<compile_context>
chip_gen: v6e
topology: v6e:2x2x1
jax: 0.10.0
libtpu: 0.0.40
codegen_flags: <defaults>
</compile_context>

<pallas_src>
import functools

import jax
import jax.numpy as jnp
from jax.experimental import pallas as pl
from jax.experimental.pallas import tpu as pltpu

IN_FEATURES = 7 * 7 * 64   # 3136
HIDDEN = 1024
OUT = 10
OUT_PAD = 128              # lane-dense padded output width (unmasked vst)
TB_MAX = 512               # max batch tile (rows per grid step), bf16 x


def _round_up(x, m):
    return ((x + m - 1) // m) * m


def _choose_tile(b):
    """Batch tile: multiple of 8, <= TB_MAX, even #steps and low pad waste."""
    if b <= TB_MAX:
        return _round_up(b, 8)
    n_steps = -(-b // TB_MAX)
    n_steps = _round_up(n_steps, 2)          # even #steps -> megacore balance
    return _round_up(-(-b // n_steps), 8)


def _resident_spec(block_shape):
    """Constant-index_map BlockSpec; single-buffered when supported."""
    ndim = len(block_shape)
    index_map = lambda i: (0,) * ndim
    if hasattr(pl, "Buffered"):
        try:
            return pl.BlockSpec(block_shape, index_map,
                                pipeline_mode=pl.Buffered(1))
        except TypeError:
            pass                              # older signature: fall through
    return pl.BlockSpec(block_shape, index_map)


def _mlp_kernel(x_ref, w1_ref, b1_ref, w2_ref, b2_ref, o_ref):
    # fc1 + ReLU: bf16 x bf16 MXU matmul, f32 accumulation.
    h = jnp.dot(x_ref[...], w1_ref[...], preferred_element_type=jnp.float32)
    h = jnp.maximum(h + b1_ref[...], 0.0)                 # (TB, 1024) f32, VPU
    # fc2 (output padded to 128 lanes so the store is a full-lane write).
    y = jnp.dot(h.astype(jnp.bfloat16), w2_ref[...],
                preferred_element_type=jnp.float32)
    o_ref[...] = (y + b2_ref[...]).astype(o_ref.dtype)     # (TB, 128)


@functools.partial(jax.jit, static_argnames=())
def net_forward(x, w1, b1, w2, b2):
    """x: (B, 3136) -> (B, 10) f32.

    w1: (3136, 1024) bf16, b1: (1, 1024) f32,
    w2: (1024, 128) bf16 (zero-padded past col 10), b2: (1, 128) f32.
    Pass x already in bf16 to avoid a standalone cast in the wrapper.
    """
    B = x.shape[0]
    if x.dtype != jnp.bfloat16:
        # Best fused into the upstream producer; kept here for convenience.
        x = x.astype(jnp.bfloat16)

    TB = _choose_tile(B)
    Bp = _round_up(B, TB)
    if Bp != B:
        x = jnp.pad(x, ((0, Bp - B), (0, 0)))  # padded rows sliced off below
    n_steps = Bp // TB

    flops = 2 * Bp * (IN_FEATURES * HIDDEN + HIDDEN * OUT_PAD)
    bytes_accessed = (Bp * IN_FEATURES * 2            # x (bf16)
                      + IN_FEATURES * HIDDEN * 2      # w1 (bf16)
                      + HIDDEN * OUT_PAD * 2          # w2 (bf16)
                      + HIDDEN * 4 + OUT_PAD * 4      # biases (f32)
                      + Bp * OUT_PAD * 4)             # out (f32)

    out_padded = pl.pallas_call(
        _mlp_kernel,
        out_shape=jax.ShapeDtypeStruct((Bp, OUT_PAD), jnp.float32),
        grid=(n_steps,),
        in_specs=[
            pl.BlockSpec((TB, IN_FEATURES), lambda i: (i, 0)),  # x tile (bf16)
            _resident_spec((IN_FEATURES, HIDDEN)),              # w1 (resident)
            _resident_spec((1, HIDDEN)),                        # b1 (resident)
            _resident_spec((HIDDEN, OUT_PAD)),                  # w2 (resident)
            _resident_spec((1, OUT_PAD)),                       # b2 (resident)
        ],
        out_specs=pl.BlockSpec((TB, OUT_PAD), lambda i: (i, 0)),
        compiler_params=pltpu.CompilerParams(
            dimension_semantics=("parallel",),      # shard batch over v7x's 2 TCs
            vmem_limit_bytes=48 << 20,              # < v7x's 64 MiB physical VMEM
        ),
        cost_estimate=pl.CostEstimate(
            flops=flops, bytes_accessed=bytes_accessed, transcendentals=0),
    )(x, w1, b1, w2, b2)

    return out_padded[:B, :OUT]


def init_params(key):
    """nn.Linear-default init U(-1/sqrt(fan_in), +1/sqrt(fan_in)).

    Weights cast to bf16 once here (not per call); fc2 weight/bias
    zero-padded to 128 output columns for lane-dense stores.
    """
    k1, k2, k3, k4 = jax.random.split(key, 4)
    bound1 = 1.0 / jnp.sqrt(jnp.float32(IN_FEATURES))
    bound2 = 1.0 / jnp.sqrt(jnp.float32(HIDDEN))
    w1 = jax.random.uniform(k1, (IN_FEATURES, HIDDEN), jnp.float32, -bound1, bound1)
    b1 = jax.random.uniform(k2, (1, HIDDEN), jnp.float32, -bound1, bound1)
    w2 = jax.random.uniform(k3, (HIDDEN, OUT), jnp.float32, -bound2, bound2)
    b2 = jax.random.uniform(k4, (1, OUT), jnp.float32, -bound2, bound2)

    w1 = w1.astype(jnp.bfloat16)
    w2 = jnp.pad(w2, ((0, 0), (0, OUT_PAD - OUT))).astype(jnp.bfloat16)
    b2 = jnp.pad(b2, ((0, 0), (0, OUT_PAD - OUT)))
    # TODO(synk): quantized-w1 path for the weight-load-bound small-B regime
    # (int8 + per-column scales on v5e/v6e, fp8-e4m3 on v7x) and cross-call
    # w1 prefetch (P10 semaphore future) for serving.
    return w1, b1, w2, b2


if __name__ == "__main__":
    key = jax.random.PRNGKey(0)
    kx, kp = jax.random.split(key)

    B = 2
    x = jax.random.normal(kx, (B, IN_FEATURES), jnp.float32)
    w1, b1, w2, b2 = init_params(kp)

    out = net_forward(x, w1, b1, w2, b2)
    out = jax.block_until_ready(out)
    assert out.shape == (B, OUT)

    # Reference in plain JAX mirroring the kernel's bf16-input / f32-accumulate math.
    w1f = w1.astype(jnp.float32)
    w2f = w2.astype(jnp.float32)[:, :OUT]
    xb = x.astype(jnp.bfloat16).astype(jnp.float32)
    h_ref = jnp.maximum(
        jnp.dot(xb, w1f, precision=jax.lax.Precision.HIGHEST) + b1, 0.0)
    ref = jnp.dot(h_ref.astype(jnp.bfloat16).astype(jnp.float32), w2f,
                  precision=jax.lax.Precision.HIGHEST) + b2[:, :OUT]

    assert jnp.allclose(out, ref, atol=1e-3, rtol=1e-3), (
        float(jnp.max(jnp.abs(out - ref))))

    print("KERNEL_OK")
</pallas_src>

<mosaic_0001>
module attributes {stable_mosaic.version = 11 : i64} {
  func.func @_mlp_kernel(%arg0: i32, %arg1: memref<8x3136xbf16, #tpu.memory_space<vmem>>, %arg2: memref<3136x1024xbf16, #tpu.memory_space<vmem>>, %arg3: memref<1x1024xf32, #tpu.memory_space<vmem>>, %arg4: memref<1024x128xbf16, #tpu.memory_space<vmem>>, %arg5: memref<1x128xf32, #tpu.memory_space<vmem>>, %arg6: memref<8x128xf32, #tpu.memory_space<vmem>>) attributes {dimension_semantics = [#tpu.dimension_semantics<parallel>], iteration_bounds = array<i64: 1>, scalar_prefetch = 0 : i64, scratch_operands = 0 : i64, tpu.core_type = #tpu.core_type<tc>, window_params = [{transform_indices = @transform_0, window_bounds = array<i64: 8, 3136>}, {pipeline_mode = #tpu.pipeline_mode<synchronous>, transform_indices = @transform_1, window_bounds = array<i64: 3136, 1024>}, {pipeline_mode = #tpu.pipeline_mode<synchronous>, transform_indices = @transform_2, window_bounds = array<i64: 1, 1024>}, {pipeline_mode = #tpu.pipeline_mode<synchronous>, transform_indices = @transform_3, window_bounds = array<i64: 1024, 128>}, {pipeline_mode = #tpu.pipeline_mode<synchronous>, transform_indices = @transform_4, window_bounds = array<i64: 1, 128>}, {transform_indices = @transform_5, window_bounds = array<i64: 8, 128>}]} {
    %c0 = arith.constant 0 : index
    %c0_0 = arith.constant 0 : index
    %0 = vector.load %arg1[%c0, %c0_0] : memref<8x3136xbf16, #tpu.memory_space<vmem>>, vector<8x3136xbf16>
    %c0_1 = arith.constant 0 : index
    %c0_2 = arith.constant 0 : index
    %1 = vector.load %arg2[%c0_1, %c0_2] : memref<3136x1024xbf16, #tpu.memory_space<vmem>>, vector<3136x1024xbf16>
    %cst = arith.constant dense<0.000000e+00> : vector<8x1024xf32>
    %2 = tpu.matmul %0, %1, %cst {dimension_numbers = #tpu.dot_dimension_numbers<[1], [0], [0], [1], [0, 0, 1, 1], [], []>} : vector<8x3136xbf16>, vector<3136x1024xbf16>, vector<8x1024xf32> -> vector<8x1024xf32>
    %c0_3 = arith.constant 0 : index
    %c0_4 = arith.constant 0 : index
    %3 = vector.load %arg3[%c0_3, %c0_4] : memref<1x1024xf32, #tpu.memory_space<vmem>>, vector<1x1024xf32>
    %4 = vector.broadcast %3 : vector<1x1024xf32> to vector<8x1024xf32>
    %5 = arith.addf %2, %4 : vector<8x1024xf32>
    %cst_5 = arith.constant 0.000000e+00 : f32
    %6 = vector.broadcast %cst_5 : f32 to vector<8x1024xf32>
    %7 = arith.maximumf %5, %6 : vector<8x1024xf32>
    %8 = arith.truncf %7 : vector<8x1024xf32> to vector<8x1024xbf16>
    %c0_6 = arith.constant 0 : index
    %c0_7 = arith.constant 0 : index
    %9 = vector.load %arg4[%c0_6, %c0_7] : memref<1024x128xbf16, #tpu.memory_space<vmem>>, vector<1024x128xbf16>
    %cst_8 = arith.constant dense<0.000000e+00> : vector<8x128xf32>
    %10 = tpu.matmul %8, %9, %cst_8 {dimension_numbers = #tpu.dot_dimension_numbers<[1], [0], [0], [1], [0, 0, 1, 1], [], []>} : vector<8x1024xbf16>, vector<1024x128xbf16>, vector<8x128xf32> -> vector<8x128xf32>
    %c0_9 = arith.constant 0 : index
    %c0_10 = arith.constant 0 : index
    %11 = vector.load %arg5[%c0_9, %c0_10] : memref<1x128xf32, #tpu.memory_space<vmem>>, vector<1x128xf32>
    %12 = vector.broadcast %11 : vector<1x128xf32> to vector<8x128xf32>
    %13 = arith.addf %10, %12 : vector<8x128xf32>
    %c0_11 = arith.constant 0 : index
    %c0_12 = arith.constant 0 : index
    %14 = vector.load %arg6[%c0_11, %c0_12] : memref<8x128xf32, #tpu.memory_space<vmem>>, vector<8x128xf32>
    tpu.vector_store %arg6[%c0_11, %c0_12], %13 {strides = array<i32>} : memref<8x128xf32, #tpu.memory_space<vmem>>, vector<8x128xf32>,
    return
  }
  func.func @transform_0(%arg0: i32) -> (i32, i32) {
    %c0_i32 = arith.constant 0 : i32
    %c0_i32_0 = arith.constant 0 : i32
    return %arg0, %c0_i32 : i32, i32
  }
  func.func @transform_1(%arg0: i32) -> (i32, i32) {
    %c0_i32 = arith.constant 0 : i32
    %c0_i32_0 = arith.constant 0 : i32
    %c0_i32_1 = arith.constant 0 : i32
    return %c0_i32, %c0_i32_0 : i32, i32
  }
  func.func @transform_2(%arg0: i32) -> (i32, i32) {
    %c0_i32 = arith.constant 0 : i32
    %c0_i32_0 = arith.constant 0 : i32
    %c0_i32_1 = arith.constant 0 : i32
    return %c0_i32, %c0_i32_0 : i32, i32
  }
  func.func @transform_3(%arg0: i32) -> (i32, i32) {
    %c0_i32 = arith.constant 0 : i32
    %c0_i32_0 = arith.constant 0 : i32
    %c0_i32_1 = arith.constant 0 : i32
    return %c0_i32, %c0_i32_0 : i32, i32
  }
  func.func @transform_4(%arg0: i32) -> (i32, i32) {
    %c0_i32 = arith.constant 0 : i32
    %c0_i32_0 = arith.constant 0 : i32
    %c0_i32_1 = arith.constant 0 : i32
    return %c0_i32, %c0_i32_0 : i32, i32
  }
  func.func @transform_5(%arg0: i32) -> (i32, i32) {
    %c0_i32 = arith.constant 0 : i32
    %c0_i32_0 = arith.constant 0 : i32
    return %arg0, %c0_i32 : i32, i32
  }
}

</mosaic_0001>

<llo_original>
// kernel: net_forward.1
$region0: #{net_forward.1}
  #allocation0 [shape = 'u32[]', space=smem, size = 0x4, offset = 0x4, fixed_abs, tag = 'smem constant byte address 0x4 - core index']
  #allocation1 [shape = 'u32[144,128]{1,0:T(1,128)}', space=vmem, size = 0x12000, scoped, tag = 'internal scratch']
  %s0 = inlined_call_operand.vmem [shape: bf16[8,3136], index: 0, kind: input, shape index: {}]
  %s1 = inlined_call_operand.hbm [shape: bf16[3136,1024], index: 1, kind: input, shape index: {}]
  %s2 = inlined_call_operand.hbm [shape: f32[1,1024], index: 2, kind: input, shape index: {}]
  %s3 = inlined_call_operand.hbm [shape: bf16[1024,128], index: 3, kind: input, shape index: {}]
  %s4 = inlined_call_operand.hbm [shape: f32[1,128], index: 4, kind: input, shape index: {}]
  %s5 = inlined_call_operand.vmem [shape: f32[8,128], index: 5, kind: output, shape index: {}]
  %s6 = sld [smem:[#allocation0]]
  $region46: #{net_forward.1} parent=0
    _
  %s8 = ssub.s32 1, %s6
  %s9 = scalar_select 0, %s8, %s6
  $region1: #{net_forward.1} parent=0
    #allocation2 [shape = 'u8[6422528]{0}', space=vmem, size = 0x620000, scoped, tag = 'input window, operand 1, single buffered']
    #allocation3 [shape = 's32[1]{0}', space=sflag, size = 0x4, scoped, tag = 'scoped memory for net_forward.1']
    #allocation4 [shape = 'u8[4096]{0}', space=vmem, size = 0x1000, scoped, tag = 'input window, operand 2, single buffered']
    #allocation5 [shape = 's32[1]{0}', space=sflag, size = 0x4, scoped, tag = 'scoped memory for net_forward.1']
    #allocation6 [shape = 'u8[262144]{0}', space=vmem, size = 0x40000, scoped, tag = 'input window, operand 3, single buffered']
    #allocation7 [shape = 'u8[512]{0}', space=vmem, size = 0x400, scoped, tag = 'input window, operand 4, single buffered']
    #allocation8 [shape = 's32[1]{0}', space=sflag, size = 0x4, scoped, tag = 'scoped memory for net_forward.1']
    %10 = vsyncpa [#allocation3], 0
    %11 = vsyncpa [#allocation5], 0
    %12 = vsyncpa [#allocation8], 0
    // Predicated region
    $region2: #{net_forward.1} parent=1 // pred_check
      _
    $region3: #{net_forward.1} parent=1 // pred_check_branch
      %14 = sbr.rel (0) target = $region5
    $region4: #{net_forward.1} parent=1 // pred_region
      _
    $region5: #{net_forward.1} parent=1 // pred_fallthru
      _
    // Predicated region
    $region6: #{net_forward.1} parent=1 // pred_check
      _
    $region7: #{net_forward.1} parent=1 // pred_check_branch
      %16 = sbr.rel (0) target = $region9
    $region8: #{net_forward.1} parent=1 // pred_region
      %s18 = ssub.s32 200704, 200704
      %19 = vsyncadd [#allocation3], %s18
      %s20 = sshll.u32 [#allocation2], 4
      %s21 = int_to_ptr.vmem [resolvable:$true] %s20
      %26 = dma.hbm_to_vmem [thread:$0]  %s1, 200704, %s21, [#allocation3], 512, 512, 32
    $region9: #{net_forward.1} parent=1 // pred_fallthru
      _
    // Predicated region
    $region10: #{net_forward.1} parent=1 // pred_check
      _
    $region11: #{net_forward.1} parent=1 // pred_check_branch
      %28 = sbr.rel (0) target = $region13
    $region12: #{net_forward.1} parent=1 // pred_region
      %s30 = ssub.s32 128, 128
      %31 = vsyncadd [#allocation5], %s30
      %s33 = sshll.u32 [#allocation4], 4
      %s34 = int_to_ptr.vmem [resolvable:$true] %s33
      %36 = dma.hbm_to_vmem [thread:$0]  %s2, 128, %s34, [#allocation5]
    $region13: #{net_forward.1} parent=1 // pred_fallthru
      _
    // Predicated region
    $region14: #{net_forward.1} parent=1 // pred_check
      _
    $region15: #{net_forward.1} parent=1 // pred_check_branch
      %38 = sbr.rel (0) target = $region17
    $region16: #{net_forward.1} parent=1 // pred_region
      %s40 = ssub.s32 8192, 8192
      %41 = vsyncadd [#allocation5], %s40
      %s42 = sshll.u32 [#allocation6], 4
      %s43 = int_to_ptr.vmem [resolvable:$true] %s42
      %48 = dma.hbm_to_vmem [thread:$0]  %s3, 8192, %s43, [#allocation5], 64, 64, 4
    $region17: #{net_forward.1} parent=1 // pred_fallthru
      _
    // Predicated region
    $region18: #{net_forward.1} parent=1 // pred_check
      _
    $region19: #{net_forward.1} parent=1 // pred_check_branch
      %50 = sbr.rel (0) target = $region21
    $region20: #{net_forward.1} parent=1 // pred_region
      %s52 = ssub.s32 16, 16
      %53 = vsyncadd [#allocation8], %s52
      %s55 = sshll.u32 [#allocation7], 4
      %s56 = int_to_ptr.vmem [resolvable:$true] %s55
      %58 = dma.hbm_to_vmem [thread:$0]  %s4, 16, %s56, [#allocation8]
    $region21: #{net_forward.1} parent=1 // pred_fallthru
      _
    // Predicated region
    $region22: #{net_forward.1} parent=1 // pred_check
      _
    $region23: #{net_forward.1} parent=1 // pred_check_branch
      %60 = sbr.rel (0) target = $region25
    $region24: #{net_forward.1} parent=1 // pred_region
      %61 = dma.done [#allocation3], 200704
    $region25: #{net_forward.1} parent=1 // pred_fallthru
      _
    // Predicated region
    $region26: #{net_forward.1} parent=1 // pred_check
      _
    $region27: #{net_forward.1} parent=1 // pred_check_branch
      %63 = sbr.rel (0) target = $region29
    $region28: #{net_forward.1} parent=1 // pred_region
      %64 = dma.done [#allocation5], 128
    $region29: #{net_forward.1} parent=1 // pred_fallthru
      _
    // Predicated region
    $region30: #{net_forward.1} parent=1 // pred_check
      _
    $region31: #{net_forward.1} parent=1 // pred_check_branch
      %66 = sbr.rel (0) target = $region33
    $region32: #{net_forward.1} parent=1 // pred_region
      %67 = dma.done [#allocation5], 8192
    $region33: #{net_forward.1} parent=1 // pred_fallthru
      _
    // Predicated region
    $region34: #{net_forward.1} parent=1 // pred_check
      _
    $region35: #{net_forward.1} parent=1 // pred_check_branch
      %69 = sbr.rel (0) target = $region37
    $region36: #{net_forward.1} parent=1 // pred_region
      %70 = dma.done [#allocation8], 16
    $region37: #{net_forward.1} parent=1 // pred_fallthru
      _
    %v72 = vld [vmem:[%s0] sm:$0xff]
    %v73 = vld [vmem:[%s0 + $0x8] sm:$0xff]
    %v74 = vld [vmem:[%s0 + $0x10] sm:$0xff]
    %v75 = vld [vmem:[%s0 + $0x18] sm:$0xff]
    %v76 = vld [vmem:[%s0 + $0x20] sm:$0xff]
    %v77 = vld [vmem:[%s0 + $0x28] sm:$0xff]
    %v78 = vld [vmem:[%s0 + $0x30] sm:$0xff]
    %v79 = vld [vmem:[%s0 + $0x38] sm:$0xff]
    %v80 = vld [vmem:[%s0 + $0x40] sm:$0xff]
    %v81 = vld [vmem:[%s0 + $0x48] sm:$0xff]
    %v82 = vld [vmem:[%s0 + $0x50] sm:$0xff]
    %v83 = vld [vmem:[%s0 + $0x58] sm:$0xff]
    %v84 = vld [vmem:[%s0 + $0x60] sm:$0xf]
    %v85 = vld [vmem:[#allocation2] sm:$0xff]
    %v86 = vld [vmem:[#allocation2 + $0x8] sm:$0xff]
    %v87 = vld [vmem:[#allocation2 + $0x10] sm:$0xff]
    %v88 = vld [vmem:[#allocation2 + $0x18] sm:$0xff]
    %v89 = vld [vmem:[#allocation2 + $0x20] sm:$0xff]
    %v90 = vld [vmem:[#allocation2 + $0x28] sm:$0xff]
    %v91 = vld [vmem:[#allocation2 + $0x30] sm:$0xff]
    %v92 = vld [vmem:[#allocation2 + $0x38] sm:$0xff]
    %v93 = vld [vmem:[#allocation2 + $0x40] sm:$0xff]
    %v94 = vld [vmem:[#allocation2 + $0x48] sm:$0xff]
    %v95 = vld [vmem:[#allocation2 + $0x50] sm:$0xff]
    %v96 = vld [vmem:[#allocation2 + $0x58] sm:$0xff]
    %v97 = vld [vmem:[#allocation2 + $0x60] sm:$0xff]
    %v98 = vld [vmem:[#allocation2 + $0x68] sm:$0xff]
    %v99 = vld [vmem:[#allocation2 + $0x70] sm:$0xff]
    %v100 = vld [vmem:[#allocation2 + $0x78] sm:$0xff]
    %v101 = vld [vmem:[#allocation2 + $0x80] sm:$0xff]
    %v102 = vld [vmem:[#allocation2 + $0x88] sm:$0xff]
    %v103 = vld [vmem:[#allocation2 + $0x90] sm:$0xff]
    %v104 = vld [vmem:[#allocation2 + $0x98] sm:$0xff]
    %v105 = vld [vmem:[#allocation2 + $0xa0] sm:$0xff]
    %v106 = vld [vmem:[#allocation2 + $0xa8] sm:$0xff]
    %v107 = vld [vmem:[#allocation2 + $0xb0] sm:$0xff]
    %v108 = vld [vmem:[#allocation2 + $0xb8] sm:$0xff]
    %v109 = vld [vmem:[#allocation2 + $0xc0] sm:$0xff]
    %v110 = vld [vmem:[#allocation2 + $0xc8] sm:$0xff]
    %v111 = vld [vmem:[#allocation2 + $0xd0] sm:$0xff]
    %v112 = vld [vmem:[#allocation2 + $0xd8] sm:$0xff]
    %v113 = vld [vmem:[#allocation2 + $0xe0] sm:$0xff]
    %v114 = vld [vmem:[#allocation2 + $0xe8] sm:$0xff]
    %v115 = vld [vmem:[#allocation2 + $0xf0] sm:$0xff]
    %v116 = vld [vmem:[#allocation2 + $0xf8] sm:$0xff]
    %v117 = vld [vmem:[#allocation2 + $0x100] sm:$0xff]
    %v118 = vld [vmem:[#allocation2 + $0x108] sm:$0xff]
    %v119 = vld [vmem:[#allocation2 + $0x110] sm:$0xff]
    %v120 = vld [vmem:[#allocation2 + $0x118] sm:$0xff]
    %v121 = vld [vmem:[#allocation2 + $0x120] sm:$0xff]
    %v122 = vld [vmem:[#allocation2 + $0x128] sm:$0xff]
    %v123 = vld [vmem:[#allocation2 + $0x130] sm:$0xff]
    %v124 = vld [vmem:[#allocation2 + $0x138] sm:$0xff]
    %v125 = vld [vmem:[#allocation2 + $0x140] sm:$0xff]
    %v126 = vld [vmem:[#allocation2 + $0x148] sm:$0xff]
    %v127 = vld [vmem:[#allocation2 + $0x150] sm:$0xff]
    %v128 = vld [vmem:[#allocation2 + $0x158] sm:$0xff]
    %v129 = vld [vmem:[#allocation2 + $0x160] sm:$0xff]
    %v130 = vld [vmem:[#allocation2 + $0x168] sm:$0xff]
    %v131 = vld [vmem:[#allocation2 + $0x170] sm:$0xff]
    %v132 = vld [vmem:[#allocation2 + $0x178] sm:$0xff]
    %v133 = vld [vmem:[#allocation2 + $0x180] sm:$0xff]
    %v134 = vld [vmem:[#allocation2 + $0x188] sm:$0xff]
    %v135 = vld [vmem:[#allocation2 + $0x190] sm:$0xff]
    %v136 = vld [vmem:[#allocation2 + $0x198] sm:$0xff]
    %v137 = vld [vmem:[#allocation2 + $0x1a0] sm:$0xff]
    %v138 = vld [vmem:[#allocation2 + $0x1a8] sm:$0xff]
    %v139 = vld [vmem:[#allocation2 + $0x1b0] sm:$0xff]
    %v140 = vld [vmem:[#allocation2 + $0x1b8] sm:$0xff]
    %v141 = vld [vmem:[#allocation2 + $0x1c0] sm:$0xff]
    %v142 = vld [vmem:[#allocation2 + $0x1c8] sm:$0xff]
    %v143 = vld [vmem:[#allocation2 + $0x1d0] sm:$0xff]
    %v144 = vld [vmem:[#allocation2 + $0x1d8] sm:$0xff]
    %v145 = vld [vmem:[#allocation2 + $0x1e0] sm:$0xff]
    %v146 = vld [vmem:[#allocation2 + $0x1e8] sm:$0xff]
    %v147 = vld [vmem:[#allocation2 + $0x1f0] sm:$0xff]
    %v148 = vld [vmem:[#allocation2 + $0x1f8] sm:$0xff]
    %v149 = vld [vmem:[#allocation2 + $0x200] sm:$0xff]
    %v150 = vld [vmem:[#allocation2 + $0x208] sm:$0xff]
    %v151 = vld [vmem:[#allocation2 + $0x210] sm:$0xff]
    %v152 = vld [vmem:[#allocation2 + $0x218] sm:$0xff]
    %v153 = vld [vmem:[#allocation2 + $0x220] sm:$0xff]
    %v154 = vld [vmem:[#allocation2 + $0x228] sm:$0xff]
    %v155 = vld [vmem:[#allocation2 + $0x230] sm:$0xff]
    %v156 = vld [vmem:[#allocation2 + $0x238] sm:$0xff]
    %v157 = vld [vmem:[#allocation2 + $0x240] sm:$0xff]
    %v158 = vld [vmem:[#allocation2 + $0x248] sm:$0xff]
    %v159 = vld [vmem:[#allocation2 + $0x250] sm:$0xff]
    %v160 = vld [vmem:[#allocation2 + $0x258] sm:$0xff]
    %v161 = vld [vmem:[#allocation2 + $0x260] sm:$0xff]
    %v162 = vld [vmem:[#allocation2 + $0x268] sm:$0xff]
    %v163 = vld [vmem:[#allocation2 + $0x270] sm:$0xff]
    %v164 = vld [vmem:[#allocation2 + $0x278] sm:$0xff]
    %v165 = vld [vmem:[#allocation2 + $0x280] sm:$0xff]
    %v166 = vld [vmem:[#allocation2 + $0x288] sm:$0xff]
    %v167 = vld [vmem:[#allocation2 + $0x290] sm:$0xff]
    %v168 = vld [vmem:[#allocation2 + $0x298] sm:$0xff]
    %v169 = vld [vmem:[#allocation2 + $0x2a0] sm:$0xff]
    %v170 = vld [vmem:[#allocation2 + $0x2a8] sm:$0xff]
    %v171 = vld [vmem:[#allocation2 + $0x2b0] sm:$0xff]
    %v172 = vld [vmem:[#allocation2 + $0x2b8] sm:$0xff]
    %v173 = vld [vmem:[#allocation2 + $0x2c0] sm:$0xff]
    %v174 = vld [vmem:[#allocation2 + $0x2c8] sm:$0xff]
    %v175 = vld [vmem:[#allocation2 + $0x2d0] sm:$0xff]
    %v176 = vld [vmem:[#allocation2 + $0x2d8] sm:$0xff]
    %v177 = vld [vmem:[#allocation2 + $0x2e0] sm:$0xff]
    %v178 = vld [vmem:[#allocation2 + $0x2e8] sm:$0xff]
    %v179 = vld [vmem:[#allocation2 + $0x2f0] sm:$0xff]
    %v180 = vld [vmem:[#allocation2 + $0x2f8] sm:$0xff]
    %v181 = vld [vmem:[#allocation2 + $0x300] sm:$0xff]
    %v182 = vld [vmem:[#allocation2 + $0x308] sm:$0xff]
    %v183 = vld [vmem:[#allocation2 + $0x310] sm:$0xff]
    %v184 = vld [vmem:[#allocation2 + $0x318] sm:$0xff]
    %v185 = vld [vmem:[#allocation2 + $0x320] sm:$0xff]
    %v186 = vld [vmem:[#allocation2 + $0x328] sm:$0xff]
    %v187 = vld [vmem:[#allocation2 + $0x330] sm:$0xff]
    %v188 = vld [vmem:[#allocation2 + $0x338] sm:$0xff]
    %v189 = vld [vmem:[#allocation2 + $0x340] sm:$0xff]
    %v190 = vld [vmem:[#allocation2 + $0x348] sm:$0xff]
    %v191 = vld [vmem:[#allocation2 + $0x350] sm:$0xff]
    %v192 = vld [vmem:[#allocation2 + $0x358] sm:$0xff]
    %v193 = vld [vmem:[#allocation2 + $0x360] sm:$0xff]
    %v194 = vld [vmem:[#allocation2 + $0x368] sm:$0xff]
    %v195 = vld [vmem:[#allocation2 + $0x370] sm:$0xff]
    %v196 = vld [vmem:[#allocation2 + $0x378] sm:$0xff]
    %v197 = vld [vmem:[#allocation2 + $0x380] sm:$0xff]
    %v198 = vld [vmem:[#allocation2 + $0x388] sm:$0xff]
    %v199 = vld [vmem:[#allocation2 + $0x390] sm:$0xff]
    %v200 = vld [vmem:[#allocation2 + $0x398] sm:$0xff]
    %v201 = vld [vmem:[#allocation2 + $0x3a0] sm:$0xff]
    %v202 = vld [vmem:[#allocation2 + $0x3a8] sm:$0xff]
    %v203 = vld [vmem:[#allocation2 + $0x3b0] sm:$0xff]
    %v204 = vld [vmem:[#allocation2 + $0x3b8] sm:$0xff]
    %v205 = vld [vmem:[#allocation2 + $0x3c0] sm:$0xff]
    %v206 = vld [vmem:[#allocation2 + $0x3c8] sm:$0xff]
    %v207 = vld [vmem:[#allocation2 + $0x3d0] sm:$0xff]
    %v208 = vld [vmem:[#allocation2 + $0x3d8] sm:$0xff]
    %v209 = vld [vmem:[#allocation2 + $0x3e0] sm:$0xff]
    %v210 = vld [vmem:[#allocation2 + $0x3e8] sm:$0xff]
    %v211 = vld [vmem:[#allocation2 + $0x3f0] sm:$0xff]
    %v212 = vld [vmem:[#allocation2 + $0x3f8] sm:$0xff]
    %v213 = vld [vmem:[#allocation2 + $0x400] sm:$0xff]
    %v214 = vld [vmem:[#allocation2 + $0x408] sm:$0xff]
    %v215 = vld [vmem:[#allocation2 + $0x410] sm:$0xff]
    %v216 = vld [vmem:[#allocation2 + $0x418] sm:$0xff]
    %v217 = vld [vmem:[#allocation2 + $0x420] sm:$0xff]
    %v218 = vld [vmem:[#allocation2 + $0x428] sm:$0xff]
    %v219 = vld [vmem:[#allocation2 + $0x430] sm:$0xff]
    %v220 = vld [vmem:[#allocation2 + $0x438] sm:$0xff]
    %v221 = vld [vmem:[#allocation2 + $0x440] sm:$0xff]
    %v222 = vld [vmem:[#allocation2 + $0x448] sm:$0xff]
    %v223 = vld [vmem:[#allocation2 + $0x450] sm:$0xff]
    %v224 = vld [vmem:[#allocation2 + $0x458] sm:$0xff]
    %v225 = vld [vmem:[#allocation2 + $0x460] sm:$0xff]
    %v226 = vld [vmem:[#allocation2 + $0x468] sm:$0xff]
    %v227 = vld [vmem:[#allocation2 + $0x470] sm:$0xff]
    %v228 = vld [vmem:[#allocation2 + $0x478] sm:$0xff]
    %v229 = vld [vmem:[#allocation2 + $0x480] sm:$0xff]
    %v230 = vld [vmem:[#allocation2 + $0x488] sm:$0xff]
    %v231 = vld [vmem:[#allocation2 + $0x490] sm:$0xff]
    %v232 = vld [vmem:[#allocation2 + $0x498] sm:$0xff]
    %v233 = vld [vmem:[#allocation2 + $0x4a0] sm:$0xff]
    %v234 = vld [vmem:[#allocation2 + $0x4a8] sm:$0xff]
    %v235 = vld [vmem:[#allocation2 + $0x4b0] sm:$0xff]
    %v236 = vld [vmem:[#allocation2 + $0x4b8] sm:$0xff]
    %v237 = vld [vmem:[#allocation2 + $0x4c0] sm:$0xff]
    %v238 = vld [vmem:[#allocation2 + $0x4c8] sm:$0xff]
    %v239 = vld [vmem:[#allocation2 + $0x4d0] sm:$0xff]
    %v240 = vld [vmem:[#allocation2 + $0x4d8] sm:$0xff]
    %v241 = vld [vmem:[#allocation2 + $0x4e0] sm:$0xff]
    %v242 = vld [vmem:[#allocation2 + $0x4e8] sm:$0xff]
    %v243 = vld [vmem:[#allocation2 + $0x4f0] sm:$0xff]
    %v244 = vld [vmem:[#allocation2 + $0x4f8] sm:$0xff]
    %v245 = vld [vmem:[#allocation2 + $0x500] sm:$0xff]
    %v246 = vld [vmem:[#allocation2 + $0x508] sm:$0xff]
    %v247 = vld [vmem:[#allocation2 + $0x510] sm:$0xff]
    %v248 = vld [vmem:[#allocation2 + $0x518] sm:$0xff]
    %v249 = vld [vmem:[#allocation2 + $0x520] sm:$0xff]
    %v250 = vld [vmem:[#allocation2 + $0x528] sm:$0xff]
    %v251 = vld [vmem:[#allocation2 + $0x530] sm:$0xff]
    %v252 = vld [vmem:[#allocation2 + $0x538] sm:$0xff]
    %v253 = vld [vmem:[#allocation2 + $0x540] sm:$0xff]
    %v254 = vld [vmem:[#allocation2 + $0x548] sm:$0xff]
    %v255 = vld [vmem:[#allocation2 + $0x550] sm:$0xff]
    %v256 = vld [vmem:[#allocation2 + $0x558] sm:$0xff]
    %v257 = vld [vmem:[#allocation2 + $0x560] sm:$0xff]
    %v258 = vld [vmem:[#allocation2 + $0x568] sm:$0xff]
    %v259 = vld [vmem:[#allocation2 + $0x570] sm:$0xff]
    %v260 = vld [vmem:[#allocation2 + $0x578] sm:$0xff]
    %v261 = vld [vmem:[#allocation2 + $0x580] sm:$0xff]
    %v262 = vld [vmem:[#allocation2 + $0x588] sm:$0xff]
    %v263 = vld [vmem:[#allocation2 + $0x590] sm:$0xff]
    %v264 = vld [vmem:[#allocation2 + $0x598] sm:$0xff]
    %v265 = vld [vmem:[#allocation2 + $0x5a0] sm:$0xff]
    %v266 = vld [vmem:[#allocation2 + $0x5a8] sm:$0xff]
    %v267 = vld [vmem:[#allocation2 + $0x5b0] sm:$0xff]
    %v268 = vld [vmem:[#allocation2 + $0x5b8] sm:$0xff]
    %v269 = vld [vmem:[#allocation2 + $0x5c0] sm:$0xff]
    %v270 = vld [vmem:[#allocation2 + $0x5c8] sm:$0xff]
    %v271 = vld [vmem:[#allocation2 + $0x5d0] sm:$0xff]
    %v272 = vld [vmem:[#allocation2 + $0x5d8] sm:$0xff]
    %v273 = vld [vmem:[#allocation2 + $0x5e0] sm:$0xff]
    %v274 = vld [vmem:[#allocation2 + $0x5e8] sm:$0xff]
    %v275 = vld [vmem:[#allocation2 + $0x5f0] sm:$0xff]
    %v276 = vld [vmem:[#allocation2 + $0x5f8] sm:$0xff]
    %v277 = vld [vmem:[#allocation2 + $0x600] sm:$0xff]
    %v278 = vld [vmem:[#allocation2 + $0x608] sm:$0xff]
    %v279 = vld [vmem:[#allocation2 + $0x610] sm:$0xff]
    %v280 = vld [vmem:[#allocation2 + $0x618] sm:$0xff]
    %v281 = vld [vmem:[#allocation2 + $0x620] sm:$0xff]
    %v282 = vld [vmem:[#allocation2 + $0x628] sm:$0xff]
    %v283 = vld [vmem:[#allocation2 + $0x630] sm:$0xff]
    %v284 = vld [vmem:[#allocation2 + $0x638] sm:$0xff]
    %v285 = vld [vmem:[#allocation2 + $0x640] sm:$0xff]
    %v286 = vld [vmem:[#allocation2 + $0x648] sm:$0xff]
    %v287 = vld [vmem:[#allocation2 + $0x650] sm:$0xff]
    %v288 = vld [vmem:[#allocation2 + $0x658] sm:$0xff]
    %v289 = vld [vmem:[#allocation2 + $0x660] sm:$0xff]
    %v290 = vld [vmem:[#allocation2 + $0x668] sm:$0xff]
    %v291 = vld [vmem:[#allocation2 + $0x670] sm:$0xff]
    %v292 = vld [vmem:[#allocation2 + $0x678] sm:$0xff]
    %v293 = vld [vmem:[#allocation2 + $0x680] sm:$0xff]
    %v294 = vld [vmem:[#allocation2 + $0x688] sm:$0xff]
    %v295 = vld [vmem:[#allocation2 + $0x690] sm:$0xff]
    %v296 = vld [vmem:[#allocation2 + $0x698] sm:$0xff]
    %v297 = vld [vmem:[#allocation2 + $0x6a0] sm:$0xff]
    %v298 = vld [vmem:[#allocation2 + $0x6a8] sm:$0xff]
    %v299 = vld [vmem:[#allocation2 + $0x6b0] sm:$0xff]
    %v300 = vld [vmem:[#allocation2 + $0x6b8] sm:$0xff]
    %v301 = vld [vmem:[#allocation2 + $0x6c0] sm:$0xff]
    %v302 = vld [vmem:[#allocation2 + $0x6c8] sm:$0xff]
    %v303 = vld [vmem:[#allocation2 + $0x6d0] sm:$0xff]
    %v304 = vld [vmem:[#allocation2 + $0x6d8] sm:$0xff]
    %v305 = vld [vmem:[#allocation2 + $0x6e0] sm:$0xff]
    %v306 = vld [vmem:[#allocation2 + $0x6e8] sm:$0xff]
    %v307 = vld [vmem:[#allocation2 + $0x6f0] sm:$0xff]
    %v308 = vld [vmem:[#allocation2 + $0x6f8] sm:$0xff]
    %v309 = vld [vmem:[#allocation2 + $0x700] sm:$0xff]
    %v310 = vld [vmem:[#allocation2 + $0x708] sm:$0xff]
    %v311 = vld [vmem:[#allocation2 + $0x710] sm:$0xff]
    %v312 = vld [vmem:[#allocation2 + $0x718] sm:$0xff]
    %v313 = vld [vmem:[#allocation2 + $0x720] sm:$0xff]
    %v314 = vld [vmem:[#allocation2 + $0x728] sm:$0xff]
    %v315 = vld [vmem:[#allocation2 + $0x730] sm:$0xff]
    %v316 = vld [vmem:[#allocation2 + $0x738] sm:$0xff]
    %v317 = vld [vmem:[#allocation2 + $0x740] sm:$0xff]
    %v318 = vld [vmem:[#allocation2 + $0x748] sm:$0xff]
    %v319 = vld [vmem:[#allocation2 + $0x750] sm:$0xff]
    %v320 = vld [vmem:[#allocation2 + $0x758] sm:$0xff]
    %v321 = vld [vmem:[#allocation2 + $0x760] sm:$0xff]
    %v322 = vld [vmem:[#allocation2 + $0x768] sm:$0xff]
    %v323 = vld [vmem:[#allocation2 + $0x770] sm:$0xff]
    %v324 = vld [vmem:[#allocation2 + $0x778] sm:$0xff]
    %v325 = vld [vmem:[#allocation2 + $0x780] sm:$0xff]
    %v326 = vld [vmem:[#allocation2 + $0x788] sm:$0xff]
    %v327 = vld [vmem:[#allocation2 + $0x790] sm:$0xff]
    %v328 = vld [vmem:[#allocation2 + $0x798] sm:$0xff]
    %v329 = vld [vmem:[#allocation2 + $0x7a0] sm:$0xff]
    %v330 = vld [vmem:[#allocation2 + $0x7a8] sm:$0xff]
    %v331 = vld [vmem:[#allocation2 + $0x7b0] sm:$0xff]
    %v332 = vld [vmem:[#allocation2 + $0x7b8] sm:$0xff]
    %v333 = vld [vmem:[#allocation2 + $0x7c0] sm:$0xff]
    %v334 = vld [vmem:[#allocation2 + $0x7c8] sm:$0xff]
    %v335 = vld [vmem:[#allocation2 + $0x7d0] sm:$0xff]
    %v336 = vld [vmem:[#allocation2 + $0x7d8] sm:$0xff]
    %v337 = vld [vmem:[#allocation2 + $0x7e0] sm:$0xff]
    %v338 = vld [vmem:[#allocation2 + $0x7e8] sm:$0xff]
    %v339 = vld [vmem:[#allocation2 + $0x7f0] sm:$0xff]
    %v340 = vld [vmem:[#allocation2 + $0x7f8] sm:$0xff]
    %v341 = vld [vmem:[#allocation2 + $0x800] sm:$0xff]
    %v342 = vld [vmem:[#allocation2 + $0x808] sm:$0xff]
    %v343 = vld [vmem:[#allocation2 + $0x810] sm:$0xff]
    %v344 = vld [vmem:[#allocation2 + $0x818] sm:$0xff]
    %v345 = vld [vmem:[#allocation2 + $0x820] sm:$0xff]
    %v346 = vld [vmem:[#allocation2 + $0x828] sm:$0xff]
    %v347 = vld [vmem:[#allocation2 + $0x830] sm:$0xff]
    %v348 = vld [vmem:[#allocation2 + $0x838] sm:$0xff]
    %v349 = vld [vmem:[#allocation2 + $0x840] sm:$0xff]
    %v350 = vld [vmem:[#allocation2 + $0x848] sm:$0xff]
    %v351 = vld [vmem:[#allocation2 + $0x850] sm:$0xff]
    %v352 = vld [vmem:[#allocation2 + $0x858] sm:$0xff]
    %v353 = vld [vmem:[#allocation2 + $0x860] sm:$0xff]
    %v354 = vld [vmem:[#allocation2 + $0x868] sm:$0xff]
    %v355 = vld [vmem:[#allocation2 + $0x870] sm:$0xff]
    %v356 = vld [vmem:[#allocation2 + $0x878] sm:$0xff]
    %v357 = vld [vmem:[#allocation2 + $0x880] sm:$0xff]
    %v358 = vld [vmem:[#allocation2 + $0x888] sm:$0xff]
    %v359 = vld [vmem:[#allocation2 + $0x890] sm:$0xff]
    %v360 = vld [vmem:[#allocation2 + $0x898] sm:$0xff]
    %v361 = vld [vmem:[#allocation2 + $0x8a0] sm:$0xff]
    %v362 = vld [vmem:[#allocation2 + $0x8a8] sm:$0xff]
    %v363 = vld [vmem:[#allocation2 + $0x8b0] sm:$0xff]
    %v364 = vld [vmem:[#allocation2 + $0x8b8] sm:$0xff]
    %v365 = vld [vmem:[#allocation2 + $0x8c0] sm:$0xff]
    %v366 = vld [vmem:[#allocation2 + $0x8c8] sm:$0xff]
    %v367 = vld [vmem:[#allocation2 + $0x8d0] sm:$0xff]
    %v368 = vld [vmem:[#allocation2 + $0x8d8] sm:$0xff]
    %v369 = vld [vmem:[#allocation2 + $0x8e0] sm:$0xff]
    %v370 = vld [vmem:[#allocation2 + $0x8e8] sm:$0xff]
    %v371 = vld [vmem:[#allocation2 + $0x8f0] sm:$0xff]
    %v372 = vld [vmem:[#allocation2 + $0x8f8] sm:$0xff]
    %v373 = vld [vmem:[#allocation2 + $0x900] sm:$0xff]
    %v374 = vld [vmem:[#allocation2 + $0x908] sm:$0xff]
    %v375 = vld [vmem:[#allocation2 + $0x910] sm:$0xff]
    %v376 = vld [vmem:[#allocation2 + $0x918] sm:$0xff]
    %v377 = vld [vmem:[#allocation2 + $0x920] sm:$0xff]
    %v378 = vld [vmem:[#allocation2 + $0x928] sm:$0xff]
    %v379 = vld [vmem:[#allocation2 + $0x930] sm:$0xff]
    %v380 = vld [vmem:[#allocation2 + $0x938] sm:$0xff]
    %v381 = vld [vmem:[#allocation2 + $0x940] sm:$0xff]
    %v382 = vld [vmem:[#allocation2 + $0x948] sm:$0xff]
    %v383 = vld [vmem:[#allocation2 + $0x950] sm:$0xff]
    %v384 = vld [vmem:[#allocation2 + $0x958] sm:$0xff]
    %v385 = vld [vmem:[#allocation2 + $0x960] sm:$0xff]
    %v386 = vld [vmem:[#allocation2 + $0x968] sm:$0xff]
    %v387 = vld [vmem:[#allocation2 + $0x970] sm:$0xff]
    %v388 = vld [vmem:[#allocation2 + $0x978] sm:$0xff]
    %v389 = vld [vmem:[#allocation2 + $0x980] sm:$0xff]
    %v390 = vld [vmem:[#allocation2 + $0x988] sm:$0xff]
    %v391 = vld [vmem:[#allocation2 + $0x990] sm:$0xff]
    %v392 = vld [vmem:[#allocation2 + $0x998] sm:$0xff]
    %v393 = vld [vmem:[#allocation2 + $0x9a0] sm:$0xff]
    %v394 = vld [vmem:[#allocation2 + $0x9a8] sm:$0xff]
    %v395 = vld [vmem:[#allocation2 + $0x9b0] sm:$0xff]
    %v396 = vld [vmem:[#allocation2 + $0x9b8] sm:$0xff]
    %v397 = vld [vmem:[#allocation2 + $0x9c0] sm:$0xff]
    %v398 = vld [vmem:[#allocation2 + $0x9c8] sm:$0xff]
    %v399 = vld [vmem:[#allocation2 + $0x9d0] sm:$0xff]
    %v400 = vld [vmem:[#allocation2 + $0x9d8] sm:$0xff]
    %v401 = vld [vmem:[#allocation2 + $0x9e0] sm:$0xff]
    %v402 = vld [vmem:[#allocation2 + $0x9e8] sm:$0xff]
    %v403 = vld [vmem:[#allocation2 + $0x9f0] sm:$0xff]
    %v404 = vld [vmem:[#allocation2 + $0x9f8] sm:$0xff]
    %v405 = vld [vmem:[#allocation2 + $0xa00] sm:$0xff]
    %v406 = vld [vmem:[#allocation2 + $0xa08] sm:$0xff]
    %v407 = vld [vmem:[#allocation2 + $0xa10] sm:$0xff]
    %v408 = vld [vmem:[#allocation2 + $0xa18] sm:$0xff]
    %v409 = vld [vmem:[#allocation2 + $0xa20] sm:$0xff]
    %v410 = vld [vmem:[#allocation2 + $0xa28] sm:$0xff]
    %v411 = vld [vmem:[#allocation2 + $0xa30] sm:$0xff]
    %v412 = vld [vmem:[#allocation2 + $0xa38] sm:$0xff]
    %v413 = vld [vmem:[#allocation2 + $0xa40] sm:$0xff]
    %v414 = vld [vmem:[#allocation2 + $0xa48] sm:$0xff]
    %v415 = vld [vmem:[#allocation2 + $0xa50] sm:$0xff]
    %v416 = vld [vmem:[#allocation2 + $0xa58] sm:$0xff]
    %v417 = vld [vmem:[#allocation2 + $0xa60] sm:$0xff]
    %v418 = vld [vmem:[#allocation2 + $0xa68] sm:$0xff]
    %v419 = vld [vmem:[#allocation2 + $0xa70] sm:$0xff]
    %v420 = vld [vmem:[#allocation2 + $0xa78] sm:$0xff]
    %v421 = vld [vmem:[#allocation2 + $0xa80] sm:$0xff]
    %v422 = vld [vmem:[#allocation2 + $0xa88] sm:$0xff]
    %v423 = vld [vmem:[#allocation2 + $0xa90] sm:$0xff]
    %v424 = vld [vmem:[#allocation2 + $0xa98] sm:$0xff]
    %v425 = vld [vmem:[#allocation2 + $0xaa0] sm:$0xff]
    %v426 = vld [vmem:[#allocation2 + $0xaa8] sm:$0xff]
    %v427 = vld [vmem:[#allocation2 + $0xab0] sm:$0xff]
    %v428 = vld [vmem:[#allocation2 + $0xab8] sm:$0xff]
    %v429 = vld [vmem:[#allocation2 + $0xac0] sm:$0xff]
    %v430 = vld [vmem:[#allocation2 + $0xac8] sm:$0xff]
    %v431 = vld [vmem:[#allocation2 + $0xad0] sm:$0xff]
    %v432 = vld [vmem:[#allocation2 + $0xad8] sm:$0xff]
    %v433 = vld [vmem:[#allocation2 + $0xae0] sm:$0xff]
    %v434 = vld [vmem:[#allocation2 + $0xae8] sm:$0xff]
    %v435 = vld [vmem:[#allocation2 + $0xaf0] sm:$0xff]
    %v436 = vld [vmem:[#allocation2 + $0xaf8] sm:$0xff]
    %v437 = vld [vmem:[#allocation2 + $0xb00] sm:$0xff]
    %v438 = vld [vmem:[#allocation2 + $0xb08] sm:$0xff]
    %v439 = vld [vmem:[#allocation2 + $0xb10] sm:$0xff]
    %v440 = vld [vmem:[#allocation2 + $0xb18] sm:$0xff]
    %v441 = vld [vmem:[#allocation2 + $0xb20] sm:$0xff]
    %v442 = vld [vmem:[#allocation2 + $0xb28] sm:$0xff]
    %v443 = vld [vmem:[#allocation2 + $0xb30] sm:$0xff]
    %v444 = vld [vmem:[#allocation2 + $0xb38] sm:$0xff]
    %v445 = vld [vmem:[#allocation2 + $0xb40] sm:$0xff]
    %v446 = vld [vmem:[#allocation2 + $0xb48] sm:$0xff]
    %v447 = vld [vmem:[#allocation2 + $0xb50] sm:$0xff]
    %v448 = vld [vmem:[#allocation2 + $0xb58] sm:$0xff]
    %v449 = vld [vmem:[#allocation2 + $0xb60] sm:$0xff]
    %v450 = vld [vmem:[#allocation2 + $0xb68] sm:$0xff]
    %v451 = vld [vmem:[#allocation2 + $0xb70] sm:$0xff]
    %v452 = vld [vmem:[#allocation2 + $0xb78] sm:$0xff]
    %v453 = vld [vmem:[#allocation2 + $0xb80] sm:$0xff]
    %v454 = vld [vmem:[#allocation2 + $0xb88] sm:$0xff]
    %v455 = vld [vmem:[#allocation2 + $0xb90] sm:$0xff]
    %v456 = vld [vmem:[#allocation2 + $0xb98] sm:$0xff]
    %v457 = vld [vmem:[#allocation2 + $0xba0] sm:$0xff]
    %v458 = vld [vmem:[#allocation2 + $0xba8] sm:$0xff]
    %v459 = vld [vmem:[#allocation2 + $0xbb0] sm:$0xff]
    %v460 = vld [vmem:[#allocation2 + $0xbb8] sm:$0xff]
    %v461 = vld [vmem:[#allocation2 + $0xbc0] sm:$0xff]
    %v462 = vld [vmem:[#allocation2 + $0xbc8] sm:$0xff]
    %v463 = vld [vmem:[#allocation2 + $0xbd0] sm:$0xff]
    %v464 = vld [vmem:[#allocation2 + $0xbd8] sm:$0xff]
    %v465 = vld [vmem:[#allocation2 + $0xbe0] sm:$0xff]
    %v466 = vld [vmem:[#allocation2 + $0xbe8] sm:$0xff]
    %v467 = vld [vmem:[#allocation2 + $0xbf0] sm:$0xff]
    %v468 = vld [vmem:[#allocation2 + $0xbf8] sm:$0xff]
    %v469 = vld [vmem:[#allocation2 + $0xc00] sm:$0xff]
    %v470 = vld [vmem:[#allocation2 + $0xc08] sm:$0xff]
    %v471 = vld [vmem:[#allocation2 + $0xc10] sm:$0xff]
    %v472 = vld [vmem:[#allocation2 + $0xc18] sm:$0xff]
    %v473 = vld [vmem:[#allocation2 + $0xc20] sm:$0xff]
    %v474 = vld [vmem:[#allocation2 + $0xc28] sm:$0xff]
    %v475 = vld [vmem:[#allocation2 + $0xc30] sm:$0xff]
    %v476 = vld [vmem:[#allocation2 + $0xc38] sm:$0xff]
    %v477 = vld [vmem:[#allocation2 + $0xc40] sm:$0xff]
    %v478 = vld [vmem:[#allocation2 + $0xc48] sm:$0xff]
    %v479 = vld [vmem:[#allocation2 + $0xc50] sm:$0xff]
    %v480 = vld [vmem:[#allocation2 + $0xc58] sm:$0xff]
    %v481 = vld [vmem:[#allocation2 + $0xc60] sm:$0xff]
    %v482 = vld [vmem:[#allocation2 + $0xc68] sm:$0xff]
    %v483 = vld [vmem:[#allocation2 + $0xc70] sm:$0xff]
    %v484 = vld [vmem:[#allocation2 + $0xc78] sm:$0xff]
    %v485 = vld [vmem:[#allocation2 + $0xc80] sm:$0xff]
    %v486 = vld [vmem:[#allocation2 + $0xc88] sm:$0xff]
    %v487 = vld [vmem:[#allocation2 + $0xc90] sm:$0xff]
    %v488 = vld [vmem:[#allocation2 + $0xc98] sm:$0xff]
    %v489 = vld [vmem:[#allocation2 + $0xca0] sm:$0xff]
    %v490 = vld [vmem:[#allocation2 + $0xca8] sm:$0xff]
    %v491 = vld [vmem:[#allocation2 + $0xcb0] sm:$0xff]
    %v492 = vld [vmem:[#allocation2 + $0xcb8] sm:$0xff]
    %v493 = vld [vmem:[#allocation2 + $0xcc0] sm:$0xff]
    %v494 = vld [vmem:[#allocation2 + $0xcc8] sm:$0xff]
    %v495 = vld [vmem:[#allocation2 + $0xcd0] sm:$0xff]
    %v496 = vld [vmem:[#allocation2 + $0xcd8] sm:$0xff]
    %v497 = vld [vmem:[#allocation2 + $0xce0] sm:$0xff]
    %v498 = vld [vmem:[#allocation2 + $0xce8] sm:$0xff]
    %v499 = vld [vmem:[#allocation2 + $0xcf0] sm:$0xff]
    %v500 = vld [vmem:[#allocation2 + $0xcf8] sm:$0xff]
    %v501 = vld [vmem:[#allocation2 + $0xd00] sm:$0xff]
    %v502 = vld [vmem:[#allocation2 + $0xd08] sm:$0xff]
    %v503 = vld [vmem:[#allocation2 + $0xd10] sm:$0xff]
    %v504 = vld [vmem:[#allocation2 + $0xd18] sm:$0xff]
    %v505 = vld [vmem:[#allocation2 + $0xd20] sm:$0xff]
    %v506 = vld [vmem:[#allocation2 + $0xd28] sm:$0xff]
    %v507 = vld [vmem:[#allocation2 + $0xd30] sm:$0xff]
    %v508 = vld [vmem:[#allocation2 + $0xd38] sm:$0xff]
    %v509 = vld [vmem:[#allocation2 + $0xd40] sm:$0xff]
    %v510 = vld [vmem:[#allocation2 + $0xd48] sm:$0xff]
    %v511 = vld [vmem:[#allocation2 + $0xd50] sm:$0xff]
    %v512 = vld [vmem:[#allocation2 + $0xd58] sm:$0xff]
    %v513 = vld [vmem:[#allocation2 + $0xd60] sm:$0xff]
    %v514 = vld [vmem:[#allocation2 + $0xd68] sm:$0xff]
    %v515 = vld [vmem:[#allocation2 + $0xd70] sm:$0xff]
    %v516 = vld [vmem:[#allocation2 + $0xd78] sm:$0xff]
    %v517 = vld [vmem:[#allocation2 + $0xd80] sm:$0xff]
    %v518 = vld [vmem:[#allocation2 + $0xd88] sm:$0xff]
    %v519 = vld [vmem:[#allocation2 + $0xd90] sm:$0xff]
    %v520 = vld [vmem:[#allocation2 + $0xd98] sm:$0xff]
    %v521 = vld [vmem:[#allocation2 + $0xda0] sm:$0xff]
    %v522 = vld [vmem:[#allocation2 + $0xda8] sm:$0xff]
    %v523 = vld [vmem:[#allocation2 + $0xdb0] sm:$0xff]
    %v524 = vld [vmem:[#allocation2 + $0xdb8] sm:$0xff]
    %v525 = vld [vmem:[#allocation2 + $0xdc0] sm:$0xff]
    %v526 = vld [vmem:[#allocation2 + $0xdc8] sm:$0xff]
    %v527 = vld [vmem:[#allocation2 + $0xdd0] sm:$0xff]
    %v528 = vld [vmem:[#allocation2 + $0xdd8] sm:$0xff]
    %v529 = vld [vmem:[#allocation2 + $0xde0] sm:$0xff]
    %v530 = vld [vmem:[#allocation2 + $0xde8] sm:$0xff]
    %v531 = vld [vmem:[#allocation2 + $0xdf0] sm:$0xff]
    %v532 = vld [vmem:[#allocation2 + $0xdf8] sm:$0xff]
    %v533 = vld [vmem:[#allocation2 + $0xe00] sm:$0xff]
    %v534 = vld [vmem:[#allocation2 + $0xe08] sm:$0xff]
    %v535 = vld [vmem:[#allocation2 + $0xe10] sm:$0xff]
    %v536 = vld [vmem:[#allocation2 + $0xe18] sm:$0xff]
    %v537 = vld [vmem:[#allocation2 + $0xe20] sm:$0xff]
    %v538 = vld [vmem:[#allocation2 + $0xe28] sm:$0xff]
    %v539 = vld [vmem:[#allocation2 + $0xe30] sm:$0xff]
    %v540 = vld [vmem:[#allocation2 + $0xe38] sm:$0xff]
    %v541 = vld [vmem:[#allocation2 + $0xe40] sm:$0xff]
    %v542 = vld [vmem:[#allocation2 + $0xe48] sm:$0xff]
    %v543 = vld [vmem:[#allocation2 + $0xe50] sm:$0xff]
    %v544 = vld [vmem:[#allocation2 + $0xe58] sm:$0xff]
    %v545 = vld [vmem:[#allocation2 + $0xe60] sm:$0xff]
    %v546 = vld [vmem:[#allocation2 + $0xe68] sm:$0xff]
    %v547 = vld [vmem:[#allocation2 + $0xe70] sm:$0xff]
    %v548 = vld [vmem:[#allocation2 + $0xe78] sm:$0xff]
    %v549 = vld [vmem:[#allocation2 + $0xe80] sm:$0xff]
    %v550 = vld [vmem:[#allocation2 + $0xe88] sm:$0xff]
    %v551 = vld [vmem:[#allocation2 + $0xe90] sm:$0xff]
    %v552 = vld [vmem:[#allocation2 + $0xe98] sm:$0xff]
    %v553 = vld [vmem:[#allocation2 + $0xea0] sm:$0xff]
    %v554 = vld [vmem:[#allocation2 + $0xea8] sm:$0xff]
    %v555 = vld [vmem:[#allocation2 + $0xeb0] sm:$0xff]
    %v556 = vld [vmem:[#allocation2 + $0xeb8] sm:$0xff]
    %v557 = vld [vmem:[#allocation2 + $0xec0] sm:$0xff]
    %v558 = vld [vmem:[#allocation2 + $0xec8] sm:$0xff]
    %v559 = vld [vmem:[#allocation2 + $0xed0] sm:$0xff]
    %v560 = vld [vmem:[#allocation2 + $0xed8] sm:$0xff]
    %v561 = vld [vmem:[#allocation2 + $0xee0] sm:$0xff]
    %v562 = vld [vmem:[#allocation2 + $0xee8] sm:$0xff]
    %v563 = vld [vmem:[#allocation2 + $0xef0] sm:$0xff]
    %v564 = vld [vmem:[#allocation2 + $0xef8] sm:$0xff]
    %v565 = vld [vmem:[#allocation2 + $0xf00] sm:$0xff]
    %v566 = vld [vmem:[#allocation2 + $0xf08] sm:$0xff]
    %v567 = vld [vmem:[#allocation2 + $0xf10] sm:$0xff]
    %v568 = vld [vmem:[#allocation2 + $0xf18] sm:$0xff]
    %v569 = vld [vmem:[#allocation2 + $0xf20] sm:$0xff]
    %v570 = vld [vmem:[#allocation2 + $0xf28] sm:$0xff]
    %v571 = vld [vmem:[#allocation2 + $0xf30] sm:$0xff]
    %v572 = vld [vmem:[#allocation2 + $0xf38] sm:$0xff]
    %v573 = vld [vmem:[#allocation2 + $0xf40] sm:$0xff]
    %v574 = vld [vmem:[#allocation2 + $0xf48] sm:$0xff]
    %v575 = vld [vmem:[#allocation2 + $0xf50] sm:$0xff]
    %v576 = vld [vmem:[#allocation2 + $0xf58] sm:$0xff]
    %v577 = vld [vmem:[#allocation2 + $0xf60] sm:$0xff]
    %v578 = vld [vmem:[#allocation2 + $0xf68] sm:$0xff]
    %v579 = vld [vmem:[#allocation2 + $0xf70] sm:$0xff]
    %v580 = vld [vmem:[#allocation2 + $0xf78] sm:$0xff]
    %v581 = vld [vmem:[#allocation2 + $0xf80] sm:$0xff]
    %v582 = vld [vmem:[#allocation2 + $0xf88] sm:$0xff]
    %v583 = vld [vmem:[#allocation2 + $0xf90] sm:$0xff]
    %v584 = vld [vmem:[#allocation2 + $0xf98] sm:$0xff]
    %v585 = vld [vmem:[#allocation2 + $0xfa0] sm:$0xff]
    %v586 = vld [vmem:[#allocation2 + $0xfa8] sm:$0xff]
    %v587 = vld [vmem:[#allocation2 + $0xfb0] sm:$0xff]
    %v588 = vld [vmem:[#allocation2 + $0xfb8] sm:$0xff]
    %v589 = vld [vmem:[#allocation2 + $0xfc0] sm:$0xff]
    %v590 = vld [vmem:[#allocation2 + $0xfc8] sm:$0xff]
    %v591 = vld [vmem:[#allocation2 + $0xfd0] sm:$0xff]
    %v592 = vld [vmem:[#allocation2 + $0xfd8] sm:$0xff]
    %v593 = vld [vmem:[#allocation2 + $0xfe0] sm:$0xff]
    %v594 = vld [vmem:[#allocation2 + $0xfe8] sm:$0xff]
    %v595 = vld [vmem:[#allocation2 + $0xff0] sm:$0xff]
    %v596 = vld [vmem:[#allocation2 + $0xff8] sm:$0xff]
    %v597 = vld [vmem:[#allocation2 + $0x1000] sm:$0xff]
    %v598 = vld [vmem:[#allocation2 + $0x1008] sm:$0xff]
    %v599 = vld [vmem:[#allocation2 + $0x1010] sm:$0xff]
    %v600 = vld [vmem:[#allocation2 + $0x1018] sm:$0xff]
    %v601 = vld [vmem:[#allocation2 + $0x1020] sm:$0xff]
    %v602 = vld [vmem:[#allocation2 + $0x1028] sm:$0xff]
    %v603 = vld [vmem:[#allocation2 + $0x1030] sm:$0xff]
    %v604 = vld [vmem:[#allocation2 + $0x1038] sm:$0xff]
    %v605 = vld [vmem:[#allocation2 + $0x1040] sm:$0xff]
    %v606 = vld [vmem:[#allocation2 + $0x1048] sm:$0xff]
    %v607 = vld [vmem:[#allocation2 + $0x1050] sm:$0xff]
    %v608 = vld [vmem:[#allocation2 + $0x1058] sm:$0xff]
    %v609 = vld [vmem:[#allocation2 + $0x1060] sm:$0xff]
    %v610 = vld [vmem:[#allocation2 + $0x1068] sm:$0xff]
    %v611 = vld [vmem:[#allocation2 + $0x1070] sm:$0xff]
    %v612 = vld [vmem:[#allocation2 + $0x1078] sm:$0xff]
    %v613 = vld [vmem:[#allocation2 + $0x1080] sm:$0xff]
    %v614 = vld [vmem:[#allocation2 + $0x1088] sm:$0xff]
    %v615 = vld [vmem:[#allocation2 + $0x1090] sm:$0xff]
    %v616 = vld [vmem:[#allocation2 + $0x1098] sm:$0xff]
    %v617 = vld [vmem:[#allocation2 + $0x10a0] sm:$0xff]
    %v618 = vld [vmem:[#allocation2 + $0x10a8] sm:$0xff]
    %v619 = vld [vmem:[#allocation2 + $0x10b0] sm:$0xff]
    %v620 = vld [vmem:[#allocation2 + $0x10b8] sm:$0xff]
    %v621 = vld [vmem:[#allocation2 + $0x10c0] sm:$0xff]
    %v622 = vld [vmem:[#allocation2 + $0x10c8] sm:$0xff]
    %v623 = vld [vmem:[#allocation2 + $0x10d0] sm:$0xff]
    %v624 = vld [vmem:[#allocation2 + $0x10d8] sm:$0xff]
    %v625 = vld [vmem:[#allocation2 + $0x10e0] sm:$0xff]
    %v626 = vld [vmem:[#allocation2 + $0x10e8] sm:$0xff]
    %v627 = vld [vmem:[#allocation2 + $0x10f0] sm:$0xff]
    %v628 = vld [vmem:[#allocation2 + $0x10f8] sm:$0xff]
    %v629 = vld [vmem:[#allocation2 + $0x1100] sm:$0xff]
    %v630 = vld [vmem:[#allocation2 + $0x1108] sm:$0xff]
    %v631 = vld [vmem:[#allocation2 + $0x1110] sm:$0xff]
    %v632 = vld [vmem:[#allocation2 + $0x1118] sm:$0xff]
    %v633 = vld [vmem:[#allocation2 + $0x1120] sm:$0xff]
    %v634 = vld [vmem:[#allocation2 + $0x1128] sm:$0xff]
    %v635 = vld [vmem:[#allocation2 + $0x1130] sm:$0xff]
    %v636 = vld [vmem:[#allocation2 + $0x1138] sm:$0xff]
    %v637 = vld [vmem:[#allocation2 + $0x1140] sm:$0xff]
    %v638 = vld [vmem:[#allocation2 + $0x1148] sm:$0xff]
    %v639 = vld [vmem:[#allocation2 + $0x1150] sm:$0xff]
    %v640 = vld [vmem:[#allocation2 + $0x1158] sm:$0xff]
    %v641 = vld [vmem:[#allocation2 + $0x1160] sm:$0xff]
    %v642 = vld [vmem:[#allocation2 + $0x1168] sm:$0xff]
    %v643 = vld [vmem:[#allocation2 + $0x1170] sm:$0xff]
    %v644 = vld [vmem:[#allocation2 + $0x1178] sm:$0xff]
    %v645 = vld [vmem:[#allocation2 + $0x1180] sm:$0xff]
    %v646 = vld [vmem:[#allocation2 + $0x1188] sm:$0xff]
    %v647 = vld [vmem:[#allocation2 + $0x1190] sm:$0xff]
    %v648 = vld [vmem:[#allocation2 + $0x1198] sm:$0xff]
    %v649 = vld [vmem:[#allocation2 + $0x11a0] sm:$0xff]
    %v650 = vld [vmem:[#allocation2 + $0x11a8] sm:$0xff]
    %v651 = vld [vmem:[#allocation2 + $0x11b0] sm:$0xff]
    %v652 = vld [vmem:[#allocation2 + $0x11b8] sm:$0xff]
    %v653 = vld [vmem:[#allocation2 + $0x11c0] sm:$0xff]
    %v654 = vld [vmem:[#allocation2 + $0x11c8] sm:$0xff]
    %v655 = vld [vmem:[#allocation2 + $0x11d0] sm:$0xff]
    %v656 = vld [vmem:[#allocation2 + $0x11d8] sm:$0xff]
    %v657 = vld [vmem:[#allocation2 + $0x11e0] sm:$0xff]
    %v658 = vld [vmem:[#allocation2 + $0x11e8] sm:$0xff]
    %v659 = vld [vmem:[#allocation2 + $0x11f0] sm:$0xff]
    %v660 = vld [vmem:[#allocation2 + $0x11f8] sm:$0xff]
    %v661 = vld [vmem:[#allocation2 + $0x1200] sm:$0xff]
    %v662 = vld [vmem:[#allocation2 + $0x1208] sm:$0xff]
    %v663 = vld [vmem:[#allocation2 + $0x1210] sm:$0xff]
    %v664 = vld [vmem:[#allocation2 + $0x1218] sm:$0xff]
    %v665 = vld [vmem:[#allocation2 + $0x1220] sm:$0xff]
    %v666 = vld [vmem:[#allocation2 + $0x1228] sm:$0xff]
    %v667 = vld [vmem:[#allocation2 + $0x1230] sm:$0xff]
    %v668 = vld [vmem:[#allocation2 + $0x1238] sm:$0xff]
    %v669 = vld [vmem:[#allocation2 + $0x1240] sm:$0xff]
    %v670 = vld [vmem:[#allocation2 + $0x1248] sm:$0xff]
    %v671 = vld [vmem:[#allocation2 + $0x1250] sm:$0xff]
    %v672 = vld [vmem:[#allocation2 + $0x1258] sm:$0xff]
    %v673 = vld [vmem:[#allocation2 + $0x1260] sm:$0xff]
    %v674 = vld [vmem:[#allocation2 + $0x1268] sm:$0xff]
    %v675 = vld [vmem:[#allocation2 + $0x1270] sm:$0xff]
    %v676 = vld [vmem:[#allocation2 + $0x1278] sm:$0xff]
    %v677 = vld [vmem:[#allocation2 + $0x1280] sm:$0xff]
    %v678 = vld [vmem:[#allocation2 + $0x1288] sm:$0xff]
    %v679 = vld [vmem:[#allocation2 + $0x1290] sm:$0xff]
    %v680 = vld [vmem:[#allocation2 + $0x1298] sm:$0xff]
    %v681 = vld [vmem:[#allocation2 + $0x12a0] sm:$0xff]
    %v682 = vld [vmem:[#allocation2 + $0x12a8] sm:$0xff]
    %v683 = vld [vmem:[#allocation2 + $0x12b0] sm:$0xff]
    %v684 = vld [vmem:[#allocation2 + $0x12b8] sm:$0xff]
    %v685 = vld [vmem:[#allocation2 + $0x12c0] sm:$0xff]
    %v686 = vld [vmem:[#allocation2 + $0x12c8] sm:$0xff]
    %v687 = vld [vmem:[#allocation2 + $0x12d0] sm:$0xff]
    %v688 = vld [vmem:[#allocation2 + $0x12d8] sm:$0xff]
    %v689 = vld [vmem:[#allocation2 + $0x12e0] sm:$0xff]
    %v690 = vld [vmem:[#allocation2 + $0x12e8] sm:$0xff]
    %v691 = vld [vmem:[#allocation2 + $0x12f0] sm:$0xff]
    %v692 = vld [vmem:[#allocation2 + $0x12f8] sm:$0xff]
    %v693 = vld [vmem:[#allocation2 + $0x1300] sm:$0xff]
    %v694 = vld [vmem:[#allocation2 + $0x1308] sm:$0xff]
    %v695 = vld [vmem:[#allocation2 + $0x1310] sm:$0xff]
    %v696 = vld [vmem:[#allocation2 + $0x1318] sm:$0xff]
    %v697 = vld [vmem:[#allocation2 + $0x1320] sm:$0xff]
    %v698 = vld [vmem:[#allocation2 + $0x1328] sm:$0xff]
    %v699 = vld [vmem:[#allocation2 + $0x1330] sm:$0xff]
    %v700 = vld [vmem:[#allocation2 + $0x1338] sm:$0xff]
    %v701 = vld [vmem:[#allocation2 + $0x1340] sm:$0xff]
    %v702 = vld [vmem:[#allocation2 + $0x1348] sm:$0xff]
    %v703 = vld [vmem:[#allocation2 + $0x1350] sm:$0xff]
    %v704 = vld [vmem:[#allocation2 + $0x1358] sm:$0xff]
    %v705 = vld [vmem:[#allocation2 + $0x1360] sm:$0xff]
    %v706 = vld [vmem:[#allocation2 + $0x1368] sm:$0xff]
    %v707 = vld [vmem:[#allocation2 + $0x1370] sm:$0xff]
    %v708 = vld [vmem:[#allocation2 + $0x1378] sm:$0xff]
    %v709 = vld [vmem:[#allocation2 + $0x1380] sm:$0xff]
    %v710 = vld [vmem:[#allocation2 + $0x1388] sm:$0xff]
    %v711 = vld [vmem:[#allocation2 + $0x1390] sm:$0xff]
    %v712 = vld [vmem:[#allocation2 + $0x1398] sm:$0xff]
    %v713 = vld [vmem:[#allocation2 + $0x13a0] sm:$0xff]
    %v714 = vld [vmem:[#allocation2 + $0x13a8] sm:$0xff]
    %v715 = vld [vmem:[#allocation2 + $0x13b0] sm:$0xff]
    %v716 = vld [vmem:[#allocation2 + $0x13b8] sm:$0xff]
    %v717 = vld [vmem:[#allocation2 + $0x13c0] sm:$0xff]
    %v718 = vld [vmem:[#allocation2 + $0x13c8] sm:$0xff]
    %v719 = vld [vmem:[#allocation2 + $0x13d0] sm:$0xff]
    %v720 = vld [vmem:[#allocation2 + $0x13d8] sm:$0xff]
    %v721 = vld [vmem:[#allocation2 + $0x13e0] sm:$0xff]
    %v722 = vld [vmem:[#allocation2 + $0x13e8] sm:$0xff]
    %v723 = vld [vmem:[#allocation2 + $0x13f0] sm:$0xff]
    %v724 = vld [vmem:[#allocation2 + $0x13f8] sm:$0xff]
    %v725 = vld [vmem:[#allocation2 + $0x1400] sm:$0xff]
    %v726 = vld [vmem:[#allocation2 + $0x1408] sm:$0xff]
    %v727 = vld [vmem:[#allocation2 + $0x1410] sm:$0xff]
    %v728 = vld [vmem:[#allocation2 + $0x1418] sm:$0xff]
    %v729 = vld [vmem:[#allocation2 + $0x1420] sm:$0xff]
    %v730 = vld [vmem:[#allocation2 + $0x1428] sm:$0xff]
    %v731 = vld [vmem:[#allocation2 + $0x1430] sm:$0xff]
    %v732 = vld [vmem:[#allocation2 + $0x1438] sm:$0xff]
    %v733 = vld [vmem:[#allocation2 + $0x1440] sm:$0xff]
    %v734 = vld [vmem:[#allocation2 + $0x1448] sm:$0xff]
    %v735 = vld [vmem:[#allocation2 + $0x1450] sm:$0xff]
    %v736 = vld [vmem:[#allocation2 + $0x1458] sm:$0xff]
    %v737 = vld [vmem:[#allocation2 + $0x1460] sm:$0xff]
    %v738 = vld [vmem:[#allocation2 + $0x1468] sm:$0xff]
    %v739 = vld [vmem:[#allocation2 + $0x1470] sm:$0xff]
    %v740 = vld [vmem:[#allocation2 + $0x1478] sm:$0xff]
    %v741 = vld [vmem:[#allocation2 + $0x1480] sm:$0xff]
    %v742 = vld [vmem:[#allocation2 + $0x1488] sm:$0xff]
    %v743 = vld [vmem:[#allocation2 + $0x1490] sm:$0xff]
    %v744 = vld [vmem:[#allocation2 + $0x1498] sm:$0xff]
    %v745 = vld [vmem:[#allocation2 + $0x14a0] sm:$0xff]
    %v746 = vld [vmem:[#allocation2 + $0x14a8] sm:$0xff]
    %v747 = vld [vmem:[#allocation2 + $0x14b0] sm:$0xff]
    %v748 = vld [vmem:[#allocation2 + $0x14b8] sm:$0xff]
    %v749 = vld [vmem:[#allocation2 + $0x14c0] sm:$0xff]
    %v750 = vld [vmem:[#allocation2 + $0x14c8] sm:$0xff]
    %v751 = vld [vmem:[#allocation2 + $0x14d0] sm:$0xff]
    %v752 = vld [vmem:[#allocation2 + $0x14d8] sm:$0xff]
    %v753 = vld [vmem:[#allocation2 + $0x14e0] sm:$0xff]
    %v754 = vld [vmem:[#allocation2 + $0x14e8] sm:$0xff]
    %v755 = vld [vmem:[#allocation2 + $0x14f0] sm:$0xff]
    %v756 = vld [vmem:[#allocation2 + $0x14f8] sm:$0xff]
    %v757 = vld [vmem:[#allocation2 + $0x1500] sm:$0xff]
    %v758 = vld [vmem:[#allocation2 + $0x1508] sm:$0xff]
    %v759 = vld [vmem:[#allocation2 + $0x1510] sm:$0xff]
    %v760 = vld [vmem:[#allocation2 + $0x1518] sm:$0xff]
    %v761 = vld [vmem:[#allocation2 + $0x1520] sm:$0xff]
    %v762 = vld [vmem:[#allocation2 + $0x1528] sm:$0xff]
    %v763 = vld [vmem:[#allocation2 + $0x1530] sm:$0xff]
    %v764 = vld [vmem:[#allocation2 + $0x1538] sm:$0xff]
    %v765 = vld [vmem:[#allocation2 + $0x1540] sm:$0xff]
    %v766 = vld [vmem:[#allocation2 + $0x1548] sm:$0xff]
    %v767 = vld [vmem:[#allocation2 + $0x1550] sm:$0xff]
    %v768 = vld [vmem:[#allocation2 + $0x1558] sm:$0xff]
    %v769 = vld [vmem:[#allocation2 + $0x1560] sm:$0xff]
    %v770 = vld [vmem:[#allocation2 + $0x1568] sm:$0xff]
    %v771 = vld [vmem:[#allocation2 + $0x1570] sm:$0xff]
    %v772 = vld [vmem:[#allocation2 + $0x1578] sm:$0xff]
    %v773 = vld [vmem:[#allocation2 + $0x1580] sm:$0xff]
    %v774 = vld [vmem:[#allocation2 + $0x1588] sm:$0xff]
    %v775 = vld [vmem:[#allocation2 + $0x1590] sm:$0xff]
    %v776 = vld [vmem:[#allocation2 + $0x1598] sm:$0xff]
    %v777 = vld [vmem:[#allocation2 + $0x15a0] sm:$0xff]
    %v778 = vld [vmem:[#allocation2 + $0x15a8] sm:$0xff]
    %v779 = vld [vmem:[#allocation2 + $0x15b0] sm:$0xff]
    %v780 = vld [vmem:[#allocation2 + $0x15b8] sm:$0xff]
    %v781 = vld [vmem:[#allocation2 + $0x15c0] sm:$0xff]
    %v782 = vld [vmem:[#allocation2 + $0x15c8] sm:$0xff]
    %v783 = vld [vmem:[#allocation2 + $0x15d0] sm:$0xff]
    %v784 = vld [vmem:[#allocation2 + $0x15d8] sm:$0xff]
    %v785 = vld [vmem:[#allocation2 + $0x15e0] sm:$0xff]
    %v786 = vld [vmem:[#allocation2 + $0x15e8] sm:$0xff]
    %v787 = vld [vmem:[#allocation2 + $0x15f0] sm:$0xff]
    %v788 = vld [vmem:[#allocation2 + $0x15f8] sm:$0xff]
    %v789 = vld [vmem:[#allocation2 + $0x1600] sm:$0xff]
    %v790 = vld [vmem:[#allocation2 + $0x1608] sm:$0xff]
    %v791 = vld [vmem:[#allocation2 + $0x1610] sm:$0xff]
    %v792 = vld [vmem:[#allocation2 + $0x1618] sm:$0xff]
    %v793 = vld [vmem:[#allocation2 + $0x1620] sm:$0xff]
    %v794 = vld [vmem:[#allocation2 + $0x1628] sm:$0xff]
    %v795 = vld [vmem:[#allocation2 + $0x1630] sm:$0xff]
    %v796 = vld [vmem:[#allocation2 + $0x1638] sm:$0xff]
    %v797 = vld [vmem:[#allocation2 + $0x1640] sm:$0xff]
    %v798 = vld [vmem:[#allocation2 + $0x1648] sm:$0xff]
    %v799 = vld [vmem:[#allocation2 + $0x1650] sm:$0xff]
    %v800 = vld [vmem:[#allocation2 + $0x1658] sm:$0xff]
    %v801 = vld [vmem:[#allocation2 + $0x1660] sm:$0xff]
    %v802 = vld [vmem:[#allocation2 + $0x1668] sm:$0xff]
    %v803 = vld [vmem:[#allocation2 + $0x1670] sm:$0xff]
    %v804 = vld [vmem:[#allocation2 + $0x1678] sm:$0xff]
    %v805 = vld [vmem:[#allocation2 + $0x1680] sm:$0xff]
    %v806 = vld [vmem:[#allocation2 + $0x1688] sm:$0xff]
    %v807 = vld [vmem:[#allocation2 + $0x1690] sm:$0xff]
    %v808 = vld [vmem:[#allocation2 + $0x1698] sm:$0xff]
    %v809 = vld [vmem:[#allocation2 + $0x16a0] sm:$0xff]
    %v810 = vld [vmem:[#allocation2 + $0x16a8] sm:$0xff]
    %v811 = vld [vmem:[#allocation2 + $0x16b0] sm:$0xff]
    %v812 = vld [vmem:[#allocation2 + $0x16b8] sm:$0xff]
    %v813 = vld [vmem:[#allocation2 + $0x16c0] sm:$0xff]
    %v814 = vld [vmem:[#allocation2 + $0x16c8] sm:$0xff]
    %v815 = vld [vmem:[#allocation2 + $0x16d0] sm:$0xff]
    %v816 = vld [vmem:[#allocation2 + $0x16d8] sm:$0xff]
    %v817 = vld [vmem:[#allocation2 + $0x16e0] sm:$0xff]
    %v818 = vld [vmem:[#allocation2 + $0x16e8] sm:$0xff]
    %v819 = vld [vmem:[#allocation2 + $0x16f0] sm:$0xff]
    %v820 = vld [vmem:[#allocation2 + $0x16f8] sm:$0xff]
    %v821 = vld [vmem:[#allocation2 + $0x1700] sm:$0xff]
    %v822 = vld [vmem:[#allocation2 + $0x1708] sm:$0xff]
    %v823 = vld [vmem:[#allocation2 + $0x1710] sm:$0xff]
    %v824 = vld [vmem:[#allocation2 + $0x1718] sm:$0xff]
    %v825 = vld [vmem:[#allocation2 + $0x1720] sm:$0xff]
    %v826 = vld [vmem:[#allocation2 + $0x1728] sm:$0xff]
    %v827 = vld [vmem:[#allocation2 + $0x1730] sm:$0xff]
    %v828 = vld [vmem:[#allocation2 + $0x1738] sm:$0xff]
    %v829 = vld [vmem:[#allocation2 + $0x1740] sm:$0xff]
    %v830 = vld [vmem:[#allocation2 + $0x1748] sm:$0xff]
    %v831 = vld [vmem:[#allocation2 + $0x1750] sm:$0xff]
    %v832 = vld [vmem:[#allocation2 + $0x1758] sm:$0xff]
    %v833 = vld [vmem:[#allocation2 + $0x1760] sm:$0xff]
    %v834 = vld [vmem:[#allocation2 + $0x1768] sm:$0xff]
    %v835 = vld [vmem:[#allocation2 + $0x1770] sm:$0xff]
    %v836 = vld [vmem:[#allocation2 + $0x1778] sm:$0xff]
    %v837 = vld [vmem:[#allocation2 + $0x1780] sm:$0xff]
    %v838 = vld [vmem:[#allocation2 + $0x1788] sm:$0xff]
    %v839 = vld [vmem:[#allocation2 + $0x1790] sm:$0xff]
    %v840 = vld [vmem:[#allocation2 + $0x1798] sm:$0xff]
    %v841 = vld [vmem:[#allocation2 + $0x17a0] sm:$0xff]
    %v842 = vld [vmem:[#allocation2 + $0x17a8] sm:$0xff]
    %v843 = vld [vmem:[#allocation2 + $0x17b0] sm:$0xff]
    %v844 = vld [vmem:[#allocation2 + $0x17b8] sm:$0xff]
    %v845 = vld [vmem:[#allocation2 + $0x17c0] sm:$0xff]
    %v846 = vld [vmem:[#allocation2 + $0x17c8] sm:$0xff]
    %v847 = vld [vmem:[#allocation2 + $0x17d0] sm:$0xff]
    %v848 = vld [vmem:[#allocation2 + $0x17d8] sm:$0xff]
    %v849 = vld [vmem:[#allocation2 + $0x17e0] sm:$0xff]
    %v850 = vld [vmem:[#allocation2 + $0x17e8] sm:$0xff]
    %v851 = vld [vmem:[#allocation2 + $0x17f0] sm:$0xff]
    %v852 = vld [vmem:[#allocation2 + $0x17f8] sm:$0xff]
    %v853 = vld [vmem:[#allocation2 + $0x1800] sm:$0xff]
    %v854 = vld [vmem:[#allocation2 + $0x1808] sm:$0xff]
    %v855 = vld [vmem:[#allocation2 + $0x1810] sm:$0xff]
    %v856 = vld [vmem:[#allocation2 + $0x1818] sm:$0xff]
    %v857 = vld [vmem:[#allocation2 + $0x1820] sm:$0xff]
    %v858 = vld [vmem:[#allocation2 + $0x1828] sm:$0xff]
    %v859 = vld [vmem:[#allocation2 + $0x1830] sm:$0xff]
    %v860 = vld [vmem:[#allocation2 + $0x1838] sm:$0xff]
    %v861 = vld [vmem:[#allocation2 + $0x1840] sm:$0xff]
    %v862 = vld [vmem:[#allocation2 + $0x1848] sm:$0xff]
    %v863 = vld [vmem:[#allocation2 + $0x1850] sm:$0xff]
    %v864 = vld [vmem:[#allocation2 + $0x1858] sm:$0xff]
    %v865 = vld [vmem:[#allocation2 + $0x1860] sm:$0xff]
    %v866 = vld [vmem:[#allocation2 + $0x1868] sm:$0xff]
    %v867 = vld [vmem:[#allocation2 + $0x1870] sm:$0xff]
    %v868 = vld [vmem:[#allocation2 + $0x1878] sm:$0xff]
    %v869 = vld [vmem:[#allocation2 + $0x1880] sm:$0xff]
    %v870 = vld [vmem:[#allocation2 + $0x1888] sm:$0xff]
    %v871 = vld [vmem:[#allocation2 + $0x1890] sm:$0xff]
    %v872 = vld [vmem:[#allocation2 + $0x1898] sm:$0xff]
    %v873 = vld [vmem:[#allocation2 + $0x18a0] sm:$0xff]
    %v874 = vld [vmem:[#allocation2 + $0x18a8] sm:$0xff]
    %v875 = vld [vmem:[#allocation2 + $0x18b0] sm:$0xff]
    %v876 = vld [vmem:[#allocation2 + $0x18b8] sm:$0xff]
    %v877 = vld [vmem:[#allocation2 + $0x18c0] sm:$0xff]
    %v878 = vld [vmem:[#allocation2 + $0x18c8] sm:$0xff]
    %v879 = vld [vmem:[#allocation2 + $0x18d0] sm:$0xff]
    %v880 = vld [vmem:[#allocation2 + $0x18d8] sm:$0xff]
    %v881 = vld [vmem:[#allocation2 + $0x18e0] sm:$0xff]
    %v882 = vld [vmem:[#allocation2 + $0x18e8] sm:$0xff]
    %v883 = vld [vmem:[#allocation2 + $0x18f0] sm:$0xff]
    %v884 = vld [vmem:[#allocation2 + $0x18f8] sm:$0xff]
    %v885 = vld [vmem:[#allocation2 + $0x1900] sm:$0xff]
    %v886 = vld [vmem:[#allocation2 + $0x1908] sm:$0xff]
    %v887 = vld [vmem:[#allocation2 + $0x1910] sm:$0xff]
    %v888 = vld [vmem:[#allocation2 + $0x1918] sm:$0xff]
    %v889 = vld [vmem:[#allocation2 + $0x1920] sm:$0xff]
    %v890 = vld [vmem:[#allocation2 + $0x1928] sm:$0xff]
    %v891 = vld [vmem:[#allocation2 + $0x1930] sm:$0xff]
    %v892 = vld [vmem:[#allocation2 + $0x1938] sm:$0xff]
    %v893 = vld [vmem:[#allocation2 + $0x1940] sm:$0xff]
    %v894 = vld [vmem:[#allocation2 + $0x1948] sm:$0xff]
    %v895 = vld [vmem:[#allocation2 + $0x1950] sm:$0xff]
    %v896 = vld [vmem:[#allocation2 + $0x1958] sm:$0xff]
    %v897 = vld [vmem:[#allocation2 + $0x1960] sm:$0xff]
    %v898 = vld [vmem:[#allocation2 + $0x1968] sm:$0xff]
    %v899 = vld [vmem:[#allocation2 + $0x1970] sm:$0xff]
    %v900 = vld [vmem:[#allocation2 + $0x1978] sm:$0xff]
    %v901 = vld [vmem:[#allocation2 + $0x1980] sm:$0xff]
    %v902 = vld [vmem:[#allocation2 + $0x1988] sm:$0xff]
    %v903 = vld [vmem:[#allocation2 + $0x1990] sm:$0xff]
    %v904 = vld [vmem:[#allocation2 + $0x1998] sm:$0xff]
    %v905 = vld [vmem:[#allocation2 + $0x19a0] sm:$0xff]
    %v906 = vld [vmem:[#allocation2 + $0x19a8] sm:$0xff]
    %v907 = vld [vmem:[#allocation2 + $0x19b0] sm:$0xff]
    %v908 = vld [vmem:[#allocation2 + $0x19b8] sm:$0xff]
    %v909 = vld [vmem:[#allocation2 + $0x19c0] sm:$0xff]
    %v910 = vld [vmem:[#allocation2 + $0x19c8] sm:$0xff]
    %v911 = vld [vmem:[#allocation2 + $0x19d0] sm:$0xff]
    %v912 = vld [vmem:[#allocation2 + $0x19d8] sm:$0xff]
    %v913 = vld [vmem:[#allocation2 + $0x19e0] sm:$0xff]
    %v914 = vld [vmem:[#allocation2 + $0x19e8] sm:$0xff]
    %v915 = vld [vmem:[#allocation2 + $0x19f0] sm:$0xff]
    %v916 = vld [vmem:[#allocation2 + $0x19f8] sm:$0xff]
    %v917 = vld [vmem:[#allocation2 + $0x1a00] sm:$0xff]
    %v918 = vld [vmem:[#allocation2 + $0x1a08] sm:$0xff]
    %v919 = vld [vmem:[#allocation2 + $0x1a10] sm:$0xff]
    %v920 = vld [vmem:[#allocation2 + $0x1a18] sm:$0xff]
    %v921 = vld [vmem:[#allocation2 + $0x1a20] sm:$0xff]
    %v922 = vld [vmem:[#allocation2 + $0x1a28] sm:$0xff]
    %v923 = vld [vmem:[#allocation2 + $0x1a30] sm:$0xff]
    %v924 = vld [vmem:[#allocation2 + $0x1a38] sm:$0xff]
    %v925 = vld [vmem:[#allocation2 + $0x1a40] sm:$0xff]
    %v926 = vld [vmem:[#allocation2 + $0x1a48] sm:$0xff]
    %v927 = vld [vmem:[#allocation2 + $0x1a50] sm:$0xff]
    %v928 = vld [vmem:[#allocation2 + $0x1a58] sm:$0xff]
    %v929 = vld [vmem:[#allocation2 + $0x1a60] sm:$0xff]
    %v930 = vld [vmem:[#allocation2 + $0x1a68] sm:$0xff]
    %v931 = vld [vmem:[#allocation2 + $0x1a70] sm:$0xff]
    %v932 = vld [vmem:[#allocation2 + $0x1a78] sm:$0xff]
    %v933 = vld [vmem:[#allocation2 + $0x1a80] sm:$0xff]
    %v934 = vld [vmem:[#allocation2 + $0x1a88] sm:$0xff]
    %v935 = vld [vmem:[#allocation2 + $0x1a90] sm:$0xff]
    %v936 = vld [vmem:[#allocation2 + $0x1a98] sm:$0xff]
    %v937 = vld [vmem:[#allocation2 + $0x1aa0] sm:$0xff]
    %v938 = vld [vmem:[#allocation2 + $0x1aa8] sm:$0xff]
    %v939 = vld [vmem:[#allocation2 + $0x1ab0] sm:$0xff]
    %v940 = vld [vmem:[#allocation2 + $0x1ab8] sm:$0xff]
    %v941 = vld [vmem:[#allocation2 + $0x1ac0] sm:$0xff]
    %v942 = vld [vmem:[#allocation2 + $0x1ac8] sm:$0xff]
    %v943 = vld [vmem:[#allocation2 + $0x1ad0] sm:$0xff]
    %v944 = vld [vmem:[#allocation2 + $0x1ad8] sm:$0xff]
    %v945 = vld [vmem:[#allocation2 + $0x1ae0] sm:$0xff]
    %v946 = vld [vmem:[#allocation2 + $0x1ae8] sm:$0xff]
    %v947 = vld [vmem:[#allocation2 + $0x1af0] sm:$0xff]
    %v948 = vld [vmem:[#allocation2 + $0x1af8] sm:$0xff]
    %v949 = vld [vmem:[#allocation2 + $0x1b00] sm:$0xff]
    %v950 = vld [vmem:[#allocation2 + $0x1b08] sm:$0xff]
    %v951 = vld [vmem:[#allocation2 + $0x1b10] sm:$0xff]
    %v952 = vld [vmem:[#allocation2 + $0x1b18] sm:$0xff]
    %v953 = vld [vmem:[#allocation2 + $0x1b20] sm:$0xff]
    %v954 = vld [vmem:[#allocation2 + $0x1b28] sm:$0xff]
    %v955 = vld [vmem:[#allocation2 + $0x1b30] sm:$0xff]
    %v956 = vld [vmem:[#allocation2 + $0x1b38] sm:$0xff]
    %v957 = vld [vmem:[#allocation2 + $0x1b40] sm:$0xff]
    %v958 = vld [vmem:[#allocation2 + $0x1b48] sm:$0xff]
    %v959 = vld [vmem:[#allocation2 + $0x1b50] sm:$0xff]
    %v960 = vld [vmem:[#allocation2 + $0x1b58] sm:$0xff]
    %v961 = vld [vmem:[#allocation2 + $0x1b60] sm:$0xff]
    %v962 = vld [vmem:[#allocation2 + $0x1b68] sm:$0xff]
    %v963 = vld [vmem:[#allocation2 + $0x1b70] sm:$0xff]
    %v964 = vld [vmem:[#allocation2 + $0x1b78] sm:$0xff]
    %v965 = vld [vmem:[#allocation2 + $0x1b80] sm:$0xff]
    %v966 = vld [vmem:[#allocation2 + $0x1b88] sm:$0xff]
    %v967 = vld [vmem:[#allocation2 + $0x1b90] sm:$0xff]
    %v968 = vld [vmem:[#allocation2 + $0x1b98] sm:$0xff]
    %v969 = vld [vmem:[#allocation2 + $0x1ba0] sm:$0xff]
    %v970 = vld [vmem:[#allocation2 + $0x1ba8] sm:$0xff]
    %v971 = vld [vmem:[#allocation2 + $0x1bb0] sm:$0xff]
    %v972 = vld [vmem:[#allocation2 + $0x1bb8] sm:$0xff]
    %v973 = vld [vmem:[#allocation2 + $0x1bc0] sm:$0xff]
    %v974 = vld [vmem:[#allocation2 + $0x1bc8] sm:$0xff]
    %v975 = vld [vmem:[#allocation2 + $0x1bd0] sm:$0xff]
    %v976 = vld [vmem:[#allocation2 + $0x1bd8] sm:$0xff]
    %v977 = vld [vmem:[#allocation2 + $0x1be0] sm:$0xff]
    %v978 = vld [vmem:[#allocation2 + $0x1be8] sm:$0xff]
    %v979 = vld [vmem:[#allocation2 + $0x1bf0] sm:$0xff]
    %v980 = vld [vmem:[#allocation2 + $0x1bf8] sm:$0xff]
    %v981 = vld [vmem:[#allocation2 + $0x1c00] sm:$0xff]
    %v982 = vld [vmem:[#allocation2 + $0x1c08] sm:$0xff]
    %v983 = vld [vmem:[#allocation2 + $0x1c10] sm:$0xff]
    %v984 = vld [vmem:[#allocation2 + $0x1c18] sm:$0xff]
    %v985 = vld [vmem:[#allocation2 + $0x1c20] sm:$0xff]
    %v986 = vld [vmem:[#allocation2 + $0x1c28] sm:$0xff]
    %v987 = vld [vmem:[#allocation2 + $0x1c30] sm:$0xff]
    %v988 = vld [vmem:[#allocation2 + $0x1c38] sm:$0xff]
    %v989 = vld [vmem:[#allocation2 + $0x1c40] sm:$0xff]
    %v990 = vld [vmem:[#allocation2 + $0x1c48] sm:$0xff]
    %v991 = vld [vmem:[#allocation2 + $0x1c50] sm:$0xff]
    %v992 = vld [vmem:[#allocation2 + $0x1c58] sm:$0xff]
    %v993 = vld [vmem:[#allocation2 + $0x1c60] sm:$0xff]
    %v994 = vld [vmem:[#allocation2 + $0x1c68] sm:$0xff]
    %v995 = vld [vmem:[#allocation2 + $0x1c70] sm:$0xff]
    %v996 = vld [vmem:[#allocation2 + $0x1c78] sm:$0xff]
    %v997 = vld [vmem:[#allocation2 + $0x1c80] sm:$0xff]
    %v998 = vld [vmem:[#allocation2 + $0x1c88] sm:$0xff]
    %v999 = vld [vmem:[#allocation2 + $0x1c90] sm:$0xff]
    %v1000 = vld [vmem:[#allocation2 + $0x1c98] sm:$0xff]
    %v1001 = vld [vmem:[#allocation2 + $0x1ca0] sm:$0xff]
    %v1002 = vld [vmem:[#allocation2 + $0x1ca8] sm:$0xff]
    %v1003 = vld [vmem:[#allocation2 + $0x1cb0] sm:$0xff]
    %v1004 = vld [vmem:[#allocation2 + $0x1cb8] sm:$0xff]
    %v1005 = vld [vmem:[#allocation2 + $0x1cc0] sm:$0xff]
    %v1006 = vld [vmem:[#allocation2 + $0x1cc8] sm:$0xff]
    %v1007 = vld [vmem:[#allocation2 + $0x1cd0] sm:$0xff]
    %v1008 = vld [vmem:[#allocation2 + $0x1cd8] sm:$0xff]
    %v1009 = vld [vmem:[#allocation2 + $0x1ce0] sm:$0xff]
    %v1010 = vld [vmem:[#allocation2 + $0x1ce8] sm:$0xff]
    %v1011 = vld [vmem:[#allocation2 + $0x1cf0] sm:$0xff]
    %v1012 = vld [vmem:[#allocation2 + $0x1cf8] sm:$0xff]
    %v1013 = vld [vmem:[#allocation2 + $0x1d00] sm:$0xff]
    %v1014 = vld [vmem:[#allocation2 + $0x1d08] sm:$0xff]
    %v1015 = vld [vmem:[#allocation2 + $0x1d10] sm:$0xff]
    %v1016 = vld [vmem:[#allocation2 + $0x1d18] sm:$0xff]
    %v1017 = vld [vmem:[#allocation2 + $0x1d20] sm:$0xff]
    %v1018 = vld [vmem:[#allocation2 + $0x1d28] sm:$0xff]
    %v1019 = vld [vmem:[#allocation2 + $0x1d30] sm:$0xff]
    %v1020 = vld [vmem:[#allocation2 + $0x1d38] sm:$0xff]
    %v1021 = vld [vmem:[#allocation2 + $0x1d40] sm:$0xff]
    %v1022 = vld [vmem:[#allocation2 + $0x1d48] sm:$0xff]
    %v1023 = vld [vmem:[#allocation2 + $0x1d50] sm:$0xff]
    %v1024 = vld [vmem:[#allocation2 + $0x1d58] sm:$0xff]
    %v1025 = vld [vmem:[#allocation2 + $0x1d60] sm:$0xff]
    %v1026 = vld [vmem:[#allocation2 + $0x1d68] sm:$0xff]
    %v1027 = vld [vmem:[#allocation2 + $0x1d70] sm:$0xff]
    %v1028 = vld [vmem:[#allocation2 + $0x1d78] sm:$0xff]
    %v1029 = vld [vmem:[#allocation2 + $0x1d80] sm:$0xff]
    %v1030 = vld [vmem:[#allocation2 + $0x1d88] sm:$0xff]
    %v1031 = vld [vmem:[#allocation2 + $0x1d90] sm:$0xff]
    %v1032 = vld [vmem:[#allocation2 + $0x1d98] sm:$0xff]
    %v1033 = vld [vmem:[#allocation2 + $0x1da0] sm:$0xff]
    %v1034 = vld [vmem:[#allocation2 + $0x1da8] sm:$0xff]
    %v1035 = vld [vmem:[#allocation2 + $0x1db0] sm:$0xff]
    %v1036 = vld [vmem:[#allocation2 + $0x1db8] sm:$0xff]
    %v1037 = vld [vmem:[#allocation2 + $0x1dc0] sm:$0xff]
    %v1038 = vld [vmem:[#allocation2 + $0x1dc8] sm:$0xff]
    %v1039 = vld [vmem:[#allocation2 + $0x1dd0] sm:$0xff]
    %v1040 = vld [vmem:[#allocation2 + $0x1dd8] sm:$0xff]
    %v1041 = vld [vmem:[#allocation2 + $0x1de0] sm:$0xff]
    %v1042 = vld [vmem:[#allocation2 + $0x1de8] sm:$0xff]
    %v1043 = vld [vmem:[#allocation2 + $0x1df0] sm:$0xff]
    %v1044 = vld [vmem:[#allocation2 + $0x1df8] sm:$0xff]
    %v1045 = vld [vmem:[#allocation2 + $0x1e00] sm:$0xff]
    %v1046 = vld [vmem:[#allocation2 + $0x1e08] sm:$0xff]
    %v1047 = vld [vmem:[#allocation2 + $0x1e10] sm:$0xff]
    %v1048 = vld [vmem:[#allocation2 + $0x1e18] sm:$0xff]
    %v1049 = vld [vmem:[#allocation2 + $0x1e20] sm:$0xff]
    %v1050 = vld [vmem:[#allocation2 + $0x1e28] sm:$0xff]
    %v1051 = vld [vmem:[#allocation2 + $0x1e30] sm:$0xff]
    %v1052 = vld [vmem:[#allocation2 + $0x1e38] sm:$0xff]
    %v1053 = vld [vmem:[#allocation2 + $0x1e40] sm:$0xff]
    %v1054 = vld [vmem:[#allocation2 + $0x1e48] sm:$0xff]
    %v1055 = vld [vmem:[#allocation2 + $0x1e50] sm:$0xff]
    %v1056 = vld [vmem:[#allocation2 + $0x1e58] sm:$0xff]
    %v1057 = vld [vmem:[#allocation2 + $0x1e60] sm:$0xff]
    %v1058 = vld [vmem:[#allocation2 + $0x1e68] sm:$0xff]
    %v1059 = vld [vmem:[#allocation2 + $0x1e70] sm:$0xff]
    %v1060 = vld [vmem:[#allocation2 + $0x1e78] sm:$0xff]
    %v1061 = vld [vmem:[#allocation2 + $0x1e80] sm:$0xff]
    %v1062 = vld [vmem:[#allocation2 + $0x1e88] sm:$0xff]
    %v1063 = vld [vmem:[#allocation2 + $0x1e90] sm:$0xff]
    %v1064 = vld [vmem:[#allocation2 + $0x1e98] sm:$0xff]
    %v1065 = vld [vmem:[#allocation2 + $0x1ea0] sm:$0xff]
    %v1066 = vld [vmem:[#allocation2 + $0x1ea8] sm:$0xff]
    %v1067 = vld [vmem:[#allocation2 + $0x1eb0] sm:$0xff]
    %v1068 = vld [vmem:[#allocation2 + $0x1eb8] sm:$0xff]
    %v1069 = vld [vmem:[#allocation2 + $0x1ec0] sm:$0xff]
    %v1070 = vld [vmem:[#allocation2 + $0x1ec8] sm:$0xff]
    %v1071 = vld [vmem:[#allocation2 + $0x1ed0] sm:$0xff]
    %v1072 = vld [vmem:[#allocation2 + $0x1ed8] sm:$0xff]
    %v1073 = vld [vmem:[#allocation2 + $0x1ee0] sm:$0xff]
    %v1074 = vld [vmem:[#allocation2 + $0x1ee8] sm:$0xff]
    %v1075 = vld [vmem:[#allocation2 + $0x1ef0] sm:$0xff]
    %v1076 = vld [vmem:[#allocation2 + $0x1ef8] sm:$0xff]
    %v1077 = vld [vmem:[#allocation2 + $0x1f00] sm:$0xff]
    %v1078 = vld [vmem:[#allocation2 + $0x1f08] sm:$0xff]
    %v1079 = vld [vmem:[#allocation2 + $0x1f10] sm:$0xff]
    %v1080 = vld [vmem:[#allocation2 + $0x1f18] sm:$0xff]
    %v1081 = vld [vmem:[#allocation2 + $0x1f20] sm:$0xff]
    %v1082 = vld [vmem:[#allocation2 + $0x1f28] sm:$0xff]
    %v1083 = vld [vmem:[#allocation2 + $0x1f30] sm:$0xff]
    %v1084 = vld [vmem:[#allocation2 + $0x1f38] sm:$0xff]
    %v1085 = vld [vmem:[#allocation2 + $0x1f40] sm:$0xff]
    %v1086 = vld [vmem:[#allocation2 + $0x1f48] sm:$0xff]
    %v1087 = vld [vmem:[#allocation2 + $0x1f50] sm:$0xff]
    %v1088 = vld [vmem:[#allocation2 + $0x1f58] sm:$0xff]
    %v1089 = vld [vmem:[#allocation2 + $0x1f60] sm:$0xff]
    %v1090 = vld [vmem:[#allocation2 + $0x1f68] sm:$0xff]
    %v1091 = vld [vmem:[#allocation2 + $0x1f70] sm:$0xff]
    %v1092 = vld [vmem:[#allocation2 + $0x1f78] sm:$0xff]
    %v1093 = vld [vmem:[#allocation2 + $0x1f80] sm:$0xff]
    %v1094 = vld [vmem:[#allocation2 + $0x1f88] sm:$0xff]
    %v1095 = vld [vmem:[#allocation2 + $0x1f90] sm:$0xff]
    %v1096 = vld [vmem:[#allocation2 + $0x1f98] sm:$0xff]
    %v1097 = vld [vmem:[#allocation2 + $0x1fa0] sm:$0xff]
    %v1098 = vld [vmem:[#allocation2 + $0x1fa8] sm:$0xff]
    %v1099 = vld [vmem:[#allocation2 + $0x1fb0] sm:$0xff]
    %v1100 = vld [vmem:[#allocation2 + $0x1fb8] sm:$0xff]
    %v1101 = vld [vmem:[#allocation2 + $0x1fc0] sm:$0xff]
    %v1102 = vld [vmem:[#allocation2 + $0x1fc8] sm:$0xff]
    %v1103 = vld [vmem:[#allocation2 + $0x1fd0] sm:$0xff]
    %v1104 = vld [vmem:[#allocation2 + $0x1fd8] sm:$0xff]
    %v1105 = vld [vmem:[#allocation2 + $0x1fe0] sm:$0xff]
    %v1106 = vld [vmem:[#allocation2 + $0x1fe8] sm:$0xff]
    %v1107 = vld [vmem:[#allocation2 + $0x1ff0] sm:$0xff]
    %v1108 = vld [vmem:[#allocation2 + $0x1ff8] sm:$0xff]
    %v1109 = vld [vmem:[#allocation2 + $0x2000] sm:$0xff]
    %v1110 = vld [vmem:[#allocation2 + $0x2008] sm:$0xff]
    %v1111 = vld [vmem:[#allocation2 + $0x2010] sm:$0xff]
    %v1112 = vld [vmem:[#allocation2 + $0x2018] sm:$0xff]
    %v1113 = vld [vmem:[#allocation2 + $0x2020] sm:$0xff]
    %v1114 = vld [vmem:[#allocation2 + $0x2028] sm:$0xff]
    %v1115 = vld [vmem:[#allocation2 + $0x2030] sm:$0xff]
    %v1116 = vld [vmem:[#allocation2 + $0x2038] sm:$0xff]
    %v1117 = vld [vmem:[#allocation2 + $0x2040] sm:$0xff]
    %v1118 = vld [vmem:[#allocation2 + $0x2048] sm:$0xff]
    %v1119 = vld [vmem:[#allocation2 + $0x2050] sm:$0xff]
    %v1120 = vld [vmem:[#allocation2 + $0x2058] sm:$0xff]
    %v1121 = vld [vmem:[#allocation2 + $0x2060] sm:$0xff]
    %v1122 = vld [vmem:[#allocation2 + $0x2068] sm:$0xff]
    %v1123 = vld [vmem:[#allocation2 + $0x2070] sm:$0xff]
    %v1124 = vld [vmem:[#allocation2 + $0x2078] sm:$0xff]
    %v1125 = vld [vmem:[#allocation2 + $0x2080] sm:$0xff]
    %v1126 = vld [vmem:[#allocation2 + $0x2088] sm:$0xff]
    %v1127 = vld [vmem:[#allocation2 + $0x2090] sm:$0xff]
    %v1128 = vld [vmem:[#allocation2 + $0x2098] sm:$0xff]
    %v1129 = vld [vmem:[#allocation2 + $0x20a0] sm:$0xff]
    %v1130 = vld [vmem:[#allocation2 + $0x20a8] sm:$0xff]
    %v1131 = vld [vmem:[#allocation2 + $0x20b0] sm:$0xff]
    %v1132 = vld [vmem:[#allocation2 + $0x20b8] sm:$0xff]
    %v1133 = vld [vmem:[#allocation2 + $0x20c0] sm:$0xff]
    %v1134 = vld [vmem:[#allocation2 + $0x20c8] sm:$0xff]
    %v1135 = vld [vmem:[#allocation2 + $0x20d0] sm:$0xff]
    %v1136 = vld [vmem:[#allocation2 + $0x20d8] sm:$0xff]
    %v1137 = vld [vmem:[#allocation2 + $0x20e0] sm:$0xff]
    %v1138 = vld [vmem:[#allocation2 + $0x20e8] sm:$0xff]
    %v1139 = vld [vmem:[#allocation2 + $0x20f0] sm:$0xff]
    %v1140 = vld [vmem:[#allocation2 + $0x20f8] sm:$0xff]
    %v1141 = vld [vmem:[#allocation2 + $0x2100] sm:$0xff]
    %v1142 = vld [vmem:[#allocation2 + $0x2108] sm:$0xff]
    %v1143 = vld [vmem:[#allocation2 + $0x2110] sm:$0xff]
    %v1144 = vld [vmem:[#allocation2 + $0x2118] sm:$0xff]
    %v1145 = vld [vmem:[#allocation2 + $0x2120] sm:$0xff]
    %v1146 = vld [vmem:[#allocation2 + $0x2128] sm:$0xff]
    %v1147 = vld [vmem:[#allocation2 + $0x2130] sm:$0xff]
    %v1148 = vld [vmem:[#allocation2 + $0x2138] sm:$0xff]
    %v1149 = vld [vmem:[#allocation2 + $0x2140] sm:$0xff]
    %v1150 = vld [vmem:[#allocation2 + $0x2148] sm:$0xff]
    %v1151 = vld [vmem:[#allocation2 + $0x2150] sm:$0xff]
    %v1152 = vld [vmem:[#allocation2 + $0x2158] sm:$0xff]
    %v1153 = vld [vmem:[#allocation2 + $0x2160] sm:$0xff]
    %v1154 = vld [vmem:[#allocation2 + $0x2168] sm:$0xff]
    %v1155 = vld [vmem:[#allocation2 + $0x2170] sm:$0xff]
    %v1156 = vld [vmem:[#allocation2 + $0x2178] sm:$0xff]
    %v1157 = vld [vmem:[#allocation2 + $0x2180] sm:$0xff]
    %v1158 = vld [vmem:[#allocation2 + $0x2188] sm:$0xff]
    %v1159 = vld [vmem:[#allocation2 + $0x2190] sm:$0xff]
    %v1160 = vld [vmem:[#allocation2 + $0x2198] sm:$0xff]
    %v1161 = vld [vmem:[#allocation2 + $0x21a0] sm:$0xff]
    %v1162 = vld [vmem:[#allocation2 + $0x21a8] sm:$0xff]
    %v1163 = vld [vmem:[#allocation2 + $0x21b0] sm:$0xff]
    %v1164 = vld [vmem:[#allocation2 + $0x21b8] sm:$0xff]
    %v1165 = vld [vmem:[#allocation2 + $0x21c0] sm:$0xff]
    %v1166 = vld [vmem:[#allocation2 + $0x21c8] sm:$0xff]
    %v1167 = vld [vmem:[#allocation2 + $0x21d0] sm:$0xff]
    %v1168 = vld [vmem:[#allocation2 + $0x21d8] sm:$0xff]
    %v1169 = vld [vmem:[#allocation2 + $0x21e0] sm:$0xff]
    %v1170 = vld [vmem:[#allocation2 + $0x21e8] sm:$0xff]
    %v1171 = vld [vmem:[#allocation2 + $0x21f0] sm:$0xff]
    %v1172 = vld [vmem:[#allocation2 + $0x21f8] sm:$0xff]
    %v1173 = vld [vmem:[#allocation2 + $0x2200] sm:$0xff]
    %v1174 = vld [vmem:[#allocation2 + $0x2208] sm:$0xff]
    %v1175 = vld [vmem:[#allocation2 + $0x2210] sm:$0xff]
    %v1176 = vld [vmem:[#allocation2 + $0x2218] sm:$0xff]
    %v1177 = vld [vmem:[#allocation2 + $0x2220] sm:$0xff]
    %v1178 = vld [vmem:[#allocation2 + $0x2228] sm:$0xff]
    %v1179 = vld [vmem:[#allocation2 + $0x2230] sm:$0xff]
    %v1180 = vld [vmem:[#allocation2 + $0x2238] sm:$0xff]
    %v1181 = vld [vmem:[#allocation2 + $0x2240] sm:$0xff]
    %v1182 = vld [vmem:[#allocation2 + $0x2248] sm:$0xff]
    %v1183 = vld [vmem:[#allocation2 + $0x2250] sm:$0xff]
    %v1184 = vld [vmem:[#allocation2 + $0x2258] sm:$0xff]
    %v1185 = vld [vmem:[#allocation2 + $0x2260] sm:$0xff]
    %v1186 = vld [vmem:[#allocation2 + $0x2268] sm:$0xff]
    %v1187 = vld [vmem:[#allocation2 + $0x2270] sm:$0xff]
    %v1188 = vld [vmem:[#allocation2 + $0x2278] sm:$0xff]
    %v1189 = vld [vmem:[#allocation2 + $0x2280] sm:$0xff]
    %v1190 = vld [vmem:[#allocation2 + $0x2288] sm:$0xff]
    %v1191 = vld [vmem:[#allocation2 + $0x2290] sm:$0xff]
    %v1192 = vld [vmem:[#allocation2 + $0x2298] sm:$0xff]
    %v1193 = vld [vmem:[#allocation2 + $0x22a0] sm:$0xff]
    %v1194 = vld [vmem:[#allocation2 + $0x22a8] sm:$0xff]
    %v1195 = vld [vmem:[#allocation2 + $0x22b0] sm:$0xff]
    %v1196 = vld [vmem:[#allocation2 + $0x22b8] sm:$0xff]
    %v1197 = vld [vmem:[#allocation2 + $0x22c0] sm:$0xff]
    %v1198 = vld [vmem:[#allocation2 + $0x22c8] sm:$0xff]
    %v1199 = vld [vmem:[#allocation2 + $0x22d0] sm:$0xff]
    %v1200 = vld [vmem:[#allocation2 + $0x22d8] sm:$0xff]
    %v1201 = vld [vmem:[#allocation2 + $0x22e0] sm:$0xff]
    %v1202 = vld [vmem:[#allocation2 + $0x22e8] sm:$0xff]
    %v1203 = vld [vmem:[#allocation2 + $0x22f0] sm:$0xff]
    %v1204 = vld [vmem:[#allocation2 + $0x22f8] sm:$0xff]
    %v1205 = vld [vmem:[#allocation2 + $0x2300] sm:$0xff]
    %v1206 = vld [vmem:[#allocation2 + $0x2308] sm:$0xff]
    %v1207 = vld [vmem:[#allocation2 + $0x2310] sm:$0xff]
    %v1208 = vld [vmem:[#allocation2 + $0x2318] sm:$0xff]
    %v1209 = vld [vmem:[#allocation2 + $0x2320] sm:$0xff]
    %v1210 = vld [vmem:[#allocation2 + $0x2328] sm:$0xff]
    %v1211 = vld [vmem:[#allocation2 + $0x2330] sm:$0xff]
    %v1212 = vld [vmem:[#allocation2 + $0x2338] sm:$0xff]
    %v1213 = vld [vmem:[#allocation2 + $0x2340] sm:$0xff]
    %v1214 = vld [vmem:[#allocation2 + $0x2348] sm:$0xff]
    %v1215 = vld [vmem:[#allocation2 + $0x2350] sm:$0xff]
    %v1216 = vld [vmem:[#allocation2 + $0x2358] sm:$0xff]
    %v1217 = vld [vmem:[#allocation2 + $0x2360] sm:$0xff]
    %v1218 = vld [vmem:[#allocation2 + $0x2368] sm:$0xff]
    %v1219 = vld [vmem:[#allocation2 + $0x2370] sm:$0xff]
    %v1220 = vld [vmem:[#allocation2 + $0x2378] sm:$0xff]
    %v1221 = vld [vmem:[#allocation2 + $0x2380] sm:$0xff]
    %v1222 = vld [vmem:[#allocation2 + $0x2388] sm:$0xff]
    %v1223 = vld [vmem:[#allocation2 + $0x2390] sm:$0xff]
    %v1224 = vld [vmem:[#allocation2 + $0x2398] sm:$0xff]
    %v1225 = vld [vmem:[#allocation2 + $0x23a0] sm:$0xff]
    %v1226 = vld [vmem:[#allocation2 + $0x23a8] sm:$0xff]
    %v1227 = vld [vmem:[#allocation2 + $0x23b0] sm:$0xff]
    %v1228 = vld [vmem:[#allocation2 + $0x23b8] sm:$0xff]
    %v1229 = vld [vmem:[#allocation2 + $0x23c0] sm:$0xff]
    %v1230 = vld [vmem:[#allocation2 + $0x23c8] sm:$0xff]
    %v1231 = vld [vmem:[#allocation2 + $0x23d0] sm:$0xff]
    %v1232 = vld [vmem:[#allocation2 + $0x23d8] sm:$0xff]
    %v1233 = vld [vmem:[#allocation2 + $0x23e0] sm:$0xff]
    %v1234 = vld [vmem:[#allocation2 + $0x23e8] sm:$0xff]
    %v1235 = vld [vmem:[#allocation2 + $0x23f0] sm:$0xff]
    %v1236 = vld [vmem:[#allocation2 + $0x23f8] sm:$0xff]
    %v1237 = vld [vmem:[#allocation2 + $0x2400] sm:$0xff]
    %v1238 = vld [vmem:[#allocation2 + $0x2408] sm:$0xff]
    %v1239 = vld [vmem:[#allocation2 + $0x2410] sm:$0xff]
    %v1240 = vld [vmem:[#allocation2 + $0x2418] sm:$0xff]
    %v1241 = vld [vmem:[#allocation2 + $0x2420] sm:$0xff]
    %v1242 = vld [vmem:[#allocation2 + $0x2428] sm:$0xff]
    %v1243 = vld [vmem:[#allocation2 + $0x2430] sm:$0xff]
    %v1244 = vld [vmem:[#allocation2 + $0x2438] sm:$0xff]
    %v1245 = vld [vmem:[#allocation2 + $0x2440] sm:$0xff]
    %v1246 = vld [vmem:[#allocation2 + $0x2448] sm:$0xff]
    %v1247 = vld [vmem:[#allocation2 + $0x2450] sm:$0xff]
    %v1248 = vld [vmem:[#allocation2 + $0x2458] sm:$0xff]
    %v1249 = vld [vmem:[#allocation2 + $0x2460] sm:$0xff]
    %v1250 = vld [vmem:[#allocation2 + $0x2468] sm:$0xff]
    %v1251 = vld [vmem:[#allocation2 + $0x2470] sm:$0xff]
    %v1252 = vld [vmem:[#allocation2 + $0x2478] sm:$0xff]
    %v1253 = vld [vmem:[#allocation2 + $0x2480] sm:$0xff]
    %v1254 = vld [vmem:[#allocation2 + $0x2488] sm:$0xff]
    %v1255 = vld [vmem:[#allocation2 + $0x2490] sm:$0xff]
    %v1256 = vld [vmem:[#allocation2 + $0x2498] sm:$0xff]
    %v1257 = vld [vmem:[#allocation2 + $0x24a0] sm:$0xff]
    %v1258 = vld [vmem:[#allocation2 + $0x24a8] sm:$0xff]
    %v1259 = vld [vmem:[#allocation2 + $0x24b0] sm:$0xff]
    %v1260 = vld [vmem:[#allocation2 + $0x24b8] sm:$0xff]
    %v1261 = vld [vmem:[#allocation2 + $0x24c0] sm:$0xff]
    %v1262 = vld [vmem:[#allocation2 + $0x24c8] sm:$0xff]
    %v1263 = vld [vmem:[#allocation2 + $0x24d0] sm:$0xff]
    %v1264 = vld [vmem:[#allocation2 + $0x24d8] sm:$0xff]
    %v1265 = vld [vmem:[#allocation2 + $0x24e0] sm:$0xff]
    %v1266 = vld [vmem:[#allocation2 + $0x24e8] sm:$0xff]
    %v1267 = vld [vmem:[#allocation2 + $0x24f0] sm:$0xff]
    %v1268 = vld [vmem:[#allocation2 + $0x24f8] sm:$0xff]
    %v1269 = vld [vmem:[#allocation2 + $0x2500] sm:$0xff]
    %v1270 = vld [vmem:[#allocation2 + $0x2508] sm:$0xff]
    %v1271 = vld [vmem:[#allocation2 + $0x2510] sm:$0xff]
    %v1272 = vld [vmem:[#allocation2 + $0x2518] sm:$0xff]
    %v1273 = vld [vmem:[#allocation2 + $0x2520] sm:$0xff]
    %v1274 = vld [vmem:[#allocation2 + $0x2528] sm:$0xff]
    %v1275 = vld [vmem:[#allocation2 + $0x2530] sm:$0xff]
    %v1276 = vld [vmem:[#allocation2 + $0x2538] sm:$0xff]
    %v1277 = vld [vmem:[#allocation2 + $0x2540] sm:$0xff]
    %v1278 = vld [vmem:[#allocation2 + $0x2548] sm:$0xff]
    %v1279 = vld [vmem:[#allocation2 + $0x2550] sm:$0xff]
    %v1280 = vld [vmem:[#allocation2 + $0x2558] sm:$0xff]
    %v1281 = vld [vmem:[#allocation2 + $0x2560] sm:$0xff]
    %v1282 = vld [vmem:[#allocation2 + $0x2568] sm:$0xff]
    %v1283 = vld [vmem:[#allocation2 + $0x2570] sm:$0xff]
    %v1284 = vld [vmem:[#allocation2 + $0x2578] sm:$0xff]
    %v1285 = vld [vmem:[#allocation2 + $0x2580] sm:$0xff]
    %v1286 = vld [vmem:[#allocation2 + $0x2588] sm:$0xff]
    %v1287 = vld [vmem:[#allocation2 + $0x2590] sm:$0xff]
    %v1288 = vld [vmem:[#allocation2 + $0x2598] sm:$0xff]
    %v1289 = vld [vmem:[#allocation2 + $0x25a0] sm:$0xff]
    %v1290 = vld [vmem:[#allocation2 + $0x25a8] sm:$0xff]
    %v1291 = vld [vmem:[#allocation2 + $0x25b0] sm:$0xff]
    %v1292 = vld [vmem:[#allocation2 + $0x25b8] sm:$0xff]
    %v1293 = vld [vmem:[#allocation2 + $0x25c0] sm:$0xff]
    %v1294 = vld [vmem:[#allocation2 + $0x25c8] sm:$0xff]
    %v1295 = vld [vmem:[#allocation2 + $0x25d0] sm:$0xff]
    %v1296 = vld [vmem:[#allocation2 + $0x25d8] sm:$0xff]
    %v1297 = vld [vmem:[#allocation2 + $0x25e0] sm:$0xff]
    %v1298 = vld [vmem:[#allocation2 + $0x25e8] sm:$0xff]
    %v1299 = vld [vmem:[#allocation2 + $0x25f0] sm:$0xff]
    %v1300 = vld [vmem:[#allocation2 + $0x25f8] sm:$0xff]
    %v1301 = vld [vmem:[#allocation2 + $0x2600] sm:$0xff]
    %v1302 = vld [vmem:[#allocation2 + $0x2608] sm:$0xff]
    %v1303 = vld [vmem:[#allocation2 + $0x2610] sm:$0xff]
    %v1304 = vld [vmem:[#allocation2 + $0x2618] sm:$0xff]
    %v1305 = vld [vmem:[#allocation2 + $0x2620] sm:$0xff]
    %v1306 = vld [vmem:[#allocation2 + $0x2628] sm:$0xff]
    %v1307 = vld [vmem:[#allocation2 + $0x2630] sm:$0xff]
    %v1308 = vld [vmem:[#allocation2 + $0x2638] sm:$0xff]
    %v1309 = vld [vmem:[#allocation2 + $0x2640] sm:$0xff]
    %v1310 = vld [vmem:[#allocation2 + $0x2648] sm:$0xff]
    %v1311 = vld [vmem:[#allocation2 + $0x2650] sm:$0xff]
    %v1312 = vld [vmem:[#allocation2 + $0x2658] sm:$0xff]
    %v1313 = vld [vmem:[#allocation2 + $0x2660] sm:$0xff]
    %v1314 = vld [vmem:[#allocation2 + $0x2668] sm:$0xff]
    %v1315 = vld [vmem:[#allocation2 + $0x2670] sm:$0xff]
    %v1316 = vld [vmem:[#allocation2 + $0x2678] sm:$0xff]
    %v1317 = vld [vmem:[#allocation2 + $0x2680] sm:$0xff]
    %v1318 = vld [vmem:[#allocation2 + $0x2688] sm:$0xff]
    %v1319 = vld [vmem:[#allocation2 + $0x2690] sm:$0xff]
    %v1320 = vld [vmem:[#allocation2 + $0x2698] sm:$0xff]
    %v1321 = vld [vmem:[#allocation2 + $0x26a0] sm:$0xff]
    %v1322 = vld [vmem:[#allocation2 + $0x26a8] sm:$0xff]
    %v1323 = vld [vmem:[#allocation2 + $0x26b0] sm:$0xff]
    %v1324 = vld [vmem:[#allocation2 + $0x26b8] sm:$0xff]
    %v1325 = vld [vmem:[#allocation2 + $0x26c0] sm:$0xff]
    %v1326 = vld [vmem:[#allocation2 + $0x26c8] sm:$0xff]
    %v1327 = vld [vmem:[#allocation2 + $0x26d0] sm:$0xff]
    %v1328 = vld [vmem:[#allocation2 + $0x26d8] sm:$0xff]
    %v1329 = vld [vmem:[#allocation2 + $0x26e0] sm:$0xff]
    %v1330 = vld [vmem:[#allocation2 + $0x26e8] sm:$0xff]
    %v1331 = vld [vmem:[#allocation2 + $0x26f0] sm:$0xff]
    %v1332 = vld [vmem:[#allocation2 + $0x26f8] sm:$0xff]
    %v1333 = vld [vmem:[#allocation2 + $0x2700] sm:$0xff]
    %v1334 = vld [vmem:[#allocation2 + $0x2708] sm:$0xff]
    %v1335 = vld [vmem:[#allocation2 + $0x2710] sm:$0xff]
    %v1336 = vld [vmem:[#allocation2 + $0x2718] sm:$0xff]
    %v1337 = vld [vmem:[#allocation2 + $0x2720] sm:$0xff]
    %v1338 = vld [vmem:[#allocation2 + $0x2728] sm:$0xff]
    %v1339 = vld [vmem:[#allocation2 + $0x2730] sm:$0xff]
    %v1340 = vld [vmem:[#allocation2 + $0x2738] sm:$0xff]
    %v1341 = vld [vmem:[#allocation2 + $0x2740] sm:$0xff]
    %v1342 = vld [vmem:[#allocation2 + $0x2748] sm:$0xff]
    %v1343 = vld [vmem:[#allocation2 + $0x2750] sm:$0xff]
    %v1344 = vld [vmem:[#allocation2 + $0x2758] sm:$0xff]
    %v1345 = vld [vmem:[#allocation2 + $0x2760] sm:$0xff]
    %v1346 = vld [vmem:[#allocation2 + $0x2768] sm:$0xff]
    %v1347 = vld [vmem:[#allocation2 + $0x2770] sm:$0xff]
    %v1348 = vld [vmem:[#allocation2 + $0x2778] sm:$0xff]
    %v1349 = vld [vmem:[#allocation2 + $0x2780] sm:$0xff]
    %v1350 = vld [vmem:[#allocation2 + $0x2788] sm:$0xff]
    %v1351 = vld [vmem:[#allocation2 + $0x2790] sm:$0xff]
    %v1352 = vld [vmem:[#allocation2 + $0x2798] sm:$0xff]
    %v1353 = vld [vmem:[#allocation2 + $0x27a0] sm:$0xff]
    %v1354 = vld [vmem:[#allocation2 + $0x27a8] sm:$0xff]
    %v1355 = vld [vmem:[#allocation2 + $0x27b0] sm:$0xff]
    %v1356 = vld [vmem:[#allocation2 + $0x27b8] sm:$0xff]
    %v1357 = vld [vmem:[#allocation2 + $0x27c0] sm:$0xff]
    %v1358 = vld [vmem:[#allocation2 + $0x27c8] sm:$0xff]
    %v1359 = vld [vmem:[#allocation2 + $0x27d0] sm:$0xff]
    %v1360 = vld [vmem:[#allocation2 + $0x27d8] sm:$0xff]
    %v1361 = vld [vmem:[#allocation2 + $0x27e0] sm:$0xff]
    %v1362 = vld [vmem:[#allocation2 + $0x27e8] sm:$0xff]
    %v1363 = vld [vmem:[#allocation2 + $0x27f0] sm:$0xff]
    %v1364 = vld [vmem:[#allocation2 + $0x27f8] sm:$0xff]
    %v1365 = vld [vmem:[#allocation2 + $0x2800] sm:$0xff]
    %v1366 = vld [vmem:[#allocation2 + $0x2808] sm:$0xff]
    %v1367 = vld [vmem:[#allocation2 + $0x2810] sm:$0xff]
    %v1368 = vld [vmem:[#allocation2 + $0x2818] sm:$0xff]
    %v1369 = vld [vmem:[#allocation2 + $0x2820] sm:$0xff]
    %v1370 = vld [vmem:[#allocation2 + $0x2828] sm:$0xff]
    %v1371 = vld [vmem:[#allocation2 + $0x2830] sm:$0xff]
    %v1372 = vld [vmem:[#allocation2 + $0x2838] sm:$0xff]
    %v1373 = vld [vmem:[#allocation2 + $0x2840] sm:$0xff]
    %v1374 = vld [vmem:[#allocation2 + $0x2848] sm:$0xff]
    %v1375 = vld [vmem:[#allocation2 + $0x2850] sm:$0xff]
    %v1376 = vld [vmem:[#allocation2 + $0x2858] sm:$0xff]
    %v1377 = vld [vmem:[#allocation2 + $0x2860] sm:$0xff]
    %v1378 = vld [vmem:[#allocation2 + $0x2868] sm:$0xff]
    %v1379 = vld [vmem:[#allocation2 + $0x2870] sm:$0xff]
    %v1380 = vld [vmem:[#allocation2 + $0x2878] sm:$0xff]
    %v1381 = vld [vmem:[#allocation2 + $0x2880] sm:$0xff]
    %v1382 = vld [vmem:[#allocation2 + $0x2888] sm:$0xff]
    %v1383 = vld [vmem:[#allocation2 + $0x2890] sm:$0xff]
    %v1384 = vld [vmem:[#allocation2 + $0x2898] sm:$0xff]
    %v1385 = vld [vmem:[#allocation2 + $0x28a0] sm:$0xff]
    %v1386 = vld [vmem:[#allocation2 + $0x28a8] sm:$0xff]
    %v1387 = vld [vmem:[#allocation2 + $0x28b0] sm:$0xff]
    %v1388 = vld [vmem:[#allocation2 + $0x28b8] sm:$0xff]
    %v1389 = vld [vmem:[#allocation2 + $0x28c0] sm:$0xff]
    %v1390 = vld [vmem:[#allocation2 + $0x28c8] sm:$0xff]
    %v1391 = vld [vmem:[#allocation2 + $0x28d0] sm:$0xff]
    %v1392 = vld [vmem:[#allocation2 + $0x28d8] sm:$0xff]
    %v1393 = vld [vmem:[#allocation2 + $0x28e0] sm:$0xff]
    %v1394 = vld [vmem:[#allocation2 + $0x28e8] sm:$0xff]
    %v1395 = vld [vmem:[#allocation2 + $0x28f0] sm:$0xff]
    %v1396 = vld [vmem:[#allocation2 + $0x28f8] sm:$0xff]
    %v1397 = vld [vmem:[#allocation2 + $0x2900] sm:$0xff]
    %v1398 = vld [vmem:[#allocation2 + $0x2908] sm:$0xff]
    %v1399 = vld [vmem:[#allocation2 + $0x2910] sm:$0xff]
    %v1400 = vld [vmem:[#allocation2 + $0x2918] sm:$0xff]
    %v1401 = vld [vmem:[#allocation2 + $0x2920] sm:$0xff]
    %v1402 = vld [vmem:[#allocation2 + $0x2928] sm:$0xff]
    %v1403 = vld [vmem:[#allocation2 + $0x2930] sm:$0xff]
    %v1404 = vld [vmem:[#allocation2 + $0x2938] sm:$0xff]
    %v1405 = vld [vmem:[#allocation2 + $0x2940] sm:$0xff]
    %v1406 = vld [vmem:[#allocation2 + $0x2948] sm:$0xff]
    %v1407 = vld [vmem:[#allocation2 + $0x2950] sm:$0xff]
    %v1408 = vld [vmem:[#allocation2 + $0x2958] sm:$0xff]
    %v1409 = vld [vmem:[#allocation2 + $0x2960] sm:$0xff]
    %v1410 = vld [vmem:[#allocation2 + $0x2968] sm:$0xff]
    %v1411 = vld [vmem:[#allocation2 + $0x2970] sm:$0xff]
    %v1412 = vld [vmem:[#allocation2 + $0x2978] sm:$0xff]
    %v1413 = vld [vmem:[#allocation2 + $0x2980] sm:$0xff]
    %v1414 = vld [vmem:[#allocation2 + $0x2988] sm:$0xff]
    %v1415 = vld [vmem:[#allocation2 + $0x2990] sm:$0xff]
    %v1416 = vld [vmem:[#allocation2 + $0x2998] sm:$0xff]
    %v1417 = vld [vmem:[#allocation2 + $0x29a0] sm:$0xff]
    %v1418 = vld [vmem:[#allocation2 + $0x29a8] sm:$0xff]
    %v1419 = vld [vmem:[#allocation2 + $0x29b0] sm:$0xff]
    %v1420 = vld [vmem:[#allocation2 + $0x29b8] sm:$0xff]
    %v1421 = vld [vmem:[#allocation2 + $0x29c0] sm:$0xff]
    %v1422 = vld [vmem:[#allocation2 + $0x29c8] sm:$0xff]
    %v1423 = vld [vmem:[#allocation2 + $0x29d0] sm:$0xff]
    %v1424 = vld [vmem:[#allocation2 + $0x29d8] sm:$0xff]
    %v1425 = vld [vmem:[#allocation2 + $0x29e0] sm:$0xff]
    %v1426 = vld [vmem:[#allocation2 + $0x29e8] sm:$0xff]
    %v1427 = vld [vmem:[#allocation2 + $0x29f0] sm:$0xff]
    %v1428 = vld [vmem:[#allocation2 + $0x29f8] sm:$0xff]
    %v1429 = vld [vmem:[#allocation2 + $0x2a00] sm:$0xff]
    %v1430 = vld [vmem:[#allocation2 + $0x2a08] sm:$0xff]
    %v1431 = vld [vmem:[#allocation2 + $0x2a10] sm:$0xff]
    %v1432 = vld [vmem:[#allocation2 + $0x2a18] sm:$0xff]
    %v1433 = vld [vmem:[#allocation2 + $0x2a20] sm:$0xff]
    %v1434 = vld [vmem:[#allocation2 + $0x2a28] sm:$0xff]
    %v1435 = vld [vmem:[#allocation2 + $0x2a30] sm:$0xff]
    %v1436 = vld [vmem:[#allocation2 + $0x2a38] sm:$0xff]
    %v1437 = vld [vmem:[#allocation2 + $0x2a40] sm:$0xff]
    %v1438 = vld [vmem:[#allocation2 + $0x2a48] sm:$0xff]
    %v1439 = vld [vmem:[#allocation2 + $0x2a50] sm:$0xff]
    %v1440 = vld [vmem:[#allocation2 + $0x2a58] sm:$0xff]
    %v1441 = vld [vmem:[#allocation2 + $0x2a60] sm:$0xff]
    %v1442 = vld [vmem:[#allocation2 + $0x2a68] sm:$0xff]
    %v1443 = vld [vmem:[#allocation2 + $0x2a70] sm:$0xff]
    %v1444 = vld [vmem:[#allocation2 + $0x2a78] sm:$0xff]
    %v1445 = vld [vmem:[#allocation2 + $0x2a80] sm:$0xff]
    %v1446 = vld [vmem:[#allocation2 + $0x2a88] sm:$0xff]
    %v1447 = vld [vmem:[#allocation2 + $0x2a90] sm:$0xff]
    %v1448 = vld [vmem:[#allocation2 + $0x2a98] sm:$0xff]
    %v1449 = vld [vmem:[#allocation2 + $0x2aa0] sm:$0xff]
    %v1450 = vld [vmem:[#allocation2 + $0x2aa8] sm:$0xff]
    %v1451 = vld [vmem:[#allocation2 + $0x2ab0] sm:$0xff]
    %v1452 = vld [vmem:[#allocation2 + $0x2ab8] sm:$0xff]
    %v1453 = vld [vmem:[#allocation2 + $0x2ac0] sm:$0xff]
    %v1454 = vld [vmem:[#allocation2 + $0x2ac8] sm:$0xff]
    %v1455 = vld [vmem:[#allocation2 + $0x2ad0] sm:$0xff]
    %v1456 = vld [vmem:[#allocation2 + $0x2ad8] sm:$0xff]
    %v1457 = vld [vmem:[#allocation2 + $0x2ae0] sm:$0xff]
    %v1458 = vld [vmem:[#allocation2 + $0x2ae8] sm:$0xff]
    %v1459 = vld [vmem:[#allocation2 + $0x2af0] sm:$0xff]
    %v1460 = vld [vmem:[#allocation2 + $0x2af8] sm:$0xff]
    %v1461 = vld [vmem:[#allocation2 + $0x2b00] sm:$0xff]
    %v1462 = vld [vmem:[#allocation2 + $0x2b08] sm:$0xff]
    %v1463 = vld [vmem:[#allocation2 + $0x2b10] sm:$0xff]
    %v1464 = vld [vmem:[#allocation2 + $0x2b18] sm:$0xff]
    %v1465 = vld [vmem:[#allocation2 + $0x2b20] sm:$0xff]
    %v1466 = vld [vmem:[#allocation2 + $0x2b28] sm:$0xff]
    %v1467 = vld [vmem:[#allocation2 + $0x2b30] sm:$0xff]
    %v1468 = vld [vmem:[#allocation2 + $0x2b38] sm:$0xff]
    %v1469 = vld [vmem:[#allocation2 + $0x2b40] sm:$0xff]
    %v1470 = vld [vmem:[#allocation2 + $0x2b48] sm:$0xff]
    %v1471 = vld [vmem:[#allocation2 + $0x2b50] sm:$0xff]
    %v1472 = vld [vmem:[#allocation2 + $0x2b58] sm:$0xff]
    %v1473 = vld [vmem:[#allocation2 + $0x2b60] sm:$0xff]
    %v1474 = vld [vmem:[#allocation2 + $0x2b68] sm:$0xff]
    %v1475 = vld [vmem:[#allocation2 + $0x2b70] sm:$0xff]
    %v1476 = vld [vmem:[#allocation2 + $0x2b78] sm:$0xff]
    %v1477 = vld [vmem:[#allocation2 + $0x2b80] sm:$0xff]
    %v1478 = vld [vmem:[#allocation2 + $0x2b88] sm:$0xff]
    %v1479 = vld [vmem:[#allocation2 + $0x2b90] sm:$0xff]
    %v1480 = vld [vmem:[#allocation2 + $0x2b98] sm:$0xff]
    %v1481 = vld [vmem:[#allocation2 + $0x2ba0] sm:$0xff]
    %v1482 = vld [vmem:[#allocation2 + $0x2ba8] sm:$0xff]
    %v1483 = vld [vmem:[#allocation2 + $0x2bb0] sm:$0xff]
    %v1484 = vld [vmem:[#allocation2 + $0x2bb8] sm:$0xff]
    %v1485 = vld [vmem:[#allocation2 + $0x2bc0] sm:$0xff]
    %v1486 = vld [vmem:[#allocation2 + $0x2bc8] sm:$0xff]
    %v1487 = vld [vmem:[#allocation2 + $0x2bd0] sm:$0xff]
    %v1488 = vld [vmem:[#allocation2 + $0x2bd8] sm:$0xff]
    %v1489 = vld [vmem:[#allocation2 + $0x2be0] sm:$0xff]
    %v1490 = vld [vmem:[#allocation2 + $0x2be8] sm:$0xff]
    %v1491 = vld [vmem:[#allocation2 + $0x2bf0] sm:$0xff]
    %v1492 = vld [vmem:[#allocation2 + $0x2bf8] sm:$0xff]
    %v1493 = vld [vmem:[#allocation2 + $0x2c00] sm:$0xff]
    %v1494 = vld [vmem:[#allocation2 + $0x2c08] sm:$0xff]
    %v1495 = vld [vmem:[#allocation2 + $0x2c10] sm:$0xff]
    %v1496 = vld [vmem:[#allocation2 + $0x2c18] sm:$0xff]
    %v1497 = vld [vmem:[#allocation2 + $0x2c20] sm:$0xff]
    %v1498 = vld [vmem:[#allocation2 + $0x2c28] sm:$0xff]
    %v1499 = vld [vmem:[#allocation2 + $0x2c30] sm:$0xff]
    %v1500 = vld [vmem:[#allocation2 + $0x2c38] sm:$0xff]
    %v1501 = vld [vmem:[#allocation2 + $0x2c40] sm:$0xff]
    %v1502 = vld [vmem:[#allocation2 + $0x2c48] sm:$0xff]
    %v1503 = vld [vmem:[#allocation2 + $0x2c50] sm:$0xff]
    %v1504 = vld [vmem:[#allocation2 + $0x2c58] sm:$0xff]
    %v1505 = vld [vmem:[#allocation2 + $0x2c60] sm:$0xff]
    %v1506 = vld [vmem:[#allocation2 + $0x2c68] sm:$0xff]
    %v1507 = vld [vmem:[#allocation2 + $0x2c70] sm:$0xff]
    %v1508 = vld [vmem:[#allocation2 + $0x2c78] sm:$0xff]
    %v1509 = vld [vmem:[#allocation2 + $0x2c80] sm:$0xff]
    %v1510 = vld [vmem:[#allocation2 + $0x2c88] sm:$0xff]
    %v1511 = vld [vmem:[#allocation2 + $0x2c90] sm:$0xff]
    %v1512 = vld [vmem:[#allocation2 + $0x2c98] sm:$0xff]
    %v1513 = vld [vmem:[#allocation2 + $0x2ca0] sm:$0xff]
    %v1514 = vld [vmem:[#allocation2 + $0x2ca8] sm:$0xff]
    %v1515 = vld [vmem:[#allocation2 + $0x2cb0] sm:$0xff]
    %v1516 = vld [vmem:[#allocation2 + $0x2cb8] sm:$0xff]
    %v1517 = vld [vmem:[#allocation2 + $0x2cc0] sm:$0xff]
    %v1518 = vld [vmem:[#allocation2 + $0x2cc8] sm:$0xff]
    %v1519 = vld [vmem:[#allocation2 + $0x2cd0] sm:$0xff]
    %v1520 = vld [vmem:[#allocation2 + $0x2cd8] sm:$0xff]
    %v1521 = vld [vmem:[#allocation2 + $0x2ce0] sm:$0xff]
    %v1522 = vld [vmem:[#allocation2 + $0x2ce8] sm:$0xff]
    %v1523 = vld [vmem:[#allocation2 + $0x2cf0] sm:$0xff]
    %v1524 = vld [vmem:[#allocation2 + $0x2cf8] sm:$0xff]
    %v1525 = vld [vmem:[#allocation2 + $0x2d00] sm:$0xff]
    %v1526 = vld [vmem:[#allocation2 + $0x2d08] sm:$0xff]
    %v1527 = vld [vmem:[#allocation2 + $0x2d10] sm:$0xff]
    %v1528 = vld [vmem:[#allocation2 + $0x2d18] sm:$0xff]
    %v1529 = vld [vmem:[#allocation2 + $0x2d20] sm:$0xff]
    %v1530 = vld [vmem:[#allocation2 + $0x2d28] sm:$0xff]
    %v1531 = vld [vmem:[#allocation2 + $0x2d30] sm:$0xff]
    %v1532 = vld [vmem:[#allocation2 + $0x2d38] sm:$0xff]
    %v1533 = vld [vmem:[#allocation2 + $0x2d40] sm:$0xff]
    %v1534 = vld [vmem:[#allocation2 + $0x2d48] sm:$0xff]
    %v1535 = vld [vmem:[#allocation2 + $0x2d50] sm:$0xff]
    %v1536 = vld [vmem:[#allocation2 + $0x2d58] sm:$0xff]
    %v1537 = vld [vmem:[#allocation2 + $0x2d60] sm:$0xff]
    %v1538 = vld [vmem:[#allocation2 + $0x2d68] sm:$0xff]
    %v1539 = vld [vmem:[#allocation2 + $0x2d70] sm:$0xff]
    %v1540 = vld [vmem:[#allocation2 + $0x2d78] sm:$0xff]
    %v1541 = vld [vmem:[#allocation2 + $0x2d80] sm:$0xff]
    %v1542 = vld [vmem:[#allocation2 + $0x2d88] sm:$0xff]
    %v1543 = vld [vmem:[#allocation2 + $0x2d90] sm:$0xff]
    %v1544 = vld [vmem:[#allocation2 + $0x2d98] sm:$0xff]
    %v1545 = vld [vmem:[#allocation2 + $0x2da0] sm:$0xff]
    %v1546 = vld [vmem:[#allocation2 + $0x2da8] sm:$0xff]
    %v1547 = vld [vmem:[#allocation2 + $0x2db0] sm:$0xff]
    %v1548 = vld [vmem:[#allocation2 + $0x2db8] sm:$0xff]
    %v1549 = vld [vmem:[#allocation2 + $0x2dc0] sm:$0xff]
    %v1550 = vld [vmem:[#allocation2 + $0x2dc8] sm:$0xff]
    %v1551 = vld [vmem:[#allocation2 + $0x2dd0] sm:$0xff]
    %v1552 = vld [vmem:[#allocation2 + $0x2dd8] sm:$0xff]
    %v1553 = vld [vmem:[#allocation2 + $0x2de0] sm:$0xff]
    %v1554 = vld [vmem:[#allocation2 + $0x2de8] sm:$0xff]
    %v1555 = vld [vmem:[#allocation2 + $0x2df0] sm:$0xff]
    %v1556 = vld [vmem:[#allocation2 + $0x2df8] sm:$0xff]
    %v1557 = vld [vmem:[#allocation2 + $0x2e00] sm:$0xff]
    %v1558 = vld [vmem:[#allocation2 + $0x2e08] sm:$0xff]
    %v1559 = vld [vmem:[#allocation2 + $0x2e10] sm:$0xff]
    %v1560 = vld [vmem:[#allocation2 + $0x2e18] sm:$0xff]
    %v1561 = vld [vmem:[#allocation2 + $0x2e20] sm:$0xff]
    %v1562 = vld [vmem:[#allocation2 + $0x2e28] sm:$0xff]
    %v1563 = vld [vmem:[#allocation2 + $0x2e30] sm:$0xff]
    %v1564 = vld [vmem:[#allocation2 + $0x2e38] sm:$0xff]
    %v1565 = vld [vmem:[#allocation2 + $0x2e40] sm:$0xff]
    %v1566 = vld [vmem:[#allocation2 + $0x2e48] sm:$0xff]
    %v1567 = vld [vmem:[#allocation2 + $0x2e50] sm:$0xff]
    %v1568 = vld [vmem:[#allocation2 + $0x2e58] sm:$0xff]
    %v1569 = vld [vmem:[#allocation2 + $0x2e60] sm:$0xff]
    %v1570 = vld [vmem:[#allocation2 + $0x2e68] sm:$0xff]
    %v1571 = vld [vmem:[#allocation2 + $0x2e70] sm:$0xff]
    %v1572 = vld [vmem:[#allocation2 + $0x2e78] sm:$0xff]
    %v1573 = vld [vmem:[#allocation2 + $0x2e80] sm:$0xff]
    %v1574 = vld [vmem:[#allocation2 + $0x2e88] sm:$0xff]
    %v1575 = vld [vmem:[#allocation2 + $0x2e90] sm:$0xff]
    %v1576 = vld [vmem:[#allocation2 + $0x2e98] sm:$0xff]
    %v1577 = vld [vmem:[#allocation2 + $0x2ea0] sm:$0xff]
    %v1578 = vld [vmem:[#allocation2 + $0x2ea8] sm:$0xff]
    %v1579 = vld [vmem:[#allocation2 + $0x2eb0] sm:$0xff]
    %v1580 = vld [vmem:[#allocation2 + $0x2eb8] sm:$0xff]
    %v1581 = vld [vmem:[#allocation2 + $0x2ec0] sm:$0xff]
    %v1582 = vld [vmem:[#allocation2 + $0x2ec8] sm:$0xff]
    %v1583 = vld [vmem:[#allocation2 + $0x2ed0] sm:$0xff]
    %v1584 = vld [vmem:[#allocation2 + $0x2ed8] sm:$0xff]
    %v1585 = vld [vmem:[#allocation2 + $0x2ee0] sm:$0xff]
    %v1586 = vld [vmem:[#allocation2 + $0x2ee8] sm:$0xff]
    %v1587 = vld [vmem:[#allocation2 + $0x2ef0] sm:$0xff]
    %v1588 = vld [vmem:[#allocation2 + $0x2ef8] sm:$0xff]
    %v1589 = vld [vmem:[#allocation2 + $0x2f00] sm:$0xff]
    %v1590 = vld [vmem:[#allocation2 + $0x2f08] sm:$0xff]
    %v1591 = vld [vmem:[#allocation2 + $0x2f10] sm:$0xff]
    %v1592 = vld [vmem:[#allocation2 + $0x2f18] sm:$0xff]
    %v1593 = vld [vmem:[#allocation2 + $0x2f20] sm:$0xff]
    %v1594 = vld [vmem:[#allocation2 + $0x2f28] sm:$0xff]
    %v1595 = vld [vmem:[#allocation2 + $0x2f30] sm:$0xff]
    %v1596 = vld [vmem:[#allocation2 + $0x2f38] sm:$0xff]
    %v1597 = vld [vmem:[#allocation2 + $0x2f40] sm:$0xff]
    %v1598 = vld [vmem:[#allocation2 + $0x2f48] sm:$0xff]
    %v1599 = vld [vmem:[#allocation2 + $0x2f50] sm:$0xff]
    %v1600 = vld [vmem:[#allocation2 + $0x2f58] sm:$0xff]
    %v1601 = vld [vmem:[#allocation2 + $0x2f60] sm:$0xff]
    %v1602 = vld [vmem:[#allocation2 + $0x2f68] sm:$0xff]
    %v1603 = vld [vmem:[#allocation2 + $0x2f70] sm:$0xff]
    %v1604 = vld [vmem:[#allocation2 + $0x2f78] sm:$0xff]
    %v1605 = vld [vmem:[#allocation2 + $0x2f80] sm:$0xff]
    %v1606 = vld [vmem:[#allocation2 + $0x2f88] sm:$0xff]
    %v1607 = vld [vmem:[#allocation2 + $0x2f90] sm:$0xff]
    %v1608 = vld [vmem:[#allocation2 + $0x2f98] sm:$0xff]
    %v1609 = vld [vmem:[#allocation2 + $0x2fa0] sm:$0xff]
    %v1610 = vld [vmem:[#allocation2 + $0x2fa8] sm:$0xff]
    %v1611 = vld [vmem:[#allocation2 + $0x2fb0] sm:$0xff]
    %v1612 = vld [vmem:[#allocation2 + $0x2fb8] sm:$0xff]
    %v1613 = vld [vmem:[#allocation2 + $0x2fc0] sm:$0xff]
    %v1614 = vld [vmem:[#allocation2 + $0x2fc8] sm:$0xff]
    %v1615 = vld [vmem:[#allocation2 + $0x2fd0] sm:$0xff]
    %v1616 = vld [vmem:[#allocation2 + $0x2fd8] sm:$0xff]
    %v1617 = vld [vmem:[#allocation2 + $0x2fe0] sm:$0xff]
    %v1618 = vld [vmem:[#allocation2 + $0x2fe8] sm:$0xff]
    %v1619 = vld [vmem:[#allocation2 + $0x2ff0] sm:$0xff]
    %v1620 = vld [vmem:[#allocation2 + $0x2ff8] sm:$0xff]
    %v1621 = vld [vmem:[#allocation2 + $0x3000] sm:$0xff]
    %v1622 = vld [vmem:[#allocation2 + $0x3008] sm:$0xff]
    %v1623 = vld [vmem:[#allocation2 + $0x3010] sm:$0xff]
    %v1624 = vld [vmem:[#allocation2 + $0x3018] sm:$0xff]
    %v1625 = vld [vmem:[#allocation2 + $0x3020] sm:$0xff]
    %v1626 = vld [vmem:[#allocation2 + $0x3028] sm:$0xff]
    %v1627 = vld [vmem:[#allocation2 + $0x3030] sm:$0xff]
    %v1628 = vld [vmem:[#allocation2 + $0x3038] sm:$0xff]
    %v1629 = vld [vmem:[#allocation2 + $0x3040] sm:$0xff]
    %v1630 = vld [vmem:[#allocation2 + $0x3048] sm:$0xff]
    %v1631 = vld [vmem:[#allocation2 + $0x3050] sm:$0xff]
    %v1632 = vld [vmem:[#allocation2 + $0x3058] sm:$0xff]
    %v1633 = vld [vmem:[#allocation2 + $0x3060] sm:$0xff]
    %v1634 = vld [vmem:[#allocation2 + $0x3068] sm:$0xff]
    %v1635 = vld [vmem:[#allocation2 + $0x3070] sm:$0xff]
    %v1636 = vld [vmem:[#allocation2 + $0x3078] sm:$0xff]
    %v1637 = vld [vmem:[#allocation2 + $0x3080] sm:$0xff]
    %v1638 = vld [vmem:[#allocation2 + $0x3088] sm:$0xff]
    %v1639 = vld [vmem:[#allocation2 + $0x3090] sm:$0xff]
    %v1640 = vld [vmem:[#allocation2 + $0x3098] sm:$0xff]
    %v1641 = vld [vmem:[#allocation2 + $0x30a0] sm:$0xff]
    %v1642 = vld [vmem:[#allocation2 + $0x30a8] sm:$0xff]
    %v1643 = vld [vmem:[#allocation2 + $0x30b0] sm:$0xff]
    %v1644 = vld [vmem:[#allocation2 + $0x30b8] sm:$0xff]
    %v1645 = vld [vmem:[#allocation2 + $0x30c0] sm:$0xff]
    %v1646 = vld [vmem:[#allocation2 + $0x30c8] sm:$0xff]
    %v1647 = vld [vmem:[#allocation2 + $0x30d0] sm:$0xff]
    %v1648 = vld [vmem:[#allocation2 + $0x30d8] sm:$0xff]
    %v1649 = vld [vmem:[#allocation2 + $0x30e0] sm:$0xff]
    %v1650 = vld [vmem:[#allocation2 + $0x30e8] sm:$0xff]
    %v1651 = vld [vmem:[#allocation2 + $0x30f0] sm:$0xff]
    %v1652 = vld [vmem:[#allocation2 + $0x30f8] sm:$0xff]
    %v1653 = vld [vmem:[#allocation4] sm:$0xff]
    %v1655 = vlaneseq
    %v1656 = vshrl.u32 %v1655, 7
    %v1657 = vsub.s32 0, %v1656
    %v1658 = vrot.slane %v1653, %v1657
    %v1659 = vlaneseq
    %v1660 = vshrl.u32 %v1659, 7
    %v1661 = vsub.s32 1, %v1660
    %v1662 = vrot.slane %v1653, %v1661
    %v1663 = vlaneseq
    %v1664 = vshrl.u32 %v1663, 7
    %v1665 = vsub.s32 2, %v1664
    %v1666 = vrot.slane %v1653, %v1665
    %v1667 = vlaneseq
    %v1668 = vshrl.u32 %v1667, 7
    %v1669 = vsub.s32 3, %v1668
    %v1670 = vrot.slane %v1653, %v1669
    %v1671 = vlaneseq
    %v1672 = vshrl.u32 %v1671, 7
    %v1673 = vsub.s32 4, %v1672
    %v1674 = vrot.slane %v1653, %v1673
    %v1675 = vlaneseq
    %v1676 = vshrl.u32 %v1675, 7
    %v1677 = vsub.s32 5, %v1676
    %v1678 = vrot.slane %v1653, %v1677
    %v1679 = vlaneseq
    %v1680 = vshrl.u32 %v1679, 7
    %v1681 = vsub.s32 6, %v1680
    %v1682 = vrot.slane %v1653, %v1681
    %v1683 = vlaneseq
    %v1684 = vshrl.u32 %v1683, 7
    %v1685 = vsub.s32 7, %v1684
    %v1686 = vrot.slane %v1653, %v1685
    %v1708 = vunpack.c.l.b16 %v72
    %v1709 = vunpack.c.h.b16 %v72
    %v1710 = vunpack.c.l.b16 %v73
    %v1711 = vunpack.c.h.b16 %v73
    %v1712 = vunpack.c.l.b16 %v74
    %v1713 = vunpack.c.h.b16 %v74
    %v1714 = vunpack.c.l.b16 %v75
    %v1715 = vunpack.c.h.b16 %v75
    %v1716 = vunpack.c.l.b16 %v76
    %v1717 = vunpack.c.h.b16 %v76
    %v1718 = vunpack.c.l.b16 %v77
    %v1719 = vunpack.c.h.b16 %v77
    %v1720 = vunpack.c.l.b16 %v78
    %v1721 = vunpack.c.h.b16 %v78
    %v1722 = vunpack.c.l.b16 %v79
    %v1723 = vunpack.c.h.b16 %v79
    %v1724 = vunpack.c.l.b16 %v80
    %v1725 = vunpack.c.h.b16 %v80
    %v1726 = vunpack.c.l.b16 %v81
    %v1727 = vunpack.c.h.b16 %v81
    %v1728 = vunpack.c.l.b16 %v82
    %v1729 = vunpack.c.h.b16 %v82
    %v1730 = vunpack.c.l.b16 %v83
    %v1731 = vunpack.c.h.b16 %v83
    %v1732 = vunpack.c.l.b16 %v84
    %v1733 = vpack.c.b16 %v1708, %v1708
    %v1734 = vpack.c.b16 %v1709, %v1709
    %v1735 = vpack.c.b16 %v1710, %v1710
    %v1736 = vpack.c.b16 %v1711, %v1711
    %v1737 = vpack.c.b16 %v1712, %v1712
    %v1738 = vpack.c.b16 %v1713, %v1713
    %v1739 = vpack.c.b16 %v1714, %v1714
    %v1740 = vpack.c.b16 %v1715, %v1715
    %v1741 = vpack.c.b16 %v1716, %v1716
    %v1742 = vpack.c.b16 %v1717, %v1717
    %v1743 = vpack.c.b16 %v1718, %v1718
    %v1744 = vpack.c.b16 %v1719, %v1719
    %v1745 = vpack.c.b16 %v1720, %v1720
    %v1746 = vpack.c.b16 %v1721, %v1721
    %v1747 = vpack.c.b16 %v1722, %v1722
    %v1748 = vpack.c.b16 %v1723, %v1723
    %v1749 = vpack.c.b16 %v1724, %v1724
    %v1750 = vpack.c.b16 %v1725, %v1725
    %v1751 = vpack.c.b16 %v1726, %v1726
    %v1752 = vpack.c.b16 %v1727, %v1727
    %v1753 = vpack.c.b16 %v1728, %v1728
    %v1754 = vpack.c.b16 %v1729, %v1729
    %v1755 = vpack.c.b16 %v1730, %v1730
    %v1756 = vpack.c.b16 %v1731, %v1731
    %v1757 = vpack.c.b16 %v1732, %v1732
    %v3350 = vunpack.c.l.b16 %v85
    %v3351 = vunpack.c.h.b16 %v85
    %v3352 = vunpack.c.l.b16 %v86
    %v3353 = vunpack.c.h.b16 %v86
    %v3354 = vunpack.c.l.b16 %v87
    %v3355 = vunpack.c.h.b16 %v87
    %v3356 = vunpack.c.l.b16 %v88
    %v3357 = vunpack.c.h.b16 %v88
    %v3358 = vunpack.c.l.b16 %v89
    %v3359 = vunpack.c.h.b16 %v89
    %v3360 = vunpack.c.l.b16 %v90
    %v3361 = vunpack.c.h.b16 %v90
    %v3362 = vunpack.c.l.b16 %v91
    %v3363 = vunpack.c.h.b16 %v91
    %v3364 = vunpack.c.l.b16 %v92
    %v3365 = vunpack.c.h.b16 %v92
    %v3366 = vunpack.c.l.b16 %v93
    %v3367 = vunpack.c.h.b16 %v93
    %v3368 = vunpack.c.l.b16 %v94
    %v3369 = vunpack.c.h.b16 %v94
    %v3370 = vunpack.c.l.b16 %v95
    %v3371 = vunpack.c.h.b16 %v95
    %v3372 = vunpack.c.l.b16 %v96
    %v3373 = vunpack.c.h.b16 %v96
    %v3374 = vunpack.c.l.b16 %v97
    %v3375 = vunpack.c.h.b16 %v97
    %v3376 = vunpack.c.l.b16 %v98
    %v3377 = vunpack.c.h.b16 %v98
    %v3378 = vunpack.c.l.b16 %v99
    %v3379 = vunpack.c.h.b16 %v99
    %v3380 = vunpack.c.l.b16 %v100
    %v3381 = vunpack.c.h.b16 %v100
    %v3382 = vunpack.c.l.b16 %v101
    %v3383 = vunpack.c.h.b16 %v101
    %v3384 = vunpack.c.l.b16 %v102
    %v3385 = vunpack.c.h.b16 %v102
    %v3386 = vunpack.c.l.b16 %v103
    %v3387 = vunpack.c.h.b16 %v103
    %v3388 = vunpack.c.l.b16 %v104
    %v3389 = vunpack.c.h.b16 %v104
    %v3390 = vunpack.c.l.b16 %v105
    %v3391 = vunpack.c.h.b16 %v105
    %v3392 = vunpack.c.l.b16 %v106
    %v3393 = vunpack.c.h.b16 %v106
    %v3394 = vunpack.c.l.b16 %v107
    %v3395 = vunpack.c.h.b16 %v107
    %v3396 = vunpack.c.l.b16 %v108
    %v3397 = vunpack.c.h.b16 %v108
    %v3398 = vunpack.c.l.b16 %v109
    %v3399 = vunpack.c.h.b16 %v109
    %v3400 = vunpack.c.l.b16 %v110
    %v3401 = vunpack.c.h.b16 %v110
    %v3402 = vunpack.c.l.b16 %v111
    %v3403 = vunpack.c.h.b16 %v111
    %v3404 = vunpack.c.l.b16 %v112
    %v3405 = vunpack.c.h.b16 %v112
    %v3406 = vunpack.c.l.b16 %v113
    %v3407 = vunpack.c.h.b16 %v113
    %v3408 = vunpack.c.l.b16 %v114
    %v3409 = vunpack.c.h.b16 %v114
    %v3410 = vunpack.c.l.b16 %v115
    %v3411 = vunpack.c.h.b16 %v115
    %v3412 = vunpack.c.l.b16 %v116
    %v3413 = vunpack.c.h.b16 %v116
    %v3414 = vunpack.c.l.b16 %v117
    %v3415 = vunpack.c.h.b16 %v117
    %v3416 = vunpack.c.l.b16 %v118
    %v3417 = vunpack.c.h.b16 %v118
    %v3418 = vunpack.c.l.b16 %v119
    %v3419 = vunpack.c.h.b16 %v119
    %v3420 = vunpack.c.l.b16 %v120
    %v3421 = vunpack.c.h.b16 %v120
    %v3422 = vunpack.c.l.b16 %v121
    %v3423 = vunpack.c.h.b16 %v121
    %v3424 = vunpack.c.l.b16 %v122
    %v3425 = vunpack.c.h.b16 %v122
    %v3426 = vunpack.c.l.b16 %v123
    %v3427 = vunpack.c.h.b16 %v123
    %v3428 = vunpack.c.l.b16 %v124
    %v3429 = vunpack.c.h.b16 %v124
    %v3430 = vunpack.c.l.b16 %v125
    %v3431 = vunpack.c.h.b16 %v125
    %v3432 = vunpack.c.l.b16 %v126
    %v3433 = vunpack.c.h.b16 %v126
    %v3434 = vunpack.c.l.b16 %v127
    %v3435 = vunpack.c.h.b16 %v127
    %v3436 = vunpack.c.l.b16 %v128
    %v3437 = vunpack.c.h.b16 %v128
    %v3438 = vunpack.c.l.b16 %v129
    %v3439 = vunpack.c.h.b16 %v129
    %v3440 = vunpack.c.l.b16 %v130
    %v3441 = vunpack.c.h.b16 %v130
    %v3442 = vunpack.c.l.b16 %v131
    %v3443 = vunpack.c.h.b16 %v131
    %v3444 = vunpack.c.l.b16 %v132
    %v3445 = vunpack.c.h.b16 %v132
    %v3446 = vunpack.c.l.b16 %v133
    %v3447 = vunpack.c.h.b16 %v133
    %v3448 = vunpack.c.l.b16 %v134
    %v3449 = vunpack.c.h.b16 %v134
    %v3450 = vunpack.c.l.b16 %v135
    %v3451 = vunpack.c.h.b16 %v135
    %v3452 = vunpack.c.l.b16 %v136
    %v3453 = vunpack.c.h.b16 %v136
    %v3454 = vunpack.c.l.b16 %v137
    %v3455 = vunpack.c.h.b16 %v137
    %v3456 = vunpack.c.l.b16 %v138
    %v3457 = vunpack.c.h.b16 %v138
    %v3458 = vunpack.c.l.b16 %v139
    %v3459 = vunpack.c.h.b16 %v139
    %v3460 = vunpack.c.l.b16 %v140
    %v3461 = vunpack.c.h.b16 %v140
    %v3462 = vunpack.c.l.b16 %v141
    %v3463 = vunpack.c.h.b16 %v141
    %v3464 = vunpack.c.l.b16 %v142
    %v3465 = vunpack.c.h.b16 %v142
    %v3466 = vunpack.c.l.b16 %v143
    %v3467 = vunpack.c.h.b16 %v143
    %v3468 = vunpack.c.l.b16 %v144
    %v3469 = vunpack.c.h.b16 %v144
    %v3470 = vunpack.c.l.b16 %v145
    %v3471 = vunpack.c.h.b16 %v145
    %v3472 = vunpack.c.l.b16 %v146
    %v3473 = vunpack.c.h.b16 %v146
    %v3474 = vunpack.c.l.b16 %v147
    %v3475 = vunpack.c.h.b16 %v147
    %v3476 = vunpack.c.l.b16 %v148
    %v3477 = vunpack.c.h.b16 %v148
    %v3478 = vunpack.c.l.b16 %v149
    %v3479 = vunpack.c.h.b16 %v149
    %v3480 = vunpack.c.l.b16 %v150
    %v3481 = vunpack.c.h.b16 %v150
    %v3482 = vunpack.c.l.b16 %v151
    %v3483 = vunpack.c.h.b16 %v151
    %v3484 = vunpack.c.l.b16 %v152
    %v3485 = vunpack.c.h.b16 %v152
    %v3486 = vunpack.c.l.b16 %v153
    %v3487 = vunpack.c.h.b16 %v153
    %v3488 = vunpack.c.l.b16 %v154
    %v3489 = vunpack.c.h.b16 %v154
    %v3490 = vunpack.c.l.b16 %v155
    %v3491 = vunpack.c.h.b16 %v155
    %v3492 = vunpack.c.l.b16 %v156
    %v3493 = vunpack.c.h.b16 %v156
    %v3494 = vunpack.c.l.b16 %v157
    %v3495 = vunpack.c.h.b16 %v157
    %v3496 = vunpack.c.l.b16 %v158
    %v3497 = vunpack.c.h.b16 %v158
    %v3498 = vunpack.c.l.b16 %v159
    %v3499 = vunpack.c.h.b16 %v159
    %v3500 = vunpack.c.l.b16 %v160
    %v3501 = vunpack.c.h.b16 %v160
    %v3502 = vunpack.c.l.b16 %v161
    %v3503 = vunpack.c.h.b16 %v161
    %v3504 = vunpack.c.l.b16 %v162
    %v3505 = vunpack.c.h.b16 %v162
    %v3506 = vunpack.c.l.b16 %v163
    %v3507 = vunpack.c.h.b16 %v163
    %v3508 = vunpack.c.l.b16 %v164
    %v3509 = vunpack.c.h.b16 %v164
    %v3510 = vunpack.c.l.b16 %v165
    %v3511 = vunpack.c.h.b16 %v165
    %v3512 = vunpack.c.l.b16 %v166
    %v3513 = vunpack.c.h.b16 %v166
    %v3514 = vunpack.c.l.b16 %v167
    %v3515 = vunpack.c.h.b16 %v167
    %v3516 = vunpack.c.l.b16 %v168
    %v3517 = vunpack.c.h.b16 %v168
    %v3518 = vunpack.c.l.b16 %v169
    %v3519 = vunpack.c.h.b16 %v169
    %v3520 = vunpack.c.l.b16 %v170
    %v3521 = vunpack.c.h.b16 %v170
    %v3522 = vunpack.c.l.b16 %v171
    %v3523 = vunpack.c.h.b16 %v171
    %v3524 = vunpack.c.l.b16 %v172
    %v3525 = vunpack.c.h.b16 %v172
    %v3526 = vunpack.c.l.b16 %v173
    %v3527 = vunpack.c.h.b16 %v173
    %v3528 = vunpack.c.l.b16 %v174
    %v3529 = vunpack.c.h.b16 %v174
    %v3530 = vunpack.c.l.b16 %v175
    %v3531 = vunpack.c.h.b16 %v175
    %v3532 = vunpack.c.l.b16 %v176
    %v3533 = vunpack.c.h.b16 %v176
    %v3534 = vunpack.c.l.b16 %v177
    %v3535 = vunpack.c.h.b16 %v177
    %v3536 = vunpack.c.l.b16 %v178
    %v3537 = vunpack.c.h.b16 %v178
    %v3538 = vunpack.c.l.b16 %v179
    %v3539 = vunpack.c.h.b16 %v179
    %v3540 = vunpack.c.l.b16 %v180
    %v3541 = vunpack.c.h.b16 %v180
    %v3542 = vunpack.c.l.b16 %v181
    %v3543 = vunpack.c.h.b16 %v181
    %v3544 = vunpack.c.l.b16 %v182
    %v3545 = vunpack.c.h.b16 %v182
    %v3546 = vunpack.c.l.b16 %v183
    %v3547 = vunpack.c.h.b16 %v183
    %v3548 = vunpack.c.l.b16 %v184
    %v3549 = vunpack.c.h.b16 %v184
    %v3550 = vunpack.c.l.b16 %v185
    %v3551 = vunpack.c.h.b16 %v185
    %v3552 = vunpack.c.l.b16 %v186
    %v3553 = vunpack.c.h.b16 %v186
    %v3554 = vunpack.c.l.b16 %v187
    %v3555 = vunpack.c.h.b16 %v187
    %v3556 = vunpack.c.l.b16 %v188
    %v3557 = vunpack.c.h.b16 %v188
    %v3558 = vunpack.c.l.b16 %v189
    %v3559 = vunpack.c.h.b16 %v189
    %v3560 = vunpack.c.l.b16 %v190
    %v3561 = vunpack.c.h.b16 %v190
    %v3562 = vunpack.c.l.b16 %v191
    %v3563 = vunpack.c.h.b16 %v191
    %v3564 = vunpack.c.l.b16 %v192
    %v3565 = vunpack.c.h.b16 %v192
    %v3566 = vunpack.c.l.b16 %v193
    %v3567 = vunpack.c.h.b16 %v193
    %v3568 = vunpack.c.l.b16 %v194
    %v3569 = vunpack.c.h.b16 %v194
    %v3570 = vunpack.c.l.b16 %v195
    %v3571 = vunpack.c.h.b16 %v195
    %v3572 = vunpack.c.l.b16 %v196
    %v3573 = vunpack.c.h.b16 %v196
    %v3574 = vunpack.c.l.b16 %v197
    %v3575 = vunpack.c.h.b16 %v197
    %v3576 = vunpack.c.l.b16 %v198
    %v3577 = vunpack.c.h.b16 %v198
    %v3578 = vunpack.c.l.b16 %v199
    %v3579 = vunpack.c.h.b16 %v199
    %v3580 = vunpack.c.l.b16 %v200
    %v3581 = vunpack.c.h.b16 %v200
    %v3582 = vunpack.c.l.b16 %v201
    %v3583 = vunpack.c.h.b16 %v201
    %v3584 = vunpack.c.l.b16 %v202
    %v3585 = vunpack.c.h.b16 %v202
    %v3586 = vunpack.c.l.b16 %v203
    %v3587 = vunpack.c.h.b16 %v203
    %v3588 = vunpack.c.l.b16 %v204
    %v3589 = vunpack.c.h.b16 %v204
    %v3590 = vunpack.c.l.b16 %v205
    %v3591 = vunpack.c.h.b16 %v205
    %v3592 = vunpack.c.l.b16 %v206
    %v3593 = vunpack.c.h.b16 %v206
    %v3594 = vunpack.c.l.b16 %v207
    %v3595 = vunpack.c.h.b16 %v207
    %v3596 = vunpack.c.l.b16 %v208
    %v3597 = vunpack.c.h.b16 %v208
    %v3598 = vunpack.c.l.b16 %v209
    %v3599 = vunpack.c.h.b16 %v209
    %v3600 = vunpack.c.l.b16 %v210
    %v3601 = vunpack.c.h.b16 %v210
    %v3602 = vunpack.c.l.b16 %v211
    %v3603 = vunpack.c.h.b16 %v211
    %v3604 = vunpack.c.l.b16 %v212
    %v3605 = vunpack.c.h.b16 %v212
    %v3606 = vunpack.c.l.b16 %v213
    %v3607 = vunpack.c.h.b16 %v213
    %v3608 = vunpack.c.l.b16 %v214
    %v3609 = vunpack.c.h.b16 %v214
    %v3610 = vunpack.c.l.b16 %v215
    %v3611 = vunpack.c.h.b16 %v215
    %v3612 = vunpack.c.l.b16 %v216
    %v3613 = vunpack.c.h.b16 %v216
    %v3614 = vunpack.c.l.b16 %v217
    %v3615 = vunpack.c.h.b16 %v217
    %v3616 = vunpack.c.l.b16 %v218
    %v3617 = vunpack.c.h.b16 %v218
    %v3618 = vunpack.c.l.b16 %v219
    %v3619 = vunpack.c.h.b16 %v219
    %v3620 = vunpack.c.l.b16 %v220
    %v3621 = vunpack.c.h.b16 %v220
    %v3622 = vunpack.c.l.b16 %v221
    %v3623 = vunpack.c.h.b16 %v221
    %v3624 = vunpack.c.l.b16 %v222
    %v3625 = vunpack.c.h.b16 %v222
    %v3626 = vunpack.c.l.b16 %v223
    %v3627 = vunpack.c.h.b16 %v223
    %v3628 = vunpack.c.l.b16 %v224
    %v3629 = vunpack.c.h.b16 %v224
    %v3630 = vunpack.c.l.b16 %v225
    %v3631 = vunpack.c.h.b16 %v225
    %v3632 = vunpack.c.l.b16 %v226
    %v3633 = vunpack.c.h.b16 %v226
    %v3634 = vunpack.c.l.b16 %v227
    %v3635 = vunpack.c.h.b16 %v227
    %v3636 = vunpack.c.l.b16 %v228
    %v3637 = vunpack.c.h.b16 %v228
    %v3638 = vunpack.c.l.b16 %v229
    %v3639 = vunpack.c.h.b16 %v229
    %v3640 = vunpack.c.l.b16 %v230
    %v3641 = vunpack.c.h.b16 %v230
    %v3642 = vunpack.c.l.b16 %v231
    %v3643 = vunpack.c.h.b16 %v231
    %v3644 = vunpack.c.l.b16 %v232
    %v3645 = vunpack.c.h.b16 %v232
    %v3646 = vunpack.c.l.b16 %v233
    %v3647 = vunpack.c.h.b16 %v233
    %v3648 = vunpack.c.l.b16 %v234
    %v3649 = vunpack.c.h.b16 %v234
    %v3650 = vunpack.c.l.b16 %v235
    %v3651 = vunpack.c.h.b16 %v235
    %v3652 = vunpack.c.l.b16 %v236
    %v3653 = vunpack.c.h.b16 %v236
    %v3654 = vunpack.c.l.b16 %v237
    %v3655 = vunpack.c.h.b16 %v237
    %v3656 = vunpack.c.l.b16 %v238
    %v3657 = vunpack.c.h.b16 %v238
    %v3658 = vunpack.c.l.b16 %v239
    %v3659 = vunpack.c.h.b16 %v239
    %v3660 = vunpack.c.l.b16 %v240
    %v3661 = vunpack.c.h.b16 %v240
    %v3662 = vunpack.c.l.b16 %v241
    %v3663 = vunpack.c.h.b16 %v241
    %v3664 = vunpack.c.l.b16 %v242
    %v3665 = vunpack.c.h.b16 %v242
    %v3666 = vunpack.c.l.b16 %v243
    %v3667 = vunpack.c.h.b16 %v243
    %v3668 = vunpack.c.l.b16 %v244
    %v3669 = vunpack.c.h.b16 %v244
    %v3670 = vunpack.c.l.b16 %v245
    %v3671 = vunpack.c.h.b16 %v245
    %v3672 = vunpack.c.l.b16 %v246
    %v3673 = vunpack.c.h.b16 %v246
    %v3674 = vunpack.c.l.b16 %v247
    %v3675 = vunpack.c.h.b16 %v247
    %v3676 = vunpack.c.l.b16 %v248
    %v3677 = vunpack.c.h.b16 %v248
    %v3678 = vunpack.c.l.b16 %v249
    %v3679 = vunpack.c.h.b16 %v249
    %v3680 = vunpack.c.l.b16 %v250
    %v3681 = vunpack.c.h.b16 %v250
    %v3682 = vunpack.c.l.b16 %v251
    %v3683 = vunpack.c.h.b16 %v251
    %v3684 = vunpack.c.l.b16 %v252
    %v3685 = vunpack.c.h.b16 %v252
    %v3686 = vunpack.c.l.b16 %v253
    %v3687 = vunpack.c.h.b16 %v253
    %v3688 = vunpack.c.l.b16 %v254
    %v3689 = vunpack.c.h.b16 %v254
    %v3690 = vunpack.c.l.b16 %v255
    %v3691 = vunpack.c.h.b16 %v255
    %v3692 = vunpack.c.l.b16 %v256
    %v3693 = vunpack.c.h.b16 %v256
    %v3694 = vunpack.c.l.b16 %v257
    %v3695 = vunpack.c.h.b16 %v257
    %v3696 = vunpack.c.l.b16 %v258
    %v3697 = vunpack.c.h.b16 %v258
    %v3698 = vunpack.c.l.b16 %v259
    %v3699 = vunpack.c.h.b16 %v259
    %v3700 = vunpack.c.l.b16 %v260
    %v3701 = vunpack.c.h.b16 %v260
    %v3702 = vunpack.c.l.b16 %v261
    %v3703 = vunpack.c.h.b16 %v261
    %v3704 = vunpack.c.l.b16 %v262
    %v3705 = vunpack.c.h.b16 %v262
    %v3706 = vunpack.c.l.b16 %v263
    %v3707 = vunpack.c.h.b16 %v263
    %v3708 = vunpack.c.l.b16 %v264
    %v3709 = vunpack.c.h.b16 %v264
    %v3710 = vunpack.c.l.b16 %v265
    %v3711 = vunpack.c.h.b16 %v265
    %v3712 = vunpack.c.l.b16 %v266
    %v3713 = vunpack.c.h.b16 %v266
    %v3714 = vunpack.c.l.b16 %v267
    %v3715 = vunpack.c.h.b16 %v267
    %v3716 = vunpack.c.l.b16 %v268
    %v3717 = vunpack.c.h.b16 %v268
    %v3718 = vunpack.c.l.b16 %v269
    %v3719 = vunpack.c.h.b16 %v269
    %v3720 = vunpack.c.l.b16 %v270
    %v3721 = vunpack.c.h.b16 %v270
    %v3722 = vunpack.c.l.b16 %v271
    %v3723 = vunpack.c.h.b16 %v271
    %v3724 = vunpack.c.l.b16 %v272
    %v3725 = vunpack.c.h.b16 %v272
    %v3726 = vunpack.c.l.b16 %v273
    %v3727 = vunpack.c.h.b16 %v273
    %v3728 = vunpack.c.l.b16 %v274
    %v3729 = vunpack.c.h.b16 %v274
    %v3730 = vunpack.c.l.b16 %v275
    %v3731 = vunpack.c.h.b16 %v275
    %v3732 = vunpack.c.l.b16 %v276
    %v3733 = vunpack.c.h.b16 %v276
    %v3734 = vunpack.c.l.b16 %v277
    %v3735 = vunpack.c.h.b16 %v277
    %v3736 = vunpack.c.l.b16 %v278
    %v3737 = vunpack.c.h.b16 %v278
    %v3738 = vunpack.c.l.b16 %v279
    %v3739 = vunpack.c.h.b16 %v279
    %v3740 = vunpack.c.l.b16 %v280
    %v3741 = vunpack.c.h.b16 %v280
    %v3742 = vunpack.c.l.b16 %v281
    %v3743 = vunpack.c.h.b16 %v281
    %v3744 = vunpack.c.l.b16 %v282
    %v3745 = vunpack.c.h.b16 %v282
    %v3746 = vunpack.c.l.b16 %v283
    %v3747 = vunpack.c.h.b16 %v283
    %v3748 = vunpack.c.l.b16 %v284
    %v3749 = vunpack.c.h.b16 %v284
    %v3750 = vunpack.c.l.b16 %v285
    %v3751 = vunpack.c.h.b16 %v285
    %v3752 = vunpack.c.l.b16 %v286
    %v3753 = vunpack.c.h.b16 %v286
    %v3754 = vunpack.c.l.b16 %v287
    %v3755 = vunpack.c.h.b16 %v287
    %v3756 = vunpack.c.l.b16 %v288
    %v3757 = vunpack.c.h.b16 %v288
    %v3758 = vunpack.c.l.b16 %v289
    %v3759 = vunpack.c.h.b16 %v289
    %v3760 = vunpack.c.l.b16 %v290
    %v3761 = vunpack.c.h.b16 %v290
    %v3762 = vunpack.c.l.b16 %v291
    %v3763 = vunpack.c.h.b16 %v291
    %v3764 = vunpack.c.l.b16 %v292
    %v3765 = vunpack.c.h.b16 %v292
    %v3766 = vunpack.c.l.b16 %v293
    %v3767 = vunpack.c.h.b16 %v293
    %v3768 = vunpack.c.l.b16 %v294
    %v3769 = vunpack.c.h.b16 %v294
    %v3770 = vunpack.c.l.b16 %v295
    %v3771 = vunpack.c.h.b16 %v295
    %v3772 = vunpack.c.l.b16 %v296
    %v3773 = vunpack.c.h.b16 %v296
    %v3774 = vunpack.c.l.b16 %v297
    %v3775 = vunpack.c.h.b16 %v297
    %v3776 = vunpack.c.l.b16 %v298
    %v3777 = vunpack.c.h.b16 %v298
    %v3778 = vunpack.c.l.b16 %v299
    %v3779 = vunpack.c.h.b16 %v299
    %v3780 = vunpack.c.l.b16 %v300
    %v3781 = vunpack.c.h.b16 %v300
    %v3782 = vunpack.c.l.b16 %v301
    %v3783 = vunpack.c.h.b16 %v301
    %v3784 = vunpack.c.l.b16 %v302
    %v3785 = vunpack.c.h.b16 %v302
    %v3786 = vunpack.c.l.b16 %v303
    %v3787 = vunpack.c.h.b16 %v303
    %v3788 = vunpack.c.l.b16 %v304
    %v3789 = vunpack.c.h.b16 %v304
    %v3790 = vunpack.c.l.b16 %v305
    %v3791 = vunpack.c.h.b16 %v305
    %v3792 = vunpack.c.l.b16 %v306
    %v3793 = vunpack.c.h.b16 %v306
    %v3794 = vunpack.c.l.b16 %v307
    %v3795 = vunpack.c.h.b16 %v307
    %v3796 = vunpack.c.l.b16 %v308
    %v3797 = vunpack.c.h.b16 %v308
    %v3798 = vunpack.c.l.b16 %v309
    %v3799 = vunpack.c.h.b16 %v309
    %v3800 = vunpack.c.l.b16 %v310
    %v3801 = vunpack.c.h.b16 %v310
    %v3802 = vunpack.c.l.b16 %v311
    %v3803 = vunpack.c.h.b16 %v311
    %v3804 = vunpack.c.l.b16 %v312
    %v3805 = vunpack.c.h.b16 %v312
    %v3806 = vunpack.c.l.b16 %v313
    %v3807 = vunpack.c.h.b16 %v313
    %v3808 = vunpack.c.l.b16 %v314
    %v3809 = vunpack.c.h.b16 %v314
    %v3810 = vunpack.c.l.b16 %v315
    %v3811 = vunpack.c.h.b16 %v315
    %v3812 = vunpack.c.l.b16 %v316
    %v3813 = vunpack.c.h.b16 %v316
    %v3814 = vunpack.c.l.b16 %v317
    %v3815 = vunpack.c.h.b16 %v317
    %v3816 = vunpack.c.l.b16 %v318
    %v3817 = vunpack.c.h.b16 %v318
    %v3818 = vunpack.c.l.b16 %v319
    %v3819 = vunpack.c.h.b16 %v319
    %v3820 = vunpack.c.l.b16 %v320
    %v3821 = vunpack.c.h.b16 %v320
    %v3822 = vunpack.c.l.b16 %v321
    %v3823 = vunpack.c.h.b16 %v321
    %v3824 = vunpack.c.l.b16 %v322
    %v3825 = vunpack.c.h.b16 %v322
    %v3826 = vunpack.c.l.b16 %v323
    %v3827 = vunpack.c.h.b16 %v323
    %v3828 = vunpack.c.l.b16 %v324
    %v3829 = vunpack.c.h.b16 %v324
    %v3830 = vunpack.c.l.b16 %v325
    %v3831 = vunpack.c.h.b16 %v325
    %v3832 = vunpack.c.l.b16 %v326
    %v3833 = vunpack.c.h.b16 %v326
    %v3834 = vunpack.c.l.b16 %v327
    %v3835 = vunpack.c.h.b16 %v327
    %v3836 = vunpack.c.l.b16 %v328
    %v3837 = vunpack.c.h.b16 %v328
    %v3838 = vunpack.c.l.b16 %v329
    %v3839 = vunpack.c.h.b16 %v329
    %v3840 = vunpack.c.l.b16 %v330
    %v3841 = vunpack.c.h.b16 %v330
    %v3842 = vunpack.c.l.b16 %v331
    %v3843 = vunpack.c.h.b16 %v331
    %v3844 = vunpack.c.l.b16 %v332
    %v3845 = vunpack.c.h.b16 %v332
    %v3846 = vunpack.c.l.b16 %v333
    %v3847 = vunpack.c.h.b16 %v333
    %v3848 = vunpack.c.l.b16 %v334
    %v3849 = vunpack.c.h.b16 %v334
    %v3850 = vunpack.c.l.b16 %v335
    %v3851 = vunpack.c.h.b16 %v335
    %v3852 = vunpack.c.l.b16 %v336
    %v3853 = vunpack.c.h.b16 %v336
    %v3854 = vunpack.c.l.b16 %v337
    %v3855 = vunpack.c.h.b16 %v337
    %v3856 = vunpack.c.l.b16 %v338
    %v3857 = vunpack.c.h.b16 %v338
    %v3858 = vunpack.c.l.b16 %v339
    %v3859 = vunpack.c.h.b16 %v339
    %v3860 = vunpack.c.l.b16 %v340
    %v3861 = vunpack.c.h.b16 %v340
    %v3862 = vunpack.c.l.b16 %v341
    %v3863 = vunpack.c.h.b16 %v341
    %v3864 = vunpack.c.l.b16 %v342
    %v3865 = vunpack.c.h.b16 %v342
    %v3866 = vunpack.c.l.b16 %v343
    %v3867 = vunpack.c.h.b16 %v343
    %v3868 = vunpack.c.l.b16 %v344
    %v3869 = vunpack.c.h.b16 %v344
    %v3870 = vunpack.c.l.b16 %v345
    %v3871 = vunpack.c.h.b16 %v345
    %v3872 = vunpack.c.l.b16 %v346
    %v3873 = vunpack.c.h.b16 %v346
    %v3874 = vunpack.c.l.b16 %v347
    %v3875 = vunpack.c.h.b16 %v347
    %v3876 = vunpack.c.l.b16 %v348
    %v3877 = vunpack.c.h.b16 %v348
    %v3878 = vunpack.c.l.b16 %v349
    %v3879 = vunpack.c.h.b16 %v349
    %v3880 = vunpack.c.l.b16 %v350
    %v3881 = vunpack.c.h.b16 %v350
    %v3882 = vunpack.c.l.b16 %v351
    %v3883 = vunpack.c.h.b16 %v351
    %v3884 = vunpack.c.l.b16 %v352
    %v3885 = vunpack.c.h.b16 %v352
    %v3886 = vunpack.c.l.b16 %v353
    %v3887 = vunpack.c.h.b16 %v353
    %v3888 = vunpack.c.l.b16 %v354
    %v3889 = vunpack.c.h.b16 %v354
    %v3890 = vunpack.c.l.b16 %v355
    %v3891 = vunpack.c.h.b16 %v355
    %v3892 = vunpack.c.l.b16 %v356
    %v3893 = vunpack.c.h.b16 %v356
    %v3894 = vunpack.c.l.b16 %v357
    %v3895 = vunpack.c.h.b16 %v357
    %v3896 = vunpack.c.l.b16 %v358
    %v3897 = vunpack.c.h.b16 %v358
    %v3898 = vunpack.c.l.b16 %v359
    %v3899 = vunpack.c.h.b16 %v359
    %v3900 = vunpack.c.l.b16 %v360
    %v3901 = vunpack.c.h.b16 %v360
    %v3902 = vunpack.c.l.b16 %v361
    %v3903 = vunpack.c.h.b16 %v361
    %v3904 = vunpack.c.l.b16 %v362
    %v3905 = vunpack.c.h.b16 %v362
    %v3906 = vunpack.c.l.b16 %v363
    %v3907 = vunpack.c.h.b16 %v363
    %v3908 = vunpack.c.l.b16 %v364
    %v3909 = vunpack.c.h.b16 %v364
    %v3910 = vunpack.c.l.b16 %v365
    %v3911 = vunpack.c.h.b16 %v365
    %v3912 = vunpack.c.l.b16 %v366
    %v3913 = vunpack.c.h.b16 %v366
    %v3914 = vunpack.c.l.b16 %v367
    %v3915 = vunpack.c.h.b16 %v367
    %v3916 = vunpack.c.l.b16 %v368
    %v3917 = vunpack.c.h.b16 %v368
    %v3918 = vunpack.c.l.b16 %v369
    %v3919 = vunpack.c.h.b16 %v369
    %v3920 = vunpack.c.l.b16 %v370
    %v3921 = vunpack.c.h.b16 %v370
    %v3922 = vunpack.c.l.b16 %v371
    %v3923 = vunpack.c.h.b16 %v371
    %v3924 = vunpack.c.l.b16 %v372
    %v3925 = vunpack.c.h.b16 %v372
    %v3926 = vunpack.c.l.b16 %v373
    %v3927 = vunpack.c.h.b16 %v373
    %v3928 = vunpack.c.l.b16 %v374
    %v3929 = vunpack.c.h.b16 %v374
    %v3930 = vunpack.c.l.b16 %v375
    %v3931 = vunpack.c.h.b16 %v375
    %v3932 = vunpack.c.l.b16 %v376
    %v3933 = vunpack.c.h.b16 %v376
    %v3934 = vunpack.c.l.b16 %v377
    %v3935 = vunpack.c.h.b16 %v377
    %v3936 = vunpack.c.l.b16 %v378
    %v3937 = vunpack.c.h.b16 %v378
    %v3938 = vunpack.c.l.b16 %v379
    %v3939 = vunpack.c.h.b16 %v379
    %v3940 = vunpack.c.l.b16 %v380
    %v3941 = vunpack.c.h.b16 %v380
    %v3942 = vunpack.c.l.b16 %v381
    %v3943 = vunpack.c.h.b16 %v381
    %v3944 = vunpack.c.l.b16 %v382
    %v3945 = vunpack.c.h.b16 %v382
    %v3946 = vunpack.c.l.b16 %v383
    %v3947 = vunpack.c.h.b16 %v383
    %v3948 = vunpack.c.l.b16 %v384
    %v3949 = vunpack.c.h.b16 %v384
    %v3950 = vunpack.c.l.b16 %v385
    %v3951 = vunpack.c.h.b16 %v385
    %v3952 = vunpack.c.l.b16 %v386
    %v3953 = vunpack.c.h.b16 %v386
    %v3954 = vunpack.c.l.b16 %v387
    %v3955 = vunpack.c.h.b16 %v387
    %v3956 = vunpack.c.l.b16 %v388
    %v3957 = vunpack.c.h.b16 %v388
    %v3958 = vunpack.c.l.b16 %v389
    %v3959 = vunpack.c.h.b16 %v389
    %v3960 = vunpack.c.l.b16 %v390
    %v3961 = vunpack.c.h.b16 %v390
    %v3962 = vunpack.c.l.b16 %v391
    %v3963 = vunpack.c.h.b16 %v391
    %v3964 = vunpack.c.l.b16 %v392
    %v3965 = vunpack.c.h.b16 %v392
    %v3966 = vunpack.c.l.b16 %v393
    %v3967 = vunpack.c.h.b16 %v393
    %v3968 = vunpack.c.l.b16 %v394
    %v3969 = vunpack.c.h.b16 %v394
    %v3970 = vunpack.c.l.b16 %v395
    %v3971 = vunpack.c.h.b16 %v395
    %v3972 = vunpack.c.l.b16 %v396
    %v3973 = vunpack.c.h.b16 %v396
    %v3974 = vunpack.c.l.b16 %v397
    %v3975 = vunpack.c.h.b16 %v397
    %v3976 = vunpack.c.l.b16 %v398
    %v3977 = vunpack.c.h.b16 %v398
    %v3978 = vunpack.c.l.b16 %v399
    %v3979 = vunpack.c.h.b16 %v399
    %v3980 = vunpack.c.l.b16 %v400
    %v3981 = vunpack.c.h.b16 %v400
    %v3982 = vunpack.c.l.b16 %v401
    %v3983 = vunpack.c.h.b16 %v401
    %v3984 = vunpack.c.l.b16 %v402
    %v3985 = vunpack.c.h.b16 %v402
    %v3986 = vunpack.c.l.b16 %v403
    %v3987 = vunpack.c.h.b16 %v403
    %v3988 = vunpack.c.l.b16 %v404
    %v3989 = vunpack.c.h.b16 %v404
    %v3990 = vunpack.c.l.b16 %v405
    %v3991 = vunpack.c.h.b16 %v405
    %v3992 = vunpack.c.l.b16 %v406
    %v3993 = vunpack.c.h.b16 %v406
    %v3994 = vunpack.c.l.b16 %v407
    %v3995 = vunpack.c.h.b16 %v407
    %v3996 = vunpack.c.l.b16 %v408
    %v3997 = vunpack.c.h.b16 %v408
    %v3998 = vunpack.c.l.b16 %v409
    %v3999 = vunpack.c.h.b16 %v409
    %v4000 = vunpack.c.l.b16 %v410
    %v4001 = vunpack.c.h.b16 %v410
    %v4002 = vunpack.c.l.b16 %v411
    %v4003 = vunpack.c.h.b16 %v411
    %v4004 = vunpack.c.l.b16 %v412
    %v4005 = vunpack.c.h.b16 %v412
    %v4006 = vunpack.c.l.b16 %v413
    %v4007 = vunpack.c.h.b16 %v413
    %v4008 = vunpack.c.l.b16 %v414
    %v4009 = vunpack.c.h.b16 %v414
    %v4010 = vunpack.c.l.b16 %v415
    %v4011 = vunpack.c.h.b16 %v415
    %v4012 = vunpack.c.l.b16 %v416
    %v4013 = vunpack.c.h.b16 %v416
    %v4014 = vunpack.c.l.b16 %v417
    %v4015 = vunpack.c.h.b16 %v417
    %v4016 = vunpack.c.l.b16 %v418
    %v4017 = vunpack.c.h.b16 %v418
    %v4018 = vunpack.c.l.b16 %v419
    %v4019 = vunpack.c.h.b16 %v419
    %v4020 = vunpack.c.l.b16 %v420
    %v4021 = vunpack.c.h.b16 %v420
    %v4022 = vunpack.c.l.b16 %v421
    %v4023 = vunpack.c.h.b16 %v421
    %v4024 = vunpack.c.l.b16 %v422
    %v4025 = vunpack.c.h.b16 %v422
    %v4026 = vunpack.c.l.b16 %v423
    %v4027 = vunpack.c.h.b16 %v423
    %v4028 = vunpack.c.l.b16 %v424
    %v4029 = vunpack.c.h.b16 %v424
    %v4030 = vunpack.c.l.b16 %v425
    %v4031 = vunpack.c.h.b16 %v425
    %v4032 = vunpack.c.l.b16 %v426
    %v4033 = vunpack.c.h.b16 %v426
    %v4034 = vunpack.c.l.b16 %v427
    %v4035 = vunpack.c.h.b16 %v427
    %v4036 = vunpack.c.l.b16 %v428
    %v4037 = vunpack.c.h.b16 %v428
    %v4038 = vunpack.c.l.b16 %v429
    %v4039 = vunpack.c.h.b16 %v429
    %v4040 = vunpack.c.l.b16 %v430
    %v4041 = vunpack.c.h.b16 %v430
    %v4042 = vunpack.c.l.b16 %v431
    %v4043 = vunpack.c.h.b16 %v431
    %v4044 = vunpack.c.l.b16 %v432
    %v4045 = vunpack.c.h.b16 %v432
    %v4046 = vunpack.c.l.b16 %v433
    %v4047 = vunpack.c.h.b16 %v433
    %v4048 = vunpack.c.l.b16 %v434
    %v4049 = vunpack.c.h.b16 %v434
    %v4050 = vunpack.c.l.b16 %v435
    %v4051 = vunpack.c.h.b16 %v435
    %v4052 = vunpack.c.l.b16 %v436
    %v4053 = vunpack.c.h.b16 %v436
    %v4054 = vunpack.c.l.b16 %v437
    %v4055 = vunpack.c.h.b16 %v437
    %v4056 = vunpack.c.l.b16 %v438
    %v4057 = vunpack.c.h.b16 %v438
    %v4058 = vunpack.c.l.b16 %v439
    %v4059 = vunpack.c.h.b16 %v439
    %v4060 = vunpack.c.l.b16 %v440
    %v4061 = vunpack.c.h.b16 %v440
    %v4062 = vunpack.c.l.b16 %v441
    %v4063 = vunpack.c.h.b16 %v441
    %v4064 = vunpack.c.l.b16 %v442
    %v4065 = vunpack.c.h.b16 %v442
    %v4066 = vunpack.c.l.b16 %v443
    %v4067 = vunpack.c.h.b16 %v443
    %v4068 = vunpack.c.l.b16 %v444
    %v4069 = vunpack.c.h.b16 %v444
    %v4070 = vunpack.c.l.b16 %v445
    %v4071 = vunpack.c.h.b16 %v445
    %v4072 = vunpack.c.l.b16 %v446
    %v4073 = vunpack.c.h.b16 %v446
    %v4074 = vunpack.c.l.b16 %v447
    %v4075 = vunpack.c.h.b16 %v447
    %v4076 = vunpack.c.l.b16 %v448
    %v4077 = vunpack.c.h.b16 %v448
    %v4078 = vunpack.c.l.b16 %v449
    %v4079 = vunpack.c.h.b16 %v449
    %v4080 = vunpack.c.l.b16 %v450
    %v4081 = vunpack.c.h.b16 %v450
    %v4082 = vunpack.c.l.b16 %v451
    %v4083 = vunpack.c.h.b16 %v451
    %v4084 = vunpack.c.l.b16 %v452
    %v4085 = vunpack.c.h.b16 %v452
    %v4086 = vunpack.c.l.b16 %v453
    %v4087 = vunpack.c.h.b16 %v453
    %v4088 = vunpack.c.l.b16 %v454
    %v4089 = vunpack.c.h.b16 %v454
    %v4090 = vunpack.c.l.b16 %v455
    %v4091 = vunpack.c.h.b16 %v455
    %v4092 = vunpack.c.l.b16 %v456
    %v4093 = vunpack.c.h.b16 %v456
    %v4094 = vunpack.c.l.b16 %v457
    %v4095 = vunpack.c.h.b16 %v457
    %v4096 = vunpack.c.l.b16 %v458
    %v4097 = vunpack.c.h.b16 %v458
    %v4098 = vunpack.c.l.b16 %v459
    %v4099 = vunpack.c.h.b16 %v459
    %v4100 = vunpack.c.l.b16 %v460
    %v4101 = vunpack.c.h.b16 %v460
    %v4102 = vunpack.c.l.b16 %v461
    %v4103 = vunpack.c.h.b16 %v461
    %v4104 = vunpack.c.l.b16 %v462
    %v4105 = vunpack.c.h.b16 %v462
    %v4106 = vunpack.c.l.b16 %v463
    %v4107 = vunpack.c.h.b16 %v463
    %v4108 = vunpack.c.l.b16 %v464
    %v4109 = vunpack.c.h.b16 %v464
    %v4110 = vunpack.c.l.b16 %v465
    %v4111 = vunpack.c.h.b16 %v465
    %v4112 = vunpack.c.l.b16 %v466
    %v4113 = vunpack.c.h.b16 %v466
    %v4114 = vunpack.c.l.b16 %v467
    %v4115 = vunpack.c.h.b16 %v467
    %v4116 = vunpack.c.l.b16 %v468
    %v4117 = vunpack.c.h.b16 %v468
    %v4118 = vunpack.c.l.b16 %v469
    %v4119 = vunpack.c.h.b16 %v469
    %v4120 = vunpack.c.l.b16 %v470
    %v4121 = vunpack.c.h.b16 %v470
    %v4122 = vunpack.c.l.b16 %v471
    %v4123 = vunpack.c.h.b16 %v471
    %v4124 = vunpack.c.l.b16 %v472
    %v4125 = vunpack.c.h.b16 %v472
    %v4126 = vunpack.c.l.b16 %v473
    %v4127 = vunpack.c.h.b16 %v473
    %v4128 = vunpack.c.l.b16 %v474
    %v4129 = vunpack.c.h.b16 %v474
    %v4130 = vunpack.c.l.b16 %v475
    %v4131 = vunpack.c.h.b16 %v475
    %v4132 = vunpack.c.l.b16 %v476
    %v4133 = vunpack.c.h.b16 %v476
    %v4134 = vunpack.c.l.b16 %v477
    %v4135 = vunpack.c.h.b16 %v477
    %v4136 = vunpack.c.l.b16 %v478
    %v4137 = vunpack.c.h.b16 %v478
    %v4138 = vunpack.c.l.b16 %v479
    %v4139 = vunpack.c.h.b16 %v479
    %v4140 = vunpack.c.l.b16 %v480
    %v4141 = vunpack.c.h.b16 %v480
    %v4142 = vunpack.c.l.b16 %v481
    %v4143 = vunpack.c.h.b16 %v481
    %v4144 = vunpack.c.l.b16 %v482
    %v4145 = vunpack.c.h.b16 %v482
    %v4146 = vunpack.c.l.b16 %v483
    %v4147 = vunpack.c.h.b16 %v483
    %v4148 = vunpack.c.l.b16 %v484
    %v4149 = vunpack.c.h.b16 %v484
    %v4150 = vunpack.c.l.b16 %v485
    %v4151 = vunpack.c.h.b16 %v485
    %v4152 = vunpack.c.l.b16 %v486
    %v4153 = vunpack.c.h.b16 %v486
    %v4154 = vunpack.c.l.b16 %v487
    %v4155 = vunpack.c.h.b16 %v487
    %v4156 = vunpack.c.l.b16 %v488
    %v4157 = vunpack.c.h.b16 %v488
    %v4158 = vunpack.c.l.b16 %v489
    %v4159 = vunpack.c.h.b16 %v489
    %v4160 = vunpack.c.l.b16 %v490
    %v4161 = vunpack.c.h.b16 %v490
    %v4162 = vunpack.c.l.b16 %v491
    %v4163 = vunpack.c.h.b16 %v491
    %v4164 = vunpack.c.l.b16 %v492
    %v4165 = vunpack.c.h.b16 %v492
    %v4166 = vunpack.c.l.b16 %v493
    %v4167 = vunpack.c.h.b16 %v493
    %v4168 = vunpack.c.l.b16 %v494
    %v4169 = vunpack.c.h.b16 %v494
    %v4170 = vunpack.c.l.b16 %v495
    %v4171 = vunpack.c.h.b16 %v495
    %v4172 = vunpack.c.l.b16 %v496
    %v4173 = vunpack.c.h.b16 %v496
    %v4174 = vunpack.c.l.b16 %v497
    %v4175 = vunpack.c.h.b16 %v497
    %v4176 = vunpack.c.l.b16 %v498
    %v4177 = vunpack.c.h.b16 %v498
    %v4178 = vunpack.c.l.b16 %v499
    %v4179 = vunpack.c.h.b16 %v499
    %v4180 = vunpack.c.l.b16 %v500
    %v4181 = vunpack.c.h.b16 %v500
    %v4182 = vunpack.c.l.b16 %v501
    %v4183 = vunpack.c.h.b16 %v501
    %v4184 = vunpack.c.l.b16 %v502
    %v4185 = vunpack.c.h.b16 %v502
    %v4186 = vunpack.c.l.b16 %v503
    %v4187 = vunpack.c.h.b16 %v503
    %v4188 = vunpack.c.l.b16 %v504
    %v4189 = vunpack.c.h.b16 %v504
    %v4190 = vunpack.c.l.b16 %v505
    %v4191 = vunpack.c.h.b16 %v505
    %v4192 = vunpack.c.l.b16 %v506
    %v4193 = vunpack.c.h.b16 %v506
    %v4194 = vunpack.c.l.b16 %v507
    %v4195 = vunpack.c.h.b16 %v507
    %v4196 = vunpack.c.l.b16 %v508
    %v4197 = vunpack.c.h.b16 %v508
    %v4198 = vunpack.c.l.b16 %v509
    %v4199 = vunpack.c.h.b16 %v509
    %v4200 = vunpack.c.l.b16 %v510
    %v4201 = vunpack.c.h.b16 %v510
    %v4202 = vunpack.c.l.b16 %v511
    %v4203 = vunpack.c.h.b16 %v511
    %v4204 = vunpack.c.l.b16 %v512
    %v4205 = vunpack.c.h.b16 %v512
    %v4206 = vunpack.c.l.b16 %v513
    %v4207 = vunpack.c.h.b16 %v513
    %v4208 = vunpack.c.l.b16 %v514
    %v4209 = vunpack.c.h.b16 %v514
    %v4210 = vunpack.c.l.b16 %v515
    %v4211 = vunpack.c.h.b16 %v515
    %v4212 = vunpack.c.l.b16 %v516
    %v4213 = vunpack.c.h.b16 %v516
    %v4214 = vunpack.c.l.b16 %v517
    %v4215 = vunpack.c.h.b16 %v517
    %v4216 = vunpack.c.l.b16 %v518
    %v4217 = vunpack.c.h.b16 %v518
    %v4218 = vunpack.c.l.b16 %v519
    %v4219 = vunpack.c.h.b16 %v519
    %v4220 = vunpack.c.l.b16 %v520
    %v4221 = vunpack.c.h.b16 %v520
    %v4222 = vunpack.c.l.b16 %v521
    %v4223 = vunpack.c.h.b16 %v521
    %v4224 = vunpack.c.l.b16 %v522
    %v4225 = vunpack.c.h.b16 %v522
    %v4226 = vunpack.c.l.b16 %v523
    %v4227 = vunpack.c.h.b16 %v523
    %v4228 = vunpack.c.l.b16 %v524
    %v4229 = vunpack.c.h.b16 %v524
    %v4230 = vunpack.c.l.b16 %v525
    %v4231 = vunpack.c.h.b16 %v525
    %v4232 = vunpack.c.l.b16 %v526
    %v4233 = vunpack.c.h.b16 %v526
    %v4234 = vunpack.c.l.b16 %v527
    %v4235 = vunpack.c.h.b16 %v527
    %v4236 = vunpack.c.l.b16 %v528
    %v4237 = vunpack.c.h.b16 %v528
    %v4238 = vunpack.c.l.b16 %v529
    %v4239 = vunpack.c.h.b16 %v529
    %v4240 = vunpack.c.l.b16 %v530
    %v4241 = vunpack.c.h.b16 %v530
    %v4242 = vunpack.c.l.b16 %v531
    %v4243 = vunpack.c.h.b16 %v531
    %v4244 = vunpack.c.l.b16 %v532
    %v4245 = vunpack.c.h.b16 %v532
    %v4246 = vunpack.c.l.b16 %v533
    %v4247 = vunpack.c.h.b16 %v533
    %v4248 = vunpack.c.l.b16 %v534
    %v4249 = vunpack.c.h.b16 %v534
    %v4250 = vunpack.c.l.b16 %v535
    %v4251 = vunpack.c.h.b16 %v535
    %v4252 = vunpack.c.l.b16 %v536
    %v4253 = vunpack.c.h.b16 %v536
    %v4254 = vunpack.c.l.b16 %v537
    %v4255 = vunpack.c.h.b16 %v537
    %v4256 = vunpack.c.l.b16 %v538
    %v4257 = vunpack.c.h.b16 %v538
    %v4258 = vunpack.c.l.b16 %v539
    %v4259 = vunpack.c.h.b16 %v539
    %v4260 = vunpack.c.l.b16 %v540
    %v4261 = vunpack.c.h.b16 %v540
    %v4262 = vunpack.c.l.b16 %v541
    %v4263 = vunpack.c.h.b16 %v541
    %v4264 = vunpack.c.l.b16 %v542
    %v4265 = vunpack.c.h.b16 %v542
    %v4266 = vunpack.c.l.b16 %v543
    %v4267 = vunpack.c.h.b16 %v543
    %v4268 = vunpack.c.l.b16 %v544
    %v4269 = vunpack.c.h.b16 %v544
    %v4270 = vunpack.c.l.b16 %v545
    %v4271 = vunpack.c.h.b16 %v545
    %v4272 = vunpack.c.l.b16 %v546
    %v4273 = vunpack.c.h.b16 %v546
    %v4274 = vunpack.c.l.b16 %v547
    %v4275 = vunpack.c.h.b16 %v547
    %v4276 = vunpack.c.l.b16 %v548
    %v4277 = vunpack.c.h.b16 %v548
    %v4278 = vunpack.c.l.b16 %v549
    %v4279 = vunpack.c.h.b16 %v549
    %v4280 = vunpack.c.l.b16 %v550
    %v4281 = vunpack.c.h.b16 %v550
    %v4282 = vunpack.c.l.b16 %v551
    %v4283 = vunpack.c.h.b16 %v551
    %v4284 = vunpack.c.l.b16 %v552
    %v4285 = vunpack.c.h.b16 %v552
    %v4286 = vunpack.c.l.b16 %v553
    %v4287 = vunpack.c.h.b16 %v553
    %v4288 = vunpack.c.l.b16 %v554
    %v4289 = vunpack.c.h.b16 %v554
    %v4290 = vunpack.c.l.b16 %v555
    %v4291 = vunpack.c.h.b16 %v555
    %v4292 = vunpack.c.l.b16 %v556
    %v4293 = vunpack.c.h.b16 %v556
    %v4294 = vunpack.c.l.b16 %v557
    %v4295 = vunpack.c.h.b16 %v557
    %v4296 = vunpack.c.l.b16 %v558
    %v4297 = vunpack.c.h.b16 %v558
    %v4298 = vunpack.c.l.b16 %v559
    %v4299 = vunpack.c.h.b16 %v559
    %v4300 = vunpack.c.l.b16 %v560
    %v4301 = vunpack.c.h.b16 %v560
    %v4302 = vunpack.c.l.b16 %v561
    %v4303 = vunpack.c.h.b16 %v561
    %v4304 = vunpack.c.l.b16 %v562
    %v4305 = vunpack.c.h.b16 %v562
    %v4306 = vunpack.c.l.b16 %v563
    %v4307 = vunpack.c.h.b16 %v563
    %v4308 = vunpack.c.l.b16 %v564
    %v4309 = vunpack.c.h.b16 %v564
    %v4310 = vunpack.c.l.b16 %v565
    %v4311 = vunpack.c.h.b16 %v565
    %v4312 = vunpack.c.l.b16 %v566
    %v4313 = vunpack.c.h.b16 %v566
    %v4314 = vunpack.c.l.b16 %v567
    %v4315 = vunpack.c.h.b16 %v567
    %v4316 = vunpack.c.l.b16 %v568
    %v4317 = vunpack.c.h.b16 %v568
    %v4318 = vunpack.c.l.b16 %v569
    %v4319 = vunpack.c.h.b16 %v569
    %v4320 = vunpack.c.l.b16 %v570
    %v4321 = vunpack.c.h.b16 %v570
    %v4322 = vunpack.c.l.b16 %v571
    %v4323 = vunpack.c.h.b16 %v571
    %v4324 = vunpack.c.l.b16 %v572
    %v4325 = vunpack.c.h.b16 %v572
    %v4326 = vunpack.c.l.b16 %v573
    %v4327 = vunpack.c.h.b16 %v573
    %v4328 = vunpack.c.l.b16 %v574
    %v4329 = vunpack.c.h.b16 %v574
    %v4330 = vunpack.c.l.b16 %v575
    %v4331 = vunpack.c.h.b16 %v575
    %v4332 = vunpack.c.l.b16 %v576
    %v4333 = vunpack.c.h.b16 %v576
    %v4334 = vunpack.c.l.b16 %v577
    %v4335 = vunpack.c.h.b16 %v577
    %v4336 = vunpack.c.l.b16 %v578
    %v4337 = vunpack.c.h.b16 %v578
    %v4338 = vunpack.c.l.b16 %v579
    %v4339 = vunpack.c.h.b16 %v579
    %v4340 = vunpack.c.l.b16 %v580
    %v4341 = vunpack.c.h.b16 %v580
    %v4342 = vunpack.c.l.b16 %v581
    %v4343 = vunpack.c.h.b16 %v581
    %v4344 = vunpack.c.l.b16 %v582
    %v4345 = vunpack.c.h.b16 %v582
    %v4346 = vunpack.c.l.b16 %v583
    %v4347 = vunpack.c.h.b16 %v583
    %v4348 = vunpack.c.l.b16 %v584
    %v4349 = vunpack.c.h.b16 %v584
    %v4350 = vunpack.c.l.b16 %v585
    %v4351 = vunpack.c.h.b16 %v585
    %v4352 = vunpack.c.l.b16 %v586
    %v4353 = vunpack.c.h.b16 %v586
    %v4354 = vunpack.c.l.b16 %v587
    %v4355 = vunpack.c.h.b16 %v587
    %v4356 = vunpack.c.l.b16 %v588
    %v4357 = vunpack.c.h.b16 %v588
    %v4358 = vunpack.c.l.b16 %v589
    %v4359 = vunpack.c.h.b16 %v589
    %v4360 = vunpack.c.l.b16 %v590
    %v4361 = vunpack.c.h.b16 %v590
    %v4362 = vunpack.c.l.b16 %v591
    %v4363 = vunpack.c.h.b16 %v591
    %v4364 = vunpack.c.l.b16 %v592
    %v4365 = vunpack.c.h.b16 %v592
    %v4366 = vunpack.c.l.b16 %v593
    %v4367 = vunpack.c.h.b16 %v593
    %v4368 = vunpack.c.l.b16 %v594
    %v4369 = vunpack.c.h.b16 %v594
    %v4370 = vunpack.c.l.b16 %v595
    %v4371 = vunpack.c.h.b16 %v595
    %v4372 = vunpack.c.l.b16 %v596
    %v4373 = vunpack.c.h.b16 %v596
    %v4374 = vunpack.c.l.b16 %v597
    %v4375 = vunpack.c.h.b16 %v597
    %v4376 = vunpack.c.l.b16 %v598
    %v4377 = vunpack.c.h.b16 %v598
    %v4378 = vunpack.c.l.b16 %v599
    %v4379 = vunpack.c.h.b16 %v599
    %v4380 = vunpack.c.l.b16 %v600
    %v4381 = vunpack.c.h.b16 %v600
    %v4382 = vunpack.c.l.b16 %v601
    %v4383 = vunpack.c.h.b16 %v601
    %v4384 = vunpack.c.l.b16 %v602
    %v4385 = vunpack.c.h.b16 %v602
    %v4386 = vunpack.c.l.b16 %v603
    %v4387 = vunpack.c.h.b16 %v603
    %v4388 = vunpack.c.l.b16 %v604
    %v4389 = vunpack.c.h.b16 %v604
    %v4390 = vunpack.c.l.b16 %v605
    %v4391 = vunpack.c.h.b16 %v605
    %v4392 = vunpack.c.l.b16 %v606
    %v4393 = vunpack.c.h.b16 %v606
    %v4394 = vunpack.c.l.b16 %v607
    %v4395 = vunpack.c.h.b16 %v607
    %v4396 = vunpack.c.l.b16 %v608
    %v4397 = vunpack.c.h.b16 %v608
    %v4398 = vunpack.c.l.b16 %v609
    %v4399 = vunpack.c.h.b16 %v609
    %v4400 = vunpack.c.l.b16 %v610
    %v4401 = vunpack.c.h.b16 %v610
    %v4402 = vunpack.c.l.b16 %v611
    %v4403 = vunpack.c.h.b16 %v611
    %v4404 = vunpack.c.l.b16 %v612
    %v4405 = vunpack.c.h.b16 %v612
    %v4406 = vunpack.c.l.b16 %v613
    %v4407 = vunpack.c.h.b16 %v613
    %v4408 = vunpack.c.l.b16 %v614
    %v4409 = vunpack.c.h.b16 %v614
    %v4410 = vunpack.c.l.b16 %v615
    %v4411 = vunpack.c.h.b16 %v615
    %v4412 = vunpack.c.l.b16 %v616
    %v4413 = vunpack.c.h.b16 %v616
    %v4414 = vunpack.c.l.b16 %v617
    %v4415 = vunpack.c.h.b16 %v617
    %v4416 = vunpack.c.l.b16 %v618
    %v4417 = vunpack.c.h.b16 %v618
    %v4418 = vunpack.c.l.b16 %v619
    %v4419 = vunpack.c.h.b16 %v619
    %v4420 = vunpack.c.l.b16 %v620
    %v4421 = vunpack.c.h.b16 %v620
    %v4422 = vunpack.c.l.b16 %v621
    %v4423 = vunpack.c.h.b16 %v621
    %v4424 = vunpack.c.l.b16 %v622
    %v4425 = vunpack.c.h.b16 %v622
    %v4426 = vunpack.c.l.b16 %v623
    %v4427 = vunpack.c.h.b16 %v623
    %v4428 = vunpack.c.l.b16 %v624
    %v4429 = vunpack.c.h.b16 %v624
    %v4430 = vunpack.c.l.b16 %v625
    %v4431 = vunpack.c.h.b16 %v625
    %v4432 = vunpack.c.l.b16 %v626
    %v4433 = vunpack.c.h.b16 %v626
    %v4434 = vunpack.c.l.b16 %v627
    %v4435 = vunpack.c.h.b16 %v627
    %v4436 = vunpack.c.l.b16 %v628
    %v4437 = vunpack.c.h.b16 %v628
    %v4438 = vunpack.c.l.b16 %v629
    %v4439 = vunpack.c.h.b16 %v629
    %v4440 = vunpack.c.l.b16 %v630
    %v4441 = vunpack.c.h.b16 %v630
    %v4442 = vunpack.c.l.b16 %v631
    %v4443 = vunpack.c.h.b16 %v631
    %v4444 = vunpack.c.l.b16 %v632
    %v4445 = vunpack.c.h.b16 %v632
    %v4446 = vunpack.c.l.b16 %v633
    %v4447 = vunpack.c.h.b16 %v633
    %v4448 = vunpack.c.l.b16 %v634
    %v4449 = vunpack.c.h.b16 %v634
    %v4450 = vunpack.c.l.b16 %v635
    %v4451 = vunpack.c.h.b16 %v635
    %v4452 = vunpack.c.l.b16 %v636
    %v4453 = vunpack.c.h.b16 %v636
    %v4454 = vunpack.c.l.b16 %v637
    %v4455 = vunpack.c.h.b16 %v637
    %v4456 = vunpack.c.l.b16 %v638
    %v4457 = vunpack.c.h.b16 %v638
    %v4458 = vunpack.c.l.b16 %v639
    %v4459 = vunpack.c.h.b16 %v639
    %v4460 = vunpack.c.l.b16 %v640
    %v4461 = vunpack.c.h.b16 %v640
    %v4462 = vunpack.c.l.b16 %v641
    %v4463 = vunpack.c.h.b16 %v641
    %v4464 = vunpack.c.l.b16 %v642
    %v4465 = vunpack.c.h.b16 %v642
    %v4466 = vunpack.c.l.b16 %v643
    %v4467 = vunpack.c.h.b16 %v643
    %v4468 = vunpack.c.l.b16 %v644
    %v4469 = vunpack.c.h.b16 %v644
    %v4470 = vunpack.c.l.b16 %v645
    %v4471 = vunpack.c.h.b16 %v645
    %v4472 = vunpack.c.l.b16 %v646
    %v4473 = vunpack.c.h.b16 %v646
    %v4474 = vunpack.c.l.b16 %v647
    %v4475 = vunpack.c.h.b16 %v647
    %v4476 = vunpack.c.l.b16 %v648
    %v4477 = vunpack.c.h.b16 %v648
    %v4478 = vunpack.c.l.b16 %v649
    %v4479 = vunpack.c.h.b16 %v649
    %v4480 = vunpack.c.l.b16 %v650
    %v4481 = vunpack.c.h.b16 %v650
    %v4482 = vunpack.c.l.b16 %v651
    %v4483 = vunpack.c.h.b16 %v651
    %v4484 = vunpack.c.l.b16 %v652
    %v4485 = vunpack.c.h.b16 %v652
    %v4486 = vunpack.c.l.b16 %v653
    %v4487 = vunpack.c.h.b16 %v653
    %v4488 = vunpack.c.l.b16 %v654
    %v4489 = vunpack.c.h.b16 %v654
    %v4490 = vunpack.c.l.b16 %v655
    %v4491 = vunpack.c.h.b16 %v655
    %v4492 = vunpack.c.l.b16 %v656
    %v4493 = vunpack.c.h.b16 %v656
    %v4494 = vunpack.c.l.b16 %v657
    %v4495 = vunpack.c.h.b16 %v657
    %v4496 = vunpack.c.l.b16 %v658
    %v4497 = vunpack.c.h.b16 %v658
    %v4498 = vunpack.c.l.b16 %v659
    %v4499 = vunpack.c.h.b16 %v659
    %v4500 = vunpack.c.l.b16 %v660
    %v4501 = vunpack.c.h.b16 %v660
    %v4502 = vunpack.c.l.b16 %v661
    %v4503 = vunpack.c.h.b16 %v661
    %v4504 = vunpack.c.l.b16 %v662
    %v4505 = vunpack.c.h.b16 %v662
    %v4506 = vunpack.c.l.b16 %v663
    %v4507 = vunpack.c.h.b16 %v663
    %v4508 = vunpack.c.l.b16 %v664
    %v4509 = vunpack.c.h.b16 %v664
    %v4510 = vunpack.c.l.b16 %v665
    %v4511 = vunpack.c.h.b16 %v665
    %v4512 = vunpack.c.l.b16 %v666
    %v4513 = vunpack.c.h.b16 %v666
    %v4514 = vunpack.c.l.b16 %v667
    %v4515 = vunpack.c.h.b16 %v667
    %v4516 = vunpack.c.l.b16 %v668
    %v4517 = vunpack.c.h.b16 %v668
    %v4518 = vunpack.c.l.b16 %v669
    %v4519 = vunpack.c.h.b16 %v669
    %v4520 = vunpack.c.l.b16 %v670
    %v4521 = vunpack.c.h.b16 %v670
    %v4522 = vunpack.c.l.b16 %v671
    %v4523 = vunpack.c.h.b16 %v671
    %v4524 = vunpack.c.l.b16 %v672
    %v4525 = vunpack.c.h.b16 %v672
    %v4526 = vunpack.c.l.b16 %v673
    %v4527 = vunpack.c.h.b16 %v673
    %v4528 = vunpack.c.l.b16 %v674
    %v4529 = vunpack.c.h.b16 %v674
    %v4530 = vunpack.c.l.b16 %v675
    %v4531 = vunpack.c.h.b16 %v675
    %v4532 = vunpack.c.l.b16 %v676
    %v4533 = vunpack.c.h.b16 %v676
    %v4534 = vunpack.c.l.b16 %v677
    %v4535 = vunpack.c.h.b16 %v677
    %v4536 = vunpack.c.l.b16 %v678
    %v4537 = vunpack.c.h.b16 %v678
    %v4538 = vunpack.c.l.b16 %v679
    %v4539 = vunpack.c.h.b16 %v679
    %v4540 = vunpack.c.l.b16 %v680
    %v4541 = vunpack.c.h.b16 %v680
    %v4542 = vunpack.c.l.b16 %v681
    %v4543 = vunpack.c.h.b16 %v681
    %v4544 = vunpack.c.l.b16 %v682
    %v4545 = vunpack.c.h.b16 %v682
    %v4546 = vunpack.c.l.b16 %v683
    %v4547 = vunpack.c.h.b16 %v683
    %v4548 = vunpack.c.l.b16 %v684
    %v4549 = vunpack.c.h.b16 %v684
    %v4550 = vunpack.c.l.b16 %v685
    %v4551 = vunpack.c.h.b16 %v685
    %v4552 = vunpack.c.l.b16 %v686
    %v4553 = vunpack.c.h.b16 %v686
    %v4554 = vunpack.c.l.b16 %v687
    %v4555 = vunpack.c.h.b16 %v687
    %v4556 = vunpack.c.l.b16 %v688
    %v4557 = vunpack.c.h.b16 %v688
    %v4558 = vunpack.c.l.b16 %v689
    %v4559 = vunpack.c.h.b16 %v689
    %v4560 = vunpack.c.l.b16 %v690
    %v4561 = vunpack.c.h.b16 %v690
    %v4562 = vunpack.c.l.b16 %v691
    %v4563 = vunpack.c.h.b16 %v691
    %v4564 = vunpack.c.l.b16 %v692
    %v4565 = vunpack.c.h.b16 %v692
    %v4566 = vunpack.c.l.b16 %v693
    %v4567 = vunpack.c.h.b16 %v693
    %v4568 = vunpack.c.l.b16 %v694
    %v4569 = vunpack.c.h.b16 %v694
    %v4570 = vunpack.c.l.b16 %v695
    %v4571 = vunpack.c.h.b16 %v695
    %v4572 = vunpack.c.l.b16 %v696
    %v4573 = vunpack.c.h.b16 %v696
    %v4574 = vunpack.c.l.b16 %v697
    %v4575 = vunpack.c.h.b16 %v697
    %v4576 = vunpack.c.l.b16 %v698
    %v4577 = vunpack.c.h.b16 %v698
    %v4578 = vunpack.c.l.b16 %v699
    %v4579 = vunpack.c.h.b16 %v699
    %v4580 = vunpack.c.l.b16 %v700
    %v4581 = vunpack.c.h.b16 %v700
    %v4582 = vunpack.c.l.b16 %v701
    %v4583 = vunpack.c.h.b16 %v701
    %v4584 = vunpack.c.l.b16 %v702
    %v4585 = vunpack.c.h.b16 %v702
    %v4586 = vunpack.c.l.b16 %v703
    %v4587 = vunpack.c.h.b16 %v703
    %v4588 = vunpack.c.l.b16 %v704
    %v4589 = vunpack.c.h.b16 %v704
    %v4590 = vunpack.c.l.b16 %v705
    %v4591 = vunpack.c.h.b16 %v705
    %v4592 = vunpack.c.l.b16 %v706
    %v4593 = vunpack.c.h.b16 %v706
    %v4594 = vunpack.c.l.b16 %v707
    %v4595 = vunpack.c.h.b16 %v707
    %v4596 = vunpack.c.l.b16 %v708
    %v4597 = vunpack.c.h.b16 %v708
    %v4598 = vunpack.c.l.b16 %v709
    %v4599 = vunpack.c.h.b16 %v709
    %v4600 = vunpack.c.l.b16 %v710
    %v4601 = vunpack.c.h.b16 %v710
    %v4602 = vunpack.c.l.b16 %v711
    %v4603 = vunpack.c.h.b16 %v711
    %v4604 = vunpack.c.l.b16 %v712
    %v4605 = vunpack.c.h.b16 %v712
    %v4606 = vunpack.c.l.b16 %v713
    %v4607 = vunpack.c.h.b16 %v713
    %v4608 = vunpack.c.l.b16 %v714
    %v4609 = vunpack.c.h.b16 %v714
    %v4610 = vunpack.c.l.b16 %v715
    %v4611 = vunpack.c.h.b16 %v715
    %v4612 = vunpack.c.l.b16 %v716
    %v4613 = vunpack.c.h.b16 %v716
    %v4614 = vunpack.c.l.b16 %v717
    %v4615 = vunpack.c.h.b16 %v717
    %v4616 = vunpack.c.l.b16 %v718
    %v4617 = vunpack.c.h.b16 %v718
    %v4618 = vunpack.c.l.b16 %v719
    %v4619 = vunpack.c.h.b16 %v719
    %v4620 = vunpack.c.l.b16 %v720
    %v4621 = vunpack.c.h.b16 %v720
    %v4622 = vunpack.c.l.b16 %v721
    %v4623 = vunpack.c.h.b16 %v721
    %v4624 = vunpack.c.l.b16 %v722
    %v4625 = vunpack.c.h.b16 %v722
    %v4626 = vunpack.c.l.b16 %v723
    %v4627 = vunpack.c.h.b16 %v723
    %v4628 = vunpack.c.l.b16 %v724
    %v4629 = vunpack.c.h.b16 %v724
    %v4630 = vunpack.c.l.b16 %v725
    %v4631 = vunpack.c.h.b16 %v725
    %v4632 = vunpack.c.l.b16 %v726
    %v4633 = vunpack.c.h.b16 %v726
    %v4634 = vunpack.c.l.b16 %v727
    %v4635 = vunpack.c.h.b16 %v727
    %v4636 = vunpack.c.l.b16 %v728
    %v4637 = vunpack.c.h.b16 %v728
    %v4638 = vunpack.c.l.b16 %v729
    %v4639 = vunpack.c.h.b16 %v729
    %v4640 = vunpack.c.l.b16 %v730
    %v4641 = vunpack.c.h.b16 %v730
    %v4642 = vunpack.c.l.b16 %v731
    %v4643 = vunpack.c.h.b16 %v731
    %v4644 = vunpack.c.l.b16 %v732
    %v4645 = vunpack.c.h.b16 %v732
    %v4646 = vunpack.c.l.b16 %v733
    %v4647 = vunpack.c.h.b16 %v733
    %v4648 = vunpack.c.l.b16 %v734
    %v4649 = vunpack.c.h.b16 %v734
    %v4650 = vunpack.c.l.b16 %v735
    %v4651 = vunpack.c.h.b16 %v735
    %v4652 = vunpack.c.l.b16 %v736
    %v4653 = vunpack.c.h.b16 %v736
    %v4654 = vunpack.c.l.b16 %v737
    %v4655 = vunpack.c.h.b16 %v737
    %v4656 = vunpack.c.l.b16 %v738
    %v4657 = vunpack.c.h.b16 %v738
    %v4658 = vunpack.c.l.b16 %v739
    %v4659 = vunpack.c.h.b16 %v739
    %v4660 = vunpack.c.l.b16 %v740
    %v4661 = vunpack.c.h.b16 %v740
    %v4662 = vunpack.c.l.b16 %v741
    %v4663 = vunpack.c.h.b16 %v741
    %v4664 = vunpack.c.l.b16 %v742
    %v4665 = vunpack.c.h.b16 %v742
    %v4666 = vunpack.c.l.b16 %v743
    %v4667 = vunpack.c.h.b16 %v743
    %v4668 = vunpack.c.l.b16 %v744
    %v4669 = vunpack.c.h.b16 %v744
    %v4670 = vunpack.c.l.b16 %v745
    %v4671 = vunpack.c.h.b16 %v745
    %v4672 = vunpack.c.l.b16 %v746
    %v4673 = vunpack.c.h.b16 %v746
    %v4674 = vunpack.c.l.b16 %v747
    %v4675 = vunpack.c.h.b16 %v747
    %v4676 = vunpack.c.l.b16 %v748
    %v4677 = vunpack.c.h.b16 %v748
    %v4678 = vunpack.c.l.b16 %v749
    %v4679 = vunpack.c.h.b16 %v749
    %v4680 = vunpack.c.l.b16 %v750
    %v4681 = vunpack.c.h.b16 %v750
    %v4682 = vunpack.c.l.b16 %v751
    %v4683 = vunpack.c.h.b16 %v751
    %v4684 = vunpack.c.l.b16 %v752
    %v4685 = vunpack.c.h.b16 %v752
    %v4686 = vunpack.c.l.b16 %v753
    %v4687 = vunpack.c.h.b16 %v753
    %v4688 = vunpack.c.l.b16 %v754
    %v4689 = vunpack.c.h.b16 %v754
    %v4690 = vunpack.c.l.b16 %v755
    %v4691 = vunpack.c.h.b16 %v755
    %v4692 = vunpack.c.l.b16 %v756
    %v4693 = vunpack.c.h.b16 %v756
    %v4694 = vunpack.c.l.b16 %v757
    %v4695 = vunpack.c.h.b16 %v757
    %v4696 = vunpack.c.l.b16 %v758
    %v4697 = vunpack.c.h.b16 %v758
    %v4698 = vunpack.c.l.b16 %v759
    %v4699 = vunpack.c.h.b16 %v759
    %v4700 = vunpack.c.l.b16 %v760
    %v4701 = vunpack.c.h.b16 %v760
    %v4702 = vunpack.c.l.b16 %v761
    %v4703 = vunpack.c.h.b16 %v761
    %v4704 = vunpack.c.l.b16 %v762
    %v4705 = vunpack.c.h.b16 %v762
    %v4706 = vunpack.c.l.b16 %v763
    %v4707 = vunpack.c.h.b16 %v763
    %v4708 = vunpack.c.l.b16 %v764
    %v4709 = vunpack.c.h.b16 %v764
    %v4710 = vunpack.c.l.b16 %v765
    %v4711 = vunpack.c.h.b16 %v765
    %v4712 = vunpack.c.l.b16 %v766
    %v4713 = vunpack.c.h.b16 %v766
    %v4714 = vunpack.c.l.b16 %v767
    %v4715 = vunpack.c.h.b16 %v767
    %v4716 = vunpack.c.l.b16 %v768
    %v4717 = vunpack.c.h.b16 %v768
    %v4718 = vunpack.c.l.b16 %v769
    %v4719 = vunpack.c.h.b16 %v769
    %v4720 = vunpack.c.l.b16 %v770
    %v4721 = vunpack.c.h.b16 %v770
    %v4722 = vunpack.c.l.b16 %v771
    %v4723 = vunpack.c.h.b16 %v771
    %v4724 = vunpack.c.l.b16 %v772
    %v4725 = vunpack.c.h.b16 %v772
    %v4726 = vunpack.c.l.b16 %v773
    %v4727 = vunpack.c.h.b16 %v773
    %v4728 = vunpack.c.l.b16 %v774
    %v4729 = vunpack.c.h.b16 %v774
    %v4730 = vunpack.c.l.b16 %v775
    %v4731 = vunpack.c.h.b16 %v775
    %v4732 = vunpack.c.l.b16 %v776
    %v4733 = vunpack.c.h.b16 %v776
    %v4734 = vunpack.c.l.b16 %v777
    %v4735 = vunpack.c.h.b16 %v777
    %v4736 = vunpack.c.l.b16 %v778
    %v4737 = vunpack.c.h.b16 %v778
    %v4738 = vunpack.c.l.b16 %v779
    %v4739 = vunpack.c.h.b16 %v779
    %v4740 = vunpack.c.l.b16 %v780
    %v4741 = vunpack.c.h.b16 %v780
    %v4742 = vunpack.c.l.b16 %v781
    %v4743 = vunpack.c.h.b16 %v781
    %v4744 = vunpack.c.l.b16 %v782
    %v4745 = vunpack.c.h.b16 %v782
    %v4746 = vunpack.c.l.b16 %v783
    %v4747 = vunpack.c.h.b16 %v783
    %v4748 = vunpack.c.l.b16 %v784
    %v4749 = vunpack.c.h.b16 %v784
    %v4750 = vunpack.c.l.b16 %v785
    %v4751 = vunpack.c.h.b16 %v785
    %v4752 = vunpack.c.l.b16 %v786
    %v4753 = vunpack.c.h.b16 %v786
    %v4754 = vunpack.c.l.b16 %v787
    %v4755 = vunpack.c.h.b16 %v787
    %v4756 = vunpack.c.l.b16 %v788
    %v4757 = vunpack.c.h.b16 %v788
    %v4758 = vunpack.c.l.b16 %v789
    %v4759 = vunpack.c.h.b16 %v789
    %v4760 = vunpack.c.l.b16 %v790
    %v4761 = vunpack.c.h.b16 %v790
    %v4762 = vunpack.c.l.b16 %v791
    %v4763 = vunpack.c.h.b16 %v791
    %v4764 = vunpack.c.l.b16 %v792
    %v4765 = vunpack.c.h.b16 %v792
    %v4766 = vunpack.c.l.b16 %v793
    %v4767 = vunpack.c.h.b16 %v793
    %v4768 = vunpack.c.l.b16 %v794
    %v4769 = vunpack.c.h.b16 %v794
    %v4770 = vunpack.c.l.b16 %v795
    %v4771 = vunpack.c.h.b16 %v795
    %v4772 = vunpack.c.l.b16 %v796
    %v4773 = vunpack.c.h.b16 %v796
    %v4774 = vunpack.c.l.b16 %v797
    %v4775 = vunpack.c.h.b16 %v797
    %v4776 = vunpack.c.l.b16 %v798
    %v4777 = vunpack.c.h.b16 %v798
    %v4778 = vunpack.c.l.b16 %v799
    %v4779 = vunpack.c.h.b16 %v799
    %v4780 = vunpack.c.l.b16 %v800
    %v4781 = vunpack.c.h.b16 %v800
    %v4782 = vunpack.c.l.b16 %v801
    %v4783 = vunpack.c.h.b16 %v801
    %v4784 = vunpack.c.l.b16 %v802
    %v4785 = vunpack.c.h.b16 %v802
    %v4786 = vunpack.c.l.b16 %v803
    %v4787 = vunpack.c.h.b16 %v803
    %v4788 = vunpack.c.l.b16 %v804
    %v4789 = vunpack.c.h.b16 %v804
    %v4790 = vunpack.c.l.b16 %v805
    %v4791 = vunpack.c.h.b16 %v805
    %v4792 = vunpack.c.l.b16 %v806
    %v4793 = vunpack.c.h.b16 %v806
    %v4794 = vunpack.c.l.b16 %v807
    %v4795 = vunpack.c.h.b16 %v807
    %v4796 = vunpack.c.l.b16 %v808
    %v4797 = vunpack.c.h.b16 %v808
    %v4798 = vunpack.c.l.b16 %v809
    %v4799 = vunpack.c.h.b16 %v809
    %v4800 = vunpack.c.l.b16 %v810
    %v4801 = vunpack.c.h.b16 %v810
    %v4802 = vunpack.c.l.b16 %v811
    %v4803 = vunpack.c.h.b16 %v811
    %v4804 = vunpack.c.l.b16 %v812
    %v4805 = vunpack.c.h.b16 %v812
    %v4806 = vunpack.c.l.b16 %v813
    %v4807 = vunpack.c.h.b16 %v813
    %v4808 = vunpack.c.l.b16 %v814
    %v4809 = vunpack.c.h.b16 %v814
    %v4810 = vunpack.c.l.b16 %v815
    %v4811 = vunpack.c.h.b16 %v815
    %v4812 = vunpack.c.l.b16 %v816
    %v4813 = vunpack.c.h.b16 %v816
    %v4814 = vunpack.c.l.b16 %v817
    %v4815 = vunpack.c.h.b16 %v817
    %v4816 = vunpack.c.l.b16 %v818
    %v4817 = vunpack.c.h.b16 %v818
    %v4818 = vunpack.c.l.b16 %v819
    %v4819 = vunpack.c.h.b16 %v819
    %v4820 = vunpack.c.l.b16 %v820
    %v4821 = vunpack.c.h.b16 %v820
    %v4822 = vunpack.c.l.b16 %v821
    %v4823 = vunpack.c.h.b16 %v821
    %v4824 = vunpack.c.l.b16 %v822
    %v4825 = vunpack.c.h.b16 %v822
    %v4826 = vunpack.c.l.b16 %v823
    %v4827 = vunpack.c.h.b16 %v823
    %v4828 = vunpack.c.l.b16 %v824
    %v4829 = vunpack.c.h.b16 %v824
    %v4830 = vunpack.c.l.b16 %v825
    %v4831 = vunpack.c.h.b16 %v825
    %v4832 = vunpack.c.l.b16 %v826
    %v4833 = vunpack.c.h.b16 %v826
    %v4834 = vunpack.c.l.b16 %v827
    %v4835 = vunpack.c.h.b16 %v827
    %v4836 = vunpack.c.l.b16 %v828
    %v4837 = vunpack.c.h.b16 %v828
    %v4838 = vunpack.c.l.b16 %v829
    %v4839 = vunpack.c.h.b16 %v829
    %v4840 = vunpack.c.l.b16 %v830
    %v4841 = vunpack.c.h.b16 %v830
    %v4842 = vunpack.c.l.b16 %v831
    %v4843 = vunpack.c.h.b16 %v831
    %v4844 = vunpack.c.l.b16 %v832
    %v4845 = vunpack.c.h.b16 %v832
    %v4846 = vunpack.c.l.b16 %v833
    %v4847 = vunpack.c.h.b16 %v833
    %v4848 = vunpack.c.l.b16 %v834
    %v4849 = vunpack.c.h.b16 %v834
    %v4850 = vunpack.c.l.b16 %v835
    %v4851 = vunpack.c.h.b16 %v835
    %v4852 = vunpack.c.l.b16 %v836
    %v4853 = vunpack.c.h.b16 %v836
    %v4854 = vunpack.c.l.b16 %v837
    %v4855 = vunpack.c.h.b16 %v837
    %v4856 = vunpack.c.l.b16 %v838
    %v4857 = vunpack.c.h.b16 %v838
    %v4858 = vunpack.c.l.b16 %v839
    %v4859 = vunpack.c.h.b16 %v839
    %v4860 = vunpack.c.l.b16 %v840
    %v4861 = vunpack.c.h.b16 %v840
    %v4862 = vunpack.c.l.b16 %v841
    %v4863 = vunpack.c.h.b16 %v841
    %v4864 = vunpack.c.l.b16 %v842
    %v4865 = vunpack.c.h.b16 %v842
    %v4866 = vunpack.c.l.b16 %v843
    %v4867 = vunpack.c.h.b16 %v843
    %v4868 = vunpack.c.l.b16 %v844
    %v4869 = vunpack.c.h.b16 %v844
    %v4870 = vunpack.c.l.b16 %v845
    %v4871 = vunpack.c.h.b16 %v845
    %v4872 = vunpack.c.l.b16 %v846
    %v4873 = vunpack.c.h.b16 %v846
    %v4874 = vunpack.c.l.b16 %v847
    %v4875 = vunpack.c.h.b16 %v847
    %v4876 = vunpack.c.l.b16 %v848
    %v4877 = vunpack.c.h.b16 %v848
    %v4878 = vunpack.c.l.b16 %v849
    %v4879 = vunpack.c.h.b16 %v849
    %v4880 = vunpack.c.l.b16 %v850
    %v4881 = vunpack.c.h.b16 %v850
    %v4882 = vunpack.c.l.b16 %v851
    %v4883 = vunpack.c.h.b16 %v851
    %v4884 = vunpack.c.l.b16 %v852
    %v4885 = vunpack.c.h.b16 %v852
    %v4886 = vunpack.c.l.b16 %v853
    %v4887 = vunpack.c.h.b16 %v853
    %v4888 = vunpack.c.l.b16 %v854
    %v4889 = vunpack.c.h.b16 %v854
    %v4890 = vunpack.c.l.b16 %v855
    %v4891 = vunpack.c.h.b16 %v855
    %v4892 = vunpack.c.l.b16 %v856
    %v4893 = vunpack.c.h.b16 %v856
    %v4894 = vunpack.c.l.b16 %v857
    %v4895 = vunpack.c.h.b16 %v857
    %v4896 = vunpack.c.l.b16 %v858
    %v4897 = vunpack.c.h.b16 %v858
    %v4898 = vunpack.c.l.b16 %v859
    %v4899 = vunpack.c.h.b16 %v859
    %v4900 = vunpack.c.l.b16 %v860
    %v4901 = vunpack.c.h.b16 %v860
    %v4902 = vunpack.c.l.b16 %v861
    %v4903 = vunpack.c.h.b16 %v861
    %v4904 = vunpack.c.l.b16 %v862
    %v4905 = vunpack.c.h.b16 %v862
    %v4906 = vunpack.c.l.b16 %v863
    %v4907 = vunpack.c.h.b16 %v863
    %v4908 = vunpack.c.l.b16 %v864
    %v4909 = vunpack.c.h.b16 %v864
    %v4910 = vunpack.c.l.b16 %v865
    %v4911 = vunpack.c.h.b16 %v865
    %v4912 = vunpack.c.l.b16 %v866
    %v4913 = vunpack.c.h.b16 %v866
    %v4914 = vunpack.c.l.b16 %v867
    %v4915 = vunpack.c.h.b16 %v867
    %v4916 = vunpack.c.l.b16 %v868
    %v4917 = vunpack.c.h.b16 %v868
    %v4918 = vunpack.c.l.b16 %v869
    %v4919 = vunpack.c.h.b16 %v869
    %v4920 = vunpack.c.l.b16 %v870
    %v4921 = vunpack.c.h.b16 %v870
    %v4922 = vunpack.c.l.b16 %v871
    %v4923 = vunpack.c.h.b16 %v871
    %v4924 = vunpack.c.l.b16 %v872
    %v4925 = vunpack.c.h.b16 %v872
    %v4926 = vunpack.c.l.b16 %v873
    %v4927 = vunpack.c.h.b16 %v873
    %v4928 = vunpack.c.l.b16 %v874
    %v4929 = vunpack.c.h.b16 %v874
    %v4930 = vunpack.c.l.b16 %v875
    %v4931 = vunpack.c.h.b16 %v875
    %v4932 = vunpack.c.l.b16 %v876
    %v4933 = vunpack.c.h.b16 %v876
    %v4934 = vunpack.c.l.b16 %v877
    %v4935 = vunpack.c.h.b16 %v877
    %v4936 = vunpack.c.l.b16 %v878
    %v4937 = vunpack.c.h.b16 %v878
    %v4938 = vunpack.c.l.b16 %v879
    %v4939 = vunpack.c.h.b16 %v879
    %v4940 = vunpack.c.l.b16 %v880
    %v4941 = vunpack.c.h.b16 %v880
    %v4942 = vunpack.c.l.b16 %v881
    %v4943 = vunpack.c.h.b16 %v881
    %v4944 = vunpack.c.l.b16 %v882
    %v4945 = vunpack.c.h.b16 %v882
    %v4946 = vunpack.c.l.b16 %v883
    %v4947 = vunpack.c.h.b16 %v883
    %v4948 = vunpack.c.l.b16 %v884
    %v4949 = vunpack.c.h.b16 %v884
    %v4950 = vunpack.c.l.b16 %v885
    %v4951 = vunpack.c.h.b16 %v885
    %v4952 = vunpack.c.l.b16 %v886
    %v4953 = vunpack.c.h.b16 %v886
    %v4954 = vunpack.c.l.b16 %v887
    %v4955 = vunpack.c.h.b16 %v887
    %v4956 = vunpack.c.l.b16 %v888
    %v4957 = vunpack.c.h.b16 %v888
    %v4958 = vunpack.c.l.b16 %v889
    %v4959 = vunpack.c.h.b16 %v889
    %v4960 = vunpack.c.l.b16 %v890
    %v4961 = vunpack.c.h.b16 %v890
    %v4962 = vunpack.c.l.b16 %v891
    %v4963 = vunpack.c.h.b16 %v891
    %v4964 = vunpack.c.l.b16 %v892
    %v4965 = vunpack.c.h.b16 %v892
    %v4966 = vunpack.c.l.b16 %v893
    %v4967 = vunpack.c.h.b16 %v893
    %v4968 = vunpack.c.l.b16 %v894
    %v4969 = vunpack.c.h.b16 %v894
    %v4970 = vunpack.c.l.b16 %v895
    %v4971 = vunpack.c.h.b16 %v895
    %v4972 = vunpack.c.l.b16 %v896
    %v4973 = vunpack.c.h.b16 %v896
    %v4974 = vunpack.c.l.b16 %v897
    %v4975 = vunpack.c.h.b16 %v897
    %v4976 = vunpack.c.l.b16 %v898
    %v4977 = vunpack.c.h.b16 %v898
    %v4978 = vunpack.c.l.b16 %v899
    %v4979 = vunpack.c.h.b16 %v899
    %v4980 = vunpack.c.l.b16 %v900
    %v4981 = vunpack.c.h.b16 %v900
    %v4982 = vunpack.c.l.b16 %v901
    %v4983 = vunpack.c.h.b16 %v901
    %v4984 = vunpack.c.l.b16 %v902
    %v4985 = vunpack.c.h.b16 %v902
    %v4986 = vunpack.c.l.b16 %v903
    %v4987 = vunpack.c.h.b16 %v903
    %v4988 = vunpack.c.l.b16 %v904
    %v4989 = vunpack.c.h.b16 %v904
    %v4990 = vunpack.c.l.b16 %v905
    %v4991 = vunpack.c.h.b16 %v905
    %v4992 = vunpack.c.l.b16 %v906
    %v4993 = vunpack.c.h.b16 %v906
    %v4994 = vunpack.c.l.b16 %v907
    %v4995 = vunpack.c.h.b16 %v907
    %v4996 = vunpack.c.l.b16 %v908
    %v4997 = vunpack.c.h.b16 %v908
    %v4998 = vunpack.c.l.b16 %v909
    %v4999 = vunpack.c.h.b16 %v909
    %v5000 = vunpack.c.l.b16 %v910
    %v5001 = vunpack.c.h.b16 %v910
    %v5002 = vunpack.c.l.b16 %v911
    %v5003 = vunpack.c.h.b16 %v911
    %v5004 = vunpack.c.l.b16 %v912
    %v5005 = vunpack.c.h.b16 %v912
    %v5006 = vunpack.c.l.b16 %v913
    %v5007 = vunpack.c.h.b16 %v913
    %v5008 = vunpack.c.l.b16 %v914
    %v5009 = vunpack.c.h.b16 %v914
    %v5010 = vunpack.c.l.b16 %v915
    %v5011 = vunpack.c.h.b16 %v915
    %v5012 = vunpack.c.l.b16 %v916
    %v5013 = vunpack.c.h.b16 %v916
    %v5014 = vunpack.c.l.b16 %v917
    %v5015 = vunpack.c.h.b16 %v917
    %v5016 = vunpack.c.l.b16 %v918
    %v5017 = vunpack.c.h.b16 %v918
    %v5018 = vunpack.c.l.b16 %v919
    %v5019 = vunpack.c.h.b16 %v919
    %v5020 = vunpack.c.l.b16 %v920
    %v5021 = vunpack.c.h.b16 %v920
    %v5022 = vunpack.c.l.b16 %v921
    %v5023 = vunpack.c.h.b16 %v921
    %v5024 = vunpack.c.l.b16 %v922
    %v5025 = vunpack.c.h.b16 %v922
    %v5026 = vunpack.c.l.b16 %v923
    %v5027 = vunpack.c.h.b16 %v923
    %v5028 = vunpack.c.l.b16 %v924
    %v5029 = vunpack.c.h.b16 %v924
    %v5030 = vunpack.c.l.b16 %v925
    %v5031 = vunpack.c.h.b16 %v925
    %v5032 = vunpack.c.l.b16 %v926
    %v5033 = vunpack.c.h.b16 %v926
    %v5034 = vunpack.c.l.b16 %v927
    %v5035 = vunpack.c.h.b16 %v927
    %v5036 = vunpack.c.l.b16 %v928
    %v5037 = vunpack.c.h.b16 %v928
    %v5038 = vunpack.c.l.b16 %v929
    %v5039 = vunpack.c.h.b16 %v929
    %v5040 = vunpack.c.l.b16 %v930
    %v5041 = vunpack.c.h.b16 %v930
    %v5042 = vunpack.c.l.b16 %v931
    %v5043 = vunpack.c.h.b16 %v931
    %v5044 = vunpack.c.l.b16 %v932
    %v5045 = vunpack.c.h.b16 %v932
    %v5046 = vunpack.c.l.b16 %v933
    %v5047 = vunpack.c.h.b16 %v933
    %v5048 = vunpack.c.l.b16 %v934
    %v5049 = vunpack.c.h.b16 %v934
    %v5050 = vunpack.c.l.b16 %v935
    %v5051 = vunpack.c.h.b16 %v935
    %v5052 = vunpack.c.l.b16 %v936
    %v5053 = vunpack.c.h.b16 %v936
    %v5054 = vunpack.c.l.b16 %v937
    %v5055 = vunpack.c.h.b16 %v937
    %v5056 = vunpack.c.l.b16 %v938
    %v5057 = vunpack.c.h.b16 %v938
    %v5058 = vunpack.c.l.b16 %v939
    %v5059 = vunpack.c.h.b16 %v939
    %v5060 = vunpack.c.l.b16 %v940
    %v5061 = vunpack.c.h.b16 %v940
    %v5062 = vunpack.c.l.b16 %v941
    %v5063 = vunpack.c.h.b16 %v941
    %v5064 = vunpack.c.l.b16 %v942
    %v5065 = vunpack.c.h.b16 %v942
    %v5066 = vunpack.c.l.b16 %v943
    %v5067 = vunpack.c.h.b16 %v943
    %v5068 = vunpack.c.l.b16 %v944
    %v5069 = vunpack.c.h.b16 %v944
    %v5070 = vunpack.c.l.b16 %v945
    %v5071 = vunpack.c.h.b16 %v945
    %v5072 = vunpack.c.l.b16 %v946
    %v5073 = vunpack.c.h.b16 %v946
    %v5074 = vunpack.c.l.b16 %v947
    %v5075 = vunpack.c.h.b16 %v947
    %v5076 = vunpack.c.l.b16 %v948
    %v5077 = vunpack.c.h.b16 %v948
    %v5078 = vunpack.c.l.b16 %v949
    %v5079 = vunpack.c.h.b16 %v949
    %v5080 = vunpack.c.l.b16 %v950
    %v5081 = vunpack.c.h.b16 %v950
    %v5082 = vunpack.c.l.b16 %v951
    %v5083 = vunpack.c.h.b16 %v951
    %v5084 = vunpack.c.l.b16 %v952
    %v5085 = vunpack.c.h.b16 %v952
    %v5086 = vunpack.c.l.b16 %v953
    %v5087 = vunpack.c.h.b16 %v953
    %v5088 = vunpack.c.l.b16 %v954
    %v5089 = vunpack.c.h.b16 %v954
    %v5090 = vunpack.c.l.b16 %v955
    %v5091 = vunpack.c.h.b16 %v955
    %v5092 = vunpack.c.l.b16 %v956
    %v5093 = vunpack.c.h.b16 %v956
    %v5094 = vunpack.c.l.b16 %v957
    %v5095 = vunpack.c.h.b16 %v957
    %v5096 = vunpack.c.l.b16 %v958
    %v5097 = vunpack.c.h.b16 %v958
    %v5098 = vunpack.c.l.b16 %v959
    %v5099 = vunpack.c.h.b16 %v959
    %v5100 = vunpack.c.l.b16 %v960
    %v5101 = vunpack.c.h.b16 %v960
    %v5102 = vunpack.c.l.b16 %v961
    %v5103 = vunpack.c.h.b16 %v961
    %v5104 = vunpack.c.l.b16 %v962
    %v5105 = vunpack.c.h.b16 %v962
    %v5106 = vunpack.c.l.b16 %v963
    %v5107 = vunpack.c.h.b16 %v963
    %v5108 = vunpack.c.l.b16 %v964
    %v5109 = vunpack.c.h.b16 %v964
    %v5110 = vunpack.c.l.b16 %v965
    %v5111 = vunpack.c.h.b16 %v965
    %v5112 = vunpack.c.l.b16 %v966
    %v5113 = vunpack.c.h.b16 %v966
    %v5114 = vunpack.c.l.b16 %v967
    %v5115 = vunpack.c.h.b16 %v967
    %v5116 = vunpack.c.l.b16 %v968
    %v5117 = vunpack.c.h.b16 %v968
    %v5118 = vunpack.c.l.b16 %v969
    %v5119 = vunpack.c.h.b16 %v969
    %v5120 = vunpack.c.l.b16 %v970
    %v5121 = vunpack.c.h.b16 %v970
    %v5122 = vunpack.c.l.b16 %v971
    %v5123 = vunpack.c.h.b16 %v971
    %v5124 = vunpack.c.l.b16 %v972
    %v5125 = vunpack.c.h.b16 %v972
    %v5126 = vunpack.c.l.b16 %v973
    %v5127 = vunpack.c.h.b16 %v973
    %v5128 = vunpack.c.l.b16 %v974
    %v5129 = vunpack.c.h.b16 %v974
    %v5130 = vunpack.c.l.b16 %v975
    %v5131 = vunpack.c.h.b16 %v975
    %v5132 = vunpack.c.l.b16 %v976
    %v5133 = vunpack.c.h.b16 %v976
    %v5134 = vunpack.c.l.b16 %v977
    %v5135 = vunpack.c.h.b16 %v977
    %v5136 = vunpack.c.l.b16 %v978
    %v5137 = vunpack.c.h.b16 %v978
    %v5138 = vunpack.c.l.b16 %v979
    %v5139 = vunpack.c.h.b16 %v979
    %v5140 = vunpack.c.l.b16 %v980
    %v5141 = vunpack.c.h.b16 %v980
    %v5142 = vunpack.c.l.b16 %v981
    %v5143 = vunpack.c.h.b16 %v981
    %v5144 = vunpack.c.l.b16 %v982
    %v5145 = vunpack.c.h.b16 %v982
    %v5146 = vunpack.c.l.b16 %v983
    %v5147 = vunpack.c.h.b16 %v983
    %v5148 = vunpack.c.l.b16 %v984
    %v5149 = vunpack.c.h.b16 %v984
    %v5150 = vunpack.c.l.b16 %v985
    %v5151 = vunpack.c.h.b16 %v985
    %v5152 = vunpack.c.l.b16 %v986
    %v5153 = vunpack.c.h.b16 %v986
    %v5154 = vunpack.c.l.b16 %v987
    %v5155 = vunpack.c.h.b16 %v987
    %v5156 = vunpack.c.l.b16 %v988
    %v5157 = vunpack.c.h.b16 %v988
    %v5158 = vunpack.c.l.b16 %v989
    %v5159 = vunpack.c.h.b16 %v989
    %v5160 = vunpack.c.l.b16 %v990
    %v5161 = vunpack.c.h.b16 %v990
    %v5162 = vunpack.c.l.b16 %v991
    %v5163 = vunpack.c.h.b16 %v991
    %v5164 = vunpack.c.l.b16 %v992
    %v5165 = vunpack.c.h.b16 %v992
    %v5166 = vunpack.c.l.b16 %v993
    %v5167 = vunpack.c.h.b16 %v993
    %v5168 = vunpack.c.l.b16 %v994
    %v5169 = vunpack.c.h.b16 %v994
    %v5170 = vunpack.c.l.b16 %v995
    %v5171 = vunpack.c.h.b16 %v995
    %v5172 = vunpack.c.l.b16 %v996
    %v5173 = vunpack.c.h.b16 %v996
    %v5174 = vunpack.c.l.b16 %v997
    %v5175 = vunpack.c.h.b16 %v997
    %v5176 = vunpack.c.l.b16 %v998
    %v5177 = vunpack.c.h.b16 %v998
    %v5178 = vunpack.c.l.b16 %v999
    %v5179 = vunpack.c.h.b16 %v999
    %v5180 = vunpack.c.l.b16 %v1000
    %v5181 = vunpack.c.h.b16 %v1000
    %v5182 = vunpack.c.l.b16 %v1001
    %v5183 = vunpack.c.h.b16 %v1001
    %v5184 = vunpack.c.l.b16 %v1002
    %v5185 = vunpack.c.h.b16 %v1002
    %v5186 = vunpack.c.l.b16 %v1003
    %v5187 = vunpack.c.h.b16 %v1003
    %v5188 = vunpack.c.l.b16 %v1004
    %v5189 = vunpack.c.h.b16 %v1004
    %v5190 = vunpack.c.l.b16 %v1005
    %v5191 = vunpack.c.h.b16 %v1005
    %v5192 = vunpack.c.l.b16 %v1006
    %v5193 = vunpack.c.h.b16 %v1006
    %v5194 = vunpack.c.l.b16 %v1007
    %v5195 = vunpack.c.h.b16 %v1007
    %v5196 = vunpack.c.l.b16 %v1008
    %v5197 = vunpack.c.h.b16 %v1008
    %v5198 = vunpack.c.l.b16 %v1009
    %v5199 = vunpack.c.h.b16 %v1009
    %v5200 = vunpack.c.l.b16 %v1010
    %v5201 = vunpack.c.h.b16 %v1010
    %v5202 = vunpack.c.l.b16 %v1011
    %v5203 = vunpack.c.h.b16 %v1011
    %v5204 = vunpack.c.l.b16 %v1012
    %v5205 = vunpack.c.h.b16 %v1012
    %v5206 = vunpack.c.l.b16 %v1013
    %v5207 = vunpack.c.h.b16 %v1013
    %v5208 = vunpack.c.l.b16 %v1014
    %v5209 = vunpack.c.h.b16 %v1014
    %v5210 = vunpack.c.l.b16 %v1015
    %v5211 = vunpack.c.h.b16 %v1015
    %v5212 = vunpack.c.l.b16 %v1016
    %v5213 = vunpack.c.h.b16 %v1016
    %v5214 = vunpack.c.l.b16 %v1017
    %v5215 = vunpack.c.h.b16 %v1017
    %v5216 = vunpack.c.l.b16 %v1018
    %v5217 = vunpack.c.h.b16 %v1018
    %v5218 = vunpack.c.l.b16 %v1019
    %v5219 = vunpack.c.h.b16 %v1019
    %v5220 = vunpack.c.l.b16 %v1020
    %v5221 = vunpack.c.h.b16 %v1020
    %v5222 = vunpack.c.l.b16 %v1021
    %v5223 = vunpack.c.h.b16 %v1021
    %v5224 = vunpack.c.l.b16 %v1022
    %v5225 = vunpack.c.h.b16 %v1022
    %v5226 = vunpack.c.l.b16 %v1023
    %v5227 = vunpack.c.h.b16 %v1023
    %v5228 = vunpack.c.l.b16 %v1024
    %v5229 = vunpack.c.h.b16 %v1024
    %v5230 = vunpack.c.l.b16 %v1025
    %v5231 = vunpack.c.h.b16 %v1025
    %v5232 = vunpack.c.l.b16 %v1026
    %v5233 = vunpack.c.h.b16 %v1026
    %v5234 = vunpack.c.l.b16 %v1027
    %v5235 = vunpack.c.h.b16 %v1027
    %v5236 = vunpack.c.l.b16 %v1028
    %v5237 = vunpack.c.h.b16 %v1028
    %v5238 = vunpack.c.l.b16 %v1029
    %v5239 = vunpack.c.h.b16 %v1029
    %v5240 = vunpack.c.l.b16 %v1030
    %v5241 = vunpack.c.h.b16 %v1030
    %v5242 = vunpack.c.l.b16 %v1031
    %v5243 = vunpack.c.h.b16 %v1031
    %v5244 = vunpack.c.l.b16 %v1032
    %v5245 = vunpack.c.h.b16 %v1032
    %v5246 = vunpack.c.l.b16 %v1033
    %v5247 = vunpack.c.h.b16 %v1033
    %v5248 = vunpack.c.l.b16 %v1034
    %v5249 = vunpack.c.h.b16 %v1034
    %v5250 = vunpack.c.l.b16 %v1035
    %v5251 = vunpack.c.h.b16 %v1035
    %v5252 = vunpack.c.l.b16 %v1036
    %v5253 = vunpack.c.h.b16 %v1036
    %v5254 = vunpack.c.l.b16 %v1037
    %v5255 = vunpack.c.h.b16 %v1037
    %v5256 = vunpack.c.l.b16 %v1038
    %v5257 = vunpack.c.h.b16 %v1038
    %v5258 = vunpack.c.l.b16 %v1039
    %v5259 = vunpack.c.h.b16 %v1039
    %v5260 = vunpack.c.l.b16 %v1040
    %v5261 = vunpack.c.h.b16 %v1040
    %v5262 = vunpack.c.l.b16 %v1041
    %v5263 = vunpack.c.h.b16 %v1041
    %v5264 = vunpack.c.l.b16 %v1042
    %v5265 = vunpack.c.h.b16 %v1042
    %v5266 = vunpack.c.l.b16 %v1043
    %v5267 = vunpack.c.h.b16 %v1043
    %v5268 = vunpack.c.l.b16 %v1044
    %v5269 = vunpack.c.h.b16 %v1044
    %v5270 = vunpack.c.l.b16 %v1045
    %v5271 = vunpack.c.h.b16 %v1045
    %v5272 = vunpack.c.l.b16 %v1046
    %v5273 = vunpack.c.h.b16 %v1046
    %v5274 = vunpack.c.l.b16 %v1047
    %v5275 = vunpack.c.h.b16 %v1047
    %v5276 = vunpack.c.l.b16 %v1048
    %v5277 = vunpack.c.h.b16 %v1048
    %v5278 = vunpack.c.l.b16 %v1049
    %v5279 = vunpack.c.h.b16 %v1049
    %v5280 = vunpack.c.l.b16 %v1050
    %v5281 = vunpack.c.h.b16 %v1050
    %v5282 = vunpack.c.l.b16 %v1051
    %v5283 = vunpack.c.h.b16 %v1051
    %v5284 = vunpack.c.l.b16 %v1052
    %v5285 = vunpack.c.h.b16 %v1052
    %v5286 = vunpack.c.l.b16 %v1053
    %v5287 = vunpack.c.h.b16 %v1053
    %v5288 = vunpack.c.l.b16 %v1054
    %v5289 = vunpack.c.h.b16 %v1054
    %v5290 = vunpack.c.l.b16 %v1055
    %v5291 = vunpack.c.h.b16 %v1055
    %v5292 = vunpack.c.l.b16 %v1056
    %v5293 = vunpack.c.h.b16 %v1056
    %v5294 = vunpack.c.l.b16 %v1057
    %v5295 = vunpack.c.h.b16 %v1057
    %v5296 = vunpack.c.l.b16 %v1058
    %v5297 = vunpack.c.h.b16 %v1058
    %v5298 = vunpack.c.l.b16 %v1059
    %v5299 = vunpack.c.h.b16 %v1059
    %v5300 = vunpack.c.l.b16 %v1060
    %v5301 = vunpack.c.h.b16 %v1060
    %v5302 = vunpack.c.l.b16 %v1061
    %v5303 = vunpack.c.h.b16 %v1061
    %v5304 = vunpack.c.l.b16 %v1062
    %v5305 = vunpack.c.h.b16 %v1062
    %v5306 = vunpack.c.l.b16 %v1063
    %v5307 = vunpack.c.h.b16 %v1063
    %v5308 = vunpack.c.l.b16 %v1064
    %v5309 = vunpack.c.h.b16 %v1064
    %v5310 = vunpack.c.l.b16 %v1065
    %v5311 = vunpack.c.h.b16 %v1065
    %v5312 = vunpack.c.l.b16 %v1066
    %v5313 = vunpack.c.h.b16 %v1066
    %v5314 = vunpack.c.l.b16 %v1067
    %v5315 = vunpack.c.h.b16 %v1067
    %v5316 = vunpack.c.l.b16 %v1068
    %v5317 = vunpack.c.h.b16 %v1068
    %v5318 = vunpack.c.l.b16 %v1069
    %v5319 = vunpack.c.h.b16 %v1069
    %v5320 = vunpack.c.l.b16 %v1070
    %v5321 = vunpack.c.h.b16 %v1070
    %v5322 = vunpack.c.l.b16 %v1071
    %v5323 = vunpack.c.h.b16 %v1071
    %v5324 = vunpack.c.l.b16 %v1072
    %v5325 = vunpack.c.h.b16 %v1072
    %v5326 = vunpack.c.l.b16 %v1073
    %v5327 = vunpack.c.h.b16 %v1073
    %v5328 = vunpack.c.l.b16 %v1074
    %v5329 = vunpack.c.h.b16 %v1074
    %v5330 = vunpack.c.l.b16 %v1075
    %v5331 = vunpack.c.h.b16 %v1075
    %v5332 = vunpack.c.l.b16 %v1076
    %v5333 = vunpack.c.h.b16 %v1076
    %v5334 = vunpack.c.l.b16 %v1077
    %v5335 = vunpack.c.h.b16 %v1077
    %v5336 = vunpack.c.l.b16 %v1078
    %v5337 = vunpack.c.h.b16 %v1078
    %v5338 = vunpack.c.l.b16 %v1079
    %v5339 = vunpack.c.h.b16 %v1079
    %v5340 = vunpack.c.l.b16 %v1080
    %v5341 = vunpack.c.h.b16 %v1080
    %v5342 = vunpack.c.l.b16 %v1081
    %v5343 = vunpack.c.h.b16 %v1081
    %v5344 = vunpack.c.l.b16 %v1082
    %v5345 = vunpack.c.h.b16 %v1082
    %v5346 = vunpack.c.l.b16 %v1083
    %v5347 = vunpack.c.h.b16 %v1083
    %v5348 = vunpack.c.l.b16 %v1084
    %v5349 = vunpack.c.h.b16 %v1084
    %v5350 = vunpack.c.l.b16 %v1085
    %v5351 = vunpack.c.h.b16 %v1085
    %v5352 = vunpack.c.l.b16 %v1086
    %v5353 = vunpack.c.h.b16 %v1086
    %v5354 = vunpack.c.l.b16 %v1087
    %v5355 = vunpack.c.h.b16 %v1087
    %v5356 = vunpack.c.l.b16 %v1088
    %v5357 = vunpack.c.h.b16 %v1088
    %v5358 = vunpack.c.l.b16 %v1089
    %v5359 = vunpack.c.h.b16 %v1089
    %v5360 = vunpack.c.l.b16 %v1090
    %v5361 = vunpack.c.h.b16 %v1090
    %v5362 = vunpack.c.l.b16 %v1091
    %v5363 = vunpack.c.h.b16 %v1091
    %v5364 = vunpack.c.l.b16 %v1092
    %v5365 = vunpack.c.h.b16 %v1092
    %v5366 = vunpack.c.l.b16 %v1093
    %v5367 = vunpack.c.h.b16 %v1093
    %v5368 = vunpack.c.l.b16 %v1094
    %v5369 = vunpack.c.h.b16 %v1094
    %v5370 = vunpack.c.l.b16 %v1095
    %v5371 = vunpack.c.h.b16 %v1095
    %v5372 = vunpack.c.l.b16 %v1096
    %v5373 = vunpack.c.h.b16 %v1096
    %v5374 = vunpack.c.l.b16 %v1097
    %v5375 = vunpack.c.h.b16 %v1097
    %v5376 = vunpack.c.l.b16 %v1098
    %v5377 = vunpack.c.h.b16 %v1098
    %v5378 = vunpack.c.l.b16 %v1099
    %v5379 = vunpack.c.h.b16 %v1099
    %v5380 = vunpack.c.l.b16 %v1100
    %v5381 = vunpack.c.h.b16 %v1100
    %v5382 = vunpack.c.l.b16 %v1101
    %v5383 = vunpack.c.h.b16 %v1101
    %v5384 = vunpack.c.l.b16 %v1102
    %v5385 = vunpack.c.h.b16 %v1102
    %v5386 = vunpack.c.l.b16 %v1103
    %v5387 = vunpack.c.h.b16 %v1103
    %v5388 = vunpack.c.l.b16 %v1104
    %v5389 = vunpack.c.h.b16 %v1104
    %v5390 = vunpack.c.l.b16 %v1105
    %v5391 = vunpack.c.h.b16 %v1105
    %v5392 = vunpack.c.l.b16 %v1106
    %v5393 = vunpack.c.h.b16 %v1106
    %v5394 = vunpack.c.l.b16 %v1107
    %v5395 = vunpack.c.h.b16 %v1107
    %v5396 = vunpack.c.l.b16 %v1108
    %v5397 = vunpack.c.h.b16 %v1108
    %v5398 = vunpack.c.l.b16 %v1109
    %v5399 = vunpack.c.h.b16 %v1109
    %v5400 = vunpack.c.l.b16 %v1110
    %v5401 = vunpack.c.h.b16 %v1110
    %v5402 = vunpack.c.l.b16 %v1111
    %v5403 = vunpack.c.h.b16 %v1111
    %v5404 = vunpack.c.l.b16 %v1112
    %v5405 = vunpack.c.h.b16 %v1112
    %v5406 = vunpack.c.l.b16 %v1113
    %v5407 = vunpack.c.h.b16 %v1113
    %v5408 = vunpack.c.l.b16 %v1114
    %v5409 = vunpack.c.h.b16 %v1114
    %v5410 = vunpack.c.l.b16 %v1115
    %v5411 = vunpack.c.h.b16 %v1115
    %v5412 = vunpack.c.l.b16 %v1116
    %v5413 = vunpack.c.h.b16 %v1116
    %v5414 = vunpack.c.l.b16 %v1117
    %v5415 = vunpack.c.h.b16 %v1117
    %v5416 = vunpack.c.l.b16 %v1118
    %v5417 = vunpack.c.h.b16 %v1118
    %v5418 = vunpack.c.l.b16 %v1119
    %v5419 = vunpack.c.h.b16 %v1119
    %v5420 = vunpack.c.l.b16 %v1120
    %v5421 = vunpack.c.h.b16 %v1120
    %v5422 = vunpack.c.l.b16 %v1121
    %v5423 = vunpack.c.h.b16 %v1121
    %v5424 = vunpack.c.l.b16 %v1122
    %v5425 = vunpack.c.h.b16 %v1122
    %v5426 = vunpack.c.l.b16 %v1123
    %v5427 = vunpack.c.h.b16 %v1123
    %v5428 = vunpack.c.l.b16 %v1124
    %v5429 = vunpack.c.h.b16 %v1124
    %v5430 = vunpack.c.l.b16 %v1125
    %v5431 = vunpack.c.h.b16 %v1125
    %v5432 = vunpack.c.l.b16 %v1126
    %v5433 = vunpack.c.h.b16 %v1126
    %v5434 = vunpack.c.l.b16 %v1127
    %v5435 = vunpack.c.h.b16 %v1127
    %v5436 = vunpack.c.l.b16 %v1128
    %v5437 = vunpack.c.h.b16 %v1128
    %v5438 = vunpack.c.l.b16 %v1129
    %v5439 = vunpack.c.h.b16 %v1129
    %v5440 = vunpack.c.l.b16 %v1130
    %v5441 = vunpack.c.h.b16 %v1130
    %v5442 = vunpack.c.l.b16 %v1131
    %v5443 = vunpack.c.h.b16 %v1131
    %v5444 = vunpack.c.l.b16 %v1132
    %v5445 = vunpack.c.h.b16 %v1132
    %v5446 = vunpack.c.l.b16 %v1133
    %v5447 = vunpack.c.h.b16 %v1133
    %v5448 = vunpack.c.l.b16 %v1134
    %v5449 = vunpack.c.h.b16 %v1134
    %v5450 = vunpack.c.l.b16 %v1135
    %v5451 = vunpack.c.h.b16 %v1135
    %v5452 = vunpack.c.l.b16 %v1136
    %v5453 = vunpack.c.h.b16 %v1136
    %v5454 = vunpack.c.l.b16 %v1137
    %v5455 = vunpack.c.h.b16 %v1137
    %v5456 = vunpack.c.l.b16 %v1138
    %v5457 = vunpack.c.h.b16 %v1138
    %v5458 = vunpack.c.l.b16 %v1139
    %v5459 = vunpack.c.h.b16 %v1139
    %v5460 = vunpack.c.l.b16 %v1140
    %v5461 = vunpack.c.h.b16 %v1140
    %v5462 = vunpack.c.l.b16 %v1141
    %v5463 = vunpack.c.h.b16 %v1141
    %v5464 = vunpack.c.l.b16 %v1142
    %v5465 = vunpack.c.h.b16 %v1142
    %v5466 = vunpack.c.l.b16 %v1143
    %v5467 = vunpack.c.h.b16 %v1143
    %v5468 = vunpack.c.l.b16 %v1144
    %v5469 = vunpack.c.h.b16 %v1144
    %v5470 = vunpack.c.l.b16 %v1145
    %v5471 = vunpack.c.h.b16 %v1145
    %v5472 = vunpack.c.l.b16 %v1146
    %v5473 = vunpack.c.h.b16 %v1146
    %v5474 = vunpack.c.l.b16 %v1147
    %v5475 = vunpack.c.h.b16 %v1147
    %v5476 = vunpack.c.l.b16 %v1148
    %v5477 = vunpack.c.h.b16 %v1148
    %v5478 = vunpack.c.l.b16 %v1149
    %v5479 = vunpack.c.h.b16 %v1149
    %v5480 = vunpack.c.l.b16 %v1150
    %v5481 = vunpack.c.h.b16 %v1150
    %v5482 = vunpack.c.l.b16 %v1151
    %v5483 = vunpack.c.h.b16 %v1151
    %v5484 = vunpack.c.l.b16 %v1152
    %v5485 = vunpack.c.h.b16 %v1152
    %v5486 = vunpack.c.l.b16 %v1153
    %v5487 = vunpack.c.h.b16 %v1153
    %v5488 = vunpack.c.l.b16 %v1154
    %v5489 = vunpack.c.h.b16 %v1154
    %v5490 = vunpack.c.l.b16 %v1155
    %v5491 = vunpack.c.h.b16 %v1155
    %v5492 = vunpack.c.l.b16 %v1156
    %v5493 = vunpack.c.h.b16 %v1156
    %v5494 = vunpack.c.l.b16 %v1157
    %v5495 = vunpack.c.h.b16 %v1157
    %v5496 = vunpack.c.l.b16 %v1158
    %v5497 = vunpack.c.h.b16 %v1158
    %v5498 = vunpack.c.l.b16 %v1159
    %v5499 = vunpack.c.h.b16 %v1159
    %v5500 = vunpack.c.l.b16 %v1160
    %v5501 = vunpack.c.h.b16 %v1160
    %v5502 = vunpack.c.l.b16 %v1161
    %v5503 = vunpack.c.h.b16 %v1161
    %v5504 = vunpack.c.l.b16 %v1162
    %v5505 = vunpack.c.h.b16 %v1162
    %v5506 = vunpack.c.l.b16 %v1163
    %v5507 = vunpack.c.h.b16 %v1163
    %v5508 = vunpack.c.l.b16 %v1164
    %v5509 = vunpack.c.h.b16 %v1164
    %v5510 = vunpack.c.l.b16 %v1165
    %v5511 = vunpack.c.h.b16 %v1165
    %v5512 = vunpack.c.l.b16 %v1166
    %v5513 = vunpack.c.h.b16 %v1166
    %v5514 = vunpack.c.l.b16 %v1167
    %v5515 = vunpack.c.h.b16 %v1167
    %v5516 = vunpack.c.l.b16 %v1168
    %v5517 = vunpack.c.h.b16 %v1168
    %v5518 = vunpack.c.l.b16 %v1169
    %v5519 = vunpack.c.h.b16 %v1169
    %v5520 = vunpack.c.l.b16 %v1170
    %v5521 = vunpack.c.h.b16 %v1170
    %v5522 = vunpack.c.l.b16 %v1171
    %v5523 = vunpack.c.h.b16 %v1171
    %v5524 = vunpack.c.l.b16 %v1172
    %v5525 = vunpack.c.h.b16 %v1172
    %v5526 = vunpack.c.l.b16 %v1173
    %v5527 = vunpack.c.h.b16 %v1173
    %v5528 = vunpack.c.l.b16 %v1174
    %v5529 = vunpack.c.h.b16 %v1174
    %v5530 = vunpack.c.l.b16 %v1175
    %v5531 = vunpack.c.h.b16 %v1175
    %v5532 = vunpack.c.l.b16 %v1176
    %v5533 = vunpack.c.h.b16 %v1176
    %v5534 = vunpack.c.l.b16 %v1177
    %v5535 = vunpack.c.h.b16 %v1177
    %v5536 = vunpack.c.l.b16 %v1178
    %v5537 = vunpack.c.h.b16 %v1178
    %v5538 = vunpack.c.l.b16 %v1179
    %v5539 = vunpack.c.h.b16 %v1179
    %v5540 = vunpack.c.l.b16 %v1180
    %v5541 = vunpack.c.h.b16 %v1180
    %v5542 = vunpack.c.l.b16 %v1181
    %v5543 = vunpack.c.h.b16 %v1181
    %v5544 = vunpack.c.l.b16 %v1182
    %v5545 = vunpack.c.h.b16 %v1182
    %v5546 = vunpack.c.l.b16 %v1183
    %v5547 = vunpack.c.h.b16 %v1183
    %v5548 = vunpack.c.l.b16 %v1184
    %v5549 = vunpack.c.h.b16 %v1184
    %v5550 = vunpack.c.l.b16 %v1185
    %v5551 = vunpack.c.h.b16 %v1185
    %v5552 = vunpack.c.l.b16 %v1186
    %v5553 = vunpack.c.h.b16 %v1186
    %v5554 = vunpack.c.l.b16 %v1187
    %v5555 = vunpack.c.h.b16 %v1187
    %v5556 = vunpack.c.l.b16 %v1188
    %v5557 = vunpack.c.h.b16 %v1188
    %v5558 = vunpack.c.l.b16 %v1189
    %v5559 = vunpack.c.h.b16 %v1189
    %v5560 = vunpack.c.l.b16 %v1190
    %v5561 = vunpack.c.h.b16 %v1190
    %v5562 = vunpack.c.l.b16 %v1191
    %v5563 = vunpack.c.h.b16 %v1191
    %v5564 = vunpack.c.l.b16 %v1192
    %v5565 = vunpack.c.h.b16 %v1192
    %v5566 = vunpack.c.l.b16 %v1193
    %v5567 = vunpack.c.h.b16 %v1193
    %v5568 = vunpack.c.l.b16 %v1194
    %v5569 = vunpack.c.h.b16 %v1194
    %v5570 = vunpack.c.l.b16 %v1195
    %v5571 = vunpack.c.h.b16 %v1195
    %v5572 = vunpack.c.l.b16 %v1196
    %v5573 = vunpack.c.h.b16 %v1196
    %v5574 = vunpack.c.l.b16 %v1197
    %v5575 = vunpack.c.h.b16 %v1197
    %v5576 = vunpack.c.l.b16 %v1198
    %v5577 = vunpack.c.h.b16 %v1198
    %v5578 = vunpack.c.l.b16 %v1199
    %v5579 = vunpack.c.h.b16 %v1199
    %v5580 = vunpack.c.l.b16 %v1200
    %v5581 = vunpack.c.h.b16 %v1200
    %v5582 = vunpack.c.l.b16 %v1201
    %v5583 = vunpack.c.h.b16 %v1201
    %v5584 = vunpack.c.l.b16 %v1202
    %v5585 = vunpack.c.h.b16 %v1202
    %v5586 = vunpack.c.l.b16 %v1203
    %v5587 = vunpack.c.h.b16 %v1203
    %v5588 = vunpack.c.l.b16 %v1204
    %v5589 = vunpack.c.h.b16 %v1204
    %v5590 = vunpack.c.l.b16 %v1205
    %v5591 = vunpack.c.h.b16 %v1205
    %v5592 = vunpack.c.l.b16 %v1206
    %v5593 = vunpack.c.h.b16 %v1206
    %v5594 = vunpack.c.l.b16 %v1207
    %v5595 = vunpack.c.h.b16 %v1207
    %v5596 = vunpack.c.l.b16 %v1208
    %v5597 = vunpack.c.h.b16 %v1208
    %v5598 = vunpack.c.l.b16 %v1209
    %v5599 = vunpack.c.h.b16 %v1209
    %v5600 = vunpack.c.l.b16 %v1210
    %v5601 = vunpack.c.h.b16 %v1210
    %v5602 = vunpack.c.l.b16 %v1211
    %v5603 = vunpack.c.h.b16 %v1211
    %v5604 = vunpack.c.l.b16 %v1212
    %v5605 = vunpack.c.h.b16 %v1212
    %v5606 = vunpack.c.l.b16 %v1213
    %v5607 = vunpack.c.h.b16 %v1213
    %v5608 = vunpack.c.l.b16 %v1214
    %v5609 = vunpack.c.h.b16 %v1214
    %v5610 = vunpack.c.l.b16 %v1215
    %v5611 = vunpack.c.h.b16 %v1215
    %v5612 = vunpack.c.l.b16 %v1216
    %v5613 = vunpack.c.h.b16 %v1216
    %v5614 = vunpack.c.l.b16 %v1217
    %v5615 = vunpack.c.h.b16 %v1217
    %v5616 = vunpack.c.l.b16 %v1218
    %v5617 = vunpack.c.h.b16 %v1218
    %v5618 = vunpack.c.l.b16 %v1219
    %v5619 = vunpack.c.h.b16 %v1219
    %v5620 = vunpack.c.l.b16 %v1220
    %v5621 = vunpack.c.h.b16 %v1220
    %v5622 = vunpack.c.l.b16 %v1221
    %v5623 = vunpack.c.h.b16 %v1221
    %v5624 = vunpack.c.l.b16 %v1222
    %v5625 = vunpack.c.h.b16 %v1222
    %v5626 = vunpack.c.l.b16 %v1223
    %v5627 = vunpack.c.h.b16 %v1223
    %v5628 = vunpack.c.l.b16 %v1224
    %v5629 = vunpack.c.h.b16 %v1224
    %v5630 = vunpack.c.l.b16 %v1225
    %v5631 = vunpack.c.h.b16 %v1225
    %v5632 = vunpack.c.l.b16 %v1226
    %v5633 = vunpack.c.h.b16 %v1226
    %v5634 = vunpack.c.l.b16 %v1227
    %v5635 = vunpack.c.h.b16 %v1227
    %v5636 = vunpack.c.l.b16 %v1228
    %v5637 = vunpack.c.h.b16 %v1228
    %v5638 = vunpack.c.l.b16 %v1229
    %v5639 = vunpack.c.h.b16 %v1229
    %v5640 = vunpack.c.l.b16 %v1230
    %v5641 = vunpack.c.h.b16 %v1230
    %v5642 = vunpack.c.l.b16 %v1231
    %v5643 = vunpack.c.h.b16 %v1231
    %v5644 = vunpack.c.l.b16 %v1232
    %v5645 = vunpack.c.h.b16 %v1232
    %v5646 = vunpack.c.l.b16 %v1233
    %v5647 = vunpack.c.h.b16 %v1233
    %v5648 = vunpack.c.l.b16 %v1234
    %v5649 = vunpack.c.h.b16 %v1234
    %v5650 = vunpack.c.l.b16 %v1235
    %v5651 = vunpack.c.h.b16 %v1235
    %v5652 = vunpack.c.l.b16 %v1236
    %v5653 = vunpack.c.h.b16 %v1236
    %v5654 = vunpack.c.l.b16 %v1237
    %v5655 = vunpack.c.h.b16 %v1237
    %v5656 = vunpack.c.l.b16 %v1238
    %v5657 = vunpack.c.h.b16 %v1238
    %v5658 = vunpack.c.l.b16 %v1239
    %v5659 = vunpack.c.h.b16 %v1239
    %v5660 = vunpack.c.l.b16 %v1240
    %v5661 = vunpack.c.h.b16 %v1240
    %v5662 = vunpack.c.l.b16 %v1241
    %v5663 = vunpack.c.h.b16 %v1241
    %v5664 = vunpack.c.l.b16 %v1242
    %v5665 = vunpack.c.h.b16 %v1242
    %v5666 = vunpack.c.l.b16 %v1243
    %v5667 = vunpack.c.h.b16 %v1243
    %v5668 = vunpack.c.l.b16 %v1244
    %v5669 = vunpack.c.h.b16 %v1244
    %v5670 = vunpack.c.l.b16 %v1245
    %v5671 = vunpack.c.h.b16 %v1245
    %v5672 = vunpack.c.l.b16 %v1246
    %v5673 = vunpack.c.h.b16 %v1246
    %v5674 = vunpack.c.l.b16 %v1247
    %v5675 = vunpack.c.h.b16 %v1247
    %v5676 = vunpack.c.l.b16 %v1248
    %v5677 = vunpack.c.h.b16 %v1248
    %v5678 = vunpack.c.l.b16 %v1249
    %v5679 = vunpack.c.h.b16 %v1249
    %v5680 = vunpack.c.l.b16 %v1250
    %v5681 = vunpack.c.h.b16 %v1250
    %v5682 = vunpack.c.l.b16 %v1251
    %v5683 = vunpack.c.h.b16 %v1251
    %v5684 = vunpack.c.l.b16 %v1252
    %v5685 = vunpack.c.h.b16 %v1252
    %v5686 = vunpack.c.l.b16 %v1253
    %v5687 = vunpack.c.h.b16 %v1253
    %v5688 = vunpack.c.l.b16 %v1254
    %v5689 = vunpack.c.h.b16 %v1254
    %v5690 = vunpack.c.l.b16 %v1255
    %v5691 = vunpack.c.h.b16 %v1255
    %v5692 = vunpack.c.l.b16 %v1256
    %v5693 = vunpack.c.h.b16 %v1256
    %v5694 = vunpack.c.l.b16 %v1257
    %v5695 = vunpack.c.h.b16 %v1257
    %v5696 = vunpack.c.l.b16 %v1258
    %v5697 = vunpack.c.h.b16 %v1258
    %v5698 = vunpack.c.l.b16 %v1259
    %v5699 = vunpack.c.h.b16 %v1259
    %v5700 = vunpack.c.l.b16 %v1260
    %v5701 = vunpack.c.h.b16 %v1260
    %v5702 = vunpack.c.l.b16 %v1261
    %v5703 = vunpack.c.h.b16 %v1261
    %v5704 = vunpack.c.l.b16 %v1262
    %v5705 = vunpack.c.h.b16 %v1262
    %v5706 = vunpack.c.l.b16 %v1263
    %v5707 = vunpack.c.h.b16 %v1263
    %v5708 = vunpack.c.l.b16 %v1264
    %v5709 = vunpack.c.h.b16 %v1264
    %v5710 = vunpack.c.l.b16 %v1265
    %v5711 = vunpack.c.h.b16 %v1265
    %v5712 = vunpack.c.l.b16 %v1266
    %v5713 = vunpack.c.h.b16 %v1266
    %v5714 = vunpack.c.l.b16 %v1267
    %v5715 = vunpack.c.h.b16 %v1267
    %v5716 = vunpack.c.l.b16 %v1268
    %v5717 = vunpack.c.h.b16 %v1268
    %v5718 = vunpack.c.l.b16 %v1269
    %v5719 = vunpack.c.h.b16 %v1269
    %v5720 = vunpack.c.l.b16 %v1270
    %v5721 = vunpack.c.h.b16 %v1270
    %v5722 = vunpack.c.l.b16 %v1271
    %v5723 = vunpack.c.h.b16 %v1271
    %v5724 = vunpack.c.l.b16 %v1272
    %v5725 = vunpack.c.h.b16 %v1272
    %v5726 = vunpack.c.l.b16 %v1273
    %v5727 = vunpack.c.h.b16 %v1273
    %v5728 = vunpack.c.l.b16 %v1274
    %v5729 = vunpack.c.h.b16 %v1274
    %v5730 = vunpack.c.l.b16 %v1275
    %v5731 = vunpack.c.h.b16 %v1275
    %v5732 = vunpack.c.l.b16 %v1276
    %v5733 = vunpack.c.h.b16 %v1276
    %v5734 = vunpack.c.l.b16 %v1277
    %v5735 = vunpack.c.h.b16 %v1277
    %v5736 = vunpack.c.l.b16 %v1278
    %v5737 = vunpack.c.h.b16 %v1278
    %v5738 = vunpack.c.l.b16 %v1279
    %v5739 = vunpack.c.h.b16 %v1279
    %v5740 = vunpack.c.l.b16 %v1280
    %v5741 = vunpack.c.h.b16 %v1280
    %v5742 = vunpack.c.l.b16 %v1281
    %v5743 = vunpack.c.h.b16 %v1281
    %v5744 = vunpack.c.l.b16 %v1282
    %v5745 = vunpack.c.h.b16 %v1282
    %v5746 = vunpack.c.l.b16 %v1283
    %v5747 = vunpack.c.h.b16 %v1283
    %v5748 = vunpack.c.l.b16 %v1284
    %v5749 = vunpack.c.h.b16 %v1284
    %v5750 = vunpack.c.l.b16 %v1285
    %v5751 = vunpack.c.h.b16 %v1285
    %v5752 = vunpack.c.l.b16 %v1286
    %v5753 = vunpack.c.h.b16 %v1286
    %v5754 = vunpack.c.l.b16 %v1287
    %v5755 = vunpack.c.h.b16 %v1287
    %v5756 = vunpack.c.l.b16 %v1288
    %v5757 = vunpack.c.h.b16 %v1288
    %v5758 = vunpack.c.l.b16 %v1289
    %v5759 = vunpack.c.h.b16 %v1289
    %v5760 = vunpack.c.l.b16 %v1290
    %v5761 = vunpack.c.h.b16 %v1290
    %v5762 = vunpack.c.l.b16 %v1291
    %v5763 = vunpack.c.h.b16 %v1291
    %v5764 = vunpack.c.l.b16 %v1292
    %v5765 = vunpack.c.h.b16 %v1292
    %v5766 = vunpack.c.l.b16 %v1293
    %v5767 = vunpack.c.h.b16 %v1293
    %v5768 = vunpack.c.l.b16 %v1294
    %v5769 = vunpack.c.h.b16 %v1294
    %v5770 = vunpack.c.l.b16 %v1295
    %v5771 = vunpack.c.h.b16 %v1295
    %v5772 = vunpack.c.l.b16 %v1296
    %v5773 = vunpack.c.h.b16 %v1296
    %v5774 = vunpack.c.l.b16 %v1297
    %v5775 = vunpack.c.h.b16 %v1297
    %v5776 = vunpack.c.l.b16 %v1298
    %v5777 = vunpack.c.h.b16 %v1298
    %v5778 = vunpack.c.l.b16 %v1299
    %v5779 = vunpack.c.h.b16 %v1299
    %v5780 = vunpack.c.l.b16 %v1300
    %v5781 = vunpack.c.h.b16 %v1300
    %v5782 = vunpack.c.l.b16 %v1301
    %v5783 = vunpack.c.h.b16 %v1301
    %v5784 = vunpack.c.l.b16 %v1302
    %v5785 = vunpack.c.h.b16 %v1302
    %v5786 = vunpack.c.l.b16 %v1303
    %v5787 = vunpack.c.h.b16 %v1303
    %v5788 = vunpack.c.l.b16 %v1304
    %v5789 = vunpack.c.h.b16 %v1304
    %v5790 = vunpack.c.l.b16 %v1305
    %v5791 = vunpack.c.h.b16 %v1305
    %v5792 = vunpack.c.l.b16 %v1306
    %v5793 = vunpack.c.h.b16 %v1306
    %v5794 = vunpack.c.l.b16 %v1307
    %v5795 = vunpack.c.h.b16 %v1307
    %v5796 = vunpack.c.l.b16 %v1308
    %v5797 = vunpack.c.h.b16 %v1308
    %v5798 = vunpack.c.l.b16 %v1309
    %v5799 = vunpack.c.h.b16 %v1309
    %v5800 = vunpack.c.l.b16 %v1310
    %v5801 = vunpack.c.h.b16 %v1310
    %v5802 = vunpack.c.l.b16 %v1311
    %v5803 = vunpack.c.h.b16 %v1311
    %v5804 = vunpack.c.l.b16 %v1312
    %v5805 = vunpack.c.h.b16 %v1312
    %v5806 = vunpack.c.l.b16 %v1313
    %v5807 = vunpack.c.h.b16 %v1313
    %v5808 = vunpack.c.l.b16 %v1314
    %v5809 = vunpack.c.h.b16 %v1314
    %v5810 = vunpack.c.l.b16 %v1315
    %v5811 = vunpack.c.h.b16 %v1315
    %v5812 = vunpack.c.l.b16 %v1316
    %v5813 = vunpack.c.h.b16 %v1316
    %v5814 = vunpack.c.l.b16 %v1317
    %v5815 = vunpack.c.h.b16 %v1317
    %v5816 = vunpack.c.l.b16 %v1318
    %v5817 = vunpack.c.h.b16 %v1318
    %v5818 = vunpack.c.l.b16 %v1319
    %v5819 = vunpack.c.h.b16 %v1319
    %v5820 = vunpack.c.l.b16 %v1320
    %v5821 = vunpack.c.h.b16 %v1320
    %v5822 = vunpack.c.l.b16 %v1321
    %v5823 = vunpack.c.h.b16 %v1321
    %v5824 = vunpack.c.l.b16 %v1322
    %v5825 = vunpack.c.h.b16 %v1322
    %v5826 = vunpack.c.l.b16 %v1323
    %v5827 = vunpack.c.h.b16 %v1323
    %v5828 = vunpack.c.l.b16 %v1324
    %v5829 = vunpack.c.h.b16 %v1324
    %v5830 = vunpack.c.l.b16 %v1325
    %v5831 = vunpack.c.h.b16 %v1325
    %v5832 = vunpack.c.l.b16 %v1326
    %v5833 = vunpack.c.h.b16 %v1326
    %v5834 = vunpack.c.l.b16 %v1327
    %v5835 = vunpack.c.h.b16 %v1327
    %v5836 = vunpack.c.l.b16 %v1328
    %v5837 = vunpack.c.h.b16 %v1328
    %v5838 = vunpack.c.l.b16 %v1329
    %v5839 = vunpack.c.h.b16 %v1329
    %v5840 = vunpack.c.l.b16 %v1330
    %v5841 = vunpack.c.h.b16 %v1330
    %v5842 = vunpack.c.l.b16 %v1331
    %v5843 = vunpack.c.h.b16 %v1331
    %v5844 = vunpack.c.l.b16 %v1332
    %v5845 = vunpack.c.h.b16 %v1332
    %v5846 = vunpack.c.l.b16 %v1333
    %v5847 = vunpack.c.h.b16 %v1333
    %v5848 = vunpack.c.l.b16 %v1334
    %v5849 = vunpack.c.h.b16 %v1334
    %v5850 = vunpack.c.l.b16 %v1335
    %v5851 = vunpack.c.h.b16 %v1335
    %v5852 = vunpack.c.l.b16 %v1336
    %v5853 = vunpack.c.h.b16 %v1336
    %v5854 = vunpack.c.l.b16 %v1337
    %v5855 = vunpack.c.h.b16 %v1337
    %v5856 = vunpack.c.l.b16 %v1338
    %v5857 = vunpack.c.h.b16 %v1338
    %v5858 = vunpack.c.l.b16 %v1339
    %v5859 = vunpack.c.h.b16 %v1339
    %v5860 = vunpack.c.l.b16 %v1340
    %v5861 = vunpack.c.h.b16 %v1340
    %v5862 = vunpack.c.l.b16 %v1341
    %v5863 = vunpack.c.h.b16 %v1341
    %v5864 = vunpack.c.l.b16 %v1342
    %v5865 = vunpack.c.h.b16 %v1342
    %v5866 = vunpack.c.l.b16 %v1343
    %v5867 = vunpack.c.h.b16 %v1343
    %v5868 = vunpack.c.l.b16 %v1344
    %v5869 = vunpack.c.h.b16 %v1344
    %v5870 = vunpack.c.l.b16 %v1345
    %v5871 = vunpack.c.h.b16 %v1345
    %v5872 = vunpack.c.l.b16 %v1346
    %v5873 = vunpack.c.h.b16 %v1346
    %v5874 = vunpack.c.l.b16 %v1347
    %v5875 = vunpack.c.h.b16 %v1347
    %v5876 = vunpack.c.l.b16 %v1348
    %v5877 = vunpack.c.h.b16 %v1348
    %v5878 = vunpack.c.l.b16 %v1349
    %v5879 = vunpack.c.h.b16 %v1349
    %v5880 = vunpack.c.l.b16 %v1350
    %v5881 = vunpack.c.h.b16 %v1350
    %v5882 = vunpack.c.l.b16 %v1351
    %v5883 = vunpack.c.h.b16 %v1351
    %v5884 = vunpack.c.l.b16 %v1352
    %v5885 = vunpack.c.h.b16 %v1352
    %v5886 = vunpack.c.l.b16 %v1353
    %v5887 = vunpack.c.h.b16 %v1353
    %v5888 = vunpack.c.l.b16 %v1354
    %v5889 = vunpack.c.h.b16 %v1354
    %v5890 = vunpack.c.l.b16 %v1355
    %v5891 = vunpack.c.h.b16 %v1355
    %v5892 = vunpack.c.l.b16 %v1356
    %v5893 = vunpack.c.h.b16 %v1356
    %v5894 = vunpack.c.l.b16 %v1357
    %v5895 = vunpack.c.h.b16 %v1357
    %v5896 = vunpack.c.l.b16 %v1358
    %v5897 = vunpack.c.h.b16 %v1358
    %v5898 = vunpack.c.l.b16 %v1359
    %v5899 = vunpack.c.h.b16 %v1359
    %v5900 = vunpack.c.l.b16 %v1360
    %v5901 = vunpack.c.h.b16 %v1360
    %v5902 = vunpack.c.l.b16 %v1361
    %v5903 = vunpack.c.h.b16 %v1361
    %v5904 = vunpack.c.l.b16 %v1362
    %v5905 = vunpack.c.h.b16 %v1362
    %v5906 = vunpack.c.l.b16 %v1363
    %v5907 = vunpack.c.h.b16 %v1363
    %v5908 = vunpack.c.l.b16 %v1364
    %v5909 = vunpack.c.h.b16 %v1364
    %v5910 = vunpack.c.l.b16 %v1365
    %v5911 = vunpack.c.h.b16 %v1365
    %v5912 = vunpack.c.l.b16 %v1366
    %v5913 = vunpack.c.h.b16 %v1366
    %v5914 = vunpack.c.l.b16 %v1367
    %v5915 = vunpack.c.h.b16 %v1367
    %v5916 = vunpack.c.l.b16 %v1368
    %v5917 = vunpack.c.h.b16 %v1368
    %v5918 = vunpack.c.l.b16 %v1369
    %v5919 = vunpack.c.h.b16 %v1369
    %v5920 = vunpack.c.l.b16 %v1370
    %v5921 = vunpack.c.h.b16 %v1370
    %v5922 = vunpack.c.l.b16 %v1371
    %v5923 = vunpack.c.h.b16 %v1371
    %v5924 = vunpack.c.l.b16 %v1372
    %v5925 = vunpack.c.h.b16 %v1372
    %v5926 = vunpack.c.l.b16 %v1373
    %v5927 = vunpack.c.h.b16 %v1373
    %v5928 = vunpack.c.l.b16 %v1374
    %v5929 = vunpack.c.h.b16 %v1374
    %v5930 = vunpack.c.l.b16 %v1375
    %v5931 = vunpack.c.h.b16 %v1375
    %v5932 = vunpack.c.l.b16 %v1376
    %v5933 = vunpack.c.h.b16 %v1376
    %v5934 = vunpack.c.l.b16 %v1377
    %v5935 = vunpack.c.h.b16 %v1377
    %v5936 = vunpack.c.l.b16 %v1378
    %v5937 = vunpack.c.h.b16 %v1378
    %v5938 = vunpack.c.l.b16 %v1379
    %v5939 = vunpack.c.h.b16 %v1379
    %v5940 = vunpack.c.l.b16 %v1380
    %v5941 = vunpack.c.h.b16 %v1380
    %v5942 = vunpack.c.l.b16 %v1381
    %v5943 = vunpack.c.h.b16 %v1381
    %v5944 = vunpack.c.l.b16 %v1382
    %v5945 = vunpack.c.h.b16 %v1382
    %v5946 = vunpack.c.l.b16 %v1383
    %v5947 = vunpack.c.h.b16 %v1383
    %v5948 = vunpack.c.l.b16 %v1384
    %v5949 = vunpack.c.h.b16 %v1384
    %v5950 = vunpack.c.l.b16 %v1385
    %v5951 = vunpack.c.h.b16 %v1385
    %v5952 = vunpack.c.l.b16 %v1386
    %v5953 = vunpack.c.h.b16 %v1386
    %v5954 = vunpack.c.l.b16 %v1387
    %v5955 = vunpack.c.h.b16 %v1387
    %v5956 = vunpack.c.l.b16 %v1388
    %v5957 = vunpack.c.h.b16 %v1388
    %v5958 = vunpack.c.l.b16 %v1389
    %v5959 = vunpack.c.h.b16 %v1389
    %v5960 = vunpack.c.l.b16 %v1390
    %v5961 = vunpack.c.h.b16 %v1390
    %v5962 = vunpack.c.l.b16 %v1391
    %v5963 = vunpack.c.h.b16 %v1391
    %v5964 = vunpack.c.l.b16 %v1392
    %v5965 = vunpack.c.h.b16 %v1392
    %v5966 = vunpack.c.l.b16 %v1393
    %v5967 = vunpack.c.h.b16 %v1393
    %v5968 = vunpack.c.l.b16 %v1394
    %v5969 = vunpack.c.h.b16 %v1394
    %v5970 = vunpack.c.l.b16 %v1395
    %v5971 = vunpack.c.h.b16 %v1395
    %v5972 = vunpack.c.l.b16 %v1396
    %v5973 = vunpack.c.h.b16 %v1396
    %v5974 = vunpack.c.l.b16 %v1397
    %v5975 = vunpack.c.h.b16 %v1397
    %v5976 = vunpack.c.l.b16 %v1398
    %v5977 = vunpack.c.h.b16 %v1398
    %v5978 = vunpack.c.l.b16 %v1399
    %v5979 = vunpack.c.h.b16 %v1399
    %v5980 = vunpack.c.l.b16 %v1400
    %v5981 = vunpack.c.h.b16 %v1400
    %v5982 = vunpack.c.l.b16 %v1401
    %v5983 = vunpack.c.h.b16 %v1401
    %v5984 = vunpack.c.l.b16 %v1402
    %v5985 = vunpack.c.h.b16 %v1402
    %v5986 = vunpack.c.l.b16 %v1403
    %v5987 = vunpack.c.h.b16 %v1403
    %v5988 = vunpack.c.l.b16 %v1404
    %v5989 = vunpack.c.h.b16 %v1404
    %v5990 = vunpack.c.l.b16 %v1405
    %v5991 = vunpack.c.h.b16 %v1405
    %v5992 = vunpack.c.l.b16 %v1406
    %v5993 = vunpack.c.h.b16 %v1406
    %v5994 = vunpack.c.l.b16 %v1407
    %v5995 = vunpack.c.h.b16 %v1407
    %v5996 = vunpack.c.l.b16 %v1408
    %v5997 = vunpack.c.h.b16 %v1408
    %v5998 = vunpack.c.l.b16 %v1409
    %v5999 = vunpack.c.h.b16 %v1409
    %v6000 = vunpack.c.l.b16 %v1410
    %v6001 = vunpack.c.h.b16 %v1410
    %v6002 = vunpack.c.l.b16 %v1411
    %v6003 = vunpack.c.h.b16 %v1411
    %v6004 = vunpack.c.l.b16 %v1412
    %v6005 = vunpack.c.h.b16 %v1412
    %v6006 = vunpack.c.l.b16 %v1413
    %v6007 = vunpack.c.h.b16 %v1413
    %v6008 = vunpack.c.l.b16 %v1414
    %v6009 = vunpack.c.h.b16 %v1414
    %v6010 = vunpack.c.l.b16 %v1415
    %v6011 = vunpack.c.h.b16 %v1415
    %v6012 = vunpack.c.l.b16 %v1416
    %v6013 = vunpack.c.h.b16 %v1416
    %v6014 = vunpack.c.l.b16 %v1417
    %v6015 = vunpack.c.h.b16 %v1417
    %v6016 = vunpack.c.l.b16 %v1418
    %v6017 = vunpack.c.h.b16 %v1418
    %v6018 = vunpack.c.l.b16 %v1419
    %v6019 = vunpack.c.h.b16 %v1419
    %v6020 = vunpack.c.l.b16 %v1420
    %v6021 = vunpack.c.h.b16 %v1420
    %v6022 = vunpack.c.l.b16 %v1421
    %v6023 = vunpack.c.h.b16 %v1421
    %v6024 = vunpack.c.l.b16 %v1422
    %v6025 = vunpack.c.h.b16 %v1422
    %v6026 = vunpack.c.l.b16 %v1423
    %v6027 = vunpack.c.h.b16 %v1423
    %v6028 = vunpack.c.l.b16 %v1424
    %v6029 = vunpack.c.h.b16 %v1424
    %v6030 = vunpack.c.l.b16 %v1425
    %v6031 = vunpack.c.h.b16 %v1425
    %v6032 = vunpack.c.l.b16 %v1426
    %v6033 = vunpack.c.h.b16 %v1426
    %v6034 = vunpack.c.l.b16 %v1427
    %v6035 = vunpack.c.h.b16 %v1427
    %v6036 = vunpack.c.l.b16 %v1428
    %v6037 = vunpack.c.h.b16 %v1428
    %v6038 = vunpack.c.l.b16 %v1429
    %v6039 = vunpack.c.h.b16 %v1429
    %v6040 = vunpack.c.l.b16 %v1430
    %v6041 = vunpack.c.h.b16 %v1430
    %v6042 = vunpack.c.l.b16 %v1431
    %v6043 = vunpack.c.h.b16 %v1431
    %v6044 = vunpack.c.l.b16 %v1432
    %v6045 = vunpack.c.h.b16 %v1432
    %v6046 = vunpack.c.l.b16 %v1433
    %v6047 = vunpack.c.h.b16 %v1433
    %v6048 = vunpack.c.l.b16 %v1434
    %v6049 = vunpack.c.h.b16 %v1434
    %v6050 = vunpack.c.l.b16 %v1435
    %v6051 = vunpack.c.h.b16 %v1435
    %v6052 = vunpack.c.l.b16 %v1436
    %v6053 = vunpack.c.h.b16 %v1436
    %v6054 = vunpack.c.l.b16 %v1437
    %v6055 = vunpack.c.h.b16 %v1437
    %v6056 = vunpack.c.l.b16 %v1438
    %v6057 = vunpack.c.h.b16 %v1438
    %v6058 = vunpack.c.l.b16 %v1439
    %v6059 = vunpack.c.h.b16 %v1439
    %v6060 = vunpack.c.l.b16 %v1440
    %v6061 = vunpack.c.h.b16 %v1440
    %v6062 = vunpack.c.l.b16 %v1441
    %v6063 = vunpack.c.h.b16 %v1441
    %v6064 = vunpack.c.l.b16 %v1442
    %v6065 = vunpack.c.h.b16 %v1442
    %v6066 = vunpack.c.l.b16 %v1443
    %v6067 = vunpack.c.h.b16 %v1443
    %v6068 = vunpack.c.l.b16 %v1444
    %v6069 = vunpack.c.h.b16 %v1444
    %v6070 = vunpack.c.l.b16 %v1445
    %v6071 = vunpack.c.h.b16 %v1445
    %v6072 = vunpack.c.l.b16 %v1446
    %v6073 = vunpack.c.h.b16 %v1446
    %v6074 = vunpack.c.l.b16 %v1447
    %v6075 = vunpack.c.h.b16 %v1447
    %v6076 = vunpack.c.l.b16 %v1448
    %v6077 = vunpack.c.h.b16 %v1448
    %v6078 = vunpack.c.l.b16 %v1449
    %v6079 = vunpack.c.h.b16 %v1449
    %v6080 = vunpack.c.l.b16 %v1450
    %v6081 = vunpack.c.h.b16 %v1450
    %v6082 = vunpack.c.l.b16 %v1451
    %v6083 = vunpack.c.h.b16 %v1451
    %v6084 = vunpack.c.l.b16 %v1452
    %v6085 = vunpack.c.h.b16 %v1452
    %v6086 = vunpack.c.l.b16 %v1453
    %v6087 = vunpack.c.h.b16 %v1453
    %v6088 = vunpack.c.l.b16 %v1454
    %v6089 = vunpack.c.h.b16 %v1454
    %v6090 = vunpack.c.l.b16 %v1455
    %v6091 = vunpack.c.h.b16 %v1455
    %v6092 = vunpack.c.l.b16 %v1456
    %v6093 = vunpack.c.h.b16 %v1456
    %v6094 = vunpack.c.l.b16 %v1457
    %v6095 = vunpack.c.h.b16 %v1457
    %v6096 = vunpack.c.l.b16 %v1458
    %v6097 = vunpack.c.h.b16 %v1458
    %v6098 = vunpack.c.l.b16 %v1459
    %v6099 = vunpack.c.h.b16 %v1459
    %v6100 = vunpack.c.l.b16 %v1460
    %v6101 = vunpack.c.h.b16 %v1460
    %v6102 = vunpack.c.l.b16 %v1461
    %v6103 = vunpack.c.h.b16 %v1461
    %v6104 = vunpack.c.l.b16 %v1462
    %v6105 = vunpack.c.h.b16 %v1462
    %v6106 = vunpack.c.l.b16 %v1463
    %v6107 = vunpack.c.h.b16 %v1463
    %v6108 = vunpack.c.l.b16 %v1464
    %v6109 = vunpack.c.h.b16 %v1464
    %v6110 = vunpack.c.l.b16 %v1465
    %v6111 = vunpack.c.h.b16 %v1465
    %v6112 = vunpack.c.l.b16 %v1466
    %v6113 = vunpack.c.h.b16 %v1466
    %v6114 = vunpack.c.l.b16 %v1467
    %v6115 = vunpack.c.h.b16 %v1467
    %v6116 = vunpack.c.l.b16 %v1468
    %v6117 = vunpack.c.h.b16 %v1468
    %v6118 = vunpack.c.l.b16 %v1469
    %v6119 = vunpack.c.h.b16 %v1469
    %v6120 = vunpack.c.l.b16 %v1470
    %v6121 = vunpack.c.h.b16 %v1470
    %v6122 = vunpack.c.l.b16 %v1471
    %v6123 = vunpack.c.h.b16 %v1471
    %v6124 = vunpack.c.l.b16 %v1472
    %v6125 = vunpack.c.h.b16 %v1472
    %v6126 = vunpack.c.l.b16 %v1473
    %v6127 = vunpack.c.h.b16 %v1473
    %v6128 = vunpack.c.l.b16 %v1474
    %v6129 = vunpack.c.h.b16 %v1474
    %v6130 = vunpack.c.l.b16 %v1475
    %v6131 = vunpack.c.h.b16 %v1475
    %v6132 = vunpack.c.l.b16 %v1476
    %v6133 = vunpack.c.h.b16 %v1476
    %v6134 = vunpack.c.l.b16 %v1477
    %v6135 = vunpack.c.h.b16 %v1477
    %v6136 = vunpack.c.l.b16 %v1478
    %v6137 = vunpack.c.h.b16 %v1478
    %v6138 = vunpack.c.l.b16 %v1479
    %v6139 = vunpack.c.h.b16 %v1479
    %v6140 = vunpack.c.l.b16 %v1480
    %v6141 = vunpack.c.h.b16 %v1480
    %v6142 = vunpack.c.l.b16 %v1481
    %v6143 = vunpack.c.h.b16 %v1481
    %v6144 = vunpack.c.l.b16 %v1482
    %v6145 = vunpack.c.h.b16 %v1482
    %v6146 = vunpack.c.l.b16 %v1483
    %v6147 = vunpack.c.h.b16 %v1483
    %v6148 = vunpack.c.l.b16 %v1484
    %v6149 = vunpack.c.h.b16 %v1484
    %v6150 = vunpack.c.l.b16 %v1485
    %v6151 = vunpack.c.h.b16 %v1485
    %v6152 = vunpack.c.l.b16 %v1486
    %v6153 = vunpack.c.h.b16 %v1486
    %v6154 = vunpack.c.l.b16 %v1487
    %v6155 = vunpack.c.h.b16 %v1487
    %v6156 = vunpack.c.l.b16 %v1488
    %v6157 = vunpack.c.h.b16 %v1488
    %v6158 = vunpack.c.l.b16 %v1489
    %v6159 = vunpack.c.h.b16 %v1489
    %v6160 = vunpack.c.l.b16 %v1490
    %v6161 = vunpack.c.h.b16 %v1490
    %v6162 = vunpack.c.l.b16 %v1491
    %v6163 = vunpack.c.h.b16 %v1491
    %v6164 = vunpack.c.l.b16 %v1492
    %v6165 = vunpack.c.h.b16 %v1492
    %v6166 = vunpack.c.l.b16 %v1493
    %v6167 = vunpack.c.h.b16 %v1493
    %v6168 = vunpack.c.l.b16 %v1494
    %v6169 = vunpack.c.h.b16 %v1494
    %v6170 = vunpack.c.l.b16 %v1495
    %v6171 = vunpack.c.h.b16 %v1495
    %v6172 = vunpack.c.l.b16 %v1496
    %v6173 = vunpack.c.h.b16 %v1496
    %v6174 = vunpack.c.l.b16 %v1497
    %v6175 = vunpack.c.h.b16 %v1497
    %v6176 = vunpack.c.l.b16 %v1498
    %v6177 = vunpack.c.h.b16 %v1498
    %v6178 = vunpack.c.l.b16 %v1499
    %v6179 = vunpack.c.h.b16 %v1499
    %v6180 = vunpack.c.l.b16 %v1500
    %v6181 = vunpack.c.h.b16 %v1500
    %v6182 = vunpack.c.l.b16 %v1501
    %v6183 = vunpack.c.h.b16 %v1501
    %v6184 = vunpack.c.l.b16 %v1502
    %v6185 = vunpack.c.h.b16 %v1502
    %v6186 = vunpack.c.l.b16 %v1503
    %v6187 = vunpack.c.h.b16 %v1503
    %v6188 = vunpack.c.l.b16 %v1504
    %v6189 = vunpack.c.h.b16 %v1504
    %v6190 = vunpack.c.l.b16 %v1505
    %v6191 = vunpack.c.h.b16 %v1505
    %v6192 = vunpack.c.l.b16 %v1506
    %v6193 = vunpack.c.h.b16 %v1506
    %v6194 = vunpack.c.l.b16 %v1507
    %v6195 = vunpack.c.h.b16 %v1507
    %v6196 = vunpack.c.l.b16 %v1508
    %v6197 = vunpack.c.h.b16 %v1508
    %v6198 = vunpack.c.l.b16 %v1509
    %v6199 = vunpack.c.h.b16 %v1509
    %v6200 = vunpack.c.l.b16 %v1510
    %v6201 = vunpack.c.h.b16 %v1510
    %v6202 = vunpack.c.l.b16 %v1511
    %v6203 = vunpack.c.h.b16 %v1511
    %v6204 = vunpack.c.l.b16 %v1512
    %v6205 = vunpack.c.h.b16 %v1512
    %v6206 = vunpack.c.l.b16 %v1513
    %v6207 = vunpack.c.h.b16 %v1513
    %v6208 = vunpack.c.l.b16 %v1514
    %v6209 = vunpack.c.h.b16 %v1514
    %v6210 = vunpack.c.l.b16 %v1515
    %v6211 = vunpack.c.h.b16 %v1515
    %v6212 = vunpack.c.l.b16 %v1516
    %v6213 = vunpack.c.h.b16 %v1516
    %v6214 = vunpack.c.l.b16 %v1517
    %v6215 = vunpack.c.h.b16 %v1517
    %v6216 = vunpack.c.l.b16 %v1518
    %v6217 = vunpack.c.h.b16 %v1518
    %v6218 = vunpack.c.l.b16 %v1519
    %v6219 = vunpack.c.h.b16 %v1519
    %v6220 = vunpack.c.l.b16 %v1520
    %v6221 = vunpack.c.h.b16 %v1520
    %v6222 = vunpack.c.l.b16 %v1521
    %v6223 = vunpack.c.h.b16 %v1521
    %v6224 = vunpack.c.l.b16 %v1522
    %v6225 = vunpack.c.h.b16 %v1522
    %v6226 = vunpack.c.l.b16 %v1523
    %v6227 = vunpack.c.h.b16 %v1523
    %v6228 = vunpack.c.l.b16 %v1524
    %v6229 = vunpack.c.h.b16 %v1524
    %v6230 = vunpack.c.l.b16 %v1525
    %v6231 = vunpack.c.h.b16 %v1525
    %v6232 = vunpack.c.l.b16 %v1526
    %v6233 = vunpack.c.h.b16 %v1526
    %v6234 = vunpack.c.l.b16 %v1527
    %v6235 = vunpack.c.h.b16 %v1527
    %v6236 = vunpack.c.l.b16 %v1528
    %v6237 = vunpack.c.h.b16 %v1528
    %v6238 = vunpack.c.l.b16 %v1529
    %v6239 = vunpack.c.h.b16 %v1529
    %v6240 = vunpack.c.l.b16 %v1530
    %v6241 = vunpack.c.h.b16 %v1530
    %v6242 = vunpack.c.l.b16 %v1531
    %v6243 = vunpack.c.h.b16 %v1531
    %v6244 = vunpack.c.l.b16 %v1532
    %v6245 = vunpack.c.h.b16 %v1532
    %v6246 = vunpack.c.l.b16 %v1533
    %v6247 = vunpack.c.h.b16 %v1533
    %v6248 = vunpack.c.l.b16 %v1534
    %v6249 = vunpack.c.h.b16 %v1534
    %v6250 = vunpack.c.l.b16 %v1535
    %v6251 = vunpack.c.h.b16 %v1535
    %v6252 = vunpack.c.l.b16 %v1536
    %v6253 = vunpack.c.h.b16 %v1536
    %v6254 = vunpack.c.l.b16 %v1537
    %v6255 = vunpack.c.h.b16 %v1537
    %v6256 = vunpack.c.l.b16 %v1538
    %v6257 = vunpack.c.h.b16 %v1538
    %v6258 = vunpack.c.l.b16 %v1539
    %v6259 = vunpack.c.h.b16 %v1539
    %v6260 = vunpack.c.l.b16 %v1540
    %v6261 = vunpack.c.h.b16 %v1540
    %v6262 = vunpack.c.l.b16 %v1541
    %v6263 = vunpack.c.h.b16 %v1541
    %v6264 = vunpack.c.l.b16 %v1542
    %v6265 = vunpack.c.h.b16 %v1542
    %v6266 = vunpack.c.l.b16 %v1543
    %v6267 = vunpack.c.h.b16 %v1543
    %v6268 = vunpack.c.l.b16 %v1544
    %v6269 = vunpack.c.h.b16 %v1544
    %v6270 = vunpack.c.l.b16 %v1545
    %v6271 = vunpack.c.h.b16 %v1545
    %v6272 = vunpack.c.l.b16 %v1546
    %v6273 = vunpack.c.h.b16 %v1546
    %v6274 = vunpack.c.l.b16 %v1547
    %v6275 = vunpack.c.h.b16 %v1547
    %v6276 = vunpack.c.l.b16 %v1548
    %v6277 = vunpack.c.h.b16 %v1548
    %v6278 = vunpack.c.l.b16 %v1549
    %v6279 = vunpack.c.h.b16 %v1549
    %v6280 = vunpack.c.l.b16 %v1550
    %v6281 = vunpack.c.h.b16 %v1550
    %v6282 = vunpack.c.l.b16 %v1551
    %v6283 = vunpack.c.h.b16 %v1551
    %v6284 = vunpack.c.l.b16 %v1552
    %v6285 = vunpack.c.h.b16 %v1552
    %v6286 = vunpack.c.l.b16 %v1553
    %v6287 = vunpack.c.h.b16 %v1553
    %v6288 = vunpack.c.l.b16 %v1554
    %v6289 = vunpack.c.h.b16 %v1554
    %v6290 = vunpack.c.l.b16 %v1555
    %v6291 = vunpack.c.h.b16 %v1555
    %v6292 = vunpack.c.l.b16 %v1556
    %v6293 = vunpack.c.h.b16 %v1556
    %v6294 = vunpack.c.l.b16 %v1557
    %v6295 = vunpack.c.h.b16 %v1557
    %v6296 = vunpack.c.l.b16 %v1558
    %v6297 = vunpack.c.h.b16 %v1558
    %v6298 = vunpack.c.l.b16 %v1559
    %v6299 = vunpack.c.h.b16 %v1559
    %v6300 = vunpack.c.l.b16 %v1560
    %v6301 = vunpack.c.h.b16 %v1560
    %v6302 = vunpack.c.l.b16 %v1561
    %v6303 = vunpack.c.h.b16 %v1561
    %v6304 = vunpack.c.l.b16 %v1562
    %v6305 = vunpack.c.h.b16 %v1562
    %v6306 = vunpack.c.l.b16 %v1563
    %v6307 = vunpack.c.h.b16 %v1563
    %v6308 = vunpack.c.l.b16 %v1564
    %v6309 = vunpack.c.h.b16 %v1564
    %v6310 = vunpack.c.l.b16 %v1565
    %v6311 = vunpack.c.h.b16 %v1565
    %v6312 = vunpack.c.l.b16 %v1566
    %v6313 = vunpack.c.h.b16 %v1566
    %v6314 = vunpack.c.l.b16 %v1567
    %v6315 = vunpack.c.h.b16 %v1567
    %v6316 = vunpack.c.l.b16 %v1568
    %v6317 = vunpack.c.h.b16 %v1568
    %v6318 = vunpack.c.l.b16 %v1569
    %v6319 = vunpack.c.h.b16 %v1569
    %v6320 = vunpack.c.l.b16 %v1570
    %v6321 = vunpack.c.h.b16 %v1570
    %v6322 = vunpack.c.l.b16 %v1571
    %v6323 = vunpack.c.h.b16 %v1571
    %v6324 = vunpack.c.l.b16 %v1572
    %v6325 = vunpack.c.h.b16 %v1572
    %v6326 = vunpack.c.l.b16 %v1573
    %v6327 = vunpack.c.h.b16 %v1573
    %v6328 = vunpack.c.l.b16 %v1574
    %v6329 = vunpack.c.h.b16 %v1574
    %v6330 = vunpack.c.l.b16 %v1575
    %v6331 = vunpack.c.h.b16 %v1575
    %v6332 = vunpack.c.l.b16 %v1576
    %v6333 = vunpack.c.h.b16 %v1576
    %v6334 = vunpack.c.l.b16 %v1577
    %v6335 = vunpack.c.h.b16 %v1577
    %v6336 = vunpack.c.l.b16 %v1578
    %v6337 = vunpack.c.h.b16 %v1578
    %v6338 = vunpack.c.l.b16 %v1579
    %v6339 = vunpack.c.h.b16 %v1579
    %v6340 = vunpack.c.l.b16 %v1580
    %v6341 = vunpack.c.h.b16 %v1580
    %v6342 = vunpack.c.l.b16 %v1581
    %v6343 = vunpack.c.h.b16 %v1581
    %v6344 = vunpack.c.l.b16 %v1582
    %v6345 = vunpack.c.h.b16 %v1582
    %v6346 = vunpack.c.l.b16 %v1583
    %v6347 = vunpack.c.h.b16 %v1583
    %v6348 = vunpack.c.l.b16 %v1584
    %v6349 = vunpack.c.h.b16 %v1584
    %v6350 = vunpack.c.l.b16 %v1585
    %v6351 = vunpack.c.h.b16 %v1585
    %v6352 = vunpack.c.l.b16 %v1586
    %v6353 = vunpack.c.h.b16 %v1586
    %v6354 = vunpack.c.l.b16 %v1587
    %v6355 = vunpack.c.h.b16 %v1587
    %v6356 = vunpack.c.l.b16 %v1588
    %v6357 = vunpack.c.h.b16 %v1588
    %v6358 = vunpack.c.l.b16 %v1589
    %v6359 = vunpack.c.h.b16 %v1589
    %v6360 = vunpack.c.l.b16 %v1590
    %v6361 = vunpack.c.h.b16 %v1590
    %v6362 = vunpack.c.l.b16 %v1591
    %v6363 = vunpack.c.h.b16 %v1591
    %v6364 = vunpack.c.l.b16 %v1592
    %v6365 = vunpack.c.h.b16 %v1592
    %v6366 = vunpack.c.l.b16 %v1593
    %v6367 = vunpack.c.h.b16 %v1593
    %v6368 = vunpack.c.l.b16 %v1594
    %v6369 = vunpack.c.h.b16 %v1594
    %v6370 = vunpack.c.l.b16 %v1595
    %v6371 = vunpack.c.h.b16 %v1595
    %v6372 = vunpack.c.l.b16 %v1596
    %v6373 = vunpack.c.h.b16 %v1596
    %v6374 = vunpack.c.l.b16 %v1597
    %v6375 = vunpack.c.h.b16 %v1597
    %v6376 = vunpack.c.l.b16 %v1598
    %v6377 = vunpack.c.h.b16 %v1598
    %v6378 = vunpack.c.l.b16 %v1599
    %v6379 = vunpack.c.h.b16 %v1599
    %v6380 = vunpack.c.l.b16 %v1600
    %v6381 = vunpack.c.h.b16 %v1600
    %v6382 = vunpack.c.l.b16 %v1601
    %v6383 = vunpack.c.h.b16 %v1601
    %v6384 = vunpack.c.l.b16 %v1602
    %v6385 = vunpack.c.h.b16 %v1602
    %v6386 = vunpack.c.l.b16 %v1603
    %v6387 = vunpack.c.h.b16 %v1603
    %v6388 = vunpack.c.l.b16 %v1604
    %v6389 = vunpack.c.h.b16 %v1604
    %v6390 = vunpack.c.l.b16 %v1605
    %v6391 = vunpack.c.h.b16 %v1605
    %v6392 = vunpack.c.l.b16 %v1606
    %v6393 = vunpack.c.h.b16 %v1606
    %v6394 = vunpack.c.l.b16 %v1607
    %v6395 = vunpack.c.h.b16 %v1607
    %v6396 = vunpack.c.l.b16 %v1608
    %v6397 = vunpack.c.h.b16 %v1608
    %v6398 = vunpack.c.l.b16 %v1609
    %v6399 = vunpack.c.h.b16 %v1609
    %v6400 = vunpack.c.l.b16 %v1610
    %v6401 = vunpack.c.h.b16 %v1610
    %v6402 = vunpack.c.l.b16 %v1611
    %v6403 = vunpack.c.h.b16 %v1611
    %v6404 = vunpack.c.l.b16 %v1612
    %v6405 = vunpack.c.h.b16 %v1612
    %v6406 = vunpack.c.l.b16 %v1613
    %v6407 = vunpack.c.h.b16 %v1613
    %v6408 = vunpack.c.l.b16 %v1614
    %v6409 = vunpack.c.h.b16 %v1614
    %v6410 = vunpack.c.l.b16 %v1615
    %v6411 = vunpack.c.h.b16 %v1615
    %v6412 = vunpack.c.l.b16 %v1616
    %v6413 = vunpack.c.h.b16 %v1616
    %v6414 = vunpack.c.l.b16 %v1617
    %v6415 = vunpack.c.h.b16 %v1617
    %v6416 = vunpack.c.l.b16 %v1618
    %v6417 = vunpack.c.h.b16 %v1618
    %v6418 = vunpack.c.l.b16 %v1619
    %v6419 = vunpack.c.h.b16 %v1619
    %v6420 = vunpack.c.l.b16 %v1620
    %v6421 = vunpack.c.h.b16 %v1620
    %v6422 = vunpack.c.l.b16 %v1621
    %v6423 = vunpack.c.h.b16 %v1621
    %v6424 = vunpack.c.l.b16 %v1622
    %v6425 = vunpack.c.h.b16 %v1622
    %v6426 = vunpack.c.l.b16 %v1623
    %v6427 = vunpack.c.h.b16 %v1623
    %v6428 = vunpack.c.l.b16 %v1624
    %v6429 = vunpack.c.h.b16 %v1624
    %v6430 = vunpack.c.l.b16 %v1625
    %v6431 = vunpack.c.h.b16 %v1625
    %v6432 = vunpack.c.l.b16 %v1626
    %v6433 = vunpack.c.h.b16 %v1626
    %v6434 = vunpack.c.l.b16 %v1627
    %v6435 = vunpack.c.h.b16 %v1627
    %v6436 = vunpack.c.l.b16 %v1628
    %v6437 = vunpack.c.h.b16 %v1628
    %v6438 = vunpack.c.l.b16 %v1629
    %v6439 = vunpack.c.h.b16 %v1629
    %v6440 = vunpack.c.l.b16 %v1630
    %v6441 = vunpack.c.h.b16 %v1630
    %v6442 = vunpack.c.l.b16 %v1631
    %v6443 = vunpack.c.h.b16 %v1631
    %v6444 = vunpack.c.l.b16 %v1632
    %v6445 = vunpack.c.h.b16 %v1632
    %v6446 = vunpack.c.l.b16 %v1633
    %v6447 = vunpack.c.h.b16 %v1633
    %v6448 = vunpack.c.l.b16 %v1634
    %v6449 = vunpack.c.h.b16 %v1634
    %v6450 = vunpack.c.l.b16 %v1635
    %v6451 = vunpack.c.h.b16 %v1635
    %v6452 = vunpack.c.l.b16 %v1636
    %v6453 = vunpack.c.h.b16 %v1636
    %v6454 = vunpack.c.l.b16 %v1637
    %v6455 = vunpack.c.h.b16 %v1637
    %v6456 = vunpack.c.l.b16 %v1638
    %v6457 = vunpack.c.h.b16 %v1638
    %v6458 = vunpack.c.l.b16 %v1639
    %v6459 = vunpack.c.h.b16 %v1639
    %v6460 = vunpack.c.l.b16 %v1640
    %v6461 = vunpack.c.h.b16 %v1640
    %v6462 = vunpack.c.l.b16 %v1641
    %v6463 = vunpack.c.h.b16 %v1641
    %v6464 = vunpack.c.l.b16 %v1642
    %v6465 = vunpack.c.h.b16 %v1642
    %v6466 = vunpack.c.l.b16 %v1643
    %v6467 = vunpack.c.h.b16 %v1643
    %v6468 = vunpack.c.l.b16 %v1644
    %v6469 = vunpack.c.h.b16 %v1644
    %v6470 = vunpack.c.l.b16 %v1645
    %v6471 = vunpack.c.h.b16 %v1645
    %v6472 = vunpack.c.l.b16 %v1646
    %v6473 = vunpack.c.h.b16 %v1646
    %v6474 = vunpack.c.l.b16 %v1647
    %v6475 = vunpack.c.h.b16 %v1647
    %v6476 = vunpack.c.l.b16 %v1648
    %v6477 = vunpack.c.h.b16 %v1648
    %v6478 = vunpack.c.l.b16 %v1649
    %v6479 = vunpack.c.h.b16 %v1649
    %v6480 = vunpack.c.l.b16 %v1650
    %v6481 = vunpack.c.h.b16 %v1650
    %v6482 = vunpack.c.l.b16 %v1651
    %v6483 = vunpack.c.h.b16 %v1651
    %v6484 = vunpack.c.l.b16 %v1652
    %v6485 = vunpack.c.h.b16 %v1652
    %v6486 = vpack.c.b16 %v3358, %v3350
    %v6487 = vpack.c.b16 %v3359, %v3351
    %v6488 = vpack.c.b16 %v3360, %v3352
    %v6489 = vpack.c.b16 %v3361, %v3353
    %v6490 = vpack.c.b16 %v3362, %v3354
    %v6491 = vpack.c.b16 %v3363, %v3355
    %v6492 = vpack.c.b16 %v3364, %v3356
    %v6493 = vpack.c.b16 %v3365, %v3357
    %v6494 = vpack.c.b16 %v3374, %v3366
    %v6495 = vpack.c.b16 %v3375, %v3367
    %v6496 = vpack.c.b16 %v3376, %v3368
    %v6497 = vpack.c.b16 %v3377, %v3369
    %v6498 = vpack.c.b16 %v3378, %v3370
    %v6499 = vpack.c.b16 %v3379, %v3371
    %v6500 = vpack.c.b16 %v3380, %v3372
    %v6501 = vpack.c.b16 %v3381, %v3373
    %v6502 = vpack.c.b16 %v3390, %v3382
    %v6503 = vpack.c.b16 %v3391, %v3383
    %v6504 = vpack.c.b16 %v3392, %v3384
    %v6505 = vpack.c.b16 %v3393, %v3385
    %v6506 = vpack.c.b16 %v3394, %v3386
    %v6507 = vpack.c.b16 %v3395, %v3387
    %v6508 = vpack.c.b16 %v3396, %v3388
    %v6509 = vpack.c.b16 %v3397, %v3389
    %v6510 = vpack.c.b16 %v3406, %v3398
    %v6511 = vpack.c.b16 %v3407, %v3399
    %v6512 = vpack.c.b16 %v3408, %v3400
    %v6513 = vpack.c.b16 %v3409, %v3401
    %v6514 = vpack.c.b16 %v3410, %v3402
    %v6515 = vpack.c.b16 %v3411, %v3403
    %v6516 = vpack.c.b16 %v3412, %v3404
    %v6517 = vpack.c.b16 %v3413, %v3405
    %v6518 = vpack.c.b16 %v3422, %v3414
    %v6519 = vpack.c.b16 %v3423, %v3415
    %v6520 = vpack.c.b16 %v3424, %v3416
    %v6521 = vpack.c.b16 %v3425, %v3417
    %v6522 = vpack.c.b16 %v3426, %v3418
    %v6523 = vpack.c.b16 %v3427, %v3419
    %v6524 = vpack.c.b16 %v3428, %v3420
    %v6525 = vpack.c.b16 %v3429, %v3421
    %v6526 = vpack.c.b16 %v3438, %v3430
    %v6527 = vpack.c.b16 %v3439, %v3431
    %v6528 = vpack.c.b16 %v3440, %v3432
    %v6529 = vpack.c.b16 %v3441, %v3433
    %v6530 = vpack.c.b16 %v3442, %v3434
    %v6531 = vpack.c.b16 %v3443, %v3435
    %v6532 = vpack.c.b16 %v3444, %v3436
    %v6533 = vpack.c.b16 %v3445, %v3437
    %v6534 = vpack.c.b16 %v3454, %v3446
    %v6535 = vpack.c.b16 %v3455, %v3447
    %v6536 = vpack.c.b16 %v3456, %v3448
    %v6537 = vpack.c.b16 %v3457, %v3449
    %v6538 = vpack.c.b16 %v3458, %v3450
    %v6539 = vpack.c.b16 %v3459, %v3451
    %v6540 = vpack.c.b16 %v3460, %v3452
    %v6541 = vpack.c.b16 %v3461, %v3453
    %v6542 = vpack.c.b16 %v3470, %v3462
    %v6543 = vpack.c.b16 %v3471, %v3463
    %v6544 = vpack.c.b16 %v3472, %v3464
    %v6545 = vpack.c.b16 %v3473, %v3465
    %v6546 = vpack.c.b16 %v3474, %v3466
    %v6547 = vpack.c.b16 %v3475, %v3467
    %v6548 = vpack.c.b16 %v3476, %v3468
    %v6549 = vpack.c.b16 %v3477, %v3469
    %v6550 = vpack.c.b16 %v3486, %v3478
    %v6551 = vpack.c.b16 %v3487, %v3479
    %v6552 = vpack.c.b16 %v3488, %v3480
    %v6553 = vpack.c.b16 %v3489, %v3481
    %v6554 = vpack.c.b16 %v3490, %v3482
    %v6555 = vpack.c.b16 %v3491, %v3483
    %v6556 = vpack.c.b16 %v3492, %v3484
    %v6557 = vpack.c.b16 %v3493, %v3485
    %v6558 = vpack.c.b16 %v3502, %v3494
    %v6559 = vpack.c.b16 %v3503, %v3495
    %v6560 = vpack.c.b16 %v3504, %v3496
    %v6561 = vpack.c.b16 %v3505, %v3497
    %v6562 = vpack.c.b16 %v3506, %v3498
    %v6563 = vpack.c.b16 %v3507, %v3499
    %v6564 = vpack.c.b16 %v3508, %v3500
    %v6565 = vpack.c.b16 %v3509, %v3501
    %v6566 = vpack.c.b16 %v3518, %v3510
    %v6567 = vpack.c.b16 %v3519, %v3511
    %v6568 = vpack.c.b16 %v3520, %v3512
    %v6569 = vpack.c.b16 %v3521, %v3513
    %v6570 = vpack.c.b16 %v3522, %v3514
    %v6571 = vpack.c.b16 %v3523, %v3515
    %v6572 = vpack.c.b16 %v3524, %v3516
    %v6573 = vpack.c.b16 %v3525, %v3517
    %v6574 = vpack.c.b16 %v3534, %v3526
    %v6575 = vpack.c.b16 %v3535, %v3527
    %v6576 = vpack.c.b16 %v3536, %v3528
    %v6577 = vpack.c.b16 %v3537, %v3529
    %v6578 = vpack.c.b16 %v3538, %v3530
    %v6579 = vpack.c.b16 %v3539, %v3531
    %v6580 = vpack.c.b16 %v3540, %v3532
    %v6581 = vpack.c.b16 %v3541, %v3533
    %v6582 = vpack.c.b16 %v3550, %v3542
    %v6583 = vpack.c.b16 %v3551, %v3543
    %v6584 = vpack.c.b16 %v3552, %v3544
    %v6585 = vpack.c.b16 %v3553, %v3545
    %v6586 = vpack.c.b16 %v3554, %v3546
    %v6587 = vpack.c.b16 %v3555, %v3547
    %v6588 = vpack.c.b16 %v3556, %v3548
    %v6589 = vpack.c.b16 %v3557, %v3549
    %v6590 = vpack.c.b16 %v3566, %v3558
    %v6591 = vpack.c.b16 %v3567, %v3559
    %v6592 = vpack.c.b16 %v3568, %v3560
    %v6593 = vpack.c.b16 %v3569, %v3561
    %v6594 = vpack.c.b16 %v3570, %v3562
    %v6595 = vpack.c.b16 %v3571, %v3563
    %v6596 = vpack.c.b16 %v3572, %v3564
    %v6597 = vpack.c.b16 %v3573, %v3565
    %v6598 = vpack.c.b16 %v3582, %v3574
    %v6599 = vpack.c.b16 %v3583, %v3575
    %v6600 = vpack.c.b16 %v3584, %v3576
    %v6601 = vpack.c.b16 %v3585, %v3577
    %v6602 = vpack.c.b16 %v3586, %v3578
    %v6603 = vpack.c.b16 %v3587, %v3579
    %v6604 = vpack.c.b16 %v3588, %v3580
    %v6605 = vpack.c.b16 %v3589, %v3581
    %v6606 = vpack.c.b16 %v3598, %v3590
    %v6607 = vpack.c.b16 %v3599, %v3591
    %v6608 = vpack.c.b16 %v3600, %v3592
    %v6609 = vpack.c.b16 %v3601, %v3593
    %v6610 = vpack.c.b16 %v3602, %v3594
    %v6611 = vpack.c.b16 %v3603, %v3595
    %v6612 = vpack.c.b16 %v3604, %v3596
    %v6613 = vpack.c.b16 %v3605, %v3597
    %v6614 = vpack.c.b16 %v3614, %v3606
    %v6615 = vpack.c.b16 %v3615, %v3607
    %v6616 = vpack.c.b16 %v3616, %v3608
    %v6617 = vpack.c.b16 %v3617, %v3609
    %v6618 = vpack.c.b16 %v3618, %v3610
    %v6619 = vpack.c.b16 %v3619, %v3611
    %v6620 = vpack.c.b16 %v3620, %v3612
    %v6621 = vpack.c.b16 %v3621, %v3613
    %v6622 = vpack.c.b16 %v3630, %v3622
    %v6623 = vpack.c.b16 %v3631, %v3623
    %v6624 = vpack.c.b16 %v3632, %v3624
    %v6625 = vpack.c.b16 %v3633, %v3625
    %v6626 = vpack.c.b16 %v3634, %v3626
    %v6627 = vpack.c.b16 %v3635, %v3627
    %v6628 = vpack.c.b16 %v3636, %v3628
    %v6629 = vpack.c.b16 %v3637, %v3629
    %v6630 = vpack.c.b16 %v3646, %v3638
    %v6631 = vpack.c.b16 %v3647, %v3639
    %v6632 = vpack.c.b16 %v3648, %v3640
    %v6633 = vpack.c.b16 %v3649, %v3641
    %v6634 = vpack.c.b16 %v3650, %v3642
    %v6635 = vpack.c.b16 %v3651, %v3643
    %v6636 = vpack.c.b16 %v3652, %v3644
    %v6637 = vpack.c.b16 %v3653, %v3645
    %v6638 = vpack.c.b16 %v3662, %v3654
    %v6639 = vpack.c.b16 %v3663, %v3655
    %v6640 = vpack.c.b16 %v3664, %v3656
    %v6641 = vpack.c.b16 %v3665, %v3657
    %v6642 = vpack.c.b16 %v3666, %v3658
    %v6643 = vpack.c.b16 %v3667, %v3659
    %v6644 = vpack.c.b16 %v3668, %v3660
    %v6645 = vpack.c.b16 %v3669, %v3661
    %v6646 = vpack.c.b16 %v3678, %v3670
    %v6647 = vpack.c.b16 %v3679, %v3671
    %v6648 = vpack.c.b16 %v3680, %v3672
    %v6649 = vpack.c.b16 %v3681, %v3673
    %v6650 = vpack.c.b16 %v3682, %v3674
    %v6651 = vpack.c.b16 %v3683, %v3675
    %v6652 = vpack.c.b16 %v3684, %v3676
    %v6653 = vpack.c.b16 %v3685, %v3677
    %v6654 = vpack.c.b16 %v3694, %v3686
    %v6655 = vpack.c.b16 %v3695, %v3687
    %v6656 = vpack.c.b16 %v3696, %v3688
    %v6657 = vpack.c.b16 %v3697, %v3689
    %v6658 = vpack.c.b16 %v3698, %v3690
    %v6659 = vpack.c.b16 %v3699, %v3691
    %v6660 = vpack.c.b16 %v3700, %v3692
    %v6661 = vpack.c.b16 %v3701, %v3693
    %v6662 = vpack.c.b16 %v3710, %v3702
    %v6663 = vpack.c.b16 %v3711, %v3703
    %v6664 = vpack.c.b16 %v3712, %v3704
    %v6665 = vpack.c.b16 %v3713, %v3705
    %v6666 = vpack.c.b16 %v3714, %v3706
    %v6667 = vpack.c.b16 %v3715, %v3707
    %v6668 = vpack.c.b16 %v3716, %v3708
    %v6669 = vpack.c.b16 %v3717, %v3709
    %v6670 = vpack.c.b16 %v3726, %v3718
    %v6671 = vpack.c.b16 %v3727, %v3719
    %v6672 = vpack.c.b16 %v3728, %v3720
    %v6673 = vpack.c.b16 %v3729, %v3721
    %v6674 = vpack.c.b16 %v3730, %v3722
    %v6675 = vpack.c.b16 %v3731, %v3723
    %v6676 = vpack.c.b16 %v3732, %v3724
    %v6677 = vpack.c.b16 %v3733, %v3725
    %v6678 = vpack.c.b16 %v3742, %v3734
    %v6679 = vpack.c.b16 %v3743, %v3735
    %v6680 = vpack.c.b16 %v3744, %v3736
    %v6681 = vpack.c.b16 %v3745, %v3737
    %v6682 = vpack.c.b16 %v3746, %v3738
    %v6683 = vpack.c.b16 %v3747, %v3739
    %v6684 = vpack.c.b16 %v3748, %v3740
    %v6685 = vpack.c.b16 %v3749, %v3741
    %v6686 = vpack.c.b16 %v3758, %v3750
    %v6687 = vpack.c.b16 %v3759, %v3751
    %v6688 = vpack.c.b16 %v3760, %v3752
    %v6689 = vpack.c.b16 %v3761, %v3753
    %v6690 = vpack.c.b16 %v3762, %v3754
    %v6691 = vpack.c.b16 %v3763, %v3755
    %v6692 = vpack.c.b16 %v3764, %v3756
    %v6693 = vpack.c.b16 %v3765, %v3757
    %v6694 = vpack.c.b16 %v3774, %v3766
    %v6695 = vpack.c.b16 %v3775, %v3767
    %v6696 = vpack.c.b16 %v3776, %v3768
    %v6697 = vpack.c.b16 %v3777, %v3769
    %v6698 = vpack.c.b16 %v3778, %v3770
    %v6699 = vpack.c.b16 %v3779, %v3771
    %v6700 = vpack.c.b16 %v3780, %v3772
    %v6701 = vpack.c.b16 %v3781, %v3773
    %v6702 = vpack.c.b16 %v3790, %v3782
    %v6703 = vpack.c.b16 %v3791, %v3783
    %v6704 = vpack.c.b16 %v3792, %v3784
    %v6705 = vpack.c.b16 %v3793, %v3785
    %v6706 = vpack.c.b16 %v3794, %v3786
    %v6707 = vpack.c.b16 %v3795, %v3787
    %v6708 = vpack.c.b16 %v3796, %v3788
    %v6709 = vpack.c.b16 %v3797, %v3789
    %v6710 = vpack.c.b16 %v3806, %v3798
    %v6711 = vpack.c.b16 %v3807, %v3799
    %v6712 = vpack.c.b16 %v3808, %v3800
    %v6713 = vpack.c.b16 %v3809, %v3801
    %v6714 = vpack.c.b16 %v3810, %v3802
    %v6715 = vpack.c.b16 %v3811, %v3803
    %v6716 = vpack.c.b16 %v3812, %v3804
    %v6717 = vpack.c.b16 %v3813, %v3805
    %v6718 = vpack.c.b16 %v3822, %v3814
    %v6719 = vpack.c.b16 %v3823, %v3815
    %v6720 = vpack.c.b16 %v3824, %v3816
    %v6721 = vpack.c.b16 %v3825, %v3817
    %v6722 = vpack.c.b16 %v3826, %v3818
    %v6723 = vpack.c.b16 %v3827, %v3819
    %v6724 = vpack.c.b16 %v3828, %v3820
    %v6725 = vpack.c.b16 %v3829, %v3821
    %v6726 = vpack.c.b16 %v3838, %v3830
    %v6727 = vpack.c.b16 %v3839, %v3831
    %v6728 = vpack.c.b16 %v3840, %v3832
    %v6729 = vpack.c.b16 %v3841, %v3833
    %v6730 = vpack.c.b16 %v3842, %v3834
    %v6731 = vpack.c.b16 %v3843, %v3835
    %v6732 = vpack.c.b16 %v3844, %v3836
    %v6733 = vpack.c.b16 %v3845, %v3837
    %v6734 = vpack.c.b16 %v3854, %v3846
    %v6735 = vpack.c.b16 %v3855, %v3847
    %v6736 = vpack.c.b16 %v3856, %v3848
    %v6737 = vpack.c.b16 %v3857, %v3849
    %v6738 = vpack.c.b16 %v3858, %v3850
    %v6739 = vpack.c.b16 %v3859, %v3851
    %v6740 = vpack.c.b16 %v3860, %v3852
    %v6741 = vpack.c.b16 %v3861, %v3853
    %v6742 = vpack.c.b16 %v3870, %v3862
    %v6743 = vpack.c.b16 %v3871, %v3863
    %v6744 = vpack.c.b16 %v3872, %v3864
    %v6745 = vpack.c.b16 %v3873, %v3865
    %v6746 = vpack.c.b16 %v3874, %v3866
    %v6747 = vpack.c.b16 %v3875, %v3867
    %v6748 = vpack.c.b16 %v3876, %v3868
    %v6749 = vpack.c.b16 %v3877, %v3869
    %v6750 = vpack.c.b16 %v3886, %v3878
    %v6751 = vpack.c.b16 %v3887, %v3879
    %v6752 = vpack.c.b16 %v3888, %v3880
    %v6753 = vpack.c.b16 %v3889, %v3881
    %v6754 = vpack.c.b16 %v3890, %v3882
    %v6755 = vpack.c.b16 %v3891, %v3883
    %v6756 = vpack.c.b16 %v3892, %v3884
    %v6757 = vpack.c.b16 %v3893, %v3885
    %v6758 = vpack.c.b16 %v3902, %v3894
    %v6759 = vpack.c.b16 %v3903, %v3895
    %v6760 = vpack.c.b16 %v3904, %v3896
    %v6761 = vpack.c.b16 %v3905, %v3897
    %v6762 = vpack.c.b16 %v3906, %v3898
    %v6763 = vpack.c.b16 %v3907, %v3899
    %v6764 = vpack.c.b16 %v3908, %v3900
    %v6765 = vpack.c.b16 %v3909, %v3901
    %v6766 = vpack.c.b16 %v3918, %v3910
    %v6767 = vpack.c.b16 %v3919, %v3911
    %v6768 = vpack.c.b16 %v3920, %v3912
    %v6769 = vpack.c.b16 %v3921, %v3913
    %v6770 = vpack.c.b16 %v3922, %v3914
    %v6771 = vpack.c.b16 %v3923, %v3915
    %v6772 = vpack.c.b16 %v3924, %v3916
    %v6773 = vpack.c.b16 %v3925, %v3917
    %v6774 = vpack.c.b16 %v3934, %v3926
    %v6775 = vpack.c.b16 %v3935, %v3927
    %v6776 = vpack.c.b16 %v3936, %v3928
    %v6777 = vpack.c.b16 %v3937, %v3929
    %v6778 = vpack.c.b16 %v3938, %v3930
    %v6779 = vpack.c.b16 %v3939, %v3931
    %v6780 = vpack.c.b16 %v3940, %v3932
    %v6781 = vpack.c.b16 %v3941, %v3933
    %v6782 = vpack.c.b16 %v3950, %v3942
    %v6783 = vpack.c.b16 %v3951, %v3943
    %v6784 = vpack.c.b16 %v3952, %v3944
    %v6785 = vpack.c.b16 %v3953, %v3945
    %v6786 = vpack.c.b16 %v3954, %v3946
    %v6787 = vpack.c.b16 %v3955, %v3947
    %v6788 = vpack.c.b16 %v3956, %v3948
    %v6789 = vpack.c.b16 %v3957, %v3949
    %v6790 = vpack.c.b16 %v3966, %v3958
    %v6791 = vpack.c.b16 %v3967, %v3959
    %v6792 = vpack.c.b16 %v3968, %v3960
    %v6793 = vpack.c.b16 %v3969, %v3961
    %v6794 = vpack.c.b16 %v3970, %v3962
    %v6795 = vpack.c.b16 %v3971, %v3963
    %v6796 = vpack.c.b16 %v3972, %v3964
    %v6797 = vpack.c.b16 %v3973, %v3965
    %v6798 = vpack.c.b16 %v3982, %v3974
    %v6799 = vpack.c.b16 %v3983, %v3975
    %v6800 = vpack.c.b16 %v3984, %v3976
    %v6801 = vpack.c.b16 %v3985, %v3977
    %v6802 = vpack.c.b16 %v3986, %v3978
    %v6803 = vpack.c.b16 %v3987, %v3979
    %v6804 = vpack.c.b16 %v3988, %v3980
    %v6805 = vpack.c.b16 %v3989, %v3981
    %v6806 = vpack.c.b16 %v3998, %v3990
    %v6807 = vpack.c.b16 %v3999, %v3991
    %v6808 = vpack.c.b16 %v4000, %v3992
    %v6809 = vpack.c.b16 %v4001, %v3993
    %v6810 = vpack.c.b16 %v4002, %v3994
    %v6811 = vpack.c.b16 %v4003, %v3995
    %v6812 = vpack.c.b16 %v4004, %v3996
    %v6813 = vpack.c.b16 %v4005, %v3997
    %v6814 = vpack.c.b16 %v4014, %v4006
    %v6815 = vpack.c.b16 %v4015, %v4007
    %v6816 = vpack.c.b16 %v4016, %v4008
    %v6817 = vpack.c.b16 %v4017, %v4009
    %v6818 = vpack.c.b16 %v4018, %v4010
    %v6819 = vpack.c.b16 %v4019, %v4011
    %v6820 = vpack.c.b16 %v4020, %v4012
    %v6821 = vpack.c.b16 %v4021, %v4013
    %v6822 = vpack.c.b16 %v4030, %v4022
    %v6823 = vpack.c.b16 %v4031, %v4023
    %v6824 = vpack.c.b16 %v4032, %v4024
    %v6825 = vpack.c.b16 %v4033, %v4025
    %v6826 = vpack.c.b16 %v4034, %v4026
    %v6827 = vpack.c.b16 %v4035, %v4027
    %v6828 = vpack.c.b16 %v4036, %v4028
    %v6829 = vpack.c.b16 %v4037, %v4029
    %v6830 = vpack.c.b16 %v4046, %v4038
    %v6831 = vpack.c.b16 %v4047, %v4039
    %v6832 = vpack.c.b16 %v4048, %v4040
    %v6833 = vpack.c.b16 %v4049, %v4041
    %v6834 = vpack.c.b16 %v4050, %v4042
    %v6835 = vpack.c.b16 %v4051, %v4043
    %v6836 = vpack.c.b16 %v4052, %v4044
    %v6837 = vpack.c.b16 %v4053, %v4045
    %v6838 = vpack.c.b16 %v4062, %v4054
    %v6839 = vpack.c.b16 %v4063, %v4055
    %v6840 = vpack.c.b16 %v4064, %v4056
    %v6841 = vpack.c.b16 %v4065, %v4057
    %v6842 = vpack.c.b16 %v4066, %v4058
    %v6843 = vpack.c.b16 %v4067, %v4059
    %v6844 = vpack.c.b16 %v4068, %v4060
    %v6845 = vpack.c.b16 %v4069, %v4061
    %v6846 = vpack.c.b16 %v4078, %v4070
    %v6847 = vpack.c.b16 %v4079, %v4071
    %v6848 = vpack.c.b16 %v4080, %v4072
    %v6849 = vpack.c.b16 %v4081, %v4073
    %v6850 = vpack.c.b16 %v4082, %v4074
    %v6851 = vpack.c.b16 %v4083, %v4075
    %v6852 = vpack.c.b16 %v4084, %v4076
    %v6853 = vpack.c.b16 %v4085, %v4077
    %v6854 = vpack.c.b16 %v4094, %v4086
    %v6855 = vpack.c.b16 %v4095, %v4087
    %v6856 = vpack.c.b16 %v4096, %v4088
    %v6857 = vpack.c.b16 %v4097, %v4089
    %v6858 = vpack.c.b16 %v4098, %v4090
    %v6859 = vpack.c.b16 %v4099, %v4091
    %v6860 = vpack.c.b16 %v4100, %v4092
    %v6861 = vpack.c.b16 %v4101, %v4093
    %v6862 = vpack.c.b16 %v4110, %v4102
    %v6863 = vpack.c.b16 %v4111, %v4103
    %v6864 = vpack.c.b16 %v4112, %v4104
    %v6865 = vpack.c.b16 %v4113, %v4105
    %v6866 = vpack.c.b16 %v4114, %v4106
    %v6867 = vpack.c.b16 %v4115, %v4107
    %v6868 = vpack.c.b16 %v4116, %v4108
    %v6869 = vpack.c.b16 %v4117, %v4109
    %v6870 = vpack.c.b16 %v4126, %v4118
    %v6871 = vpack.c.b16 %v4127, %v4119
    %v6872 = vpack.c.b16 %v4128, %v4120
    %v6873 = vpack.c.b16 %v4129, %v4121
    %v6874 = vpack.c.b16 %v4130, %v4122
    %v6875 = vpack.c.b16 %v4131, %v4123
    %v6876 = vpack.c.b16 %v4132, %v4124
    %v6877 = vpack.c.b16 %v4133, %v4125
    %v6878 = vpack.c.b16 %v4142, %v4134
    %v6879 = vpack.c.b16 %v4143, %v4135
    %v6880 = vpack.c.b16 %v4144, %v4136
    %v6881 = vpack.c.b16 %v4145, %v4137
    %v6882 = vpack.c.b16 %v4146, %v4138
    %v6883 = vpack.c.b16 %v4147, %v4139
    %v6884 = vpack.c.b16 %v4148, %v4140
    %v6885 = vpack.c.b16 %v4149, %v4141
    %v6886 = vpack.c.b16 %v4158, %v4150
    %v6887 = vpack.c.b16 %v4159, %v4151
    %v6888 = vpack.c.b16 %v4160, %v4152
    %v6889 = vpack.c.b16 %v4161, %v4153
    %v6890 = vpack.c.b16 %v4162, %v4154
    %v6891 = vpack.c.b16 %v4163, %v4155
    %v6892 = vpack.c.b16 %v4164, %v4156
    %v6893 = vpack.c.b16 %v4165, %v4157
    %v6894 = vpack.c.b16 %v4174, %v4166
    %v6895 = vpack.c.b16 %v4175, %v4167
    %v6896 = vpack.c.b16 %v4176, %v4168
    %v6897 = vpack.c.b16 %v4177, %v4169
    %v6898 = vpack.c.b16 %v4178, %v4170
    %v6899 = vpack.c.b16 %v4179, %v4171
    %v6900 = vpack.c.b16 %v4180, %v4172
    %v6901 = vpack.c.b16 %v4181, %v4173
    %v6902 = vpack.c.b16 %v4190, %v4182
    %v6903 = vpack.c.b16 %v4191, %v4183
    %v6904 = vpack.c.b16 %v4192, %v4184
    %v6905 = vpack.c.b16 %v4193, %v4185
    %v6906 = vpack.c.b16 %v4194, %v4186
    %v6907 = vpack.c.b16 %v4195, %v4187
    %v6908 = vpack.c.b16 %v4196, %v4188
    %v6909 = vpack.c.b16 %v4197, %v4189
    %v6910 = vpack.c.b16 %v4206, %v4198
    %v6911 = vpack.c.b16 %v4207, %v4199
    %v6912 = vpack.c.b16 %v4208, %v4200
    %v6913 = vpack.c.b16 %v4209, %v4201
    %v6914 = vpack.c.b16 %v4210, %v4202
    %v6915 = vpack.c.b16 %v4211, %v4203
    %v6916 = vpack.c.b16 %v4212, %v4204
    %v6917 = vpack.c.b16 %v4213, %v4205
    %v6918 = vpack.c.b16 %v4222, %v4214
    %v6919 = vpack.c.b16 %v4223, %v4215
    %v6920 = vpack.c.b16 %v4224, %v4216
    %v6921 = vpack.c.b16 %v4225, %v4217
    %v6922 = vpack.c.b16 %v4226, %v4218
    %v6923 = vpack.c.b16 %v4227, %v4219
    %v6924 = vpack.c.b16 %v4228, %v4220
    %v6925 = vpack.c.b16 %v4229, %v4221
    %v6926 = vpack.c.b16 %v4238, %v4230
    %v6927 = vpack.c.b16 %v4239, %v4231
    %v6928 = vpack.c.b16 %v4240, %v4232
    %v6929 = vpack.c.b16 %v4241, %v4233
    %v6930 = vpack.c.b16 %v4242, %v4234
    %v6931 = vpack.c.b16 %v4243, %v4235
    %v6932 = vpack.c.b16 %v4244, %v4236
    %v6933 = vpack.c.b16 %v4245, %v4237
    %v6934 = vpack.c.b16 %v4254, %v4246
    %v6935 = vpack.c.b16 %v4255, %v4247
    %v6936 = vpack.c.b16 %v4256, %v4248
    %v6937 = vpack.c.b16 %v4257, %v4249
    %v6938 = vpack.c.b16 %v4258, %v4250
    %v6939 = vpack.c.b16 %v4259, %v4251
    %v6940 = vpack.c.b16 %v4260, %v4252
    %v6941 = vpack.c.b16 %v4261, %v4253
    %v6942 = vpack.c.b16 %v4270, %v4262
    %v6943 = vpack.c.b16 %v4271, %v4263
    %v6944 = vpack.c.b16 %v4272, %v4264
    %v6945 = vpack.c.b16 %v4273, %v4265
    %v6946 = vpack.c.b16 %v4274, %v4266
    %v6947 = vpack.c.b16 %v4275, %v4267
    %v6948 = vpack.c.b16 %v4276, %v4268
    %v6949 = vpack.c.b16 %v4277, %v4269
    %v6950 = vpack.c.b16 %v4286, %v4278
    %v6951 = vpack.c.b16 %v4287, %v4279
    %v6952 = vpack.c.b16 %v4288, %v4280
    %v6953 = vpack.c.b16 %v4289, %v4281
    %v6954 = vpack.c.b16 %v4290, %v4282
    %v6955 = vpack.c.b16 %v4291, %v4283
    %v6956 = vpack.c.b16 %v4292, %v4284
    %v6957 = vpack.c.b16 %v4293, %v4285
    %v6958 = vpack.c.b16 %v4302, %v4294
    %v6959 = vpack.c.b16 %v4303, %v4295
    %v6960 = vpack.c.b16 %v4304, %v4296
    %v6961 = vpack.c.b16 %v4305, %v4297
    %v6962 = vpack.c.b16 %v4306, %v4298
    %v6963 = vpack.c.b16 %v4307, %v4299
    %v6964 = vpack.c.b16 %v4308, %v4300
    %v6965 = vpack.c.b16 %v4309, %v4301
    %v6966 = vpack.c.b16 %v4318, %v4310
    %v6967 = vpack.c.b16 %v4319, %v4311
    %v6968 = vpack.c.b16 %v4320, %v4312
    %v6969 = vpack.c.b16 %v4321, %v4313
    %v6970 = vpack.c.b16 %v4322, %v4314
    %v6971 = vpack.c.b16 %v4323, %v4315
    %v6972 = vpack.c.b16 %v4324, %v4316
    %v6973 = vpack.c.b16 %v4325, %v4317
    %v6974 = vpack.c.b16 %v4334, %v4326
    %v6975 = vpack.c.b16 %v4335, %v4327
    %v6976 = vpack.c.b16 %v4336, %v4328
    %v6977 = vpack.c.b16 %v4337, %v4329
    %v6978 = vpack.c.b16 %v4338, %v4330
    %v6979 = vpack.c.b16 %v4339, %v4331
    %v6980 = vpack.c.b16 %v4340, %v4332
    %v6981 = vpack.c.b16 %v4341, %v4333
    %v6982 = vpack.c.b16 %v4350, %v4342
    %v6983 = vpack.c.b16 %v4351, %v4343
    %v6984 = vpack.c.b16 %v4352, %v4344
    %v6985 = vpack.c.b16 %v4353, %v4345
    %v6986 = vpack.c.b16 %v4354, %v4346
    %v6987 = vpack.c.b16 %v4355, %v4347
    %v6988 = vpack.c.b16 %v4356, %v4348
    %v6989 = vpack.c.b16 %v4357, %v4349
    %v6990 = vpack.c.b16 %v4366, %v4358
    %v6991 = vpack.c.b16 %v4367, %v4359
    %v6992 = vpack.c.b16 %v4368, %v4360
    %v6993 = vpack.c.b16 %v4369, %v4361
    %v6994 = vpack.c.b16 %v4370, %v4362
    %v6995 = vpack.c.b16 %v4371, %v4363
    %v6996 = vpack.c.b16 %v4372, %v4364
    %v6997 = vpack.c.b16 %v4373, %v4365
    %v6998 = vpack.c.b16 %v4382, %v4374
    %v6999 = vpack.c.b16 %v4383, %v4375
    %v7000 = vpack.c.b16 %v4384, %v4376
    %v7001 = vpack.c.b16 %v4385, %v4377
    %v7002 = vpack.c.b16 %v4386, %v4378
    %v7003 = vpack.c.b16 %v4387, %v4379
    %v7004 = vpack.c.b16 %v4388, %v4380
    %v7005 = vpack.c.b16 %v4389, %v4381
    %v7006 = vpack.c.b16 %v4398, %v4390
    %v7007 = vpack.c.b16 %v4399, %v4391
    %v7008 = vpack.c.b16 %v4400, %v4392
    %v7009 = vpack.c.b16 %v4401, %v4393
    %v7010 = vpack.c.b16 %v4402, %v4394
    %v7011 = vpack.c.b16 %v4403, %v4395
    %v7012 = vpack.c.b16 %v4404, %v4396
    %v7013 = vpack.c.b16 %v4405, %v4397
    %v7014 = vpack.c.b16 %v4414, %v4406
    %v7015 = vpack.c.b16 %v4415, %v4407
    %v7016 = vpack.c.b16 %v4416, %v4408
    %v7017 = vpack.c.b16 %v4417, %v4409
    %v7018 = vpack.c.b16 %v4418, %v4410
    %v7019 = vpack.c.b16 %v4419, %v4411
    %v7020 = vpack.c.b16 %v4420, %v4412
    %v7021 = vpack.c.b16 %v4421, %v4413
    %v7022 = vpack.c.b16 %v4430, %v4422
    %v7023 = vpack.c.b16 %v4431, %v4423
    %v7024 = vpack.c.b16 %v4432, %v4424
    %v7025 = vpack.c.b16 %v4433, %v4425
    %v7026 = vpack.c.b16 %v4434, %v4426
    %v7027 = vpack.c.b16 %v4435, %v4427
    %v7028 = vpack.c.b16 %v4436, %v4428
    %v7029 = vpack.c.b16 %v4437, %v4429
    %v7030 = vpack.c.b16 %v4446, %v4438
    %v7031 = vpack.c.b16 %v4447, %v4439
    %v7032 = vpack.c.b16 %v4448, %v4440
    %v7033 = vpack.c.b16 %v4449, %v4441
    %v7034 = vpack.c.b16 %v4450, %v4442
    %v7035 = vpack.c.b16 %v4451, %v4443
    %v7036 = vpack.c.b16 %v4452, %v4444
    %v7037 = vpack.c.b16 %v4453, %v4445
    %v7038 = vpack.c.b16 %v4462, %v4454
    %v7039 = vpack.c.b16 %v4463, %v4455
    %v7040 = vpack.c.b16 %v4464, %v4456
    %v7041 = vpack.c.b16 %v4465, %v4457
    %v7042 = vpack.c.b16 %v4466, %v4458
    %v7043 = vpack.c.b16 %v4467, %v4459
    %v7044 = vpack.c.b16 %v4468, %v4460
    %v7045 = vpack.c.b16 %v4469, %v4461
    %v7046 = vpack.c.b16 %v4478, %v4470
    %v7047 = vpack.c.b16 %v4479, %v4471
    %v7048 = vpack.c.b16 %v4480, %v4472
    %v7049 = vpack.c.b16 %v4481, %v4473
    %v7050 = vpack.c.b16 %v4482, %v4474
    %v7051 = vpack.c.b16 %v4483, %v4475
    %v7052 = vpack.c.b16 %v4484, %v4476
    %v7053 = vpack.c.b16 %v4485, %v4477
    %v7054 = vpack.c.b16 %v4494, %v4486
    %v7055 = vpack.c.b16 %v4495, %v4487
    %v7056 = vpack.c.b16 %v4496, %v4488
    %v7057 = vpack.c.b16 %v4497, %v4489
    %v7058 = vpack.c.b16 %v4498, %v4490
    %v7059 = vpack.c.b16 %v4499, %v4491
    %v7060 = vpack.c.b16 %v4500, %v4492
    %v7061 = vpack.c.b16 %v4501, %v4493
    %v7062 = vpack.c.b16 %v4510, %v4502
    %v7063 = vpack.c.b16 %v4511, %v4503
    %v7064 = vpack.c.b16 %v4512, %v4504
    %v7065 = vpack.c.b16 %v4513, %v4505
    %v7066 = vpack.c.b16 %v4514, %v4506
    %v7067 = vpack.c.b16 %v4515, %v4507
    %v7068 = vpack.c.b16 %v4516, %v4508
    %v7069 = vpack.c.b16 %v4517, %v4509
    %v7070 = vpack.c.b16 %v4526, %v4518
    %v7071 = vpack.c.b16 %v4527, %v4519
    %v7072 = vpack.c.b16 %v4528, %v4520
    %v7073 = vpack.c.b16 %v4529, %v4521
    %v7074 = vpack.c.b16 %v4530, %v4522
    %v7075 = vpack.c.b16 %v4531, %v4523
    %v7076 = vpack.c.b16 %v4532, %v4524
    %v7077 = vpack.c.b16 %v4533, %v4525
    %v7078 = vpack.c.b16 %v4542, %v4534
    %v7079 = vpack.c.b16 %v4543, %v4535
    %v7080 = vpack.c.b16 %v4544, %v4536
    %v7081 = vpack.c.b16 %v4545, %v4537
    %v7082 = vpack.c.b16 %v4546, %v4538
    %v7083 = vpack.c.b16 %v4547, %v4539
    %v7084 = vpack.c.b16 %v4548, %v4540
    %v7085 = vpack.c.b16 %v4549, %v4541
    %v7086 = vpack.c.b16 %v4558, %v4550
    %v7087 = vpack.c.b16 %v4559, %v4551
    %v7088 = vpack.c.b16 %v4560, %v4552
    %v7089 = vpack.c.b16 %v4561, %v4553
    %v7090 = vpack.c.b16 %v4562, %v4554
    %v7091 = vpack.c.b16 %v4563, %v4555
    %v7092 = vpack.c.b16 %v4564, %v4556
    %v7093 = vpack.c.b16 %v4565, %v4557
    %v7094 = vpack.c.b16 %v4574, %v4566
    %v7095 = vpack.c.b16 %v4575, %v4567
    %v7096 = vpack.c.b16 %v4576, %v4568
    %v7097 = vpack.c.b16 %v4577, %v4569
    %v7098 = vpack.c.b16 %v4578, %v4570
    %v7099 = vpack.c.b16 %v4579, %v4571
    %v7100 = vpack.c.b16 %v4580, %v4572
    %v7101 = vpack.c.b16 %v4581, %v4573
    %v7102 = vpack.c.b16 %v4590, %v4582
    %v7103 = vpack.c.b16 %v4591, %v4583
    %v7104 = vpack.c.b16 %v4592, %v4584
    %v7105 = vpack.c.b16 %v4593, %v4585
    %v7106 = vpack.c.b16 %v4594, %v4586
    %v7107 = vpack.c.b16 %v4595, %v4587
    %v7108 = vpack.c.b16 %v4596, %v4588
    %v7109 = vpack.c.b16 %v4597, %v4589
    %v7110 = vpack.c.b16 %v4606, %v4598
    %v7111 = vpack.c.b16 %v4607, %v4599
    %v7112 = vpack.c.b16 %v4608, %v4600
    %v7113 = vpack.c.b16 %v4609, %v4601
    %v7114 = vpack.c.b16 %v4610, %v4602
    %v7115 = vpack.c.b16 %v4611, %v4603
    %v7116 = vpack.c.b16 %v4612, %v4604
    %v7117 = vpack.c.b16 %v4613, %v4605
    %v7118 = vpack.c.b16 %v4622, %v4614
    %v7119 = vpack.c.b16 %v4623, %v4615
    %v7120 = vpack.c.b16 %v4624, %v4616
    %v7121 = vpack.c.b16 %v4625, %v4617
    %v7122 = vpack.c.b16 %v4626, %v4618
    %v7123 = vpack.c.b16 %v4627, %v4619
    %v7124 = vpack.c.b16 %v4628, %v4620
    %v7125 = vpack.c.b16 %v4629, %v4621
    %v7126 = vpack.c.b16 %v4638, %v4630
    %v7127 = vpack.c.b16 %v4639, %v4631
    %v7128 = vpack.c.b16 %v4640, %v4632
    %v7129 = vpack.c.b16 %v4641, %v4633
    %v7130 = vpack.c.b16 %v4642, %v4634
    %v7131 = vpack.c.b16 %v4643, %v4635
    %v7132 = vpack.c.b16 %v4644, %v4636
    %v7133 = vpack.c.b16 %v4645, %v4637
    %v7134 = vpack.c.b16 %v4654, %v4646
    %v7135 = vpack.c.b16 %v4655, %v4647
    %v7136 = vpack.c.b16 %v4656, %v4648
    %v7137 = vpack.c.b16 %v4657, %v4649
    %v7138 = vpack.c.b16 %v4658, %v4650
    %v7139 = vpack.c.b16 %v4659, %v4651
    %v7140 = vpack.c.b16 %v4660, %v4652
    %v7141 = vpack.c.b16 %v4661, %v4653
    %v7142 = vpack.c.b16 %v4670, %v4662
    %v7143 = vpack.c.b16 %v4671, %v4663
    %v7144 = vpack.c.b16 %v4672, %v4664
    %v7145 = vpack.c.b16 %v4673, %v4665
    %v7146 = vpack.c.b16 %v4674, %v4666
    %v7147 = vpack.c.b16 %v4675, %v4667
    %v7148 = vpack.c.b16 %v4676, %v4668
    %v7149 = vpack.c.b16 %v4677, %v4669
    %v7150 = vpack.c.b16 %v4686, %v4678
    %v7151 = vpack.c.b16 %v4687, %v4679
    %v7152 = vpack.c.b16 %v4688, %v4680
    %v7153 = vpack.c.b16 %v4689, %v4681
    %v7154 = vpack.c.b16 %v4690, %v4682
    %v7155 = vpack.c.b16 %v4691, %v4683
    %v7156 = vpack.c.b16 %v4692, %v4684
    %v7157 = vpack.c.b16 %v4693, %v4685
    %v7158 = vpack.c.b16 %v4702, %v4694
    %v7159 = vpack.c.b16 %v4703, %v4695
    %v7160 = vpack.c.b16 %v4704, %v4696
    %v7161 = vpack.c.b16 %v4705, %v4697
    %v7162 = vpack.c.b16 %v4706, %v4698
    %v7163 = vpack.c.b16 %v4707, %v4699
    %v7164 = vpack.c.b16 %v4708, %v4700
    %v7165 = vpack.c.b16 %v4709, %v4701
    %v7166 = vpack.c.b16 %v4718, %v4710
    %v7167 = vpack.c.b16 %v4719, %v4711
    %v7168 = vpack.c.b16 %v4720, %v4712
    %v7169 = vpack.c.b16 %v4721, %v4713
    %v7170 = vpack.c.b16 %v4722, %v4714
    %v7171 = vpack.c.b16 %v4723, %v4715
    %v7172 = vpack.c.b16 %v4724, %v4716
    %v7173 = vpack.c.b16 %v4725, %v4717
    %v7174 = vpack.c.b16 %v4734, %v4726
    %v7175 = vpack.c.b16 %v4735, %v4727
    %v7176 = vpack.c.b16 %v4736, %v4728
    %v7177 = vpack.c.b16 %v4737, %v4729
    %v7178 = vpack.c.b16 %v4738, %v4730
    %v7179 = vpack.c.b16 %v4739, %v4731
    %v7180 = vpack.c.b16 %v4740, %v4732
    %v7181 = vpack.c.b16 %v4741, %v4733
    %v7182 = vpack.c.b16 %v4750, %v4742
    %v7183 = vpack.c.b16 %v4751, %v4743
    %v7184 = vpack.c.b16 %v4752, %v4744
    %v7185 = vpack.c.b16 %v4753, %v4745
    %v7186 = vpack.c.b16 %v4754, %v4746
    %v7187 = vpack.c.b16 %v4755, %v4747
    %v7188 = vpack.c.b16 %v4756, %v4748
    %v7189 = vpack.c.b16 %v4757, %v4749
    %v7190 = vpack.c.b16 %v4766, %v4758
    %v7191 = vpack.c.b16 %v4767, %v4759
    %v7192 = vpack.c.b16 %v4768, %v4760
    %v7193 = vpack.c.b16 %v4769, %v4761
    %v7194 = vpack.c.b16 %v4770, %v4762
    %v7195 = vpack.c.b16 %v4771, %v4763
    %v7196 = vpack.c.b16 %v4772, %v4764
    %v7197 = vpack.c.b16 %v4773, %v4765
    %v7198 = vpack.c.b16 %v4782, %v4774
    %v7199 = vpack.c.b16 %v4783, %v4775
    %v7200 = vpack.c.b16 %v4784, %v4776
    %v7201 = vpack.c.b16 %v4785, %v4777
    %v7202 = vpack.c.b16 %v4786, %v4778
    %v7203 = vpack.c.b16 %v4787, %v4779
    %v7204 = vpack.c.b16 %v4788, %v4780
    %v7205 = vpack.c.b16 %v4789, %v4781
    %v7206 = vpack.c.b16 %v4798, %v4790
    %v7207 = vpack.c.b16 %v4799, %v4791
    %v7208 = vpack.c.b16 %v4800, %v4792
    %v7209 = vpack.c.b16 %v4801, %v4793
    %v7210 = vpack.c.b16 %v4802, %v4794
    %v7211 = vpack.c.b16 %v4803, %v4795
    %v7212 = vpack.c.b16 %v4804, %v4796
    %v7213 = vpack.c.b16 %v4805, %v4797
    %v7214 = vpack.c.b16 %v4814, %v4806
    %v7215 = vpack.c.b16 %v4815, %v4807
    %v7216 = vpack.c.b16 %v4816, %v4808
    %v7217 = vpack.c.b16 %v4817, %v4809
    %v7218 = vpack.c.b16 %v4818, %v4810
    %v7219 = vpack.c.b16 %v4819, %v4811
    %v7220 = vpack.c.b16 %v4820, %v4812
    %v7221 = vpack.c.b16 %v4821, %v4813
    %v7222 = vpack.c.b16 %v4830, %v4822
    %v7223 = vpack.c.b16 %v4831, %v4823
    %v7224 = vpack.c.b16 %v4832, %v4824
    %v7225 = vpack.c.b16 %v4833, %v4825
    %v7226 = vpack.c.b16 %v4834, %v4826
    %v7227 = vpack.c.b16 %v4835, %v4827
    %v7228 = vpack.c.b16 %v4836, %v4828
    %v7229 = vpack.c.b16 %v4837, %v4829
    %v7230 = vpack.c.b16 %v4846, %v4838
    %v7231 = vpack.c.b16 %v4847, %v4839
    %v7232 = vpack.c.b16 %v4848, %v4840
    %v7233 = vpack.c.b16 %v4849, %v4841
    %v7234 = vpack.c.b16 %v4850, %v4842
    %v7235 = vpack.c.b16 %v4851, %v4843
    %v7236 = vpack.c.b16 %v4852, %v4844
    %v7237 = vpack.c.b16 %v4853, %v4845
    %v7238 = vpack.c.b16 %v4862, %v4854
    %v7239 = vpack.c.b16 %v4863, %v4855
    %v7240 = vpack.c.b16 %v4864, %v4856
    %v7241 = vpack.c.b16 %v4865, %v4857
    %v7242 = vpack.c.b16 %v4866, %v4858
    %v7243 = vpack.c.b16 %v4867, %v4859
    %v7244 = vpack.c.b16 %v4868, %v4860
    %v7245 = vpack.c.b16 %v4869, %v4861
    %v7246 = vpack.c.b16 %v4878, %v4870
    %v7247 = vpack.c.b16 %v4879, %v4871
    %v7248 = vpack.c.b16 %v4880, %v4872
    %v7249 = vpack.c.b16 %v4881, %v4873
    %v7250 = vpack.c.b16 %v4882, %v4874
    %v7251 = vpack.c.b16 %v4883, %v4875
    %v7252 = vpack.c.b16 %v4884, %v4876
    %v7253 = vpack.c.b16 %v4885, %v4877
    %v7254 = vpack.c.b16 %v4894, %v4886
    %v7255 = vpack.c.b16 %v4895, %v4887
    %v7256 = vpack.c.b16 %v4896, %v4888
    %v7257 = vpack.c.b16 %v4897, %v4889
    %v7258 = vpack.c.b16 %v4898, %v4890
    %v7259 = vpack.c.b16 %v4899, %v4891
    %v7260 = vpack.c.b16 %v4900, %v4892
    %v7261 = vpack.c.b16 %v4901, %v4893
    %v7262 = vpack.c.b16 %v4910, %v4902
    %v7263 = vpack.c.b16 %v4911, %v4903
    %v7264 = vpack.c.b16 %v4912, %v4904
    %v7265 = vpack.c.b16 %v4913, %v4905
    %v7266 = vpack.c.b16 %v4914, %v4906
    %v7267 = vpack.c.b16 %v4915, %v4907
    %v7268 = vpack.c.b16 %v4916, %v4908
    %v7269 = vpack.c.b16 %v4917, %v4909
    %v7270 = vpack.c.b16 %v4926, %v4918
    %v7271 = vpack.c.b16 %v4927, %v4919
    %v7272 = vpack.c.b16 %v4928, %v4920
    %v7273 = vpack.c.b16 %v4929, %v4921
    %v7274 = vpack.c.b16 %v4930, %v4922
    %v7275 = vpack.c.b16 %v4931, %v4923
    %v7276 = vpack.c.b16 %v4932, %v4924
    %v7277 = vpack.c.b16 %v4933, %v4925
    %v7278 = vpack.c.b16 %v4942, %v4934
    %v7279 = vpack.c.b16 %v4943, %v4935
    %v7280 = vpack.c.b16 %v4944, %v4936
    %v7281 = vpack.c.b16 %v4945, %v4937
    %v7282 = vpack.c.b16 %v4946, %v4938
    %v7283 = vpack.c.b16 %v4947, %v4939
    %v7284 = vpack.c.b16 %v4948, %v4940
    %v7285 = vpack.c.b16 %v4949, %v4941
    %v7286 = vpack.c.b16 %v4958, %v4950
    %v7287 = vpack.c.b16 %v4959, %v4951
    %v7288 = vpack.c.b16 %v4960, %v4952
    %v7289 = vpack.c.b16 %v4961, %v4953
    %v7290 = vpack.c.b16 %v4962, %v4954
    %v7291 = vpack.c.b16 %v4963, %v4955
    %v7292 = vpack.c.b16 %v4964, %v4956
    %v7293 = vpack.c.b16 %v4965, %v4957
    %v7294 = vpack.c.b16 %v4974, %v4966
    %v7295 = vpack.c.b16 %v4975, %v4967
    %v7296 = vpack.c.b16 %v4976, %v4968
    %v7297 = vpack.c.b16 %v4977, %v4969
    %v7298 = vpack.c.b16 %v4978, %v4970
    %v7299 = vpack.c.b16 %v4979, %v4971
    %v7300 = vpack.c.b16 %v4980, %v4972
    %v7301 = vpack.c.b16 %v4981, %v4973
    %v7302 = vpack.c.b16 %v4990, %v4982
    %v7303 = vpack.c.b16 %v4991, %v4983
    %v7304 = vpack.c.b16 %v4992, %v4984
    %v7305 = vpack.c.b16 %v4993, %v4985
    %v7306 = vpack.c.b16 %v4994, %v4986
    %v7307 = vpack.c.b16 %v4995, %v4987
    %v7308 = vpack.c.b16 %v4996, %v4988
    %v7309 = vpack.c.b16 %v4997, %v4989
    %v7310 = vpack.c.b16 %v5006, %v4998
    %v7311 = vpack.c.b16 %v5007, %v4999
    %v7312 = vpack.c.b16 %v5008, %v5000
    %v7313 = vpack.c.b16 %v5009, %v5001
    %v7314 = vpack.c.b16 %v5010, %v5002
    %v7315 = vpack.c.b16 %v5011, %v5003
    %v7316 = vpack.c.b16 %v5012, %v5004
    %v7317 = vpack.c.b16 %v5013, %v5005
    %v7318 = vpack.c.b16 %v5022, %v5014
    %v7319 = vpack.c.b16 %v5023, %v5015
    %v7320 = vpack.c.b16 %v5024, %v5016
    %v7321 = vpack.c.b16 %v5025, %v5017
    %v7322 = vpack.c.b16 %v5026, %v5018
    %v7323 = vpack.c.b16 %v5027, %v5019
    %v7324 = vpack.c.b16 %v5028, %v5020
    %v7325 = vpack.c.b16 %v5029, %v5021
    %v7326 = vpack.c.b16 %v5038, %v5030
    %v7327 = vpack.c.b16 %v5039, %v5031
    %v7328 = vpack.c.b16 %v5040, %v5032
    %v7329 = vpack.c.b16 %v5041, %v5033
    %v7330 = vpack.c.b16 %v5042, %v5034
    %v7331 = vpack.c.b16 %v5043, %v5035
    %v7332 = vpack.c.b16 %v5044, %v5036
    %v7333 = vpack.c.b16 %v5045, %v5037
    %v7334 = vpack.c.b16 %v5054, %v5046
    %v7335 = vpack.c.b16 %v5055, %v5047
    %v7336 = vpack.c.b16 %v5056, %v5048
    %v7337 = vpack.c.b16 %v5057, %v5049
    %v7338 = vpack.c.b16 %v5058, %v5050
    %v7339 = vpack.c.b16 %v5059, %v5051
    %v7340 = vpack.c.b16 %v5060, %v5052
    %v7341 = vpack.c.b16 %v5061, %v5053
    %v7342 = vpack.c.b16 %v5070, %v5062
    %v7343 = vpack.c.b16 %v5071, %v5063
    %v7344 = vpack.c.b16 %v5072, %v5064
    %v7345 = vpack.c.b16 %v5073, %v5065
    %v7346 = vpack.c.b16 %v5074, %v5066
    %v7347 = vpack.c.b16 %v5075, %v5067
    %v7348 = vpack.c.b16 %v5076, %v5068
    %v7349 = vpack.c.b16 %v5077, %v5069
    %v7350 = vpack.c.b16 %v5086, %v5078
    %v7351 = vpack.c.b16 %v5087, %v5079
    %v7352 = vpack.c.b16 %v5088, %v5080
    %v7353 = vpack.c.b16 %v5089, %v5081
    %v7354 = vpack.c.b16 %v5090, %v5082
    %v7355 = vpack.c.b16 %v5091, %v5083
    %v7356 = vpack.c.b16 %v5092, %v5084
    %v7357 = vpack.c.b16 %v5093, %v5085
    %v7358 = vpack.c.b16 %v5102, %v5094
    %v7359 = vpack.c.b16 %v5103, %v5095
    %v7360 = vpack.c.b16 %v5104, %v5096
    %v7361 = vpack.c.b16 %v5105, %v5097
    %v7362 = vpack.c.b16 %v5106, %v5098
    %v7363 = vpack.c.b16 %v5107, %v5099
    %v7364 = vpack.c.b16 %v5108, %v5100
    %v7365 = vpack.c.b16 %v5109, %v5101
    %v7366 = vpack.c.b16 %v5118, %v5110
    %v7367 = vpack.c.b16 %v5119, %v5111
    %v7368 = vpack.c.b16 %v5120, %v5112
    %v7369 = vpack.c.b16 %v5121, %v5113
    %v7370 = vpack.c.b16 %v5122, %v5114
    %v7371 = vpack.c.b16 %v5123, %v5115
    %v7372 = vpack.c.b16 %v5124, %v5116
    %v7373 = vpack.c.b16 %v5125, %v5117
    %v7374 = vpack.c.b16 %v5134, %v5126
    %v7375 = vpack.c.b16 %v5135, %v5127
    %v7376 = vpack.c.b16 %v5136, %v5128
    %v7377 = vpack.c.b16 %v5137, %v5129
    %v7378 = vpack.c.b16 %v5138, %v5130
    %v7379 = vpack.c.b16 %v5139, %v5131
    %v7380 = vpack.c.b16 %v5140, %v5132
    %v7381 = vpack.c.b16 %v5141, %v5133
    %v7382 = vpack.c.b16 %v5150, %v5142
    %v7383 = vpack.c.b16 %v5151, %v5143
    %v7384 = vpack.c.b16 %v5152, %v5144
    %v7385 = vpack.c.b16 %v5153, %v5145
    %v7386 = vpack.c.b16 %v5154, %v5146
    %v7387 = vpack.c.b16 %v5155, %v5147
    %v7388 = vpack.c.b16 %v5156, %v5148
    %v7389 = vpack.c.b16 %v5157, %v5149
    %v7390 = vpack.c.b16 %v5166, %v5158
    %v7391 = vpack.c.b16 %v5167, %v5159
    %v7392 = vpack.c.b16 %v5168, %v5160
    %v7393 = vpack.c.b16 %v5169, %v5161
    %v7394 = vpack.c.b16 %v5170, %v5162
    %v7395 = vpack.c.b16 %v5171, %v5163
    %v7396 = vpack.c.b16 %v5172, %v5164
    %v7397 = vpack.c.b16 %v5173, %v5165
    %v7398 = vpack.c.b16 %v5182, %v5174
    %v7399 = vpack.c.b16 %v5183, %v5175
    %v7400 = vpack.c.b16 %v5184, %v5176
    %v7401 = vpack.c.b16 %v5185, %v5177
    %v7402 = vpack.c.b16 %v5186, %v5178
    %v7403 = vpack.c.b16 %v5187, %v5179
    %v7404 = vpack.c.b16 %v5188, %v5180
    %v7405 = vpack.c.b16 %v5189, %v5181
    %v7406 = vpack.c.b16 %v5198, %v5190
    %v7407 = vpack.c.b16 %v5199, %v5191
    %v7408 = vpack.c.b16 %v5200, %v5192
    %v7409 = vpack.c.b16 %v5201, %v5193
    %v7410 = vpack.c.b16 %v5202, %v5194
    %v7411 = vpack.c.b16 %v5203, %v5195
    %v7412 = vpack.c.b16 %v5204, %v5196
    %v7413 = vpack.c.b16 %v5205, %v5197
    %v7414 = vpack.c.b16 %v5214, %v5206
    %v7415 = vpack.c.b16 %v5215, %v5207
    %v7416 = vpack.c.b16 %v5216, %v5208
    %v7417 = vpack.c.b16 %v5217, %v5209
    %v7418 = vpack.c.b16 %v5218, %v5210
    %v7419 = vpack.c.b16 %v5219, %v5211
    %v7420 = vpack.c.b16 %v5220, %v5212
    %v7421 = vpack.c.b16 %v5221, %v5213
    %v7422 = vpack.c.b16 %v5230, %v5222
    %v7423 = vpack.c.b16 %v5231, %v5223
    %v7424 = vpack.c.b16 %v5232, %v5224
    %v7425 = vpack.c.b16 %v5233, %v5225
    %v7426 = vpack.c.b16 %v5234, %v5226
    %v7427 = vpack.c.b16 %v5235, %v5227
    %v7428 = vpack.c.b16 %v5236, %v5228
    %v7429 = vpack.c.b16 %v5237, %v5229
    %v7430 = vpack.c.b16 %v5246, %v5238
    %v7431 = vpack.c.b16 %v5247, %v5239
    %v7432 = vpack.c.b16 %v5248, %v5240
    %v7433 = vpack.c.b16 %v5249, %v5241
    %v7434 = vpack.c.b16 %v5250, %v5242
    %v7435 = vpack.c.b16 %v5251, %v5243
    %v7436 = vpack.c.b16 %v5252, %v5244
    %v7437 = vpack.c.b16 %v5253, %v5245
    %v7438 = vpack.c.b16 %v5262, %v5254
    %v7439 = vpack.c.b16 %v5263, %v5255
    %v7440 = vpack.c.b16 %v5264, %v5256
    %v7441 = vpack.c.b16 %v5265, %v5257
    %v7442 = vpack.c.b16 %v5266, %v5258
    %v7443 = vpack.c.b16 %v5267, %v5259
    %v7444 = vpack.c.b16 %v5268, %v5260
    %v7445 = vpack.c.b16 %v5269, %v5261
    %v7446 = vpack.c.b16 %v5278, %v5270
    %v7447 = vpack.c.b16 %v5279, %v5271
    %v7448 = vpack.c.b16 %v5280, %v5272
    %v7449 = vpack.c.b16 %v5281, %v5273
    %v7450 = vpack.c.b16 %v5282, %v5274
    %v7451 = vpack.c.b16 %v5283, %v5275
    %v7452 = vpack.c.b16 %v5284, %v5276
    %v7453 = vpack.c.b16 %v5285, %v5277
    %v7454 = vpack.c.b16 %v5294, %v5286
    %v7455 = vpack.c.b16 %v5295, %v5287
    %v7456 = vpack.c.b16 %v5296, %v5288
    %v7457 = vpack.c.b16 %v5297, %v5289
    %v7458 = vpack.c.b16 %v5298, %v5290
    %v7459 = vpack.c.b16 %v5299, %v5291
    %v7460 = vpack.c.b16 %v5300, %v5292
    %v7461 = vpack.c.b16 %v5301, %v5293
    %v7462 = vpack.c.b16 %v5310, %v5302
    %v7463 = vpack.c.b16 %v5311, %v5303
    %v7464 = vpack.c.b16 %v5312, %v5304
    %v7465 = vpack.c.b16 %v5313, %v5305
    %v7466 = vpack.c.b16 %v5314, %v5306
    %v7467 = vpack.c.b16 %v5315, %v5307
    %v7468 = vpack.c.b16 %v5316, %v5308
    %v7469 = vpack.c.b16 %v5317, %v5309
    %v7470 = vpack.c.b16 %v5326, %v5318
    %v7471 = vpack.c.b16 %v5327, %v5319
    %v7472 = vpack.c.b16 %v5328, %v5320
    %v7473 = vpack.c.b16 %v5329, %v5321
    %v7474 = vpack.c.b16 %v5330, %v5322
    %v7475 = vpack.c.b16 %v5331, %v5323
    %v7476 = vpack.c.b16 %v5332, %v5324
    %v7477 = vpack.c.b16 %v5333, %v5325
    %v7478 = vpack.c.b16 %v5342, %v5334
    %v7479 = vpack.c.b16 %v5343, %v5335
    %v7480 = vpack.c.b16 %v5344, %v5336
    %v7481 = vpack.c.b16 %v5345, %v5337
    %v7482 = vpack.c.b16 %v5346, %v5338
    %v7483 = vpack.c.b16 %v5347, %v5339
    %v7484 = vpack.c.b16 %v5348, %v5340
    %v7485 = vpack.c.b16 %v5349, %v5341
    %v7486 = vpack.c.b16 %v5358, %v5350
    %v7487 = vpack.c.b16 %v5359, %v5351
    %v7488 = vpack.c.b16 %v5360, %v5352
    %v7489 = vpack.c.b16 %v5361, %v5353
    %v7490 = vpack.c.b16 %v5362, %v5354
    %v7491 = vpack.c.b16 %v5363, %v5355
    %v7492 = vpack.c.b16 %v5364, %v5356
    %v7493 = vpack.c.b16 %v5365, %v5357
    %v7494 = vpack.c.b16 %v5374, %v5366
    %v7495 = vpack.c.b16 %v5375, %v5367
    %v7496 = vpack.c.b16 %v5376, %v5368
    %v7497 = vpack.c.b16 %v5377, %v5369
    %v7498 = vpack.c.b16 %v5378, %v5370
    %v7499 = vpack.c.b16 %v5379, %v5371
    %v7500 = vpack.c.b16 %v5380, %v5372
    %v7501 = vpack.c.b16 %v5381, %v5373
    %v7502 = vpack.c.b16 %v5390, %v5382
    %v7503 = vpack.c.b16 %v5391, %v5383
    %v7504 = vpack.c.b16 %v5392, %v5384
    %v7505 = vpack.c.b16 %v5393, %v5385
    %v7506 = vpack.c.b16 %v5394, %v5386
    %v7507 = vpack.c.b16 %v5395, %v5387
    %v7508 = vpack.c.b16 %v5396, %v5388
    %v7509 = vpack.c.b16 %v5397, %v5389
    %v7510 = vpack.c.b16 %v5406, %v5398
    %v7511 = vpack.c.b16 %v5407, %v5399
    %v7512 = vpack.c.b16 %v5408, %v5400
    %v7513 = vpack.c.b16 %v5409, %v5401
    %v7514 = vpack.c.b16 %v5410, %v5402
    %v7515 = vpack.c.b16 %v5411, %v5403
    %v7516 = vpack.c.b16 %v5412, %v5404
    %v7517 = vpack.c.b16 %v5413, %v5405
    %v7518 = vpack.c.b16 %v5422, %v5414
    %v7519 = vpack.c.b16 %v5423, %v5415
    %v7520 = vpack.c.b16 %v5424, %v5416
    %v7521 = vpack.c.b16 %v5425, %v5417
    %v7522 = vpack.c.b16 %v5426, %v5418
    %v7523 = vpack.c.b16 %v5427, %v5419
    %v7524 = vpack.c.b16 %v5428, %v5420
    %v7525 = vpack.c.b16 %v5429, %v5421
    %v7526 = vpack.c.b16 %v5438, %v5430
    %v7527 = vpack.c.b16 %v5439, %v5431
    %v7528 = vpack.c.b16 %v5440, %v5432
    %v7529 = vpack.c.b16 %v5441, %v5433
    %v7530 = vpack.c.b16 %v5442, %v5434
    %v7531 = vpack.c.b16 %v5443, %v5435
    %v7532 = vpack.c.b16 %v5444, %v5436
    %v7533 = vpack.c.b16 %v5445, %v5437
    %v7534 = vpack.c.b16 %v5454, %v5446
    %v7535 = vpack.c.b16 %v5455, %v5447
    %v7536 = vpack.c.b16 %v5456, %v5448
    %v7537 = vpack.c.b16 %v5457, %v5449
    %v7538 = vpack.c.b16 %v5458, %v5450
    %v7539 = vpack.c.b16 %v5459, %v5451
    %v7540 = vpack.c.b16 %v5460, %v5452
    %v7541 = vpack.c.b16 %v5461, %v5453
    %v7542 = vpack.c.b16 %v5470, %v5462
    %v7543 = vpack.c.b16 %v5471, %v5463
    %v7544 = vpack.c.b16 %v5472, %v5464
    %v7545 = vpack.c.b16 %v5473, %v5465
    %v7546 = vpack.c.b16 %v5474, %v5466
    %v7547 = vpack.c.b16 %v5475, %v5467
    %v7548 = vpack.c.b16 %v5476, %v5468
    %v7549 = vpack.c.b16 %v5477, %v5469
    %v7550 = vpack.c.b16 %v5486, %v5478
    %v7551 = vpack.c.b16 %v5487, %v5479
    %v7552 = vpack.c.b16 %v5488, %v5480
    %v7553 = vpack.c.b16 %v5489, %v5481
    %v7554 = vpack.c.b16 %v5490, %v5482
    %v7555 = vpack.c.b16 %v5491, %v5483
    %v7556 = vpack.c.b16 %v5492, %v5484
    %v7557 = vpack.c.b16 %v5493, %v5485
    %v7558 = vpack.c.b16 %v5502, %v5494
    %v7559 = vpack.c.b16 %v5503, %v5495
    %v7560 = vpack.c.b16 %v5504, %v5496
    %v7561 = vpack.c.b16 %v5505, %v5497
    %v7562 = vpack.c.b16 %v5506, %v5498
    %v7563 = vpack.c.b16 %v5507, %v5499
    %v7564 = vpack.c.b16 %v5508, %v5500
    %v7565 = vpack.c.b16 %v5509, %v5501
    %v7566 = vpack.c.b16 %v5518, %v5510
    %v7567 = vpack.c.b16 %v5519, %v5511
    %v7568 = vpack.c.b16 %v5520, %v5512
    %v7569 = vpack.c.b16 %v5521, %v5513
    %v7570 = vpack.c.b16 %v5522, %v5514
    %v7571 = vpack.c.b16 %v5523, %v5515
    %v7572 = vpack.c.b16 %v5524, %v5516
    %v7573 = vpack.c.b16 %v5525, %v5517
    %v7574 = vpack.c.b16 %v5534, %v5526
    %v7575 = vpack.c.b16 %v5535, %v5527
    %v7576 = vpack.c.b16 %v5536, %v5528
    %v7577 = vpack.c.b16 %v5537, %v5529
    %v7578 = vpack.c.b16 %v5538, %v5530
    %v7579 = vpack.c.b16 %v5539, %v5531
    %v7580 = vpack.c.b16 %v5540, %v5532
    %v7581 = vpack.c.b16 %v5541, %v5533
    %v7582 = vpack.c.b16 %v5550, %v5542
    %v7583 = vpack.c.b16 %v5551, %v5543
    %v7584 = vpack.c.b16 %v5552, %v5544
    %v7585 = vpack.c.b16 %v5553, %v5545
    %v7586 = vpack.c.b16 %v5554, %v5546
    %v7587 = vpack.c.b16 %v5555, %v5547
    %v7588 = vpack.c.b16 %v5556, %v5548
    %v7589 = vpack.c.b16 %v5557, %v5549
    %v7590 = vpack.c.b16 %v5566, %v5558
    %v7591 = vpack.c.b16 %v5567, %v5559
    %v7592 = vpack.c.b16 %v5568, %v5560
    %v7593 = vpack.c.b16 %v5569, %v5561
    %v7594 = vpack.c.b16 %v5570, %v5562
    %v7595 = vpack.c.b16 %v5571, %v5563
    %v7596 = vpack.c.b16 %v5572, %v5564
    %v7597 = vpack.c.b16 %v5573, %v5565
    %v7598 = vpack.c.b16 %v5582, %v5574
    %v7599 = vpack.c.b16 %v5583, %v5575
    %v7600 = vpack.c.b16 %v5584, %v5576
    %v7601 = vpack.c.b16 %v5585, %v5577
    %v7602 = vpack.c.b16 %v5586, %v5578
    %v7603 = vpack.c.b16 %v5587, %v5579
    %v7604 = vpack.c.b16 %v5588, %v5580
    %v7605 = vpack.c.b16 %v5589, %v5581
    %v7606 = vpack.c.b16 %v5598, %v5590
    %v7607 = vpack.c.b16 %v5599, %v5591
    %v7608 = vpack.c.b16 %v5600, %v5592
    %v7609 = vpack.c.b16 %v5601, %v5593
    %v7610 = vpack.c.b16 %v5602, %v5594
    %v7611 = vpack.c.b16 %v5603, %v5595
    %v7612 = vpack.c.b16 %v5604, %v5596
    %v7613 = vpack.c.b16 %v5605, %v5597
    %v7614 = vpack.c.b16 %v5614, %v5606
    %v7615 = vpack.c.b16 %v5615, %v5607
    %v7616 = vpack.c.b16 %v5616, %v5608
    %v7617 = vpack.c.b16 %v5617, %v5609
    %v7618 = vpack.c.b16 %v5618, %v5610
    %v7619 = vpack.c.b16 %v5619, %v5611
    %v7620 = vpack.c.b16 %v5620, %v5612
    %v7621 = vpack.c.b16 %v5621, %v5613
    %v7622 = vpack.c.b16 %v5630, %v5622
    %v7623 = vpack.c.b16 %v5631, %v5623
    %v7624 = vpack.c.b16 %v5632, %v5624
    %v7625 = vpack.c.b16 %v5633, %v5625
    %v7626 = vpack.c.b16 %v5634, %v5626
    %v7627 = vpack.c.b16 %v5635, %v5627
    %v7628 = vpack.c.b16 %v5636, %v5628
    %v7629 = vpack.c.b16 %v5637, %v5629
    %v7630 = vpack.c.b16 %v5646, %v5638
    %v7631 = vpack.c.b16 %v5647, %v5639
    %v7632 = vpack.c.b16 %v5648, %v5640
    %v7633 = vpack.c.b16 %v5649, %v5641
    %v7634 = vpack.c.b16 %v5650, %v5642
    %v7635 = vpack.c.b16 %v5651, %v5643
    %v7636 = vpack.c.b16 %v5652, %v5644
    %v7637 = vpack.c.b16 %v5653, %v5645
    %v7638 = vpack.c.b16 %v5662, %v5654
    %v7639 = vpack.c.b16 %v5663, %v5655
    %v7640 = vpack.c.b16 %v5664, %v5656
    %v7641 = vpack.c.b16 %v5665, %v5657
    %v7642 = vpack.c.b16 %v5666, %v5658
    %v7643 = vpack.c.b16 %v5667, %v5659
    %v7644 = vpack.c.b16 %v5668, %v5660
    %v7645 = vpack.c.b16 %v5669, %v5661
    %v7646 = vpack.c.b16 %v5678, %v5670
    %v7647 = vpack.c.b16 %v5679, %v5671
    %v7648 = vpack.c.b16 %v5680, %v5672
    %v7649 = vpack.c.b16 %v5681, %v5673
    %v7650 = vpack.c.b16 %v5682, %v5674
    %v7651 = vpack.c.b16 %v5683, %v5675
    %v7652 = vpack.c.b16 %v5684, %v5676
    %v7653 = vpack.c.b16 %v5685, %v5677
    %v7654 = vpack.c.b16 %v5694, %v5686
    %v7655 = vpack.c.b16 %v5695, %v5687
    %v7656 = vpack.c.b16 %v5696, %v5688
    %v7657 = vpack.c.b16 %v5697, %v5689
    %v7658 = vpack.c.b16 %v5698, %v5690
    %v7659 = vpack.c.b16 %v5699, %v5691
    %v7660 = vpack.c.b16 %v5700, %v5692
    %v7661 = vpack.c.b16 %v5701, %v5693
    %v7662 = vpack.c.b16 %v5710, %v5702
    %v7663 = vpack.c.b16 %v5711, %v5703
    %v7664 = vpack.c.b16 %v5712, %v5704
    %v7665 = vpack.c.b16 %v5713, %v5705
    %v7666 = vpack.c.b16 %v5714, %v5706
    %v7667 = vpack.c.b16 %v5715, %v5707
    %v7668 = vpack.c.b16 %v5716, %v5708
    %v7669 = vpack.c.b16 %v5717, %v5709
    %v7670 = vpack.c.b16 %v5726, %v5718
    %v7671 = vpack.c.b16 %v5727, %v5719
    %v7672 = vpack.c.b16 %v5728, %v5720
    %v7673 = vpack.c.b16 %v5729, %v5721
    %v7674 = vpack.c.b16 %v5730, %v5722
    %v7675 = vpack.c.b16 %v5731, %v5723
    %v7676 = vpack.c.b16 %v5732, %v5724
    %v7677 = vpack.c.b16 %v5733, %v5725
    %v7678 = vpack.c.b16 %v5742, %v5734
    %v7679 = vpack.c.b16 %v5743, %v5735
    %v7680 = vpack.c.b16 %v5744, %v5736
    %v7681 = vpack.c.b16 %v5745, %v5737
    %v7682 = vpack.c.b16 %v5746, %v5738
    %v7683 = vpack.c.b16 %v5747, %v5739
    %v7684 = vpack.c.b16 %v5748, %v5740
    %v7685 = vpack.c.b16 %v5749, %v5741
    %v7686 = vpack.c.b16 %v5758, %v5750
    %v7687 = vpack.c.b16 %v5759, %v5751
    %v7688 = vpack.c.b16 %v5760, %v5752
    %v7689 = vpack.c.b16 %v5761, %v5753
    %v7690 = vpack.c.b16 %v5762, %v5754
    %v7691 = vpack.c.b16 %v5763, %v5755
    %v7692 = vpack.c.b16 %v5764, %v5756
    %v7693 = vpack.c.b16 %v5765, %v5757
    %v7694 = vpack.c.b16 %v5774, %v5766
    %v7695 = vpack.c.b16 %v5775, %v5767
    %v7696 = vpack.c.b16 %v5776, %v5768
    %v7697 = vpack.c.b16 %v5777, %v5769
    %v7698 = vpack.c.b16 %v5778, %v5770
    %v7699 = vpack.c.b16 %v5779, %v5771
    %v7700 = vpack.c.b16 %v5780, %v5772
    %v7701 = vpack.c.b16 %v5781, %v5773
    %v7702 = vpack.c.b16 %v5790, %v5782
    %v7703 = vpack.c.b16 %v5791, %v5783
    %v7704 = vpack.c.b16 %v5792, %v5784
    %v7705 = vpack.c.b16 %v5793, %v5785
    %v7706 = vpack.c.b16 %v5794, %v5786
    %v7707 = vpack.c.b16 %v5795, %v5787
    %v7708 = vpack.c.b16 %v5796, %v5788
    %v7709 = vpack.c.b16 %v5797, %v5789
    %v7710 = vpack.c.b16 %v5806, %v5798
    %v7711 = vpack.c.b16 %v5807, %v5799
    %v7712 = vpack.c.b16 %v5808, %v5800
    %v7713 = vpack.c.b16 %v5809, %v5801
    %v7714 = vpack.c.b16 %v5810, %v5802
    %v7715 = vpack.c.b16 %v5811, %v5803
    %v7716 = vpack.c.b16 %v5812, %v5804
    %v7717 = vpack.c.b16 %v5813, %v5805
    %v7718 = vpack.c.b16 %v5822, %v5814
    %v7719 = vpack.c.b16 %v5823, %v5815
    %v7720 = vpack.c.b16 %v5824, %v5816
    %v7721 = vpack.c.b16 %v5825, %v5817
    %v7722 = vpack.c.b16 %v5826, %v5818
    %v7723 = vpack.c.b16 %v5827, %v5819
    %v7724 = vpack.c.b16 %v5828, %v5820
    %v7725 = vpack.c.b16 %v5829, %v5821
    %v7726 = vpack.c.b16 %v5838, %v5830
    %v7727 = vpack.c.b16 %v5839, %v5831
    %v7728 = vpack.c.b16 %v5840, %v5832
    %v7729 = vpack.c.b16 %v5841, %v5833
    %v7730 = vpack.c.b16 %v5842, %v5834
    %v7731 = vpack.c.b16 %v5843, %v5835
    %v7732 = vpack.c.b16 %v5844, %v5836
    %v7733 = vpack.c.b16 %v5845, %v5837
    %v7734 = vpack.c.b16 %v5854, %v5846
    %v7735 = vpack.c.b16 %v5855, %v5847
    %v7736 = vpack.c.b16 %v5856, %v5848
    %v7737 = vpack.c.b16 %v5857, %v5849
    %v7738 = vpack.c.b16 %v5858, %v5850
    %v7739 = vpack.c.b16 %v5859, %v5851
    %v7740 = vpack.c.b16 %v5860, %v5852
    %v7741 = vpack.c.b16 %v5861, %v5853
    %v7742 = vpack.c.b16 %v5870, %v5862
    %v7743 = vpack.c.b16 %v5871, %v5863
    %v7744 = vpack.c.b16 %v5872, %v5864
    %v7745 = vpack.c.b16 %v5873, %v5865
    %v7746 = vpack.c.b16 %v5874, %v5866
    %v7747 = vpack.c.b16 %v5875, %v5867
    %v7748 = vpack.c.b16 %v5876, %v5868
    %v7749 = vpack.c.b16 %v5877, %v5869
    %v7750 = vpack.c.b16 %v5886, %v5878
    %v7751 = vpack.c.b16 %v5887, %v5879
    %v7752 = vpack.c.b16 %v5888, %v5880
    %v7753 = vpack.c.b16 %v5889, %v5881
    %v7754 = vpack.c.b16 %v5890, %v5882
    %v7755 = vpack.c.b16 %v5891, %v5883
    %v7756 = vpack.c.b16 %v5892, %v5884
    %v7757 = vpack.c.b16 %v5893, %v5885
    %v7758 = vpack.c.b16 %v5902, %v5894
    %v7759 = vpack.c.b16 %v5903, %v5895
    %v7760 = vpack.c.b16 %v5904, %v5896
    %v7761 = vpack.c.b16 %v5905, %v5897
    %v7762 = vpack.c.b16 %v5906, %v5898
    %v7763 = vpack.c.b16 %v5907, %v5899
    %v7764 = vpack.c.b16 %v5908, %v5900
    %v7765 = vpack.c.b16 %v5909, %v5901
    %v7766 = vpack.c.b16 %v5918, %v5910
    %v7767 = vpack.c.b16 %v5919, %v5911
    %v7768 = vpack.c.b16 %v5920, %v5912
    %v7769 = vpack.c.b16 %v5921, %v5913
    %v7770 = vpack.c.b16 %v5922, %v5914
    %v7771 = vpack.c.b16 %v5923, %v5915
    %v7772 = vpack.c.b16 %v5924, %v5916
    %v7773 = vpack.c.b16 %v5925, %v5917
    %v7774 = vpack.c.b16 %v5934, %v5926
    %v7775 = vpack.c.b16 %v5935, %v5927
    %v7776 = vpack.c.b16 %v5936, %v5928
    %v7777 = vpack.c.b16 %v5937, %v5929
    %v7778 = vpack.c.b16 %v5938, %v5930
    %v7779 = vpack.c.b16 %v5939, %v5931
    %v7780 = vpack.c.b16 %v5940, %v5932
    %v7781 = vpack.c.b16 %v5941, %v5933
    %v7782 = vpack.c.b16 %v5950, %v5942
    %v7783 = vpack.c.b16 %v5951, %v5943
    %v7784 = vpack.c.b16 %v5952, %v5944
    %v7785 = vpack.c.b16 %v5953, %v5945
    %v7786 = vpack.c.b16 %v5954, %v5946
    %v7787 = vpack.c.b16 %v5955, %v5947
    %v7788 = vpack.c.b16 %v5956, %v5948
    %v7789 = vpack.c.b16 %v5957, %v5949
    %v7790 = vpack.c.b16 %v5966, %v5958
    %v7791 = vpack.c.b16 %v5967, %v5959
    %v7792 = vpack.c.b16 %v5968, %v5960
    %v7793 = vpack.c.b16 %v5969, %v5961
    %v7794 = vpack.c.b16 %v5970, %v5962
    %v7795 = vpack.c.b16 %v5971, %v5963
    %v7796 = vpack.c.b16 %v5972, %v5964
    %v7797 = vpack.c.b16 %v5973, %v5965
    %v7798 = vpack.c.b16 %v5982, %v5974
    %v7799 = vpack.c.b16 %v5983, %v5975
    %v7800 = vpack.c.b16 %v5984, %v5976
    %v7801 = vpack.c.b16 %v5985, %v5977
    %v7802 = vpack.c.b16 %v5986, %v5978
    %v7803 = vpack.c.b16 %v5987, %v5979
    %v7804 = vpack.c.b16 %v5988, %v5980
    %v7805 = vpack.c.b16 %v5989, %v5981
    %v7806 = vpack.c.b16 %v5998, %v5990
    %v7807 = vpack.c.b16 %v5999, %v5991
    %v7808 = vpack.c.b16 %v6000, %v5992
    %v7809 = vpack.c.b16 %v6001, %v5993
    %v7810 = vpack.c.b16 %v6002, %v5994
    %v7811 = vpack.c.b16 %v6003, %v5995
    %v7812 = vpack.c.b16 %v6004, %v5996
    %v7813 = vpack.c.b16 %v6005, %v5997
    %v7814 = vpack.c.b16 %v6014, %v6006
    %v7815 = vpack.c.b16 %v6015, %v6007
    %v7816 = vpack.c.b16 %v6016, %v6008
    %v7817 = vpack.c.b16 %v6017, %v6009
    %v7818 = vpack.c.b16 %v6018, %v6010
    %v7819 = vpack.c.b16 %v6019, %v6011
    %v7820 = vpack.c.b16 %v6020, %v6012
    %v7821 = vpack.c.b16 %v6021, %v6013
    %v7822 = vpack.c.b16 %v6030, %v6022
    %v7823 = vpack.c.b16 %v6031, %v6023
    %v7824 = vpack.c.b16 %v6032, %v6024
    %v7825 = vpack.c.b16 %v6033, %v6025
    %v7826 = vpack.c.b16 %v6034, %v6026
    %v7827 = vpack.c.b16 %v6035, %v6027
    %v7828 = vpack.c.b16 %v6036, %v6028
    %v7829 = vpack.c.b16 %v6037, %v6029
    %v7830 = vpack.c.b16 %v6046, %v6038
    %v7831 = vpack.c.b16 %v6047, %v6039
    %v7832 = vpack.c.b16 %v6048, %v6040
    %v7833 = vpack.c.b16 %v6049, %v6041
    %v7834 = vpack.c.b16 %v6050, %v6042
    %v7835 = vpack.c.b16 %v6051, %v6043
    %v7836 = vpack.c.b16 %v6052, %v6044
    %v7837 = vpack.c.b16 %v6053, %v6045
    %v7838 = vpack.c.b16 %v6062, %v6054
    %v7839 = vpack.c.b16 %v6063, %v6055
    %v7840 = vpack.c.b16 %v6064, %v6056
    %v7841 = vpack.c.b16 %v6065, %v6057
    %v7842 = vpack.c.b16 %v6066, %v6058
    %v7843 = vpack.c.b16 %v6067, %v6059
    %v7844 = vpack.c.b16 %v6068, %v6060
    %v7845 = vpack.c.b16 %v6069, %v6061
    %v7846 = vpack.c.b16 %v6078, %v6070
    %v7847 = vpack.c.b16 %v6079, %v6071
    %v7848 = vpack.c.b16 %v6080, %v6072
    %v7849 = vpack.c.b16 %v6081, %v6073
    %v7850 = vpack.c.b16 %v6082, %v6074
    %v7851 = vpack.c.b16 %v6083, %v6075
    %v7852 = vpack.c.b16 %v6084, %v6076
    %v7853 = vpack.c.b16 %v6085, %v6077
    %v7854 = vpack.c.b16 %v6094, %v6086
    %v7855 = vpack.c.b16 %v6095, %v6087
    %v7856 = vpack.c.b16 %v6096, %v6088
    %v7857 = vpack.c.b16 %v6097, %v6089
    %v7858 = vpack.c.b16 %v6098, %v6090
    %v7859 = vpack.c.b16 %v6099, %v6091
    %v7860 = vpack.c.b16 %v6100, %v6092
    %v7861 = vpack.c.b16 %v6101, %v6093
    %v7862 = vpack.c.b16 %v6110, %v6102
    %v7863 = vpack.c.b16 %v6111, %v6103
    %v7864 = vpack.c.b16 %v6112, %v6104
    %v7865 = vpack.c.b16 %v6113, %v6105
    %v7866 = vpack.c.b16 %v6114, %v6106
    %v7867 = vpack.c.b16 %v6115, %v6107
    %v7868 = vpack.c.b16 %v6116, %v6108
    %v7869 = vpack.c.b16 %v6117, %v6109
    %v7870 = vpack.c.b16 %v6126, %v6118
    %v7871 = vpack.c.b16 %v6127, %v6119
    %v7872 = vpack.c.b16 %v6128, %v6120
    %v7873 = vpack.c.b16 %v6129, %v6121
    %v7874 = vpack.c.b16 %v6130, %v6122
    %v7875 = vpack.c.b16 %v6131, %v6123
    %v7876 = vpack.c.b16 %v6132, %v6124
    %v7877 = vpack.c.b16 %v6133, %v6125
    %v7878 = vpack.c.b16 %v6142, %v6134
    %v7879 = vpack.c.b16 %v6143, %v6135
    %v7880 = vpack.c.b16 %v6144, %v6136
    %v7881 = vpack.c.b16 %v6145, %v6137
    %v7882 = vpack.c.b16 %v6146, %v6138
    %v7883 = vpack.c.b16 %v6147, %v6139
    %v7884 = vpack.c.b16 %v6148, %v6140
    %v7885 = vpack.c.b16 %v6149, %v6141
    %v7886 = vpack.c.b16 %v6158, %v6150
    %v7887 = vpack.c.b16 %v6159, %v6151
    %v7888 = vpack.c.b16 %v6160, %v6152
    %v7889 = vpack.c.b16 %v6161, %v6153
    %v7890 = vpack.c.b16 %v6162, %v6154
    %v7891 = vpack.c.b16 %v6163, %v6155
    %v7892 = vpack.c.b16 %v6164, %v6156
    %v7893 = vpack.c.b16 %v6165, %v6157
    %v7894 = vpack.c.b16 %v6174, %v6166
    %v7895 = vpack.c.b16 %v6175, %v6167
    %v7896 = vpack.c.b16 %v6176, %v6168
    %v7897 = vpack.c.b16 %v6177, %v6169
    %v7898 = vpack.c.b16 %v6178, %v6170
    %v7899 = vpack.c.b16 %v6179, %v6171
    %v7900 = vpack.c.b16 %v6180, %v6172
    %v7901 = vpack.c.b16 %v6181, %v6173
    %v7902 = vpack.c.b16 %v6190, %v6182
    %v7903 = vpack.c.b16 %v6191, %v6183
    %v7904 = vpack.c.b16 %v6192, %v6184
    %v7905 = vpack.c.b16 %v6193, %v6185
    %v7906 = vpack.c.b16 %v6194, %v6186
    %v7907 = vpack.c.b16 %v6195, %v6187
    %v7908 = vpack.c.b16 %v6196, %v6188
    %v7909 = vpack.c.b16 %v6197, %v6189
    %v7910 = vpack.c.b16 %v6206, %v6198
    %v7911 = vpack.c.b16 %v6207, %v6199
    %v7912 = vpack.c.b16 %v6208, %v6200
    %v7913 = vpack.c.b16 %v6209, %v6201
    %v7914 = vpack.c.b16 %v6210, %v6202
    %v7915 = vpack.c.b16 %v6211, %v6203
    %v7916 = vpack.c.b16 %v6212, %v6204
    %v7917 = vpack.c.b16 %v6213, %v6205
    %v7918 = vpack.c.b16 %v6222, %v6214
    %v7919 = vpack.c.b16 %v6223, %v6215
    %v7920 = vpack.c.b16 %v6224, %v6216
    %v7921 = vpack.c.b16 %v6225, %v6217
    %v7922 = vpack.c.b16 %v6226, %v6218
    %v7923 = vpack.c.b16 %v6227, %v6219
    %v7924 = vpack.c.b16 %v6228, %v6220
    %v7925 = vpack.c.b16 %v6229, %v6221
    %v7926 = vpack.c.b16 %v6238, %v6230
    %v7927 = vpack.c.b16 %v6239, %v6231
    %v7928 = vpack.c.b16 %v6240, %v6232
    %v7929 = vpack.c.b16 %v6241, %v6233
    %v7930 = vpack.c.b16 %v6242, %v6234
    %v7931 = vpack.c.b16 %v6243, %v6235
    %v7932 = vpack.c.b16 %v6244, %v6236
    %v7933 = vpack.c.b16 %v6245, %v6237
    %v7934 = vpack.c.b16 %v6254, %v6246
    %v7935 = vpack.c.b16 %v6255, %v6247
    %v7936 = vpack.c.b16 %v6256, %v6248
    %v7937 = vpack.c.b16 %v6257, %v6249
    %v7938 = vpack.c.b16 %v6258, %v6250
    %v7939 = vpack.c.b16 %v6259, %v6251
    %v7940 = vpack.c.b16 %v6260, %v6252
    %v7941 = vpack.c.b16 %v6261, %v6253
    %v7942 = vpack.c.b16 %v6270, %v6262
    %v7943 = vpack.c.b16 %v6271, %v6263
    %v7944 = vpack.c.b16 %v6272, %v6264
    %v7945 = vpack.c.b16 %v6273, %v6265
    %v7946 = vpack.c.b16 %v6274, %v6266
    %v7947 = vpack.c.b16 %v6275, %v6267
    %v7948 = vpack.c.b16 %v6276, %v6268
    %v7949 = vpack.c.b16 %v6277, %v6269
    %v7950 = vpack.c.b16 %v6286, %v6278
    %v7951 = vpack.c.b16 %v6287, %v6279
    %v7952 = vpack.c.b16 %v6288, %v6280
    %v7953 = vpack.c.b16 %v6289, %v6281
    %v7954 = vpack.c.b16 %v6290, %v6282
    %v7955 = vpack.c.b16 %v6291, %v6283
    %v7956 = vpack.c.b16 %v6292, %v6284
    %v7957 = vpack.c.b16 %v6293, %v6285
    %v7958 = vpack.c.b16 %v6302, %v6294
    %v7959 = vpack.c.b16 %v6303, %v6295
    %v7960 = vpack.c.b16 %v6304, %v6296
    %v7961 = vpack.c.b16 %v6305, %v6297
    %v7962 = vpack.c.b16 %v6306, %v6298
    %v7963 = vpack.c.b16 %v6307, %v6299
    %v7964 = vpack.c.b16 %v6308, %v6300
    %v7965 = vpack.c.b16 %v6309, %v6301
    %v7966 = vpack.c.b16 %v6318, %v6310
    %v7967 = vpack.c.b16 %v6319, %v6311
    %v7968 = vpack.c.b16 %v6320, %v6312
    %v7969 = vpack.c.b16 %v6321, %v6313
    %v7970 = vpack.c.b16 %v6322, %v6314
    %v7971 = vpack.c.b16 %v6323, %v6315
    %v7972 = vpack.c.b16 %v6324, %v6316
    %v7973 = vpack.c.b16 %v6325, %v6317
    %v7974 = vpack.c.b16 %v6334, %v6326
    %v7975 = vpack.c.b16 %v6335, %v6327
    %v7976 = vpack.c.b16 %v6336, %v6328
    %v7977 = vpack.c.b16 %v6337, %v6329
    %v7978 = vpack.c.b16 %v6338, %v6330
    %v7979 = vpack.c.b16 %v6339, %v6331
    %v7980 = vpack.c.b16 %v6340, %v6332
    %v7981 = vpack.c.b16 %v6341, %v6333
    %v7982 = vpack.c.b16 %v6350, %v6342
    %v7983 = vpack.c.b16 %v6351, %v6343
    %v7984 = vpack.c.b16 %v6352, %v6344
    %v7985 = vpack.c.b16 %v6353, %v6345
    %v7986 = vpack.c.b16 %v6354, %v6346
    %v7987 = vpack.c.b16 %v6355, %v6347
    %v7988 = vpack.c.b16 %v6356, %v6348
    %v7989 = vpack.c.b16 %v6357, %v6349
    %v7990 = vpack.c.b16 %v6366, %v6358
    %v7991 = vpack.c.b16 %v6367, %v6359
    %v7992 = vpack.c.b16 %v6368, %v6360
    %v7993 = vpack.c.b16 %v6369, %v6361
    %v7994 = vpack.c.b16 %v6370, %v6362
    %v7995 = vpack.c.b16 %v6371, %v6363
    %v7996 = vpack.c.b16 %v6372, %v6364
    %v7997 = vpack.c.b16 %v6373, %v6365
    %v7998 = vpack.c.b16 %v6382, %v6374
    %v7999 = vpack.c.b16 %v6383, %v6375
    %v8000 = vpack.c.b16 %v6384, %v6376
    %v8001 = vpack.c.b16 %v6385, %v6377
    %v8002 = vpack.c.b16 %v6386, %v6378
    %v8003 = vpack.c.b16 %v6387, %v6379
    %v8004 = vpack.c.b16 %v6388, %v6380
    %v8005 = vpack.c.b16 %v6389, %v6381
    %v8006 = vpack.c.b16 %v6398, %v6390
    %v8007 = vpack.c.b16 %v6399, %v6391
    %v8008 = vpack.c.b16 %v6400, %v6392
    %v8009 = vpack.c.b16 %v6401, %v6393
    %v8010 = vpack.c.b16 %v6402, %v6394
    %v8011 = vpack.c.b16 %v6403, %v6395
    %v8012 = vpack.c.b16 %v6404, %v6396
    %v8013 = vpack.c.b16 %v6405, %v6397
    %v8014 = vpack.c.b16 %v6414, %v6406
    %v8015 = vpack.c.b16 %v6415, %v6407
    %v8016 = vpack.c.b16 %v6416, %v6408
    %v8017 = vpack.c.b16 %v6417, %v6409
    %v8018 = vpack.c.b16 %v6418, %v6410
    %v8019 = vpack.c.b16 %v6419, %v6411
    %v8020 = vpack.c.b16 %v6420, %v6412
    %v8021 = vpack.c.b16 %v6421, %v6413
    %v8022 = vpack.c.b16 %v6430, %v6422
    %v8023 = vpack.c.b16 %v6431, %v6423
    %v8024 = vpack.c.b16 %v6432, %v6424
    %v8025 = vpack.c.b16 %v6433, %v6425
    %v8026 = vpack.c.b16 %v6434, %v6426
    %v8027 = vpack.c.b16 %v6435, %v6427
    %v8028 = vpack.c.b16 %v6436, %v6428
    %v8029 = vpack.c.b16 %v6437, %v6429
    %v8030 = vpack.c.b16 %v6446, %v6438
    %v8031 = vpack.c.b16 %v6447, %v6439
    %v8032 = vpack.c.b16 %v6448, %v6440
    %v8033 = vpack.c.b16 %v6449, %v6441
    %v8034 = vpack.c.b16 %v6450, %v6442
    %v8035 = vpack.c.b16 %v6451, %v6443
    %v8036 = vpack.c.b16 %v6452, %v6444
    %v8037 = vpack.c.b16 %v6453, %v6445
    %v8038 = vpack.c.b16 %v6462, %v6454
    %v8039 = vpack.c.b16 %v6463, %v6455
    %v8040 = vpack.c.b16 %v6464, %v6456
    %v8041 = vpack.c.b16 %v6465, %v6457
    %v8042 = vpack.c.b16 %v6466, %v6458
    %v8043 = vpack.c.b16 %v6467, %v6459
    %v8044 = vpack.c.b16 %v6468, %v6460
    %v8045 = vpack.c.b16 %v6469, %v6461
    %v8046 = vpack.c.b16 %v6478, %v6470
    %v8047 = vpack.c.b16 %v6479, %v6471
    %v8048 = vpack.c.b16 %v6480, %v6472
    %v8049 = vpack.c.b16 %v6481, %v6473
    %v8050 = vpack.c.b16 %v6482, %v6474
    %v8051 = vpack.c.b16 %v6483, %v6475
    %v8052 = vpack.c.b16 %v6484, %v6476
    %v8053 = vpack.c.b16 %v6485, %v6477
    %vm9622 = vcmask 523264
    %v9624 = vsel %vm9622, %v1757, 0
    %9626 = vmatprep.subr.bf16.mxu0 %v6543
    %9627 = vmatpush1.bf16.msra.mxu0 %v6542
    %9628 = vmatprep.subr.bf16.mxu0 %v6535
    %9629 = vmatpush1.bf16.msra.mxu0 %v6534
    %9630 = vmatprep.subr.bf16.mxu0 %v6527
    %9631 = vmatpush1.bf16.msra.mxu0 %v6526
    %9632 = vmatprep.subr.bf16.mxu0 %v6519
    %9633 = vmatpush1.bf16.msra.mxu0 %v6518
    %9634 = vmatprep.subr.bf16.mxu0 %v6511
    %9635 = vmatpush1.bf16.msra.mxu0 %v6510
    %9636 = vmatprep.subr.bf16.mxu0 %v6503
    %9637 = vmatpush1.bf16.msra.mxu0 %v6502
    %9638 = vmatprep.subr.bf16.mxu0 %v6495
    %9639 = vmatpush1.bf16.msra.mxu0 %v6494
    %9640 = vmatprep.subr.bf16.mxu0 %v6487
    %9641 = vmatpush1.bf16.msra.mxu0 %v6486
    %9642 = vmatprep.subr.bf16.mxu0 %v6607
    %9643 = vmatpush2.bf16.msra.mxu0 %v6606
    %9644 = vmatprep.subr.bf16.mxu0 %v6599
    %9645 = vmatpush2.bf16.msra.mxu0 %v6598
    %9646 = vmatprep.subr.bf16.mxu0 %v6591
    %9647 = vmatpush2.bf16.msra.mxu0 %v6590
    %9648 = vmatprep.subr.bf16.mxu0 %v6583
    %9649 = vmatpush2.bf16.msra.mxu0 %v6582
    %9650 = vmatprep.subr.bf16.mxu0 %v6575
    %9651 = vmatpush2.bf16.msra.mxu0 %v6574
    %9652 = vmatprep.subr.bf16.mxu0 %v6567
    %9653 = vmatpush2.bf16.msra.mxu0 %v6566
    %9654 = vmatprep.subr.bf16.mxu0 %v6559
    %9655 = vmatpush2.bf16.msra.mxu0 %v6558
    %9656 = vmatprep.subr.bf16.mxu0 %v6551
    %9657 = vmatpush2.bf16.msra.mxu0 %v6550
    %9658 = vmatprep.mubr.bf16.mxu0 %v1734
    %9659 = vmatmul.mubr.bf16.gmra.mxu0 %v1733
    %v9660 = vpop.f32.mrf.mxu0
    %v9661 = vadd.f32 %v1658, %v9660
    %v9662 = vpop.f32.mrf.mxu0
    %v9663 = vadd.f32 %v1662, %v9662
    %v9664 = vpop.f32.mrf.mxu0
    %v9665 = vpop.f32.mrf.mxu0
    %9666 = vdwg.mxu0
    %9667 = vmatprep.subr.bf16.mxu0 %v6671
    %9668 = vmatpush1.bf16.msra.mxu0 %v6670
    %9669 = vmatprep.subr.bf16.mxu0 %v6663
    %9670 = vmatpush1.bf16.msra.mxu0 %v6662
    %9671 = vmatprep.subr.bf16.mxu0 %v6655
    %9672 = vmatpush1.bf16.msra.mxu0 %v6654
    %9673 = vmatprep.subr.bf16.mxu0 %v6647
    %9674 = vmatpush1.bf16.msra.mxu0 %v6646
    %9675 = vmatprep.subr.bf16.mxu0 %v6639
    %9676 = vmatpush1.bf16.msra.mxu0 %v6638
    %9677 = vmatprep.subr.bf16.mxu0 %v6631
    %9678 = vmatpush1.bf16.msra.mxu0 %v6630
    %9679 = vmatprep.subr.bf16.mxu0 %v6623
    %9680 = vmatpush1.bf16.msra.mxu0 %v6622
    %9681 = vmatprep.subr.bf16.mxu0 %v6615
    %9682 = vmatpush1.bf16.msra.mxu0 %v6614
    %9683 = vmatprep.subr.bf16.mxu0 %v6735
    %9684 = vmatpush2.bf16.msra.mxu0 %v6734
    %9685 = vmatprep.subr.bf16.mxu0 %v6727
    %9686 = vmatpush2.bf16.msra.mxu0 %v6726
    %9687 = vmatprep.subr.bf16.mxu0 %v6719
    %9688 = vmatpush2.bf16.msra.mxu0 %v6718
    %9689 = vmatprep.subr.bf16.mxu0 %v6711
    %9690 = vmatpush2.bf16.msra.mxu0 %v6710
    %9691 = vmatprep.subr.bf16.mxu0 %v6703
    %9692 = vmatpush2.bf16.msra.mxu0 %v6702
    %9693 = vmatprep.subr.bf16.mxu0 %v6695
    %9694 = vmatpush2.bf16.msra.mxu0 %v6694
    %9695 = vmatprep.subr.bf16.mxu0 %v6687
    %9696 = vmatpush2.bf16.msra.mxu0 %v6686
    %9697 = vmatprep.subr.bf16.mxu0 %v6679
    %9698 = vmatpush2.bf16.msra.mxu0 %v6678
    %9699 = vmatprep.mubr.bf16.mxu0 %v1736
    %9700 = vmatmul.mubr.bf16.gmra.mxu0 %v1735
    %v9701 = vpop.f32.mrf.mxu0
    %v9702 = vadd.f32 %v9661, %v9701
    %v9703 = vpop.f32.mrf.mxu0
    %v9704 = vadd.f32 %v9663, %v9703
    %v9705 = vpop.f32.mrf.mxu0
    %v9706 = vpop.f32.mrf.mxu0
    %9707 = vdwg.mxu0
    %9708 = vmatprep.subr.bf16.mxu0 %v6799
    %9709 = vmatpush1.bf16.msra.mxu0 %v6798
    %9710 = vmatprep.subr.bf16.mxu0 %v6791
    %9711 = vmatpush1.bf16.msra.mxu0 %v6790
    %9712 = vmatprep.subr.bf16.mxu0 %v6783
    %9713 = vmatpush1.bf16.msra.mxu0 %v6782
    %9714 = vmatprep.subr.bf16.mxu0 %v6775
    %9715 = vmatpush1.bf16.msra.mxu0 %v6774
    %9716 = vmatprep.subr.bf16.mxu0 %v6767
    %9717 = vmatpush1.bf16.msra.mxu0 %v6766
    %9718 = vmatprep.subr.bf16.mxu0 %v6759
    %9719 = vmatpush1.bf16.msra.mxu0 %v6758
    %9720 = vmatprep.subr.bf16.mxu0 %v6751
    %9721 = vmatpush1.bf16.msra.mxu0 %v6750
    %9722 = vmatprep.subr.bf16.mxu0 %v6743
    %9723 = vmatpush1.bf16.msra.mxu0 %v6742
    %9724 = vmatprep.subr.bf16.mxu0 %v6863
    %9725 = vmatpush2.bf16.msra.mxu0 %v6862
    %9726 = vmatprep.subr.bf16.mxu0 %v6855
    %9727 = vmatpush2.bf16.msra.mxu0 %v6854
    %9728 = vmatprep.subr.bf16.mxu0 %v6847
    %9729 = vmatpush2.bf16.msra.mxu0 %v6846
    %9730 = vmatprep.subr.bf16.mxu0 %v6839
    %9731 = vmatpush2.bf16.msra.mxu0 %v6838
    %9732 = vmatprep.subr.bf16.mxu0 %v6831
    %9733 = vmatpush2.bf16.msra.mxu0 %v6830
    %9734 = vmatprep.subr.bf16.mxu0 %v6823
    %9735 = vmatpush2.bf16.msra.mxu0 %v6822
    %9736 = vmatprep.subr.bf16.mxu0 %v6815
    %9737 = vmatpush2.bf16.msra.mxu0 %v6814
    %9738 = vmatprep.subr.bf16.mxu0 %v6807
    %9739 = vmatpush2.bf16.msra.mxu0 %v6806
    %9740 = vmatprep.mubr.bf16.mxu0 %v1738
    %9741 = vmatmul.mubr.bf16.gmra.mxu0 %v1737
    %v9742 = vpop.f32.mrf.mxu0
    %v9743 = vadd.f32 %v9702, %v9742
    %v9744 = vpop.f32.mrf.mxu0
    %v9745 = vadd.f32 %v9704, %v9744
    %v9746 = vpop.f32.mrf.mxu0
    %v9747 = vpop.f32.mrf.mxu0
    %9748 = vdwg.mxu0
    %9749 = vmatprep.subr.bf16.mxu0 %v6927
    %9750 = vmatpush1.bf16.msra.mxu0 %v6926
    %9751 = vmatprep.subr.bf16.mxu0 %v6919
    %9752 = vmatpush1.bf16.msra.mxu0 %v6918
    %9753 = vmatprep.subr.bf16.mxu0 %v6911
    %9754 = vmatpush1.bf16.msra.mxu0 %v6910
    %9755 = vmatprep.subr.bf16.mxu0 %v6903
    %9756 = vmatpush1.bf16.msra.mxu0 %v6902
    %9757 = vmatprep.subr.bf16.mxu0 %v6895
    %9758 = vmatpush1.bf16.msra.mxu0 %v6894
    %9759 = vmatprep.subr.bf16.mxu0 %v6887
    %9760 = vmatpush1.bf16.msra.mxu0 %v6886
    %9761 = vmatprep.subr.bf16.mxu0 %v6879
    %9762 = vmatpush1.bf16.msra.mxu0 %v6878
    %9763 = vmatprep.subr.bf16.mxu0 %v6871
    %9764 = vmatpush1.bf16.msra.mxu0 %v6870
    %9765 = vmatprep.subr.bf16.mxu0 %v6991
    %9766 = vmatpush2.bf16.msra.mxu0 %v6990
    %9767 = vmatprep.subr.bf16.mxu0 %v6983
    %9768 = vmatpush2.bf16.msra.mxu0 %v6982
    %9769 = vmatprep.subr.bf16.mxu0 %v6975
    %9770 = vmatpush2.bf16.msra.mxu0 %v6974
    %9771 = vmatprep.subr.bf16.mxu0 %v6967
    %9772 = vmatpush2.bf16.msra.mxu0 %v6966
    %9773 = vmatprep.subr.bf16.mxu0 %v6959
    %9774 = vmatpush2.bf16.msra.mxu0 %v6958
    %9775 = vmatprep.subr.bf16.mxu0 %v6951
    %9776 = vmatpush2.bf16.msra.mxu0 %v6950
    %9777 = vmatprep.subr.bf16.mxu0 %v6943
    %9778 = vmatpush2.bf16.msra.mxu0 %v6942
    %9779 = vmatprep.subr.bf16.mxu0 %v6935
    %9780 = vmatpush2.bf16.msra.mxu0 %v6934
    %9781 = vmatprep.mubr.bf16.mxu0 %v1740
    %9782 = vmatmul.mubr.bf16.gmra.mxu0 %v1739
    %v9783 = vpop.f32.mrf.mxu0
    %v9784 = vadd.f32 %v9743, %v9783
    %v9785 = vpop.f32.mrf.mxu0
    %v9786 = vadd.f32 %v9745, %v9785
    %v9787 = vpop.f32.mrf.mxu0
    %v9788 = vpop.f32.mrf.mxu0
    %9789 = vdwg.mxu0
    %9790 = vmatprep.subr.bf16.mxu0 %v7055
    %9791 = vmatpush1.bf16.msra.mxu0 %v7054
    %9792 = vmatprep.subr.bf16.mxu0 %v7047
    %9793 = vmatpush1.bf16.msra.mxu0 %v7046
    %9794 = vmatprep.subr.bf16.mxu0 %v7039
    %9795 = vmatpush1.bf16.msra.mxu0 %v7038
    %9796 = vmatprep.subr.bf16.mxu0 %v7031
    %9797 = vmatpush1.bf16.msra.mxu0 %v7030
    %9798 = vmatprep.subr.bf16.mxu0 %v7023
    %9799 = vmatpush1.bf16.msra.mxu0 %v7022
    %9800 = vmatprep.subr.bf16.mxu0 %v7015
    %9801 = vmatpush1.bf16.msra.mxu0 %v7014
    %9802 = vmatprep.subr.bf16.mxu0 %v7007
    %9803 = vmatpush1.bf16.msra.mxu0 %v7006
    %9804 = vmatprep.subr.bf16.mxu0 %v6999
    %9805 = vmatpush1.bf16.msra.mxu0 %v6998
    %9806 = vmatprep.subr.bf16.mxu0 %v7119
    %9807 = vmatpush2.bf16.msra.mxu0 %v7118
    %9808 = vmatprep.subr.bf16.mxu0 %v7111
    %9809 = vmatpush2.bf16.msra.mxu0 %v7110
    %9810 = vmatprep.subr.bf16.mxu0 %v7103
    %9811 = vmatpush2.bf16.msra.mxu0 %v7102
    %9812 = vmatprep.subr.bf16.mxu0 %v7095
    %9813 = vmatpush2.bf16.msra.mxu0 %v7094
    %9814 = vmatprep.subr.bf16.mxu0 %v7087
    %9815 = vmatpush2.bf16.msra.mxu0 %v7086
    %9816 = vmatprep.subr.bf16.mxu0 %v7079
    %9817 = vmatpush2.bf16.msra.mxu0 %v7078
    %9818 = vmatprep.subr.bf16.mxu0 %v7071
    %9819 = vmatpush2.bf16.msra.mxu0 %v7070
    %9820 = vmatprep.subr.bf16.mxu0 %v7063
    %9821 = vmatpush2.bf16.msra.mxu0 %v7062
    %9822 = vmatprep.mubr.bf16.mxu0 %v1742
    %9823 = vmatmul.mubr.bf16.gmra.mxu0 %v1741
    %v9824 = vpop.f32.mrf.mxu0
    %v9825 = vadd.f32 %v9784, %v9824
    %v9826 = vpop.f32.mrf.mxu0
    %v9827 = vadd.f32 %v9786, %v9826
    %v9828 = vpop.f32.mrf.mxu0
    %v9829 = vpop.f32.mrf.mxu0
    %9830 = vdwg.mxu0
    %9831 = vmatprep.subr.bf16.mxu0 %v7183
    %9832 = vmatpush1.bf16.msra.mxu0 %v7182
    %9833 = vmatprep.subr.bf16.mxu0 %v7175
    %9834 = vmatpush1.bf16.msra.mxu0 %v7174
    %9835 = vmatprep.subr.bf16.mxu0 %v7167
    %9836 = vmatpush1.bf16.msra.mxu0 %v7166
    %9837 = vmatprep.subr.bf16.mxu0 %v7159
    %9838 = vmatpush1.bf16.msra.mxu0 %v7158
    %9839 = vmatprep.subr.bf16.mxu0 %v7151
    %9840 = vmatpush1.bf16.msra.mxu0 %v7150
    %9841 = vmatprep.subr.bf16.mxu0 %v7143
    %9842 = vmatpush1.bf16.msra.mxu0 %v7142
    %9843 = vmatprep.subr.bf16.mxu0 %v7135
    %9844 = vmatpush1.bf16.msra.mxu0 %v7134
    %9845 = vmatprep.subr.bf16.mxu0 %v7127
    %9846 = vmatpush1.bf16.msra.mxu0 %v7126
    %9847 = vmatprep.subr.bf16.mxu0 %v7247
    %9848 = vmatpush2.bf16.msra.mxu0 %v7246
    %9849 = vmatprep.subr.bf16.mxu0 %v7239
    %9850 = vmatpush2.bf16.msra.mxu0 %v7238
    %9851 = vmatprep.subr.bf16.mxu0 %v7231
    %9852 = vmatpush2.bf16.msra.mxu0 %v7230
    %9853 = vmatprep.subr.bf16.mxu0 %v7223
    %9854 = vmatpush2.bf16.msra.mxu0 %v7222
    %9855 = vmatprep.subr.bf16.mxu0 %v7215
    %9856 = vmatpush2.bf16.msra.mxu0 %v7214
    %9857 = vmatprep.subr.bf16.mxu0 %v7207
    %9858 = vmatpush2.bf16.msra.mxu0 %v7206
    %9859 = vmatprep.subr.bf16.mxu0 %v7199
    %9860 = vmatpush2.bf16.msra.mxu0 %v7198
    %9861 = vmatprep.subr.bf16.mxu0 %v7191
    %9862 = vmatpush2.bf16.msra.mxu0 %v7190
    %9863 = vmatprep.mubr.bf16.mxu0 %v1744
    %9864 = vmatmul.mubr.bf16.gmra.mxu0 %v1743
    %v9865 = vpop.f32.mrf.mxu0
    %v9866 = vadd.f32 %v9825, %v9865
    %v9867 = vpop.f32.mrf.mxu0
    %v9868 = vadd.f32 %v9827, %v9867
    %v9869 = vpop.f32.mrf.mxu0
    %v9870 = vpop.f32.mrf.mxu0
    %9871 = vdwg.mxu0
    %9872 = vmatprep.subr.bf16.mxu0 %v7311
    %9873 = vmatpush1.bf16.msra.mxu0 %v7310
    %9874 = vmatprep.subr.bf16.mxu0 %v7303
    %9875 = vmatpush1.bf16.msra.mxu0 %v7302
    %9876 = vmatprep.subr.bf16.mxu0 %v7295
    %9877 = vmatpush1.bf16.msra.mxu0 %v7294
    %9878 = vmatprep.subr.bf16.mxu0 %v7287
    %9879 = vmatpush1.bf16.msra.mxu0 %v7286
    %9880 = vmatprep.subr.bf16.mxu0 %v7279
    %9881 = vmatpush1.bf16.msra.mxu0 %v7278
    %9882 = vmatprep.subr.bf16.mxu0 %v7271
    %9883 = vmatpush1.bf16.msra.mxu0 %v7270
    %9884 = vmatprep.subr.bf16.mxu0 %v7263
    %9885 = vmatpush1.bf16.msra.mxu0 %v7262
    %9886 = vmatprep.subr.bf16.mxu0 %v7255
    %9887 = vmatpush1.bf16.msra.mxu0 %v7254
    %9888 = vmatprep.subr.bf16.mxu0 %v7375
    %9889 = vmatpush2.bf16.msra.mxu0 %v7374
    %9890 = vmatprep.subr.bf16.mxu0 %v7367
    %9891 = vmatpush2.bf16.msra.mxu0 %v7366
    %9892 = vmatprep.subr.bf16.mxu0 %v7359
    %9893 = vmatpush2.bf16.msra.mxu0 %v7358
    %9894 = vmatprep.subr.bf16.mxu0 %v7351
    %9895 = vmatpush2.bf16.msra.mxu0 %v7350
    %9896 = vmatprep.subr.bf16.mxu0 %v7343
    %9897 = vmatpush2.bf16.msra.mxu0 %v7342
    %9898 = vmatprep.subr.bf16.mxu0 %v7335
    %9899 = vmatpush2.bf16.msra.mxu0 %v7334
    %9900 = vmatprep.subr.bf16.mxu0 %v7327
    %9901 = vmatpush2.bf16.msra.mxu0 %v7326
    %9902 = vmatprep.subr.bf16.mxu0 %v7319
    %9903 = vmatpush2.bf16.msra.mxu0 %v7318
    %9904 = vmatprep.mubr.bf16.mxu0 %v1746
    %9905 = vmatmul.mubr.bf16.gmra.mxu0 %v1745
    %v9906 = vpop.f32.mrf.mxu0
    %v9907 = vadd.f32 %v9866, %v9906
    %v9908 = vpop.f32.mrf.mxu0
    %v9909 = vadd.f32 %v9868, %v9908
    %v9910 = vpop.f32.mrf.mxu0
    %v9911 = vpop.f32.mrf.mxu0
    %9912 = vdwg.mxu0
    %9913 = vmatprep.subr.bf16.mxu0 %v7439
    %9914 = vmatpush1.bf16.msra.mxu0 %v7438
    %9915 = vmatprep.subr.bf16.mxu0 %v7431
    %9916 = vmatpush1.bf16.msra.mxu0 %v7430
    %9917 = vmatprep.subr.bf16.mxu0 %v7423
    %9918 = vmatpush1.bf16.msra.mxu0 %v7422
    %9919 = vmatprep.subr.bf16.mxu0 %v7415
    %9920 = vmatpush1.bf16.msra.mxu0 %v7414
    %9921 = vmatprep.subr.bf16.mxu0 %v7407
    %9922 = vmatpush1.bf16.msra.mxu0 %v7406
    %9923 = vmatprep.subr.bf16.mxu0 %v7399
    %9924 = vmatpush1.bf16.msra.mxu0 %v7398
    %9925 = vmatprep.subr.bf16.mxu0 %v7391
    %9926 = vmatpush1.bf16.msra.mxu0 %v7390
    %9927 = vmatprep.subr.bf16.mxu0 %v7383
    %9928 = vmatpush1.bf16.msra.mxu0 %v7382
    %9929 = vmatprep.subr.bf16.mxu0 %v7503
    %9930 = vmatpush2.bf16.msra.mxu0 %v7502
    %9931 = vmatprep.subr.bf16.mxu0 %v7495
    %9932 = vmatpush2.bf16.msra.mxu0 %v7494
    %9933 = vmatprep.subr.bf16.mxu0 %v7487
    %9934 = vmatpush2.bf16.msra.mxu0 %v7486
    %9935 = vmatprep.subr.bf16.mxu0 %v7479
    %9936 = vmatpush2.bf16.msra.mxu0 %v7478
    %9937 = vmatprep.subr.bf16.mxu0 %v7471
    %9938 = vmatpush2.bf16.msra.mxu0 %v7470
    %9939 = vmatprep.subr.bf16.mxu0 %v7463
    %9940 = vmatpush2.bf16.msra.mxu0 %v7462
    %9941 = vmatprep.subr.bf16.mxu0 %v7455
    %9942 = vmatpush2.bf16.msra.mxu0 %v7454
    %9943 = vmatprep.subr.bf16.mxu0 %v7447
    %9944 = vmatpush2.bf16.msra.mxu0 %v7446
    %9945 = vmatprep.mubr.bf16.mxu0 %v1748
    %9946 = vmatmul.mubr.bf16.gmra.mxu0 %v1747
    %v9947 = vpop.f32.mrf.mxu0
    %v9948 = vadd.f32 %v9907, %v9947
    %v9949 = vpop.f32.mrf.mxu0
    %v9950 = vadd.f32 %v9909, %v9949
    %v9951 = vpop.f32.mrf.mxu0
    %v9952 = vpop.f32.mrf.mxu0
    %9953 = vdwg.mxu0
    %9954 = vmatprep.subr.bf16.mxu0 %v7567
    %9955 = vmatpush1.bf16.msra.mxu0 %v7566
    %9956 = vmatprep.subr.bf16.mxu0 %v7559
    %9957 = vmatpush1.bf16.msra.mxu0 %v7558
    %9958 = vmatprep.subr.bf16.mxu0 %v7551
    %9959 = vmatpush1.bf16.msra.mxu0 %v7550
    %9960 = vmatprep.subr.bf16.mxu0 %v7543
    %9961 = vmatpush1.bf16.msra.mxu0 %v7542
    %9962 = vmatprep.subr.bf16.mxu0 %v7535
    %9963 = vmatpush1.bf16.msra.mxu0 %v7534
    %9964 = vmatprep.subr.bf16.mxu0 %v7527
    %9965 = vmatpush1.bf16.msra.mxu0 %v7526
    %9966 = vmatprep.subr.bf16.mxu0 %v7519
    %9967 = vmatpush1.bf16.msra.mxu0 %v7518
    %9968 = vmatprep.subr.bf16.mxu0 %v7511
    %9969 = vmatpush1.bf16.msra.mxu0 %v7510
    %9970 = vmatprep.subr.bf16.mxu0 %v7631
    %9971 = vmatpush2.bf16.msra.mxu0 %v7630
    %9972 = vmatprep.subr.bf16.mxu0 %v7623
    %9973 = vmatpush2.bf16.msra.mxu0 %v7622
    %9974 = vmatprep.subr.bf16.mxu0 %v7615
    %9975 = vmatpush2.bf16.msra.mxu0 %v7614
    %9976 = vmatprep.subr.bf16.mxu0 %v7607
    %9977 = vmatpush2.bf16.msra.mxu0 %v7606
    %9978 = vmatprep.subr.bf16.mxu0 %v7599
    %9979 = vmatpush2.bf16.msra.mxu0 %v7598
    %9980 = vmatprep.subr.bf16.mxu0 %v7591
    %9981 = vmatpush2.bf16.msra.mxu0 %v7590
    %9982 = vmatprep.subr.bf16.mxu0 %v7583
    %9983 = vmatpush2.bf16.msra.mxu0 %v7582
    %9984 = vmatprep.subr.bf16.mxu0 %v7575
    %9985 = vmatpush2.bf16.msra.mxu0 %v7574
    %9986 = vmatprep.mubr.bf16.mxu0 %v1750
    %9987 = vmatmul.mubr.bf16.gmra.mxu0 %v1749
    %v9988 = vpop.f32.mrf.mxu0
    %v9989 = vadd.f32 %v9948, %v9988
    %v9990 = vpop.f32.mrf.mxu0
    %v9991 = vadd.f32 %v9950, %v9990
    %v9992 = vpop.f32.mrf.mxu0
    %v9993 = vpop.f32.mrf.mxu0
    %9994 = vdwg.mxu0
    %9995 = vmatprep.subr.bf16.mxu0 %v7695
    %9996 = vmatpush1.bf16.msra.mxu0 %v7694
    %9997 = vmatprep.subr.bf16.mxu0 %v7687
    %9998 = vmatpush1.bf16.msra.mxu0 %v7686
    %9999 = vmatprep.subr.bf16.mxu0 %v7679
    %10000 = vmatpush1.bf16.msra.mxu0 %v7678
    %10001 = vmatprep.subr.bf16.mxu0 %v7671
    %10002 = vmatpush1.bf16.msra.mxu0 %v7670
    %10003 = vmatprep.subr.bf16.mxu0 %v7663
    %10004 = vmatpush1.bf16.msra.mxu0 %v7662
    %10005 = vmatprep.subr.bf16.mxu0 %v7655
    %10006 = vmatpush1.bf16.msra.mxu0 %v7654
    %10007 = vmatprep.subr.bf16.mxu0 %v7647
    %10008 = vmatpush1.bf16.msra.mxu0 %v7646
    %10009 = vmatprep.subr.bf16.mxu0 %v7639
    %10010 = vmatpush1.bf16.msra.mxu0 %v7638
    %10011 = vmatprep.subr.bf16.mxu0 %v7759
    %10012 = vmatpush2.bf16.msra.mxu0 %v7758
    %10013 = vmatprep.subr.bf16.mxu0 %v7751
    %10014 = vmatpush2.bf16.msra.mxu0 %v7750
    %10015 = vmatprep.subr.bf16.mxu0 %v7743
    %10016 = vmatpush2.bf16.msra.mxu0 %v7742
    %10017 = vmatprep.subr.bf16.mxu0 %v7735
    %10018 = vmatpush2.bf16.msra.mxu0 %v7734
    %10019 = vmatprep.subr.bf16.mxu0 %v7727
    %10020 = vmatpush2.bf16.msra.mxu0 %v7726
    %10021 = vmatprep.subr.bf16.mxu0 %v7719
    %10022 = vmatpush2.bf16.msra.mxu0 %v7718
    %10023 = vmatprep.subr.bf16.mxu0 %v7711
    %10024 = vmatpush2.bf16.msra.mxu0 %v7710
    %10025 = vmatprep.subr.bf16.mxu0 %v7703
    %10026 = vmatpush2.bf16.msra.mxu0 %v7702
    %10027 = vmatprep.mubr.bf16.mxu0 %v1752
    %10028 = vmatmul.mubr.bf16.gmra.mxu0 %v1751
    %v10029 = vpop.f32.mrf.mxu0
    %v10030 = vadd.f32 %v9989, %v10029
    %v10031 = vpop.f32.mrf.mxu0
    %v10032 = vadd.f32 %v9991, %v10031
    %v10033 = vpop.f32.mrf.mxu0
    %v10034 = vpop.f32.mrf.mxu0
    %10035 = vdwg.mxu0
    %10036 = vmatprep.subr.bf16.mxu0 %v7823
    %10037 = vmatpush1.bf16.msra.mxu0 %v7822
    %10038 = vmatprep.subr.bf16.mxu0 %v7815
    %10039 = vmatpush1.bf16.msra.mxu0 %v7814
    %10040 = vmatprep.subr.bf16.mxu0 %v7807
    %10041 = vmatpush1.bf16.msra.mxu0 %v7806
    %10042 = vmatprep.subr.bf16.mxu0 %v7799
    %10043 = vmatpush1.bf16.msra.mxu0 %v7798
    %10044 = vmatprep.subr.bf16.mxu0 %v7791
    %10045 = vmatpush1.bf16.msra.mxu0 %v7790
    %10046 = vmatprep.subr.bf16.mxu0 %v7783
    %10047 = vmatpush1.bf16.msra.mxu0 %v7782
    %10048 = vmatprep.subr.bf16.mxu0 %v7775
    %10049 = vmatpush1.bf16.msra.mxu0 %v7774
    %10050 = vmatprep.subr.bf16.mxu0 %v7767
    %10051 = vmatpush1.bf16.msra.mxu0 %v7766
    %10052 = vmatprep.subr.bf16.mxu0 %v7887
    %10053 = vmatpush2.bf16.msra.mxu0 %v7886
    %10054 = vmatprep.subr.bf16.mxu0 %v7879
    %10055 = vmatpush2.bf16.msra.mxu0 %v7878
    %10056 = vmatprep.subr.bf16.mxu0 %v7871
    %10057 = vmatpush2.bf16.msra.mxu0 %v7870
    %10058 = vmatprep.subr.bf16.mxu0 %v7863
    %10059 = vmatpush2.bf16.msra.mxu0 %v7862
    %10060 = vmatprep.subr.bf16.mxu0 %v7855
    %10061 = vmatpush2.bf16.msra.mxu0 %v7854
    %10062 = vmatprep.subr.bf16.mxu0 %v7847
    %10063 = vmatpush2.bf16.msra.mxu0 %v7846
    %10064 = vmatprep.subr.bf16.mxu0 %v7839
    %10065 = vmatpush2.bf16.msra.mxu0 %v7838
    %10066 = vmatprep.subr.bf16.mxu0 %v7831
    %10067 = vmatpush2.bf16.msra.mxu0 %v7830
    %10068 = vmatprep.mubr.bf16.mxu0 %v1754
    %10069 = vmatmul.mubr.bf16.gmra.mxu0 %v1753
    %v10070 = vpop.f32.mrf.mxu0
    %v10071 = vadd.f32 %v10030, %v10070
    %v10072 = vpop.f32.mrf.mxu0
    %v10073 = vadd.f32 %v10032, %v10072
    %v10074 = vpop.f32.mrf.mxu0
    %v10075 = vpop.f32.mrf.mxu0
    %10076 = vdwg.mxu0
    %10077 = vmatprep.subr.bf16.mxu0 %v7951
    %10078 = vmatpush1.bf16.msra.mxu0 %v7950
    %10079 = vmatprep.subr.bf16.mxu0 %v7943
    %10080 = vmatpush1.bf16.msra.mxu0 %v7942
    %10081 = vmatprep.subr.bf16.mxu0 %v7935
    %10082 = vmatpush1.bf16.msra.mxu0 %v7934
    %10083 = vmatprep.subr.bf16.mxu0 %v7927
    %10084 = vmatpush1.bf16.msra.mxu0 %v7926
    %10085 = vmatprep.subr.bf16.mxu0 %v7919
    %10086 = vmatpush1.bf16.msra.mxu0 %v7918
    %10087 = vmatprep.subr.bf16.mxu0 %v7911
    %10088 = vmatpush1.bf16.msra.mxu0 %v7910
    %10089 = vmatprep.subr.bf16.mxu0 %v7903
    %10090 = vmatpush1.bf16.msra.mxu0 %v7902
    %10091 = vmatprep.subr.bf16.mxu0 %v7895
    %10092 = vmatpush1.bf16.msra.mxu0 %v7894
    %10093 = vmatprep.subr.bf16.mxu0 %v8015
    %10094 = vmatpush2.bf16.msra.mxu0 %v8014
    %10095 = vmatprep.subr.bf16.mxu0 %v8007
    %10096 = vmatpush2.bf16.msra.mxu0 %v8006
    %10097 = vmatprep.subr.bf16.mxu0 %v7999
    %10098 = vmatpush2.bf16.msra.mxu0 %v7998
    %10099 = vmatprep.subr.bf16.mxu0 %v7991
    %10100 = vmatpush2.bf16.msra.mxu0 %v7990
    %10101 = vmatprep.subr.bf16.mxu0 %v7983
    %10102 = vmatpush2.bf16.msra.mxu0 %v7982
    %10103 = vmatprep.subr.bf16.mxu0 %v7975
    %10104 = vmatpush2.bf16.msra.mxu0 %v7974
    %10105 = vmatprep.subr.bf16.mxu0 %v7967
    %10106 = vmatpush2.bf16.msra.mxu0 %v7966
    %10107 = vmatprep.subr.bf16.mxu0 %v7959
    %10108 = vmatpush2.bf16.msra.mxu0 %v7958
    %10109 = vmatprep.mubr.bf16.mxu0 %v1756
    %10110 = vmatmul.mubr.bf16.gmra.mxu0 %v1755
    %v10111 = vpop.f32.mrf.mxu0
    %v10112 = vadd.f32 %v10071, %v10111
    %v10113 = vpop.f32.mrf.mxu0
    %v10114 = vadd.f32 %v10073, %v10113
    %v10115 = vpop.f32.mrf.mxu0
    %v10116 = vpop.f32.mrf.mxu0
    %10117 = vdwg.mxu0
    %10118 = vmatprep.subr.bf16.mxu0 0
    %10119 = vmatpush1.bf16.msra.mxu0 0
    %10120 = vmatprep.subr.bf16.mxu0 0
    %10121 = vmatpush1.bf16.msra.mxu0 0
    %10122 = vmatprep.subr.bf16.mxu0 0
    %10123 = vmatpush1.bf16.msra.mxu0 0
    %10124 = vmatprep.subr.bf16.mxu0 0
    %10125 = vmatpush1.bf16.msra.mxu0 0
    %10126 = vmatprep.subr.bf16.mxu0 %v8047
    %10127 = vmatpush1.bf16.msra.mxu0 %v8046
    %10128 = vmatprep.subr.bf16.mxu0 %v8039
    %10129 = vmatpush1.bf16.msra.mxu0 %v8038
    %10130 = vmatprep.subr.bf16.mxu0 %v8031
    %10131 = vmatpush1.bf16.msra.mxu0 %v8030
    %10132 = vmatprep.subr.bf16.mxu0 %v8023
    %10133 = vmatpush1.bf16.msra.mxu0 %v8022
    %10134 = vmatprep.subr.bf16.mxu0 0
    %10135 = vmatpush2.bf16.msra.mxu0 0
    %10136 = vmatprep.subr.bf16.mxu0 0
    %10137 = vmatpush2.bf16.msra.mxu0 0
    %10138 = vmatprep.subr.bf16.mxu0 0
    %10139 = vmatpush2.bf16.msra.mxu0 0
    %10140 = vmatprep.subr.bf16.mxu0 0
    %10141 = vmatpush2.bf16.msra.mxu0 0
    %10142 = vmatprep.subr.bf16.mxu0 0
    %10143 = vmatpush2.bf16.msra.mxu0 0
    %10144 = vmatprep.subr.bf16.mxu0 0
    %10145 = vmatpush2.bf16.msra.mxu0 0
    %10146 = vmatprep.subr.bf16.mxu0 0
    %10147 = vmatpush2.bf16.msra.mxu0 0
    %10148 = vmatprep.subr.bf16.mxu0 0
    %10149 = vmatpush2.bf16.msra.mxu0 0
    %10150 = vmatprep.mubr.bf16.mxu0 0
    %10151 = vmatmul.mubr.bf16.gmra.mxu0 %v9624
    %v10152 = vpop.f32.mrf.mxu0
    %v10153 = vadd.f32 %v10112, %v10152
    %v10154 = vpop.f32.mrf.mxu0
    %v10155 = vadd.f32 %v10114, %v10154
    %v10156 = vpop.f32.mrf.mxu0
    %v10157 = vpop.f32.mrf.mxu0
    %10158 = vdwg.mxu0
    %10159 = vmatprep.subr.bf16.mxu0 %v6545
    %10160 = vmatpush1.bf16.msra.mxu0 %v6544
    %10161 = vmatprep.subr.bf16.mxu0 %v6537
    %10162 = vmatpush1.bf16.msra.mxu0 %v6536
    %10163 = vmatprep.subr.bf16.mxu0 %v6529
    %10164 = vmatpush1.bf16.msra.mxu0 %v6528
    %10165 = vmatprep.subr.bf16.mxu0 %v6521
    %10166 = vmatpush1.bf16.msra.mxu0 %v6520
    %10167 = vmatprep.subr.bf16.mxu0 %v6513
    %10168 = vmatpush1.bf16.msra.mxu0 %v6512
    %10169 = vmatprep.subr.bf16.mxu0 %v6505
    %10170 = vmatpush1.bf16.msra.mxu0 %v6504
    %10171 = vmatprep.subr.bf16.mxu0 %v6497
    %10172 = vmatpush1.bf16.msra.mxu0 %v6496
    %10173 = vmatprep.subr.bf16.mxu0 %v6489
    %10174 = vmatpush1.bf16.msra.mxu0 %v6488
    %10175 = vmatprep.subr.bf16.mxu0 %v6609
    %10176 = vmatpush2.bf16.msra.mxu0 %v6608
    %10177 = vmatprep.subr.bf16.mxu0 %v6601
    %10178 = vmatpush2.bf16.msra.mxu0 %v6600
    %10179 = vmatprep.subr.bf16.mxu0 %v6593
    %10180 = vmatpush2.bf16.msra.mxu0 %v6592
    %10181 = vmatprep.subr.bf16.mxu0 %v6585
    %10182 = vmatpush2.bf16.msra.mxu0 %v6584
    %10183 = vmatprep.subr.bf16.mxu0 %v6577
    %10184 = vmatpush2.bf16.msra.mxu0 %v6576
    %10185 = vmatprep.subr.bf16.mxu0 %v6569
    %10186 = vmatpush2.bf16.msra.mxu0 %v6568
    %10187 = vmatprep.subr.bf16.mxu0 %v6561
    %10188 = vmatpush2.bf16.msra.mxu0 %v6560
    %10189 = vmatprep.subr.bf16.mxu0 %v6553
    %10190 = vmatpush2.bf16.msra.mxu0 %v6552
    %10191 = vmatprep.mubr.bf16.mxu0 %v1734
    %10192 = vmatmul.mubr.bf16.gmra.mxu0 %v1733
    %v10193 = vpop.f32.mrf.mxu0
    %v10194 = vadd.f32 %v1666, %v10193
    %v10195 = vpop.f32.mrf.mxu0
    %v10196 = vadd.f32 %v1670, %v10195
    %v10197 = vpop.f32.mrf.mxu0
    %v10198 = vpop.f32.mrf.mxu0
    %10199 = vdwg.mxu0
    %10200 = vmatprep.subr.bf16.mxu0 %v6673
    %10201 = vmatpush1.bf16.msra.mxu0 %v6672
    %10202 = vmatprep.subr.bf16.mxu0 %v6665
    %10203 = vmatpush1.bf16.msra.mxu0 %v6664
    %10204 = vmatprep.subr.bf16.mxu0 %v6657
    %10205 = vmatpush1.bf16.msra.mxu0 %v6656
    %10206 = vmatprep.subr.bf16.mxu0 %v6649
    %10207 = vmatpush1.bf16.msra.mxu0 %v6648
    %10208 = vmatprep.subr.bf16.mxu0 %v6641
    %10209 = vmatpush1.bf16.msra.mxu0 %v6640
    %10210 = vmatprep.subr.bf16.mxu0 %v6633
    %10211 = vmatpush1.bf16.msra.mxu0 %v6632
    %10212 = vmatprep.subr.bf16.mxu0 %v6625
    %10213 = vmatpush1.bf16.msra.mxu0 %v6624
    %10214 = vmatprep.subr.bf16.mxu0 %v6617
    %10215 = vmatpush1.bf16.msra.mxu0 %v6616
    %10216 = vmatprep.subr.bf16.mxu0 %v6737
    %10217 = vmatpush2.bf16.msra.mxu0 %v6736
    %10218 = vmatprep.subr.bf16.mxu0 %v6729
    %10219 = vmatpush2.bf16.msra.mxu0 %v6728
    %10220 = vmatprep.subr.bf16.mxu0 %v6721
    %10221 = vmatpush2.bf16.msra.mxu0 %v6720
    %10222 = vmatprep.subr.bf16.mxu0 %v6713
    %10223 = vmatpush2.bf16.msra.mxu0 %v6712
    %10224 = vmatprep.subr.bf16.mxu0 %v6705
    %10225 = vmatpush2.bf16.msra.mxu0 %v6704
    %10226 = vmatprep.subr.bf16.mxu0 %v6697
    %10227 = vmatpush2.bf16.msra.mxu0 %v6696
    %10228 = vmatprep.subr.bf16.mxu0 %v6689
    %10229 = vmatpush2.bf16.msra.mxu0 %v6688
    %10230 = vmatprep.subr.bf16.mxu0 %v6681
    %10231 = vmatpush2.bf16.msra.mxu0 %v6680
    %10232 = vmatprep.mubr.bf16.mxu0 %v1736
    %10233 = vmatmul.mubr.bf16.gmra.mxu0 %v1735
    %v10234 = vpop.f32.mrf.mxu0
    %v10235 = vadd.f32 %v10194, %v10234
    %v10236 = vpop.f32.mrf.mxu0
    %v10237 = vadd.f32 %v10196, %v10236
    %v10238 = vpop.f32.mrf.mxu0
    %v10239 = vpop.f32.mrf.mxu0
    %10240 = vdwg.mxu0
    %10241 = vmatprep.subr.bf16.mxu0 %v6801
    %10242 = vmatpush1.bf16.msra.mxu0 %v6800
    %10243 = vmatprep.subr.bf16.mxu0 %v6793
    %10244 = vmatpush1.bf16.msra.mxu0 %v6792
    %10245 = vmatprep.subr.bf16.mxu0 %v6785
    %10246 = vmatpush1.bf16.msra.mxu0 %v6784
    %10247 = vmatprep.subr.bf16.mxu0 %v6777
    %10248 = vmatpush1.bf16.msra.mxu0 %v6776
    %10249 = vmatprep.subr.bf16.mxu0 %v6769
    %10250 = vmatpush1.bf16.msra.mxu0 %v6768
    %10251 = vmatprep.subr.bf16.mxu0 %v6761
    %10252 = vmatpush1.bf16.msra.mxu0 %v6760
    %10253 = vmatprep.subr.bf16.mxu0 %v6753
    %10254 = vmatpush1.bf16.msra.mxu0 %v6752
    %10255 = vmatprep.subr.bf16.mxu0 %v6745
    %10256 = vmatpush1.bf16.msra.mxu0 %v6744
    %10257 = vmatprep.subr.bf16.mxu0 %v6865
    %10258 = vmatpush2.bf16.msra.mxu0 %v6864
    %10259 = vmatprep.subr.bf16.mxu0 %v6857
    %10260 = vmatpush2.bf16.msra.mxu0 %v6856
    %10261 = vmatprep.subr.bf16.mxu0 %v6849
    %10262 = vmatpush2.bf16.msra.mxu0 %v6848
    %10263 = vmatprep.subr.bf16.mxu0 %v6841
    %10264 = vmatpush2.bf16.msra.mxu0 %v6840
    %10265 = vmatprep.subr.bf16.mxu0 %v6833
    %10266 = vmatpush2.bf16.msra.mxu0 %v6832
    %10267 = vmatprep.subr.bf16.mxu0 %v6825
    %10268 = vmatpush2.bf16.msra.mxu0 %v6824
    %10269 = vmatprep.subr.bf16.mxu0 %v6817
    %10270 = vmatpush2.bf16.msra.mxu0 %v6816
    %10271 = vmatprep.subr.bf16.mxu0 %v6809
    %10272 = vmatpush2.bf16.msra.mxu0 %v6808
    %10273 = vmatprep.mubr.bf16.mxu0 %v1738
    %10274 = vmatmul.mubr.bf16.gmra.mxu0 %v1737
    %v10275 = vpop.f32.mrf.mxu0
    %v10276 = vadd.f32 %v10235, %v10275
    %v10277 = vpop.f32.mrf.mxu0
    %v10278 = vadd.f32 %v10237, %v10277
    %v10279 = vpop.f32.mrf.mxu0
    %v10280 = vpop.f32.mrf.mxu0
    %10281 = vdwg.mxu0
    %10282 = vmatprep.subr.bf16.mxu0 %v6929
    %10283 = vmatpush1.bf16.msra.mxu0 %v6928
    %10284 = vmatprep.subr.bf16.mxu0 %v6921
    %10285 = vmatpush1.bf16.msra.mxu0 %v6920
    %10286 = vmatprep.subr.bf16.mxu0 %v6913
    %10287 = vmatpush1.bf16.msra.mxu0 %v6912
    %10288 = vmatprep.subr.bf16.mxu0 %v6905
    %10289 = vmatpush1.bf16.msra.mxu0 %v6904
    %10290 = vmatprep.subr.bf16.mxu0 %v6897
    %10291 = vmatpush1.bf16.msra.mxu0 %v6896
    %10292 = vmatprep.subr.bf16.mxu0 %v6889
    %10293 = vmatpush1.bf16.msra.mxu0 %v6888
    %10294 = vmatprep.subr.bf16.mxu0 %v6881
    %10295 = vmatpush1.bf16.msra.mxu0 %v6880
    %10296 = vmatprep.subr.bf16.mxu0 %v6873
    %10297 = vmatpush1.bf16.msra.mxu0 %v6872
    %10298 = vmatprep.subr.bf16.mxu0 %v6993
    %10299 = vmatpush2.bf16.msra.mxu0 %v6992
    %10300 = vmatprep.subr.bf16.mxu0 %v6985
    %10301 = vmatpush2.bf16.msra.mxu0 %v6984
    %10302 = vmatprep.subr.bf16.mxu0 %v6977
    %10303 = vmatpush2.bf16.msra.mxu0 %v6976
    %10304 = vmatprep.subr.bf16.mxu0 %v6969
    %10305 = vmatpush2.bf16.msra.mxu0 %v6968
    %10306 = vmatprep.subr.bf16.mxu0 %v6961
    %10307 = vmatpush2.bf16.msra.mxu0 %v6960
    %10308 = vmatprep.subr.bf16.mxu0 %v6953
    %10309 = vmatpush2.bf16.msra.mxu0 %v6952
    %10310 = vmatprep.subr.bf16.mxu0 %v6945
    %10311 = vmatpush2.bf16.msra.mxu0 %v6944
    %10312 = vmatprep.subr.bf16.mxu0 %v6937
    %10313 = vmatpush2.bf16.msra.mxu0 %v6936
    %10314 = vmatprep.mubr.bf16.mxu0 %v1740
    %10315 = vmatmul.mubr.bf16.gmra.mxu0 %v1739
    %v10316 = vpop.f32.mrf.mxu0
    %v10317 = vadd.f32 %v10276, %v10316
    %v10318 = vpop.f32.mrf.mxu0
    %v10319 = vadd.f32 %v10278, %v10318
    %v10320 = vpop.f32.mrf.mxu0
    %v10321 = vpop.f32.mrf.mxu0
    %10322 = vdwg.mxu0
    %10323 = vmatprep.subr.bf16.mxu0 %v7057
    %10324 = vmatpush1.bf16.msra.mxu0 %v7056
    %10325 = vmatprep.subr.bf16.mxu0 %v7049
    %10326 = vmatpush1.bf16.msra.mxu0 %v7048
    %10327 = vmatprep.subr.bf16.mxu0 %v7041
    %10328 = vmatpush1.bf16.msra.mxu0 %v7040
    %10329 = vmatprep.subr.bf16.mxu0 %v7033
    %10330 = vmatpush1.bf16.msra.mxu0 %v7032
    %10331 = vmatprep.subr.bf16.mxu0 %v7025
    %10332 = vmatpush1.bf16.msra.mxu0 %v7024
    %10333 = vmatprep.subr.bf16.mxu0 %v7017
    %10334 = vmatpush1.bf16.msra.mxu0 %v7016
    %10335 = vmatprep.subr.bf16.mxu0 %v7009
    %10336 = vmatpush1.bf16.msra.mxu0 %v7008
    %10337 = vmatprep.subr.bf16.mxu0 %v7001
    %10338 = vmatpush1.bf16.msra.mxu0 %v7000
    %10339 = vmatprep.subr.bf16.mxu0 %v7121
    %10340 = vmatpush2.bf16.msra.mxu0 %v7120
    %10341 = vmatprep.subr.bf16.mxu0 %v7113
    %10342 = vmatpush2.bf16.msra.mxu0 %v7112
    %10343 = vmatprep.subr.bf16.mxu0 %v7105
    %10344 = vmatpush2.bf16.msra.mxu0 %v7104
    %10345 = vmatprep.subr.bf16.mxu0 %v7097
    %10346 = vmatpush2.bf16.msra.mxu0 %v7096
    %10347 = vmatprep.subr.bf16.mxu0 %v7089
    %10348 = vmatpush2.bf16.msra.mxu0 %v7088
    %10349 = vmatprep.subr.bf16.mxu0 %v7081
    %10350 = vmatpush2.bf16.msra.mxu0 %v7080
    %10351 = vmatprep.subr.bf16.mxu0 %v7073
    %10352 = vmatpush2.bf16.msra.mxu0 %v7072
    %10353 = vmatprep.subr.bf16.mxu0 %v7065
    %10354 = vmatpush2.bf16.msra.mxu0 %v7064
    %10355 = vmatprep.mubr.bf16.mxu0 %v1742
    %10356 = vmatmul.mubr.bf16.gmra.mxu0 %v1741
    %v10357 = vpop.f32.mrf.mxu0
    %v10358 = vadd.f32 %v10317, %v10357
    %v10359 = vpop.f32.mrf.mxu0
    %v10360 = vadd.f32 %v10319, %v10359
    %v10361 = vpop.f32.mrf.mxu0
    %v10362 = vpop.f32.mrf.mxu0
    %10363 = vdwg.mxu0
    %10364 = vmatprep.subr.bf16.mxu0 %v7185
    %10365 = vmatpush1.bf16.msra.mxu0 %v7184
    %10366 = vmatprep.subr.bf16.mxu0 %v7177
    %10367 = vmatpush1.bf16.msra.mxu0 %v7176
    %10368 = vmatprep.subr.bf16.mxu0 %v7169
    %10369 = vmatpush1.bf16.msra.mxu0 %v7168
    %10370 = vmatprep.subr.bf16.mxu0 %v7161
    %10371 = vmatpush1.bf16.msra.mxu0 %v7160
    %10372 = vmatprep.subr.bf16.mxu0 %v7153
    %10373 = vmatpush1.bf16.msra.mxu0 %v7152
    %10374 = vmatprep.subr.bf16.mxu0 %v7145
    %10375 = vmatpush1.bf16.msra.mxu0 %v7144
    %10376 = vmatprep.subr.bf16.mxu0 %v7137
    %10377 = vmatpush1.bf16.msra.mxu0 %v7136
    %10378 = vmatprep.subr.bf16.mxu0 %v7129
    %10379 = vmatpush1.bf16.msra.mxu0 %v7128
    %10380 = vmatprep.subr.bf16.mxu0 %v7249
    %10381 = vmatpush2.bf16.msra.mxu0 %v7248
    %10382 = vmatprep.subr.bf16.mxu0 %v7241
    %10383 = vmatpush2.bf16.msra.mxu0 %v7240
    %10384 = vmatprep.subr.bf16.mxu0 %v7233
    %10385 = vmatpush2.bf16.msra.mxu0 %v7232
    %10386 = vmatprep.subr.bf16.mxu0 %v7225
    %10387 = vmatpush2.bf16.msra.mxu0 %v7224
    %10388 = vmatprep.subr.bf16.mxu0 %v7217
    %10389 = vmatpush2.bf16.msra.mxu0 %v7216
    %10390 = vmatprep.subr.bf16.mxu0 %v7209
    %10391 = vmatpush2.bf16.msra.mxu0 %v7208
    %10392 = vmatprep.subr.bf16.mxu0 %v7201
    %10393 = vmatpush2.bf16.msra.mxu0 %v7200
    %10394 = vmatprep.subr.bf16.mxu0 %v7193
    %10395 = vmatpush2.bf16.msra.mxu0 %v7192
    %10396 = vmatprep.mubr.bf16.mxu0 %v1744
    %10397 = vmatmul.mubr.bf16.gmra.mxu0 %v1743
    %v10398 = vpop.f32.mrf.mxu0
    %v10399 = vadd.f32 %v10358, %v10398
    %v10400 = vpop.f32.mrf.mxu0
    %v10401 = vadd.f32 %v10360, %v10400
    %v10402 = vpop.f32.mrf.mxu0
    %v10403 = vpop.f32.mrf.mxu0
    %10404 = vdwg.mxu0
    %10405 = vmatprep.subr.bf16.mxu0 %v7313
    %10406 = vmatpush1.bf16.msra.mxu0 %v7312
    %10407 = vmatprep.subr.bf16.mxu0 %v7305
    %10408 = vmatpush1.bf16.msra.mxu0 %v7304
    %10409 = vmatprep.subr.bf16.mxu0 %v7297
    %10410 = vmatpush1.bf16.msra.mxu0 %v7296
    %10411 = vmatprep.subr.bf16.mxu0 %v7289
    %10412 = vmatpush1.bf16.msra.mxu0 %v7288
    %10413 = vmatprep.subr.bf16.mxu0 %v7281
    %10414 = vmatpush1.bf16.msra.mxu0 %v7280
    %10415 = vmatprep.subr.bf16.mxu0 %v7273
    %10416 = vmatpush1.bf16.msra.mxu0 %v7272
    %10417 = vmatprep.subr.bf16.mxu0 %v7265
    %10418 = vmatpush1.bf16.msra.mxu0 %v7264
    %10419 = vmatprep.subr.bf16.mxu0 %v7257
    %10420 = vmatpush1.bf16.msra.mxu0 %v7256
    %10421 = vmatprep.subr.bf16.mxu0 %v7377
    %10422 = vmatpush2.bf16.msra.mxu0 %v7376
    %10423 = vmatprep.subr.bf16.mxu0 %v7369
    %10424 = vmatpush2.bf16.msra.mxu0 %v7368
    %10425 = vmatprep.subr.bf16.mxu0 %v7361
    %10426 = vmatpush2.bf16.msra.mxu0 %v7360
    %10427 = vmatprep.subr.bf16.mxu0 %v7353
    %10428 = vmatpush2.bf16.msra.mxu0 %v7352
    %10429 = vmatprep.subr.bf16.mxu0 %v7345
    %10430 = vmatpush2.bf16.msra.mxu0 %v7344
    %10431 = vmatprep.subr.bf16.mxu0 %v7337
    %10432 = vmatpush2.bf16.msra.mxu0 %v7336
    %10433 = vmatprep.subr.bf16.mxu0 %v7329
    %10434 = vmatpush2.bf16.msra.mxu0 %v7328
    %10435 = vmatprep.subr.bf16.mxu0 %v7321
    %10436 = vmatpush2.bf16.msra.mxu0 %v7320
    %10437 = vmatprep.mubr.bf16.mxu0 %v1746
    %10438 = vmatmul.mubr.bf16.gmra.mxu0 %v1745
    %v10439 = vpop.f32.mrf.mxu0
    %v10440 = vadd.f32 %v10399, %v10439
    %v10441 = vpop.f32.mrf.mxu0
    %v10442 = vadd.f32 %v10401, %v10441
    %v10443 = vpop.f32.mrf.mxu0
    %v10444 = vpop.f32.mrf.mxu0
    %10445 = vdwg.mxu0
    %10446 = vmatprep.subr.bf16.mxu0 %v7441
    %10447 = vmatpush1.bf16.msra.mxu0 %v7440
    %10448 = vmatprep.subr.bf16.mxu0 %v7433
    %10449 = vmatpush1.bf16.msra.mxu0 %v7432
    %10450 = vmatprep.subr.bf16.mxu0 %v7425
    %10451 = vmatpush1.bf16.msra.mxu0 %v7424
    %10452 = vmatprep.subr.bf16.mxu0 %v7417
    %10453 = vmatpush1.bf16.msra.mxu0 %v7416
    %10454 = vmatprep.subr.bf16.mxu0 %v7409
    %10455 = vmatpush1.bf16.msra.mxu0 %v7408
    %10456 = vmatprep.subr.bf16.mxu0 %v7401
    %10457 = vmatpush1.bf16.msra.mxu0 %v7400
    %10458 = vmatprep.subr.bf16.mxu0 %v7393
    %10459 = vmatpush1.bf16.msra.mxu0 %v7392
    %10460 = vmatprep.subr.bf16.mxu0 %v7385
    %10461 = vmatpush1.bf16.msra.mxu0 %v7384
    %10462 = vmatprep.subr.bf16.mxu0 %v7505
    %10463 = vmatpush2.bf16.msra.mxu0 %v7504
    %10464 = vmatprep.subr.bf16.mxu0 %v7497
    %10465 = vmatpush2.bf16.msra.mxu0 %v7496
    %10466 = vmatprep.subr.bf16.mxu0 %v7489
    %10467 = vmatpush2.bf16.msra.mxu0 %v7488
    %10468 = vmatprep.subr.bf16.mxu0 %v7481
    %10469 = vmatpush2.bf16.msra.mxu0 %v7480
    %10470 = vmatprep.subr.bf16.mxu0 %v7473
    %10471 = vmatpush2.bf16.msra.mxu0 %v7472
    %10472 = vmatprep.subr.bf16.mxu0 %v7465
    %10473 = vmatpush2.bf16.msra.mxu0 %v7464
    %10474 = vmatprep.subr.bf16.mxu0 %v7457
    %10475 = vmatpush2.bf16.msra.mxu0 %v7456
    %10476 = vmatprep.subr.bf16.mxu0 %v7449
    %10477 = vmatpush2.bf16.msra.mxu0 %v7448
    %10478 = vmatprep.mubr.bf16.mxu0 %v1748
    %10479 = vmatmul.mubr.bf16.gmra.mxu0 %v1747
    %v10480 = vpop.f32.mrf.mxu0
    %v10481 = vadd.f32 %v10440, %v10480
    %v10482 = vpop.f32.mrf.mxu0
    %v10483 = vadd.f32 %v10442, %v10482
    %v10484 = vpop.f32.mrf.mxu0
    %v10485 = vpop.f32.mrf.mxu0
    %10486 = vdwg.mxu0
    %10487 = vmatprep.subr.bf16.mxu0 %v7569
    %10488 = vmatpush1.bf16.msra.mxu0 %v7568
    %10489 = vmatprep.subr.bf16.mxu0 %v7561
    %10490 = vmatpush1.bf16.msra.mxu0 %v7560
    %10491 = vmatprep.subr.bf16.mxu0 %v7553
    %10492 = vmatpush1.bf16.msra.mxu0 %v7552
    %10493 = vmatprep.subr.bf16.mxu0 %v7545
    %10494 = vmatpush1.bf16.msra.mxu0 %v7544
    %10495 = vmatprep.subr.bf16.mxu0 %v7537
    %10496 = vmatpush1.bf16.msra.mxu0 %v7536
    %10497 = vmatprep.subr.bf16.mxu0 %v7529
    %10498 = vmatpush1.bf16.msra.mxu0 %v7528
    %10499 = vmatprep.subr.bf16.mxu0 %v7521
    %10500 = vmatpush1.bf16.msra.mxu0 %v7520
    %10501 = vmatprep.subr.bf16.mxu0 %v7513
    %10502 = vmatpush1.bf16.msra.mxu0 %v7512
    %10503 = vmatprep.subr.bf16.mxu0 %v7633
    %10504 = vmatpush2.bf16.msra.mxu0 %v7632
    %10505 = vmatprep.subr.bf16.mxu0 %v7625
    %10506 = vmatpush2.bf16.msra.mxu0 %v7624
    %10507 = vmatprep.subr.bf16.mxu0 %v7617
    %10508 = vmatpush2.bf16.msra.mxu0 %v7616
    %10509 = vmatprep.subr.bf16.mxu0 %v7609
    %10510 = vmatpush2.bf16.msra.mxu0 %v7608
    %10511 = vmatprep.subr.bf16.mxu0 %v7601
    %10512 = vmatpush2.bf16.msra.mxu0 %v7600
    %10513 = vmatprep.subr.bf16.mxu0 %v7593
    %10514 = vmatpush2.bf16.msra.mxu0 %v7592
    %10515 = vmatprep.subr.bf16.mxu0 %v7585
    %10516 = vmatpush2.bf16.msra.mxu0 %v7584
    %10517 = vmatprep.subr.bf16.mxu0 %v7577
    %10518 = vmatpush2.bf16.msra.mxu0 %v7576
    %10519 = vmatprep.mubr.bf16.mxu0 %v1750
    %10520 = vmatmul.mubr.bf16.gmra.mxu0 %v1749
    %v10521 = vpop.f32.mrf.mxu0
    %v10522 = vadd.f32 %v10481, %v10521
    %v10523 = vpop.f32.mrf.mxu0
    %v10524 = vadd.f32 %v10483, %v10523
    %v10525 = vpop.f32.mrf.mxu0
    %v10526 = vpop.f32.mrf.mxu0
    %10527 = vdwg.mxu0
    %10528 = vmatprep.subr.bf16.mxu0 %v7697
    %10529 = vmatpush1.bf16.msra.mxu0 %v7696
    %10530 = vmatprep.subr.bf16.mxu0 %v7689
    %10531 = vmatpush1.bf16.msra.mxu0 %v7688
    %10532 = vmatprep.subr.bf16.mxu0 %v7681
    %10533 = vmatpush1.bf16.msra.mxu0 %v7680
    %10534 = vmatprep.subr.bf16.mxu0 %v7673
    %10535 = vmatpush1.bf16.msra.mxu0 %v7672
    %10536 = vmatprep.subr.bf16.mxu0 %v7665
    %10537 = vmatpush1.bf16.msra.mxu0 %v7664
    %10538 = vmatprep.subr.bf16.mxu0 %v7657
    %10539 = vmatpush1.bf16.msra.mxu0 %v7656
    %10540 = vmatprep.subr.bf16.mxu0 %v7649
    %10541 = vmatpush1.bf16.msra.mxu0 %v7648
    %10542 = vmatprep.subr.bf16.mxu0 %v7641
    %10543 = vmatpush1.bf16.msra.mxu0 %v7640
    %10544 = vmatprep.subr.bf16.mxu0 %v7761
    %10545 = vmatpush2.bf16.msra.mxu0 %v7760
    %10546 = vmatprep.subr.bf16.mxu0 %v7753
    %10547 = vmatpush2.bf16.msra.mxu0 %v7752
    %10548 = vmatprep.subr.bf16.mxu0 %v7745
    %10549 = vmatpush2.bf16.msra.mxu0 %v7744
    %10550 = vmatprep.subr.bf16.mxu0 %v7737
    %10551 = vmatpush2.bf16.msra.mxu0 %v7736
    %10552 = vmatprep.subr.bf16.mxu0 %v7729
    %10553 = vmatpush2.bf16.msra.mxu0 %v7728
    %10554 = vmatprep.subr.bf16.mxu0 %v7721
    %10555 = vmatpush2.bf16.msra.mxu0 %v7720
    %10556 = vmatprep.subr.bf16.mxu0 %v7713
    %10557 = vmatpush2.bf16.msra.mxu0 %v7712
    %10558 = vmatprep.subr.bf16.mxu0 %v7705
    %10559 = vmatpush2.bf16.msra.mxu0 %v7704
    %10560 = vmatprep.mubr.bf16.mxu0 %v1752
    %10561 = vmatmul.mubr.bf16.gmra.mxu0 %v1751
    %v10562 = vpop.f32.mrf.mxu0
    %v10563 = vadd.f32 %v10522, %v10562
    %v10564 = vpop.f32.mrf.mxu0
    %v10565 = vadd.f32 %v10524, %v10564
    %v10566 = vpop.f32.mrf.mxu0
    %v10567 = vpop.f32.mrf.mxu0
    %10568 = vdwg.mxu0
    %10569 = vmatprep.subr.bf16.mxu0 %v7825
    %10570 = vmatpush1.bf16.msra.mxu0 %v7824
    %10571 = vmatprep.subr.bf16.mxu0 %v7817
    %10572 = vmatpush1.bf16.msra.mxu0 %v7816
    %10573 = vmatprep.subr.bf16.mxu0 %v7809
    %10574 = vmatpush1.bf16.msra.mxu0 %v7808
    %10575 = vmatprep.subr.bf16.mxu0 %v7801
    %10576 = vmatpush1.bf16.msra.mxu0 %v7800
    %10577 = vmatprep.subr.bf16.mxu0 %v7793
    %10578 = vmatpush1.bf16.msra.mxu0 %v7792
    %10579 = vmatprep.subr.bf16.mxu0 %v7785
    %10580 = vmatpush1.bf16.msra.mxu0 %v7784
    %10581 = vmatprep.subr.bf16.mxu0 %v7777
    %10582 = vmatpush1.bf16.msra.mxu0 %v7776
    %10583 = vmatprep.subr.bf16.mxu0 %v7769
    %10584 = vmatpush1.bf16.msra.mxu0 %v7768
    %10585 = vmatprep.subr.bf16.mxu0 %v7889
    %10586 = vmatpush2.bf16.msra.mxu0 %v7888
    %10587 = vmatprep.subr.bf16.mxu0 %v7881
    %10588 = vmatpush2.bf16.msra.mxu0 %v7880
    %10589 = vmatprep.subr.bf16.mxu0 %v7873
    %10590 = vmatpush2.bf16.msra.mxu0 %v7872
    %10591 = vmatprep.subr.bf16.mxu0 %v7865
    %10592 = vmatpush2.bf16.msra.mxu0 %v7864
    %10593 = vmatprep.subr.bf16.mxu0 %v7857
    %10594 = vmatpush2.bf16.msra.mxu0 %v7856
    %10595 = vmatprep.subr.bf16.mxu0 %v7849
    %10596 = vmatpush2.bf16.msra.mxu0 %v7848
    %10597 = vmatprep.subr.bf16.mxu0 %v7841
    %10598 = vmatpush2.bf16.msra.mxu0 %v7840
    %10599 = vmatprep.subr.bf16.mxu0 %v7833
    %10600 = vmatpush2.bf16.msra.mxu0 %v7832
    %10601 = vmatprep.mubr.bf16.mxu0 %v1754
    %10602 = vmatmul.mubr.bf16.gmra.mxu0 %v1753
    %v10603 = vpop.f32.mrf.mxu0
    %v10604 = vadd.f32 %v10563, %v10603
    %v10605 = vpop.f32.mrf.mxu0
    %v10606 = vadd.f32 %v10565, %v10605
    %v10607 = vpop.f32.mrf.mxu0
    %v10608 = vpop.f32.mrf.mxu0
    %10609 = vdwg.mxu0
    %10610 = vmatprep.subr.bf16.mxu0 %v7953
    %10611 = vmatpush1.bf16.msra.mxu0 %v7952
    %10612 = vmatprep.subr.bf16.mxu0 %v7945
    %10613 = vmatpush1.bf16.msra.mxu0 %v7944
    %10614 = vmatprep.subr.bf16.mxu0 %v7937
    %10615 = vmatpush1.bf16.msra.mxu0 %v7936
    %10616 = vmatprep.subr.bf16.mxu0 %v7929
    %10617 = vmatpush1.bf16.msra.mxu0 %v7928
    %10618 = vmatprep.subr.bf16.mxu0 %v7921
    %10619 = vmatpush1.bf16.msra.mxu0 %v7920
    %10620 = vmatprep.subr.bf16.mxu0 %v7913
    %10621 = vmatpush1.bf16.msra.mxu0 %v7912
    %10622 = vmatprep.subr.bf16.mxu0 %v7905
    %10623 = vmatpush1.bf16.msra.mxu0 %v7904
    %10624 = vmatprep.subr.bf16.mxu0 %v7897
    %10625 = vmatpush1.bf16.msra.mxu0 %v7896
    %10626 = vmatprep.subr.bf16.mxu0 %v8017
    %10627 = vmatpush2.bf16.msra.mxu0 %v8016
    %10628 = vmatprep.subr.bf16.mxu0 %v8009
    %10629 = vmatpush2.bf16.msra.mxu0 %v8008
    %10630 = vmatprep.subr.bf16.mxu0 %v8001
    %10631 = vmatpush2.bf16.msra.mxu0 %v8000
    %10632 = vmatprep.subr.bf16.mxu0 %v7993
    %10633 = vmatpush2.bf16.msra.mxu0 %v7992
    %10634 = vmatprep.subr.bf16.mxu0 %v7985
    %10635 = vmatpush2.bf16.msra.mxu0 %v7984
    %10636 = vmatprep.subr.bf16.mxu0 %v7977
    %10637 = vmatpush2.bf16.msra.mxu0 %v7976
    %10638 = vmatprep.subr.bf16.mxu0 %v7969
    %10639 = vmatpush2.bf16.msra.mxu0 %v7968
    %10640 = vmatprep.subr.bf16.mxu0 %v7961
    %10641 = vmatpush2.bf16.msra.mxu0 %v7960
    %10642 = vmatprep.mubr.bf16.mxu0 %v1756
    %10643 = vmatmul.mubr.bf16.gmra.mxu0 %v1755
    %v10644 = vpop.f32.mrf.mxu0
    %v10645 = vadd.f32 %v10604, %v10644
    %v10646 = vpop.f32.mrf.mxu0
    %v10647 = vadd.f32 %v10606, %v10646
    %v10648 = vpop.f32.mrf.mxu0
    %v10649 = vpop.f32.mrf.mxu0
    %10650 = vdwg.mxu0
    %10651 = vmatprep.subr.bf16.mxu0 0
    %10652 = vmatpush1.bf16.msra.mxu0 0
    %10653 = vmatprep.subr.bf16.mxu0 0
    %10654 = vmatpush1.bf16.msra.mxu0 0
    %10655 = vmatprep.subr.bf16.mxu0 0
    %10656 = vmatpush1.bf16.msra.mxu0 0
    %10657 = vmatprep.subr.bf16.mxu0 0
    %10658 = vmatpush1.bf16.msra.mxu0 0
    %10659 = vmatprep.subr.bf16.mxu0 %v8049
    %10660 = vmatpush1.bf16.msra.mxu0 %v8048
    %10661 = vmatprep.subr.bf16.mxu0 %v8041
    %10662 = vmatpush1.bf16.msra.mxu0 %v8040
    %10663 = vmatprep.subr.bf16.mxu0 %v8033
    %10664 = vmatpush1.bf16.msra.mxu0 %v8032
    %10665 = vmatprep.subr.bf16.mxu0 %v8025
    %10666 = vmatpush1.bf16.msra.mxu0 %v8024
    %10667 = vmatprep.subr.bf16.mxu0 0
    %10668 = vmatpush2.bf16.msra.mxu0 0
    %10669 = vmatprep.subr.bf16.mxu0 0
    %10670 = vmatpush2.bf16.msra.mxu0 0
    %10671 = vmatprep.subr.bf16.mxu0 0
    %10672 = vmatpush2.bf16.msra.mxu0 0
    %10673 = vmatprep.subr.bf16.mxu0 0
    %10674 = vmatpush2.bf16.msra.mxu0 0
    %10675 = vmatprep.subr.bf16.mxu0 0
    %10676 = vmatpush2.bf16.msra.mxu0 0
    %10677 = vmatprep.subr.bf16.mxu0 0
    %10678 = vmatpush2.bf16.msra.mxu0 0
    %10679 = vmatprep.subr.bf16.mxu0 0
    %10680 = vmatpush2.bf16.msra.mxu0 0
    %10681 = vmatprep.subr.bf16.mxu0 0
    %10682 = vmatpush2.bf16.msra.mxu0 0
    %10683 = vmatprep.mubr.bf16.mxu0 0
    %10684 = vmatmul.mubr.bf16.gmra.mxu0 %v9624
    %v10685 = vpop.f32.mrf.mxu0
    %v10686 = vadd.f32 %v10645, %v10685
    %v10687 = vpop.f32.mrf.mxu0
    %v10688 = vadd.f32 %v10647, %v10687
    %v10689 = vpop.f32.mrf.mxu0
    %v10690 = vpop.f32.mrf.mxu0
    %10691 = vdwg.mxu0
    %10692 = vmatprep.subr.bf16.mxu0 %v6547
    %10693 = vmatpush1.bf16.msra.mxu0 %v6546
    %10694 = vmatprep.subr.bf16.mxu0 %v6539
    %10695 = vmatpush1.bf16.msra.mxu0 %v6538
    %10696 = vmatprep.subr.bf16.mxu0 %v6531
    %10697 = vmatpush1.bf16.msra.mxu0 %v6530
    %10698 = vmatprep.subr.bf16.mxu0 %v6523
    %10699 = vmatpush1.bf16.msra.mxu0 %v6522
    %10700 = vmatprep.subr.bf16.mxu0 %v6515
    %10701 = vmatpush1.bf16.msra.mxu0 %v6514
    %10702 = vmatprep.subr.bf16.mxu0 %v6507
    %10703 = vmatpush1.bf16.msra.mxu0 %v6506
    %10704 = vmatprep.subr.bf16.mxu0 %v6499
    %10705 = vmatpush1.bf16.msra.mxu0 %v6498
    %10706 = vmatprep.subr.bf16.mxu0 %v6491
    %10707 = vmatpush1.bf16.msra.mxu0 %v6490
    %10708 = vmatprep.subr.bf16.mxu0 %v6611
    %10709 = vmatpush2.bf16.msra.mxu0 %v6610
    %10710 = vmatprep.subr.bf16.mxu0 %v6603
    %10711 = vmatpush2.bf16.msra.mxu0 %v6602
    %10712 = vmatprep.subr.bf16.mxu0 %v6595
    %10713 = vmatpush2.bf16.msra.mxu0 %v6594
    %10714 = vmatprep.subr.bf16.mxu0 %v6587
    %10715 = vmatpush2.bf16.msra.mxu0 %v6586
    %10716 = vmatprep.subr.bf16.mxu0 %v6579
    %10717 = vmatpush2.bf16.msra.mxu0 %v6578
    %10718 = vmatprep.subr.bf16.mxu0 %v6571
    %10719 = vmatpush2.bf16.msra.mxu0 %v6570
    %10720 = vmatprep.subr.bf16.mxu0 %v6563
    %10721 = vmatpush2.bf16.msra.mxu0 %v6562
    %10722 = vmatprep.subr.bf16.mxu0 %v6555
    %10723 = vmatpush2.bf16.msra.mxu0 %v6554
    %10724 = vmatprep.mubr.bf16.mxu0 %v1734
    %10725 = vmatmul.mubr.bf16.gmra.mxu0 %v1733
    %v10726 = vpop.f32.mrf.mxu0
    %v10727 = vadd.f32 %v1674, %v10726
    %v10728 = vpop.f32.mrf.mxu0
    %v10729 = vadd.f32 %v1678, %v10728
    %v10730 = vpop.f32.mrf.mxu0
    %v10731 = vpop.f32.mrf.mxu0
    %10732 = vdwg.mxu0
    %10733 = vmatprep.subr.bf16.mxu0 %v6675
    %10734 = vmatpush1.bf16.msra.mxu0 %v6674
    %10735 = vmatprep.subr.bf16.mxu0 %v6667
    %10736 = vmatpush1.bf16.msra.mxu0 %v6666
    %10737 = vmatprep.subr.bf16.mxu0 %v6659
    %10738 = vmatpush1.bf16.msra.mxu0 %v6658
    %10739 = vmatprep.subr.bf16.mxu0 %v6651
    %10740 = vmatpush1.bf16.msra.mxu0 %v6650
    %10741 = vmatprep.subr.bf16.mxu0 %v6643
    %10742 = vmatpush1.bf16.msra.mxu0 %v6642
    %10743 = vmatprep.subr.bf16.mxu0 %v6635
    %10744 = vmatpush1.bf16.msra.mxu0 %v6634
    %10745 = vmatprep.subr.bf16.mxu0 %v6627
    %10746 = vmatpush1.bf16.msra.mxu0 %v6626
    %10747 = vmatprep.subr.bf16.mxu0 %v6619
    %10748 = vmatpush1.bf16.msra.mxu0 %v6618
    %10749 = vmatprep.subr.bf16.mxu0 %v6739
    %10750 = vmatpush2.bf16.msra.mxu0 %v6738
    %10751 = vmatprep.subr.bf16.mxu0 %v6731
    %10752 = vmatpush2.bf16.msra.mxu0 %v6730
    %10753 = vmatprep.subr.bf16.mxu0 %v6723
    %10754 = vmatpush2.bf16.msra.mxu0 %v6722
    %10755 = vmatprep.subr.bf16.mxu0 %v6715
    %10756 = vmatpush2.bf16.msra.mxu0 %v6714
    %10757 = vmatprep.subr.bf16.mxu0 %v6707
    %10758 = vmatpush2.bf16.msra.mxu0 %v6706
    %10759 = vmatprep.subr.bf16.mxu0 %v6699
    %10760 = vmatpush2.bf16.msra.mxu0 %v6698
    %10761 = vmatprep.subr.bf16.mxu0 %v6691
    %10762 = vmatpush2.bf16.msra.mxu0 %v6690
    %10763 = vmatprep.subr.bf16.mxu0 %v6683
    %10764 = vmatpush2.bf16.msra.mxu0 %v6682
    %10765 = vmatprep.mubr.bf16.mxu0 %v1736
    %10766 = vmatmul.mubr.bf16.gmra.mxu0 %v1735
    %v10767 = vpop.f32.mrf.mxu0
    %v10768 = vadd.f32 %v10727, %v10767
    %v10769 = vpop.f32.mrf.mxu0
    %v10770 = vadd.f32 %v10729, %v10769
    %v10771 = vpop.f32.mrf.mxu0
    %v10772 = vpop.f32.mrf.mxu0
    %10773 = vdwg.mxu0
    %10774 = vmatprep.subr.bf16.mxu0 %v6803
    %10775 = vmatpush1.bf16.msra.mxu0 %v6802
    %10776 = vmatprep.subr.bf16.mxu0 %v6795
    %10777 = vmatpush1.bf16.msra.mxu0 %v6794
    %10778 = vmatprep.subr.bf16.mxu0 %v6787
    %10779 = vmatpush1.bf16.msra.mxu0 %v6786
    %10780 = vmatprep.subr.bf16.mxu0 %v6779
    %10781 = vmatpush1.bf16.msra.mxu0 %v6778
    %10782 = vmatprep.subr.bf16.mxu0 %v6771
    %10783 = vmatpush1.bf16.msra.mxu0 %v6770
    %10784 = vmatprep.subr.bf16.mxu0 %v6763
    %10785 = vmatpush1.bf16.msra.mxu0 %v6762
    %10786 = vmatprep.subr.bf16.mxu0 %v6755
    %10787 = vmatpush1.bf16.msra.mxu0 %v6754
    %10788 = vmatprep.subr.bf16.mxu0 %v6747
    %10789 = vmatpush1.bf16.msra.mxu0 %v6746
    %10790 = vmatprep.subr.bf16.mxu0 %v6867
    %10791 = vmatpush2.bf16.msra.mxu0 %v6866
    %10792 = vmatprep.subr.bf16.mxu0 %v6859
    %10793 = vmatpush2.bf16.msra.mxu0 %v6858
    %10794 = vmatprep.subr.bf16.mxu0 %v6851
    %10795 = vmatpush2.bf16.msra.mxu0 %v6850
    %10796 = vmatprep.subr.bf16.mxu0 %v6843
    %10797 = vmatpush2.bf16.msra.mxu0 %v6842
    %10798 = vmatprep.subr.bf16.mxu0 %v6835
    %10799 = vmatpush2.bf16.msra.mxu0 %v6834
    %10800 = vmatprep.subr.bf16.mxu0 %v6827
    %10801 = vmatpush2.bf16.msra.mxu0 %v6826
    %10802 = vmatprep.subr.bf16.mxu0 %v6819
    %10803 = vmatpush2.bf16.msra.mxu0 %v6818
    %10804 = vmatprep.subr.bf16.mxu0 %v6811
    %10805 = vmatpush2.bf16.msra.mxu0 %v6810
    %10806 = vmatprep.mubr.bf16.mxu0 %v1738
    %10807 = vmatmul.mubr.bf16.gmra.mxu0 %v1737
    %v10808 = vpop.f32.mrf.mxu0
    %v10809 = vadd.f32 %v10768, %v10808
    %v10810 = vpop.f32.mrf.mxu0
    %v10811 = vadd.f32 %v10770, %v10810
    %v10812 = vpop.f32.mrf.mxu0
    %v10813 = vpop.f32.mrf.mxu0
    %10814 = vdwg.mxu0
    %10815 = vmatprep.subr.bf16.mxu0 %v6931
    %10816 = vmatpush1.bf16.msra.mxu0 %v6930
    %10817 = vmatprep.subr.bf16.mxu0 %v6923
    %10818 = vmatpush1.bf16.msra.mxu0 %v6922
    %10819 = vmatprep.subr.bf16.mxu0 %v6915
    %10820 = vmatpush1.bf16.msra.mxu0 %v6914
    %10821 = vmatprep.subr.bf16.mxu0 %v6907
    %10822 = vmatpush1.bf16.msra.mxu0 %v6906
    %10823 = vmatprep.subr.bf16.mxu0 %v6899
    %10824 = vmatpush1.bf16.msra.mxu0 %v6898
    %10825 = vmatprep.subr.bf16.mxu0 %v6891
    %10826 = vmatpush1.bf16.msra.mxu0 %v6890
    %10827 = vmatprep.subr.bf16.mxu0 %v6883
    %10828 = vmatpush1.bf16.msra.mxu0 %v6882
    %10829 = vmatprep.subr.bf16.mxu0 %v6875
    %10830 = vmatpush1.bf16.msra.mxu0 %v6874
    %10831 = vmatprep.subr.bf16.mxu0 %v6995
    %10832 = vmatpush2.bf16.msra.mxu0 %v6994
    %10833 = vmatprep.subr.bf16.mxu0 %v6987
    %10834 = vmatpush2.bf16.msra.mxu0 %v6986
    %10835 = vmatprep.subr.bf16.mxu0 %v6979
    %10836 = vmatpush2.bf16.msra.mxu0 %v6978
    %10837 = vmatprep.subr.bf16.mxu0 %v6971
    %10838 = vmatpush2.bf16.msra.mxu0 %v6970
    %10839 = vmatprep.subr.bf16.mxu0 %v6963
    %10840 = vmatpush2.bf16.msra.mxu0 %v6962
    %10841 = vmatprep.subr.bf16.mxu0 %v6955
    %10842 = vmatpush2.bf16.msra.mxu0 %v6954
    %10843 = vmatprep.subr.bf16.mxu0 %v6947
    %10844 = vmatpush2.bf16.msra.mxu0 %v6946
    %10845 = vmatprep.subr.bf16.mxu0 %v6939
    %10846 = vmatpush2.bf16.msra.mxu0 %v6938
    %10847 = vmatprep.mubr.bf16.mxu0 %v1740
    %10848 = vmatmul.mubr.bf16.gmra.mxu0 %v1739
    %v10849 = vpop.f32.mrf.mxu0
    %v10850 = vadd.f32 %v10809, %v10849
    %v10851 = vpop.f32.mrf.mxu0
    %v10852 = vadd.f32 %v10811, %v10851
    %v10853 = vpop.f32.mrf.mxu0
    %v10854 = vpop.f32.mrf.mxu0
    %10855 = vdwg.mxu0
    %10856 = vmatprep.subr.bf16.mxu0 %v7059
    %10857 = vmatpush1.bf16.msra.mxu0 %v7058
    %10858 = vmatprep.subr.bf16.mxu0 %v7051
    %10859 = vmatpush1.bf16.msra.mxu0 %v7050
    %10860 = vmatprep.subr.bf16.mxu0 %v7043
    %10861 = vmatpush1.bf16.msra.mxu0 %v7042
    %10862 = vmatprep.subr.bf16.mxu0 %v7035
    %10863 = vmatpush1.bf16.msra.mxu0 %v7034
    %10864 = vmatprep.subr.bf16.mxu0 %v7027
    %10865 = vmatpush1.bf16.msra.mxu0 %v7026
    %10866 = vmatprep.subr.bf16.mxu0 %v7019
    %10867 = vmatpush1.bf16.msra.mxu0 %v7018
    %10868 = vmatprep.subr.bf16.mxu0 %v7011
    %10869 = vmatpush1.bf16.msra.mxu0 %v7010
    %10870 = vmatprep.subr.bf16.mxu0 %v7003
    %10871 = vmatpush1.bf16.msra.mxu0 %v7002
    %10872 = vmatprep.subr.bf16.mxu0 %v7123
    %10873 = vmatpush2.bf16.msra.mxu0 %v7122
    %10874 = vmatprep.subr.bf16.mxu0 %v7115
    %10875 = vmatpush2.bf16.msra.mxu0 %v7114
    %10876 = vmatprep.subr.bf16.mxu0 %v7107
    %10877 = vmatpush2.bf16.msra.mxu0 %v7106
    %10878 = vmatprep.subr.bf16.mxu0 %v7099
    %10879 = vmatpush2.bf16.msra.mxu0 %v7098
    %10880 = vmatprep.subr.bf16.mxu0 %v7091
    %10881 = vmatpush2.bf16.msra.mxu0 %v7090
    %10882 = vmatprep.subr.bf16.mxu0 %v7083
    %10883 = vmatpush2.bf16.msra.mxu0 %v7082
    %10884 = vmatprep.subr.bf16.mxu0 %v7075
    %10885 = vmatpush2.bf16.msra.mxu0 %v7074
    %10886 = vmatprep.subr.bf16.mxu0 %v7067
    %10887 = vmatpush2.bf16.msra.mxu0 %v7066
    %10888 = vmatprep.mubr.bf16.mxu0 %v1742
    %10889 = vmatmul.mubr.bf16.gmra.mxu0 %v1741
    %v10890 = vpop.f32.mrf.mxu0
    %v10891 = vadd.f32 %v10850, %v10890
    %v10892 = vpop.f32.mrf.mxu0
    %v10893 = vadd.f32 %v10852, %v10892
    %v10894 = vpop.f32.mrf.mxu0
    %v10895 = vpop.f32.mrf.mxu0
    %10896 = vdwg.mxu0
    %10897 = vmatprep.subr.bf16.mxu0 %v7187
    %10898 = vmatpush1.bf16.msra.mxu0 %v7186
    %10899 = vmatprep.subr.bf16.mxu0 %v7179
    %10900 = vmatpush1.bf16.msra.mxu0 %v7178
    %10901 = vmatprep.subr.bf16.mxu0 %v7171
    %10902 = vmatpush1.bf16.msra.mxu0 %v7170
    %10903 = vmatprep.subr.bf16.mxu0 %v7163
    %10904 = vmatpush1.bf16.msra.mxu0 %v7162
    %10905 = vmatprep.subr.bf16.mxu0 %v7155
    %10906 = vmatpush1.bf16.msra.mxu0 %v7154
    %10907 = vmatprep.subr.bf16.mxu0 %v7147
    %10908 = vmatpush1.bf16.msra.mxu0 %v7146
    %10909 = vmatprep.subr.bf16.mxu0 %v7139
    %10910 = vmatpush1.bf16.msra.mxu0 %v7138
    %10911 = vmatprep.subr.bf16.mxu0 %v7131
    %10912 = vmatpush1.bf16.msra.mxu0 %v7130
    %10913 = vmatprep.subr.bf16.mxu0 %v7251
    %10914 = vmatpush2.bf16.msra.mxu0 %v7250
    %10915 = vmatprep.subr.bf16.mxu0 %v7243
    %10916 = vmatpush2.bf16.msra.mxu0 %v7242
    %10917 = vmatprep.subr.bf16.mxu0 %v7235
    %10918 = vmatpush2.bf16.msra.mxu0 %v7234
    %10919 = vmatprep.subr.bf16.mxu0 %v7227
    %10920 = vmatpush2.bf16.msra.mxu0 %v7226
    %10921 = vmatprep.subr.bf16.mxu0 %v7219
    %10922 = vmatpush2.bf16.msra.mxu0 %v7218
    %10923 = vmatprep.subr.bf16.mxu0 %v7211
    %10924 = vmatpush2.bf16.msra.mxu0 %v7210
    %10925 = vmatprep.subr.bf16.mxu0 %v7203
    %10926 = vmatpush2.bf16.msra.mxu0 %v7202
    %10927 = vmatprep.subr.bf16.mxu0 %v7195
    %10928 = vmatpush2.bf16.msra.mxu0 %v7194
    %10929 = vmatprep.mubr.bf16.mxu0 %v1744
    %10930 = vmatmul.mubr.bf16.gmra.mxu0 %v1743
    %v10931 = vpop.f32.mrf.mxu0
    %v10932 = vadd.f32 %v10891, %v10931
    %v10933 = vpop.f32.mrf.mxu0
    %v10934 = vadd.f32 %v10893, %v10933
    %v10935 = vpop.f32.mrf.mxu0
    %v10936 = vpop.f32.mrf.mxu0
    %10937 = vdwg.mxu0
    %10938 = vmatprep.subr.bf16.mxu0 %v7315
    %10939 = vmatpush1.bf16.msra.mxu0 %v7314
    %10940 = vmatprep.subr.bf16.mxu0 %v7307
    %10941 = vmatpush1.bf16.msra.mxu0 %v7306
    %10942 = vmatprep.subr.bf16.mxu0 %v7299
    %10943 = vmatpush1.bf16.msra.mxu0 %v7298
    %10944 = vmatprep.subr.bf16.mxu0 %v7291
    %10945 = vmatpush1.bf16.msra.mxu0 %v7290
    %10946 = vmatprep.subr.bf16.mxu0 %v7283
    %10947 = vmatpush1.bf16.msra.mxu0 %v7282
    %10948 = vmatprep.subr.bf16.mxu0 %v7275
    %10949 = vmatpush1.bf16.msra.mxu0 %v7274
    %10950 = vmatprep.subr.bf16.mxu0 %v7267
    %10951 = vmatpush1.bf16.msra.mxu0 %v7266
    %10952 = vmatprep.subr.bf16.mxu0 %v7259
    %10953 = vmatpush1.bf16.msra.mxu0 %v7258
    %10954 = vmatprep.subr.bf16.mxu0 %v7379
    %10955 = vmatpush2.bf16.msra.mxu0 %v7378
    %10956 = vmatprep.subr.bf16.mxu0 %v7371
    %10957 = vmatpush2.bf16.msra.mxu0 %v7370
    %10958 = vmatprep.subr.bf16.mxu0 %v7363
    %10959 = vmatpush2.bf16.msra.mxu0 %v7362
    %10960 = vmatprep.subr.bf16.mxu0 %v7355
    %10961 = vmatpush2.bf16.msra.mxu0 %v7354
    %10962 = vmatprep.subr.bf16.mxu0 %v7347
    %10963 = vmatpush2.bf16.msra.mxu0 %v7346
    %10964 = vmatprep.subr.bf16.mxu0 %v7339
    %10965 = vmatpush2.bf16.msra.mxu0 %v7338
    %10966 = vmatprep.subr.bf16.mxu0 %v7331
    %10967 = vmatpush2.bf16.msra.mxu0 %v7330
    %10968 = vmatprep.subr.bf16.mxu0 %v7323
    %10969 = vmatpush2.bf16.msra.mxu0 %v7322
    %10970 = vmatprep.mubr.bf16.mxu0 %v1746
    %10971 = vmatmul.mubr.bf16.gmra.mxu0 %v1745
    %v10972 = vpop.f32.mrf.mxu0
    %v10973 = vadd.f32 %v10932, %v10972
    %v10974 = vpop.f32.mrf.mxu0
    %v10975 = vadd.f32 %v10934, %v10974
    %v10976 = vpop.f32.mrf.mxu0
    %v10977 = vpop.f32.mrf.mxu0
    %10978 = vdwg.mxu0
    %10979 = vmatprep.subr.bf16.mxu0 %v7443
    %10980 = vmatpush1.bf16.msra.mxu0 %v7442
    %10981 = vmatprep.subr.bf16.mxu0 %v7435
    %10982 = vmatpush1.bf16.msra.mxu0 %v7434
    %10983 = vmatprep.subr.bf16.mxu0 %v7427
    %10984 = vmatpush1.bf16.msra.mxu0 %v7426
    %10985 = vmatprep.subr.bf16.mxu0 %v7419
    %10986 = vmatpush1.bf16.msra.mxu0 %v7418
    %10987 = vmatprep.subr.bf16.mxu0 %v7411
    %10988 = vmatpush1.bf16.msra.mxu0 %v7410
    %10989 = vmatprep.subr.bf16.mxu0 %v7403
    %10990 = vmatpush1.bf16.msra.mxu0 %v7402
    %10991 = vmatprep.subr.bf16.mxu0 %v7395
    %10992 = vmatpush1.bf16.msra.mxu0 %v7394
    %10993 = vmatprep.subr.bf16.mxu0 %v7387
    %10994 = vmatpush1.bf16.msra.mxu0 %v7386
    %10995 = vmatprep.subr.bf16.mxu0 %v7507
    %10996 = vmatpush2.bf16.msra.mxu0 %v7506
    %10997 = vmatprep.subr.bf16.mxu0 %v7499
    %10998 = vmatpush2.bf16.msra.mxu0 %v7498
    %10999 = vmatprep.subr.bf16.mxu0 %v7491
    %11000 = vmatpush2.bf16.msra.mxu0 %v7490
    %11001 = vmatprep.subr.bf16.mxu0 %v7483
    %11002 = vmatpush2.bf16.msra.mxu0 %v7482
    %11003 = vmatprep.subr.bf16.mxu0 %v7475
    %11004 = vmatpush2.bf16.msra.mxu0 %v7474
    %11005 = vmatprep.subr.bf16.mxu0 %v7467
    %11006 = vmatpush2.bf16.msra.mxu0 %v7466
    %11007 = vmatprep.subr.bf16.mxu0 %v7459
    %11008 = vmatpush2.bf16.msra.mxu0 %v7458
    %11009 = vmatprep.subr.bf16.mxu0 %v7451
    %11010 = vmatpush2.bf16.msra.mxu0 %v7450
    %11011 = vmatprep.mubr.bf16.mxu0 %v1748
    %11012 = vmatmul.mubr.bf16.gmra.mxu0 %v1747
    %v11013 = vpop.f32.mrf.mxu0
    %v11014 = vadd.f32 %v10973, %v11013
    %v11015 = vpop.f32.mrf.mxu0
    %v11016 = vadd.f32 %v10975, %v11015
    %v11017 = vpop.f32.mrf.mxu0
    %v11018 = vpop.f32.mrf.mxu0
    %11019 = vdwg.mxu0
    %11020 = vmatprep.subr.bf16.mxu0 %v7571
    %11021 = vmatpush1.bf16.msra.mxu0 %v7570
    %11022 = vmatprep.subr.bf16.mxu0 %v7563
    %11023 = vmatpush1.bf16.msra.mxu0 %v7562
    %11024 = vmatprep.subr.bf16.mxu0 %v7555
    %11025 = vmatpush1.bf16.msra.mxu0 %v7554
    %11026 = vmatprep.subr.bf16.mxu0 %v7547
    %11027 = vmatpush1.bf16.msra.mxu0 %v7546
    %11028 = vmatprep.subr.bf16.mxu0 %v7539
    %11029 = vmatpush1.bf16.msra.mxu0 %v7538
    %11030 = vmatprep.subr.bf16.mxu0 %v7531
    %11031 = vmatpush1.bf16.msra.mxu0 %v7530
    %11032 = vmatprep.subr.bf16.mxu0 %v7523
    %11033 = vmatpush1.bf16.msra.mxu0 %v7522
    %11034 = vmatprep.subr.bf16.mxu0 %v7515
    %11035 = vmatpush1.bf16.msra.mxu0 %v7514
    %11036 = vmatprep.subr.bf16.mxu0 %v7635
    %11037 = vmatpush2.bf16.msra.mxu0 %v7634
    %11038 = vmatprep.subr.bf16.mxu0 %v7627
    %11039 = vmatpush2.bf16.msra.mxu0 %v7626
    %11040 = vmatprep.subr.bf16.mxu0 %v7619
    %11041 = vmatpush2.bf16.msra.mxu0 %v7618
    %11042 = vmatprep.subr.bf16.mxu0 %v7611
    %11043 = vmatpush2.bf16.msra.mxu0 %v7610
    %11044 = vmatprep.subr.bf16.mxu0 %v7603
    %11045 = vmatpush2.bf16.msra.mxu0 %v7602
    %11046 = vmatprep.subr.bf16.mxu0 %v7595
    %11047 = vmatpush2.bf16.msra.mxu0 %v7594
    %11048 = vmatprep.subr.bf16.mxu0 %v7587
    %11049 = vmatpush2.bf16.msra.mxu0 %v7586
    %11050 = vmatprep.subr.bf16.mxu0 %v7579
    %11051 = vmatpush2.bf16.msra.mxu0 %v7578
    %11052 = vmatprep.mubr.bf16.mxu0 %v1750
    %11053 = vmatmul.mubr.bf16.gmra.mxu0 %v1749
    %v11054 = vpop.f32.mrf.mxu0
    %v11055 = vadd.f32 %v11014, %v11054
    %v11056 = vpop.f32.mrf.mxu0
    %v11057 = vadd.f32 %v11016, %v11056
    %v11058 = vpop.f32.mrf.mxu0
    %v11059 = vpop.f32.mrf.mxu0
    %11060 = vdwg.mxu0
    %11061 = vmatprep.subr.bf16.mxu0 %v7699
    %11062 = vmatpush1.bf16.msra.mxu0 %v7698
    %11063 = vmatprep.subr.bf16.mxu0 %v7691
    %11064 = vmatpush1.bf16.msra.mxu0 %v7690
    %11065 = vmatprep.subr.bf16.mxu0 %v7683
    %11066 = vmatpush1.bf16.msra.mxu0 %v7682
    %11067 = vmatprep.subr.bf16.mxu0 %v7675
    %11068 = vmatpush1.bf16.msra.mxu0 %v7674
    %11069 = vmatprep.subr.bf16.mxu0 %v7667
    %11070 = vmatpush1.bf16.msra.mxu0 %v7666
    %11071 = vmatprep.subr.bf16.mxu0 %v7659
    %11072 = vmatpush1.bf16.msra.mxu0 %v7658
    %11073 = vmatprep.subr.bf16.mxu0 %v7651
    %11074 = vmatpush1.bf16.msra.mxu0 %v7650
    %11075 = vmatprep.subr.bf16.mxu0 %v7643
    %11076 = vmatpush1.bf16.msra.mxu0 %v7642
    %11077 = vmatprep.subr.bf16.mxu0 %v7763
    %11078 = vmatpush2.bf16.msra.mxu0 %v7762
    %11079 = vmatprep.subr.bf16.mxu0 %v7755
    %11080 = vmatpush2.bf16.msra.mxu0 %v7754
    %11081 = vmatprep.subr.bf16.mxu0 %v7747
    %11082 = vmatpush2.bf16.msra.mxu0 %v7746
    %11083 = vmatprep.subr.bf16.mxu0 %v7739
    %11084 = vmatpush2.bf16.msra.mxu0 %v7738
    %11085 = vmatprep.subr.bf16.mxu0 %v7731
    %11086 = vmatpush2.bf16.msra.mxu0 %v7730
    %11087 = vmatprep.subr.bf16.mxu0 %v7723
    %11088 = vmatpush2.bf16.msra.mxu0 %v7722
    %11089 = vmatprep.subr.bf16.mxu0 %v7715
    %11090 = vmatpush2.bf16.msra.mxu0 %v7714
    %11091 = vmatprep.subr.bf16.mxu0 %v7707
    %11092 = vmatpush2.bf16.msra.mxu0 %v7706
    %11093 = vmatprep.mubr.bf16.mxu0 %v1752
    %11094 = vmatmul.mubr.bf16.gmra.mxu0 %v1751
    %v11095 = vpop.f32.mrf.mxu0
    %v11096 = vadd.f32 %v11055, %v11095
    %v11097 = vpop.f32.mrf.mxu0
    %v11098 = vadd.f32 %v11057, %v11097
    %v11099 = vpop.f32.mrf.mxu0
    %v11100 = vpop.f32.mrf.mxu0
    %11101 = vdwg.mxu0
    %11102 = vmatprep.subr.bf16.mxu0 %v7827
    %11103 = vmatpush1.bf16.msra.mxu0 %v7826
    %11104 = vmatprep.subr.bf16.mxu0 %v7819
    %11105 = vmatpush1.bf16.msra.mxu0 %v7818
    %11106 = vmatprep.subr.bf16.mxu0 %v7811
    %11107 = vmatpush1.bf16.msra.mxu0 %v7810
    %11108 = vmatprep.subr.bf16.mxu0 %v7803
    %11109 = vmatpush1.bf16.msra.mxu0 %v7802
    %11110 = vmatprep.subr.bf16.mxu0 %v7795
    %11111 = vmatpush1.bf16.msra.mxu0 %v7794
    %11112 = vmatprep.subr.bf16.mxu0 %v7787
    %11113 = vmatpush1.bf16.msra.mxu0 %v7786
    %11114 = vmatprep.subr.bf16.mxu0 %v7779
    %11115 = vmatpush1.bf16.msra.mxu0 %v7778
    %11116 = vmatprep.subr.bf16.mxu0 %v7771
    %11117 = vmatpush1.bf16.msra.mxu0 %v7770
    %11118 = vmatprep.subr.bf16.mxu0 %v7891
    %11119 = vmatpush2.bf16.msra.mxu0 %v7890
    %11120 = vmatprep.subr.bf16.mxu0 %v7883
    %11121 = vmatpush2.bf16.msra.mxu0 %v7882
    %11122 = vmatprep.subr.bf16.mxu0 %v7875
    %11123 = vmatpush2.bf16.msra.mxu0 %v7874
    %11124 = vmatprep.subr.bf16.mxu0 %v7867
    %11125 = vmatpush2.bf16.msra.mxu0 %v7866
    %11126 = vmatprep.subr.bf16.mxu0 %v7859
    %11127 = vmatpush2.bf16.msra.mxu0 %v7858
    %11128 = vmatprep.subr.bf16.mxu0 %v7851
    %11129 = vmatpush2.bf16.msra.mxu0 %v7850
    %11130 = vmatprep.subr.bf16.mxu0 %v7843
    %11131 = vmatpush2.bf16.msra.mxu0 %v7842
    %11132 = vmatprep.subr.bf16.mxu0 %v7835
    %11133 = vmatpush2.bf16.msra.mxu0 %v7834
    %11134 = vmatprep.mubr.bf16.mxu0 %v1754
    %11135 = vmatmul.mubr.bf16.gmra.mxu0 %v1753
    %v11136 = vpop.f32.mrf.mxu0
    %v11137 = vadd.f32 %v11096, %v11136
    %v11138 = vpop.f32.mrf.mxu0
    %v11139 = vadd.f32 %v11098, %v11138
    %v11140 = vpop.f32.mrf.mxu0
    %v11141 = vpop.f32.mrf.mxu0
    %11142 = vdwg.mxu0
    %11143 = vmatprep.subr.bf16.mxu0 %v7955
    %11144 = vmatpush1.bf16.msra.mxu0 %v7954
    %11145 = vmatprep.subr.bf16.mxu0 %v7947
    %11146 = vmatpush1.bf16.msra.mxu0 %v7946
    %11147 = vmatprep.subr.bf16.mxu0 %v7939
    %11148 = vmatpush1.bf16.msra.mxu0 %v7938
    %11149 = vmatprep.subr.bf16.mxu0 %v7931
    %11150 = vmatpush1.bf16.msra.mxu0 %v7930
    %11151 = vmatprep.subr.bf16.mxu0 %v7923
    %11152 = vmatpush1.bf16.msra.mxu0 %v7922
    %11153 = vmatprep.subr.bf16.mxu0 %v7915
    %11154 = vmatpush1.bf16.msra.mxu0 %v7914
    %11155 = vmatprep.subr.bf16.mxu0 %v7907
    %11156 = vmatpush1.bf16.msra.mxu0 %v7906
    %11157 = vmatprep.subr.bf16.mxu0 %v7899
    %11158 = vmatpush1.bf16.msra.mxu0 %v7898
    %11159 = vmatprep.subr.bf16.mxu0 %v8019
    %11160 = vmatpush2.bf16.msra.mxu0 %v8018
    %11161 = vmatprep.subr.bf16.mxu0 %v8011
    %11162 = vmatpush2.bf16.msra.mxu0 %v8010
    %11163 = vmatprep.subr.bf16.mxu0 %v8003
    %11164 = vmatpush2.bf16.msra.mxu0 %v8002
    %11165 = vmatprep.subr.bf16.mxu0 %v7995
    %11166 = vmatpush2.bf16.msra.mxu0 %v7994
    %11167 = vmatprep.subr.bf16.mxu0 %v7987
    %11168 = vmatpush2.bf16.msra.mxu0 %v7986
    %11169 = vmatprep.subr.bf16.mxu0 %v7979
    %11170 = vmatpush2.bf16.msra.mxu0 %v7978
    %11171 = vmatprep.subr.bf16.mxu0 %v7971
    %11172 = vmatpush2.bf16.msra.mxu0 %v7970
    %11173 = vmatprep.subr.bf16.mxu0 %v7963
    %11174 = vmatpush2.bf16.msra.mxu0 %v7962
    %11175 = vmatprep.mubr.bf16.mxu0 %v1756
    %11176 = vmatmul.mubr.bf16.gmra.mxu0 %v1755
    %v11177 = vpop.f32.mrf.mxu0
    %v11178 = vadd.f32 %v11137, %v11177
    %v11179 = vpop.f32.mrf.mxu0
    %v11180 = vadd.f32 %v11139, %v11179
    %v11181 = vpop.f32.mrf.mxu0
    %v11182 = vpop.f32.mrf.mxu0
    %11183 = vdwg.mxu0
    %11184 = vmatprep.subr.bf16.mxu0 0
    %11185 = vmatpush1.bf16.msra.mxu0 0
    %11186 = vmatprep.subr.bf16.mxu0 0
    %11187 = vmatpush1.bf16.msra.mxu0 0
    %11188 = vmatprep.subr.bf16.mxu0 0
    %11189 = vmatpush1.bf16.msra.mxu0 0
    %11190 = vmatprep.subr.bf16.mxu0 0
    %11191 = vmatpush1.bf16.msra.mxu0 0
    %11192 = vmatprep.subr.bf16.mxu0 %v8051
    %11193 = vmatpush1.bf16.msra.mxu0 %v8050
    %11194 = vmatprep.subr.bf16.mxu0 %v8043
    %11195 = vmatpush1.bf16.msra.mxu0 %v8042
    %11196 = vmatprep.subr.bf16.mxu0 %v8035
    %11197 = vmatpush1.bf16.msra.mxu0 %v8034
    %11198 = vmatprep.subr.bf16.mxu0 %v8027
    %11199 = vmatpush1.bf16.msra.mxu0 %v8026
    %11200 = vmatprep.subr.bf16.mxu0 0
    %11201 = vmatpush2.bf16.msra.mxu0 0
    %11202 = vmatprep.subr.bf16.mxu0 0
    %11203 = vmatpush2.bf16.msra.mxu0 0
    %11204 = vmatprep.subr.bf16.mxu0 0
    %11205 = vmatpush2.bf16.msra.mxu0 0
    %11206 = vmatprep.subr.bf16.mxu0 0
    %11207 = vmatpush2.bf16.msra.mxu0 0
    %11208 = vmatprep.subr.bf16.mxu0 0
    %11209 = vmatpush2.bf16.msra.mxu0 0
    %11210 = vmatprep.subr.bf16.mxu0 0
    %11211 = vmatpush2.bf16.msra.mxu0 0
    %11212 = vmatprep.subr.bf16.mxu0 0
    %11213 = vmatpush2.bf16.msra.mxu0 0
    %11214 = vmatprep.subr.bf16.mxu0 0
    %11215 = vmatpush2.bf16.msra.mxu0 0
    %11216 = vmatprep.mubr.bf16.mxu0 0
    %11217 = vmatmul.mubr.bf16.gmra.mxu0 %v9624
    %v11218 = vpop.f32.mrf.mxu0
    %v11219 = vadd.f32 %v11178, %v11218
    %v11220 = vpop.f32.mrf.mxu0
    %v11221 = vadd.f32 %v11180, %v11220
    %v11222 = vpop.f32.mrf.mxu0
    %v11223 = vpop.f32.mrf.mxu0
    %11224 = vdwg.mxu0
    %11225 = vmatprep.subr.bf16.mxu0 %v6549
    %11226 = vmatpush1.bf16.msra.mxu0 %v6548
    %11227 = vmatprep.subr.bf16.mxu0 %v6541
    %11228 = vmatpush1.bf16.msra.mxu0 %v6540
    %11229 = vmatprep.subr.bf16.mxu0 %v6533
    %11230 = vmatpush1.bf16.msra.mxu0 %v6532
    %11231 = vmatprep.subr.bf16.mxu0 %v6525
    %11232 = vmatpush1.bf16.msra.mxu0 %v6524
    %11233 = vmatprep.subr.bf16.mxu0 %v6517
    %11234 = vmatpush1.bf16.msra.mxu0 %v6516
    %11235 = vmatprep.subr.bf16.mxu0 %v6509
    %11236 = vmatpush1.bf16.msra.mxu0 %v6508
    %11237 = vmatprep.subr.bf16.mxu0 %v6501
    %11238 = vmatpush1.bf16.msra.mxu0 %v6500
    %11239 = vmatprep.subr.bf16.mxu0 %v6493
    %11240 = vmatpush1.bf16.msra.mxu0 %v6492
    %11241 = vmatprep.subr.bf16.mxu0 %v6613
    %11242 = vmatpush2.bf16.msra.mxu0 %v6612
    %11243 = vmatprep.subr.bf16.mxu0 %v6605
    %11244 = vmatpush2.bf16.msra.mxu0 %v6604
    %11245 = vmatprep.subr.bf16.mxu0 %v6597
    %11246 = vmatpush2.bf16.msra.mxu0 %v6596
    %11247 = vmatprep.subr.bf16.mxu0 %v6589
    %11248 = vmatpush2.bf16.msra.mxu0 %v6588
    %11249 = vmatprep.subr.bf16.mxu0 %v6581
    %11250 = vmatpush2.bf16.msra.mxu0 %v6580
    %11251 = vmatprep.subr.bf16.mxu0 %v6573
    %11252 = vmatpush2.bf16.msra.mxu0 %v6572
    %11253 = vmatprep.subr.bf16.mxu0 %v6565
    %11254 = vmatpush2.bf16.msra.mxu0 %v6564
    %11255 = vmatprep.subr.bf16.mxu0 %v6557
    %11256 = vmatpush2.bf16.msra.mxu0 %v6556
    %11257 = vmatprep.mubr.bf16.mxu0 %v1734
    %11258 = vmatmul.mubr.bf16.gmra.mxu0 %v1733
    %v11259 = vpop.f32.mrf.mxu0
    %v11260 = vadd.f32 %v1682, %v11259
    %v11261 = vpop.f32.mrf.mxu0
    %v11262 = vadd.f32 %v1686, %v11261
    %v11263 = vpop.f32.mrf.mxu0
    %v11264 = vpop.f32.mrf.mxu0
    %11265 = vdwg.mxu0
    %11266 = vmatprep.subr.bf16.mxu0 %v6677
    %11267 = vmatpush1.bf16.msra.mxu0 %v6676
    %11268 = vmatprep.subr.bf16.mxu0 %v6669
    %11269 = vmatpush1.bf16.msra.mxu0 %v6668
    %11270 = vmatprep.subr.bf16.mxu0 %v6661
    %11271 = vmatpush1.bf16.msra.mxu0 %v6660
    %11272 = vmatprep.subr.bf16.mxu0 %v6653
    %11273 = vmatpush1.bf16.msra.mxu0 %v6652
    %11274 = vmatprep.subr.bf16.mxu0 %v6645
    %11275 = vmatpush1.bf16.msra.mxu0 %v6644
    %11276 = vmatprep.subr.bf16.mxu0 %v6637
    %11277 = vmatpush1.bf16.msra.mxu0 %v6636
    %11278 = vmatprep.subr.bf16.mxu0 %v6629
    %11279 = vmatpush1.bf16.msra.mxu0 %v6628
    %11280 = vmatprep.subr.bf16.mxu0 %v6621
    %11281 = vmatpush1.bf16.msra.mxu0 %v6620
    %11282 = vmatprep.subr.bf16.mxu0 %v6741
    %11283 = vmatpush2.bf16.msra.mxu0 %v6740
    %11284 = vmatprep.subr.bf16.mxu0 %v6733
    %11285 = vmatpush2.bf16.msra.mxu0 %v6732
    %11286 = vmatprep.subr.bf16.mxu0 %v6725
    %11287 = vmatpush2.bf16.msra.mxu0 %v6724
    %11288 = vmatprep.subr.bf16.mxu0 %v6717
    %11289 = vmatpush2.bf16.msra.mxu0 %v6716
    %11290 = vmatprep.subr.bf16.mxu0 %v6709
    %11291 = vmatpush2.bf16.msra.mxu0 %v6708
    %11292 = vmatprep.subr.bf16.mxu0 %v6701
    %11293 = vmatpush2.bf16.msra.mxu0 %v6700
    %11294 = vmatprep.subr.bf16.mxu0 %v6693
    %11295 = vmatpush2.bf16.msra.mxu0 %v6692
    %11296 = vmatprep.subr.bf16.mxu0 %v6685
    %11297 = vmatpush2.bf16.msra.mxu0 %v6684
    %11298 = vmatprep.mubr.bf16.mxu0 %v1736
    %11299 = vmatmul.mubr.bf16.gmra.mxu0 %v1735
    %v11300 = vpop.f32.mrf.mxu0
    %v11301 = vadd.f32 %v11260, %v11300
    %v11302 = vpop.f32.mrf.mxu0
    %v11303 = vadd.f32 %v11262, %v11302
    %v11304 = vpop.f32.mrf.mxu0
    %v11305 = vpop.f32.mrf.mxu0
    %11306 = vdwg.mxu0
    %11307 = vmatprep.subr.bf16.mxu0 %v6805
    %11308 = vmatpush1.bf16.msra.mxu0 %v6804
    %11309 = vmatprep.subr.bf16.mxu0 %v6797
    %11310 = vmatpush1.bf16.msra.mxu0 %v6796
    %11311 = vmatprep.subr.bf16.mxu0 %v6789
    %11312 = vmatpush1.bf16.msra.mxu0 %v6788
    %11313 = vmatprep.subr.bf16.mxu0 %v6781
    %11314 = vmatpush1.bf16.msra.mxu0 %v6780
    %11315 = vmatprep.subr.bf16.mxu0 %v6773
    %11316 = vmatpush1.bf16.msra.mxu0 %v6772
    %11317 = vmatprep.subr.bf16.mxu0 %v6765
    %11318 = vmatpush1.bf16.msra.mxu0 %v6764
    %11319 = vmatprep.subr.bf16.mxu0 %v6757
    %11320 = vmatpush1.bf16.msra.mxu0 %v6756
    %11321 = vmatprep.subr.bf16.mxu0 %v6749
    %11322 = vmatpush1.bf16.msra.mxu0 %v6748
    %11323 = vmatprep.subr.bf16.mxu0 %v6869
    %11324 = vmatpush2.bf16.msra.mxu0 %v6868
    %11325 = vmatprep.subr.bf16.mxu0 %v6861
    %11326 = vmatpush2.bf16.msra.mxu0 %v6860
    %11327 = vmatprep.subr.bf16.mxu0 %v6853
    %11328 = vmatpush2.bf16.msra.mxu0 %v6852
    %11329 = vmatprep.subr.bf16.mxu0 %v6845
    %11330 = vmatpush2.bf16.msra.mxu0 %v6844
    %11331 = vmatprep.subr.bf16.mxu0 %v6837
    %11332 = vmatpush2.bf16.msra.mxu0 %v6836
    %11333 = vmatprep.subr.bf16.mxu0 %v6829
    %11334 = vmatpush2.bf16.msra.mxu0 %v6828
    %11335 = vmatprep.subr.bf16.mxu0 %v6821
    %11336 = vmatpush2.bf16.msra.mxu0 %v6820
    %11337 = vmatprep.subr.bf16.mxu0 %v6813
    %11338 = vmatpush2.bf16.msra.mxu0 %v6812
    %11339 = vmatprep.mubr.bf16.mxu0 %v1738
    %11340 = vmatmul.mubr.bf16.gmra.mxu0 %v1737
    %v11341 = vpop.f32.mrf.mxu0
    %v11342 = vadd.f32 %v11301, %v11341
    %v11343 = vpop.f32.mrf.mxu0
    %v11344 = vadd.f32 %v11303, %v11343
    %v11345 = vpop.f32.mrf.mxu0
    %v11346 = vpop.f32.mrf.mxu0
    %11347 = vdwg.mxu0
    %11348 = vmatprep.subr.bf16.mxu0 %v6933
    %11349 = vmatpush1.bf16.msra.mxu0 %v6932
    %11350 = vmatprep.subr.bf16.mxu0 %v6925
    %11351 = vmatpush1.bf16.msra.mxu0 %v6924
    %11352 = vmatprep.subr.bf16.mxu0 %v6917
    %11353 = vmatpush1.bf16.msra.mxu0 %v6916
    %11354 = vmatprep.subr.bf16.mxu0 %v6909
    %11355 = vmatpush1.bf16.msra.mxu0 %v6908
    %11356 = vmatprep.subr.bf16.mxu0 %v6901
    %11357 = vmatpush1.bf16.msra.mxu0 %v6900
    %11358 = vmatprep.subr.bf16.mxu0 %v6893
    %11359 = vmatpush1.bf16.msra.mxu0 %v6892
    %11360 = vmatprep.subr.bf16.mxu0 %v6885
    %11361 = vmatpush1.bf16.msra.mxu0 %v6884
    %11362 = vmatprep.subr.bf16.mxu0 %v6877
    %11363 = vmatpush1.bf16.msra.mxu0 %v6876
    %11364 = vmatprep.subr.bf16.mxu0 %v6997
    %11365 = vmatpush2.bf16.msra.mxu0 %v6996
    %11366 = vmatprep.subr.bf16.mxu0 %v6989
    %11367 = vmatpush2.bf16.msra.mxu0 %v6988
    %11368 = vmatprep.subr.bf16.mxu0 %v6981
    %11369 = vmatpush2.bf16.msra.mxu0 %v6980
    %11370 = vmatprep.subr.bf16.mxu0 %v6973
    %11371 = vmatpush2.bf16.msra.mxu0 %v6972
    %11372 = vmatprep.subr.bf16.mxu0 %v6965
    %11373 = vmatpush2.bf16.msra.mxu0 %v6964
    %11374 = vmatprep.subr.bf16.mxu0 %v6957
    %11375 = vmatpush2.bf16.msra.mxu0 %v6956
    %11376 = vmatprep.subr.bf16.mxu0 %v6949
    %11377 = vmatpush2.bf16.msra.mxu0 %v6948
    %11378 = vmatprep.subr.bf16.mxu0 %v6941
    %11379 = vmatpush2.bf16.msra.mxu0 %v6940
    %11380 = vmatprep.mubr.bf16.mxu0 %v1740
    %11381 = vmatmul.mubr.bf16.gmra.mxu0 %v1739
    %v11382 = vpop.f32.mrf.mxu0
    %v11383 = vadd.f32 %v11342, %v11382
    %v11384 = vpop.f32.mrf.mxu0
    %v11385 = vadd.f32 %v11344, %v11384
    %v11386 = vpop.f32.mrf.mxu0
    %v11387 = vpop.f32.mrf.mxu0
    %11388 = vdwg.mxu0
    %11389 = vmatprep.subr.bf16.mxu0 %v7061
    %11390 = vmatpush1.bf16.msra.mxu0 %v7060
    %11391 = vmatprep.subr.bf16.mxu0 %v7053
    %11392 = vmatpush1.bf16.msra.mxu0 %v7052
    %11393 = vmatprep.subr.bf16.mxu0 %v7045
    %11394 = vmatpush1.bf16.msra.mxu0 %v7044
    %11395 = vmatprep.subr.bf16.mxu0 %v7037
    %11396 = vmatpush1.bf16.msra.mxu0 %v7036
    %11397 = vmatprep.subr.bf16.mxu0 %v7029
    %11398 = vmatpush1.bf16.msra.mxu0 %v7028
    %11399 = vmatprep.subr.bf16.mxu0 %v7021
    %11400 = vmatpush1.bf16.msra.mxu0 %v7020
    %11401 = vmatprep.subr.bf16.mxu0 %v7013
    %11402 = vmatpush1.bf16.msra.mxu0 %v7012
    %11403 = vmatprep.subr.bf16.mxu0 %v7005
    %11404 = vmatpush1.bf16.msra.mxu0 %v7004
    %11405 = vmatprep.subr.bf16.mxu0 %v7125
    %11406 = vmatpush2.bf16.msra.mxu0 %v7124
    %11407 = vmatprep.subr.bf16.mxu0 %v7117
    %11408 = vmatpush2.bf16.msra.mxu0 %v7116
    %11409 = vmatprep.subr.bf16.mxu0 %v7109
    %11410 = vmatpush2.bf16.msra.mxu0 %v7108
    %11411 = vmatprep.subr.bf16.mxu0 %v7101
    %11412 = vmatpush2.bf16.msra.mxu0 %v7100
    %11413 = vmatprep.subr.bf16.mxu0 %v7093
    %11414 = vmatpush2.bf16.msra.mxu0 %v7092
    %11415 = vmatprep.subr.bf16.mxu0 %v7085
    %11416 = vmatpush2.bf16.msra.mxu0 %v7084
    %11417 = vmatprep.subr.bf16.mxu0 %v7077
    %11418 = vmatpush2.bf16.msra.mxu0 %v7076
    %11419 = vmatprep.subr.bf16.mxu0 %v7069
    %11420 = vmatpush2.bf16.msra.mxu0 %v7068
    %11421 = vmatprep.mubr.bf16.mxu0 %v1742
    %11422 = vmatmul.mubr.bf16.gmra.mxu0 %v1741
    %v11423 = vpop.f32.mrf.mxu0
    %v11424 = vadd.f32 %v11383, %v11423
    %v11425 = vpop.f32.mrf.mxu0
    %v11426 = vadd.f32 %v11385, %v11425
    %v11427 = vpop.f32.mrf.mxu0
    %v11428 = vpop.f32.mrf.mxu0
    %11429 = vdwg.mxu0
    %11430 = vmatprep.subr.bf16.mxu0 %v7189
    %11431 = vmatpush1.bf16.msra.mxu0 %v7188
    %11432 = vmatprep.subr.bf16.mxu0 %v7181
    %11433 = vmatpush1.bf16.msra.mxu0 %v7180
    %11434 = vmatprep.subr.bf16.mxu0 %v7173
    %11435 = vmatpush1.bf16.msra.mxu0 %v7172
    %11436 = vmatprep.subr.bf16.mxu0 %v7165
    %11437 = vmatpush1.bf16.msra.mxu0 %v7164
    %11438 = vmatprep.subr.bf16.mxu0 %v7157
    %11439 = vmatpush1.bf16.msra.mxu0 %v7156
    %11440 = vmatprep.subr.bf16.mxu0 %v7149
    %11441 = vmatpush1.bf16.msra.mxu0 %v7148
    %11442 = vmatprep.subr.bf16.mxu0 %v7141
    %11443 = vmatpush1.bf16.msra.mxu0 %v7140
    %11444 = vmatprep.subr.bf16.mxu0 %v7133
    %11445 = vmatpush1.bf16.msra.mxu0 %v7132
    %11446 = vmatprep.subr.bf16.mxu0 %v7253
    %11447 = vmatpush2.bf16.msra.mxu0 %v7252
    %11448 = vmatprep.subr.bf16.mxu0 %v7245
    %11449 = vmatpush2.bf16.msra.mxu0 %v7244
    %11450 = vmatprep.subr.bf16.mxu0 %v7237
    %11451 = vmatpush2.bf16.msra.mxu0 %v7236
    %11452 = vmatprep.subr.bf16.mxu0 %v7229
    %11453 = vmatpush2.bf16.msra.mxu0 %v7228
    %11454 = vmatprep.subr.bf16.mxu0 %v7221
    %11455 = vmatpush2.bf16.msra.mxu0 %v7220
    %11456 = vmatprep.subr.bf16.mxu0 %v7213
    %11457 = vmatpush2.bf16.msra.mxu0 %v7212
    %11458 = vmatprep.subr.bf16.mxu0 %v7205
    %11459 = vmatpush2.bf16.msra.mxu0 %v7204
    %11460 = vmatprep.subr.bf16.mxu0 %v7197
    %11461 = vmatpush2.bf16.msra.mxu0 %v7196
    %11462 = vmatprep.mubr.bf16.mxu0 %v1744
    %11463 = vmatmul.mubr.bf16.gmra.mxu0 %v1743
    %v11464 = vpop.f32.mrf.mxu0
    %v11465 = vadd.f32 %v11424, %v11464
    %v11466 = vpop.f32.mrf.mxu0
    %v11467 = vadd.f32 %v11426, %v11466
    %v11468 = vpop.f32.mrf.mxu0
    %v11469 = vpop.f32.mrf.mxu0
    %11470 = vdwg.mxu0
    %11471 = vmatprep.subr.bf16.mxu0 %v7317
    %11472 = vmatpush1.bf16.msra.mxu0 %v7316
    %11473 = vmatprep.subr.bf16.mxu0 %v7309
    %11474 = vmatpush1.bf16.msra.mxu0 %v7308
    %11475 = vmatprep.subr.bf16.mxu0 %v7301
    %11476 = vmatpush1.bf16.msra.mxu0 %v7300
    %11477 = vmatprep.subr.bf16.mxu0 %v7293
    %11478 = vmatpush1.bf16.msra.mxu0 %v7292
    %11479 = vmatprep.subr.bf16.mxu0 %v7285
    %11480 = vmatpush1.bf16.msra.mxu0 %v7284
    %11481 = vmatprep.subr.bf16.mxu0 %v7277
    %11482 = vmatpush1.bf16.msra.mxu0 %v7276
    %11483 = vmatprep.subr.bf16.mxu0 %v7269
    %11484 = vmatpush1.bf16.msra.mxu0 %v7268
    %11485 = vmatprep.subr.bf16.mxu0 %v7261
    %11486 = vmatpush1.bf16.msra.mxu0 %v7260
    %11487 = vmatprep.subr.bf16.mxu0 %v7381
    %11488 = vmatpush2.bf16.msra.mxu0 %v7380
    %11489 = vmatprep.subr.bf16.mxu0 %v7373
    %11490 = vmatpush2.bf16.msra.mxu0 %v7372
    %11491 = vmatprep.subr.bf16.mxu0 %v7365
    %11492 = vmatpush2.bf16.msra.mxu0 %v7364
    %11493 = vmatprep.subr.bf16.mxu0 %v7357
    %11494 = vmatpush2.bf16.msra.mxu0 %v7356
    %11495 = vmatprep.subr.bf16.mxu0 %v7349
    %11496 = vmatpush2.bf16.msra.mxu0 %v7348
    %11497 = vmatprep.subr.bf16.mxu0 %v7341
    %11498 = vmatpush2.bf16.msra.mxu0 %v7340
    %11499 = vmatprep.subr.bf16.mxu0 %v7333
    %11500 = vmatpush2.bf16.msra.mxu0 %v7332
    %11501 = vmatprep.subr.bf16.mxu0 %v7325
    %11502 = vmatpush2.bf16.msra.mxu0 %v7324
    %11503 = vmatprep.mubr.bf16.mxu0 %v1746
    %11504 = vmatmul.mubr.bf16.gmra.mxu0 %v1745
    %v11505 = vpop.f32.mrf.mxu0
    %v11506 = vadd.f32 %v11465, %v11505
    %v11507 = vpop.f32.mrf.mxu0
    %v11508 = vadd.f32 %v11467, %v11507
    %v11509 = vpop.f32.mrf.mxu0
    %v11510 = vpop.f32.mrf.mxu0
    %11511 = vdwg.mxu0
    %11512 = vmatprep.subr.bf16.mxu0 %v7445
    %11513 = vmatpush1.bf16.msra.mxu0 %v7444
    %11514 = vmatprep.subr.bf16.mxu0 %v7437
    %11515 = vmatpush1.bf16.msra.mxu0 %v7436
    %11516 = vmatprep.subr.bf16.mxu0 %v7429
    %11517 = vmatpush1.bf16.msra.mxu0 %v7428
    %11518 = vmatprep.subr.bf16.mxu0 %v7421
    %11519 = vmatpush1.bf16.msra.mxu0 %v7420
    %11520 = vmatprep.subr.bf16.mxu0 %v7413
    %11521 = vmatpush1.bf16.msra.mxu0 %v7412
    %11522 = vmatprep.subr.bf16.mxu0 %v7405
    %11523 = vmatpush1.bf16.msra.mxu0 %v7404
    %11524 = vmatprep.subr.bf16.mxu0 %v7397
    %11525 = vmatpush1.bf16.msra.mxu0 %v7396
    %11526 = vmatprep.subr.bf16.mxu0 %v7389
    %11527 = vmatpush1.bf16.msra.mxu0 %v7388
    %11528 = vmatprep.subr.bf16.mxu0 %v7509
    %11529 = vmatpush2.bf16.msra.mxu0 %v7508
    %11530 = vmatprep.subr.bf16.mxu0 %v7501
    %11531 = vmatpush2.bf16.msra.mxu0 %v7500
    %11532 = vmatprep.subr.bf16.mxu0 %v7493
    %11533 = vmatpush2.bf16.msra.mxu0 %v7492
    %11534 = vmatprep.subr.bf16.mxu0 %v7485
    %11535 = vmatpush2.bf16.msra.mxu0 %v7484
    %11536 = vmatprep.subr.bf16.mxu0 %v7477
    %11537 = vmatpush2.bf16.msra.mxu0 %v7476
    %11538 = vmatprep.subr.bf16.mxu0 %v7469
    %11539 = vmatpush2.bf16.msra.mxu0 %v7468
    %11540 = vmatprep.subr.bf16.mxu0 %v7461
    %11541 = vmatpush2.bf16.msra.mxu0 %v7460
    %11542 = vmatprep.subr.bf16.mxu0 %v7453
    %11543 = vmatpush2.bf16.msra.mxu0 %v7452
    %11544 = vmatprep.mubr.bf16.mxu0 %v1748
    %11545 = vmatmul.mubr.bf16.gmra.mxu0 %v1747
    %v11546 = vpop.f32.mrf.mxu0
    %v11547 = vadd.f32 %v11506, %v11546
    %v11548 = vpop.f32.mrf.mxu0
    %v11549 = vadd.f32 %v11508, %v11548
    %v11550 = vpop.f32.mrf.mxu0
    %v11551 = vpop.f32.mrf.mxu0
    %11552 = vdwg.mxu0
    %11553 = vmatprep.subr.bf16.mxu0 %v7573
    %11554 = vmatpush1.bf16.msra.mxu0 %v7572
    %11555 = vmatprep.subr.bf16.mxu0 %v7565
    %11556 = vmatpush1.bf16.msra.mxu0 %v7564
    %11557 = vmatprep.subr.bf16.mxu0 %v7557
    %11558 = vmatpush1.bf16.msra.mxu0 %v7556
    %11559 = vmatprep.subr.bf16.mxu0 %v7549
    %11560 = vmatpush1.bf16.msra.mxu0 %v7548
    %11561 = vmatprep.subr.bf16.mxu0 %v7541
    %11562 = vmatpush1.bf16.msra.mxu0 %v7540
    %11563 = vmatprep.subr.bf16.mxu0 %v7533
    %11564 = vmatpush1.bf16.msra.mxu0 %v7532
    %11565 = vmatprep.subr.bf16.mxu0 %v7525
    %11566 = vmatpush1.bf16.msra.mxu0 %v7524
    %11567 = vmatprep.subr.bf16.mxu0 %v7517
    %11568 = vmatpush1.bf16.msra.mxu0 %v7516
    %11569 = vmatprep.subr.bf16.mxu0 %v7637
    %11570 = vmatpush2.bf16.msra.mxu0 %v7636
    %11571 = vmatprep.subr.bf16.mxu0 %v7629
    %11572 = vmatpush2.bf16.msra.mxu0 %v7628
    %11573 = vmatprep.subr.bf16.mxu0 %v7621
    %11574 = vmatpush2.bf16.msra.mxu0 %v7620
    %11575 = vmatprep.subr.bf16.mxu0 %v7613
    %11576 = vmatpush2.bf16.msra.mxu0 %v7612
    %11577 = vmatprep.subr.bf16.mxu0 %v7605
    %11578 = vmatpush2.bf16.msra.mxu0 %v7604
    %11579 = vmatprep.subr.bf16.mxu0 %v7597
    %11580 = vmatpush2.bf16.msra.mxu0 %v7596
    %11581 = vmatprep.subr.bf16.mxu0 %v7589
    %11582 = vmatpush2.bf16.msra.mxu0 %v7588
    %11583 = vmatprep.subr.bf16.mxu0 %v7581
    %11584 = vmatpush2.bf16.msra.mxu0 %v7580
    %11585 = vmatprep.mubr.bf16.mxu0 %v1750
    %11586 = vmatmul.mubr.bf16.gmra.mxu0 %v1749
    %v11587 = vpop.f32.mrf.mxu0
    %v11588 = vadd.f32 %v11547, %v11587
    %v11589 = vpop.f32.mrf.mxu0
    %v11590 = vadd.f32 %v11549, %v11589
    %v11591 = vpop.f32.mrf.mxu0
    %v11592 = vpop.f32.mrf.mxu0
    %11593 = vdwg.mxu0
    %11594 = vmatprep.subr.bf16.mxu0 %v7701
    %11595 = vmatpush1.bf16.msra.mxu0 %v7700
    %11596 = vmatprep.subr.bf16.mxu0 %v7693
    %11597 = vmatpush1.bf16.msra.mxu0 %v7692
    %11598 = vmatprep.subr.bf16.mxu0 %v7685
    %11599 = vmatpush1.bf16.msra.mxu0 %v7684
    %11600 = vmatprep.subr.bf16.mxu0 %v7677
    %11601 = vmatpush1.bf16.msra.mxu0 %v7676
    %11602 = vmatprep.subr.bf16.mxu0 %v7669
    %11603 = vmatpush1.bf16.msra.mxu0 %v7668
    %11604 = vmatprep.subr.bf16.mxu0 %v7661
    %11605 = vmatpush1.bf16.msra.mxu0 %v7660
    %11606 = vmatprep.subr.bf16.mxu0 %v7653
    %11607 = vmatpush1.bf16.msra.mxu0 %v7652
    %11608 = vmatprep.subr.bf16.mxu0 %v7645
    %11609 = vmatpush1.bf16.msra.mxu0 %v7644
    %11610 = vmatprep.subr.bf16.mxu0 %v7765
    %11611 = vmatpush2.bf16.msra.mxu0 %v7764
    %11612 = vmatprep.subr.bf16.mxu0 %v7757
    %11613 = vmatpush2.bf16.msra.mxu0 %v7756
    %11614 = vmatprep.subr.bf16.mxu0 %v7749
    %11615 = vmatpush2.bf16.msra.mxu0 %v7748
    %11616 = vmatprep.subr.bf16.mxu0 %v7741
    %11617 = vmatpush2.bf16.msra.mxu0 %v7740
    %11618 = vmatprep.subr.bf16.mxu0 %v7733
    %11619 = vmatpush2.bf16.msra.mxu0 %v7732
    %11620 = vmatprep.subr.bf16.mxu0 %v7725
    %11621 = vmatpush2.bf16.msra.mxu0 %v7724
    %11622 = vmatprep.subr.bf16.mxu0 %v7717
    %11623 = vmatpush2.bf16.msra.mxu0 %v7716
    %11624 = vmatprep.subr.bf16.mxu0 %v7709
    %11625 = vmatpush2.bf16.msra.mxu0 %v7708
    %11626 = vmatprep.mubr.bf16.mxu0 %v1752
    %11627 = vmatmul.mubr.bf16.gmra.mxu0 %v1751
    %v11628 = vpop.f32.mrf.mxu0
    %v11629 = vadd.f32 %v11588, %v11628
    %v11630 = vpop.f32.mrf.mxu0
    %v11631 = vadd.f32 %v11590, %v11630
    %v11632 = vpop.f32.mrf.mxu0
    %v11633 = vpop.f32.mrf.mxu0
    %11634 = vdwg.mxu0
    %11635 = vmatprep.subr.bf16.mxu0 %v7829
    %11636 = vmatpush1.bf16.msra.mxu0 %v7828
    %11637 = vmatprep.subr.bf16.mxu0 %v7821
    %11638 = vmatpush1.bf16.msra.mxu0 %v7820
    %11639 = vmatprep.subr.bf16.mxu0 %v7813
    %11640 = vmatpush1.bf16.msra.mxu0 %v7812
    %11641 = vmatprep.subr.bf16.mxu0 %v7805
    %11642 = vmatpush1.bf16.msra.mxu0 %v7804
    %11643 = vmatprep.subr.bf16.mxu0 %v7797
    %11644 = vmatpush1.bf16.msra.mxu0 %v7796
    %11645 = vmatprep.subr.bf16.mxu0 %v7789
    %11646 = vmatpush1.bf16.msra.mxu0 %v7788
    %11647 = vmatprep.subr.bf16.mxu0 %v7781
    %11648 = vmatpush1.bf16.msra.mxu0 %v7780
    %11649 = vmatprep.subr.bf16.mxu0 %v7773
    %11650 = vmatpush1.bf16.msra.mxu0 %v7772
    %11651 = vmatprep.subr.bf16.mxu0 %v7893
    %11652 = vmatpush2.bf16.msra.mxu0 %v7892
    %11653 = vmatprep.subr.bf16.mxu0 %v7885
    %11654 = vmatpush2.bf16.msra.mxu0 %v7884
    %11655 = vmatprep.subr.bf16.mxu0 %v7877
    %11656 = vmatpush2.bf16.msra.mxu0 %v7876
    %11657 = vmatprep.subr.bf16.mxu0 %v7869
    %11658 = vmatpush2.bf16.msra.mxu0 %v7868
    %11659 = vmatprep.subr.bf16.mxu0 %v7861
    %11660 = vmatpush2.bf16.msra.mxu0 %v7860
    %11661 = vmatprep.subr.bf16.mxu0 %v7853
    %11662 = vmatpush2.bf16.msra.mxu0 %v7852
    %11663 = vmatprep.subr.bf16.mxu0 %v7845
    %11664 = vmatpush2.bf16.msra.mxu0 %v7844
    %11665 = vmatprep.subr.bf16.mxu0 %v7837
    %11666 = vmatpush2.bf16.msra.mxu0 %v7836
    %11667 = vmatprep.mubr.bf16.mxu0 %v1754
    %11668 = vmatmul.mubr.bf16.gmra.mxu0 %v1753
    %v11669 = vpop.f32.mrf.mxu0
    %v11670 = vadd.f32 %v11629, %v11669
    %v11671 = vpop.f32.mrf.mxu0
    %v11672 = vadd.f32 %v11631, %v11671
    %v11673 = vpop.f32.mrf.mxu0
    %v11674 = vpop.f32.mrf.mxu0
    %11675 = vdwg.mxu0
    %11676 = vmatprep.subr.bf16.mxu0 %v7957
    %11677 = vmatpush1.bf16.msra.mxu0 %v7956
    %11678 = vmatprep.subr.bf16.mxu0 %v7949
    %11679 = vmatpush1.bf16.msra.mxu0 %v7948
    %11680 = vmatprep.subr.bf16.mxu0 %v7941
    %11681 = vmatpush1.bf16.msra.mxu0 %v7940
    %11682 = vmatprep.subr.bf16.mxu0 %v7933
    %11683 = vmatpush1.bf16.msra.mxu0 %v7932
    %11684 = vmatprep.subr.bf16.mxu0 %v7925
    %11685 = vmatpush1.bf16.msra.mxu0 %v7924
    %11686 = vmatprep.subr.bf16.mxu0 %v7917
    %11687 = vmatpush1.bf16.msra.mxu0 %v7916
    %11688 = vmatprep.subr.bf16.mxu0 %v7909
    %11689 = vmatpush1.bf16.msra.mxu0 %v7908
    %11690 = vmatprep.subr.bf16.mxu0 %v7901
    %11691 = vmatpush1.bf16.msra.mxu0 %v7900
    %11692 = vmatprep.subr.bf16.mxu0 %v8021
    %11693 = vmatpush2.bf16.msra.mxu0 %v8020
    %11694 = vmatprep.subr.bf16.mxu0 %v8013
    %11695 = vmatpush2.bf16.msra.mxu0 %v8012
    %11696 = vmatprep.subr.bf16.mxu0 %v8005
    %11697 = vmatpush2.bf16.msra.mxu0 %v8004
    %11698 = vmatprep.subr.bf16.mxu0 %v7997
    %11699 = vmatpush2.bf16.msra.mxu0 %v7996
    %11700 = vmatprep.subr.bf16.mxu0 %v7989
    %11701 = vmatpush2.bf16.msra.mxu0 %v7988
    %11702 = vmatprep.subr.bf16.mxu0 %v7981
    %11703 = vmatpush2.bf16.msra.mxu0 %v7980
    %11704 = vmatprep.subr.bf16.mxu0 %v7973
    %11705 = vmatpush2.bf16.msra.mxu0 %v7972
    %11706 = vmatprep.subr.bf16.mxu0 %v7965
    %11707 = vmatpush2.bf16.msra.mxu0 %v7964
    %11708 = vmatprep.mubr.bf16.mxu0 %v1756
    %11709 = vmatmul.mubr.bf16.gmra.mxu0 %v1755
    %v11710 = vpop.f32.mrf.mxu0
    %v11711 = vadd.f32 %v11670, %v11710
    %v11712 = vpop.f32.mrf.mxu0
    %v11713 = vadd.f32 %v11672, %v11712
    %v11714 = vpop.f32.mrf.mxu0
    %v11715 = vpop.f32.mrf.mxu0
    %11716 = vdwg.mxu0
    %11717 = vmatprep.subr.bf16.mxu0 0
    %11718 = vmatpush1.bf16.msra.mxu0 0
    %11719 = vmatprep.subr.bf16.mxu0 0
    %11720 = vmatpush1.bf16.msra.mxu0 0
    %11721 = vmatprep.subr.bf16.mxu0 0
    %11722 = vmatpush1.bf16.msra.mxu0 0
    %11723 = vmatprep.subr.bf16.mxu0 0
    %11724 = vmatpush1.bf16.msra.mxu0 0
    %11725 = vmatprep.subr.bf16.mxu0 %v8053
    %11726 = vmatpush1.bf16.msra.mxu0 %v8052
    %11727 = vmatprep.subr.bf16.mxu0 %v8045
    %11728 = vmatpush1.bf16.msra.mxu0 %v8044
    %11729 = vmatprep.subr.bf16.mxu0 %v8037
    %11730 = vmatpush1.bf16.msra.mxu0 %v8036
    %11731 = vmatprep.subr.bf16.mxu0 %v8029
    %11732 = vmatpush1.bf16.msra.mxu0 %v8028
    %11733 = vmatprep.subr.bf16.mxu0 0
    %11734 = vmatpush2.bf16.msra.mxu0 0
    %11735 = vmatprep.subr.bf16.mxu0 0
    %11736 = vmatpush2.bf16.msra.mxu0 0
    %11737 = vmatprep.subr.bf16.mxu0 0
    %11738 = vmatpush2.bf16.msra.mxu0 0
    %11739 = vmatprep.subr.bf16.mxu0 0
    %11740 = vmatpush2.bf16.msra.mxu0 0
    %11741 = vmatprep.subr.bf16.mxu0 0
    %11742 = vmatpush2.bf16.msra.mxu0 0
    %11743 = vmatprep.subr.bf16.mxu0 0
    %11744 = vmatpush2.bf16.msra.mxu0 0
    %11745 = vmatprep.subr.bf16.mxu0 0
    %11746 = vmatpush2.bf16.msra.mxu0 0
    %11747 = vmatprep.subr.bf16.mxu0 0
    %11748 = vmatpush2.bf16.msra.mxu0 0
    %11749 = vmatprep.mubr.bf16.mxu0 0
    %11750 = vmatmul.mubr.bf16.gmra.mxu0 %v9624
    %v11751 = vpop.f32.mrf.mxu0
    %v11752 = vadd.f32 %v11711, %v11751
    %v11753 = vpop.f32.mrf.mxu0
    %v11754 = vadd.f32 %v11713, %v11753
    %v11755 = vpop.f32.mrf.mxu0
    %v11756 = vpop.f32.mrf.mxu0
    %11757 = vdwg.mxu0
    %v11758 = vmax.f32 %v10153, 0.0
    %v11759 = vmax.f32 %v10155, 0.0
    %v11760 = vmax.f32 %v10686, 0.0
    %v11761 = vmax.f32 %v10688, 0.0
    %v11762 = vmax.f32 %v11219, 0.0
    %v11763 = vmax.f32 %v11221, 0.0
    %v11764 = vmax.f32 %v11752, 0.0
    %v11765 = vmax.f32 %v11754, 0.0
    %v11766 = vpack.c.bf16 %v11758, %v11758
    %v11767 = vpack.c.bf16 %v11759, %v11759
    %v11768 = vpack.c.bf16 %v11760, %v11760
    %v11769 = vpack.c.bf16 %v11761, %v11761
    %v11770 = vpack.c.bf16 %v11762, %v11762
    %v11771 = vpack.c.bf16 %v11763, %v11763
    %v11772 = vpack.c.bf16 %v11764, %v11764
    %v11773 = vpack.c.bf16 %v11765, %v11765
    %v11774 = vld [vmem:[#allocation6] sm:$0xf]
    %v11775 = vld [vmem:[#allocation6 + $0x4] sm:$0xf]
    %v11776 = vld [vmem:[#allocation6 + $0x8] sm:$0xf]
    %v11777 = vld [vmem:[#allocation6 + $0xc] sm:$0xf]
    %v11778 = vld [vmem:[#allocation6 + $0x10] sm:$0xf]
    %v11779 = vld [vmem:[#allocation6 + $0x14] sm:$0xf]
    %v11780 = vld [vmem:[#allocation6 + $0x18] sm:$0xf]
    %v11781 = vld [vmem:[#allocation6 + $0x1c] sm:$0xf]
    %v11782 = vld [vmem:[#allocation6 + $0x20] sm:$0xf]
    %v11783 = vld [vmem:[#allocation6 + $0x24] sm:$0xf]
    %v11784 = vld [vmem:[#allocation6 + $0x28] sm:$0xf]
    %v11785 = vld [vmem:[#allocation6 + $0x2c] sm:$0xf]
    %v11786 = vld [vmem:[#allocation6 + $0x30] sm:$0xf]
    %v11787 = vld [vmem:[#allocation6 + $0x34] sm:$0xf]
    %v11788 = vld [vmem:[#allocation6 + $0x38] sm:$0xf]
    %v11789 = vld [vmem:[#allocation6 + $0x3c] sm:$0xf]
    %v11790 = vld [vmem:[#allocation6 + $0x40] sm:$0xf]
    %v11791 = vld [vmem:[#allocation6 + $0x44] sm:$0xf]
    %v11792 = vld [vmem:[#allocation6 + $0x48] sm:$0xf]
    %v11793 = vld [vmem:[#allocation6 + $0x4c] sm:$0xf]
    %v11794 = vld [vmem:[#allocation6 + $0x50] sm:$0xf]
    %v11795 = vld [vmem:[#allocation6 + $0x54] sm:$0xf]
    %v11796 = vld [vmem:[#allocation6 + $0x58] sm:$0xf]
    %v11797 = vld [vmem:[#allocation6 + $0x5c] sm:$0xf]
    %v11798 = vld [vmem:[#allocation6 + $0x60] sm:$0xf]
    %v11799 = vld [vmem:[#allocation6 + $0x64] sm:$0xf]
    %v11800 = vld [vmem:[#allocation6 + $0x68] sm:$0xf]
    %v11801 = vld [vmem:[#allocation6 + $0x6c] sm:$0xf]
    %v11802 = vld [vmem:[#allocation6 + $0x70] sm:$0xf]
    %v11803 = vld [vmem:[#allocation6 + $0x74] sm:$0xf]
    %v11804 = vld [vmem:[#allocation6 + $0x78] sm:$0xf]
    %v11805 = vld [vmem:[#allocation6 + $0x7c] sm:$0xf]
    %v11806 = vld [vmem:[#allocation6 + $0x80] sm:$0xf]
    %v11807 = vld [vmem:[#allocation6 + $0x84] sm:$0xf]
    %v11808 = vld [vmem:[#allocation6 + $0x88] sm:$0xf]
    %v11809 = vld [vmem:[#allocation6 + $0x8c] sm:$0xf]
    %v11810 = vld [vmem:[#allocation6 + $0x90] sm:$0xf]
    %v11811 = vld [vmem:[#allocation6 + $0x94] sm:$0xf]
    %v11812 = vld [vmem:[#allocation6 + $0x98] sm:$0xf]
    %v11813 = vld [vmem:[#allocation6 + $0x9c] sm:$0xf]
    %v11814 = vld [vmem:[#allocation6 + $0xa0] sm:$0xf]
    %v11815 = vld [vmem:[#allocation6 + $0xa4] sm:$0xf]
    %v11816 = vld [vmem:[#allocation6 + $0xa8] sm:$0xf]
    %v11817 = vld [vmem:[#allocation6 + $0xac] sm:$0xf]
    %v11818 = vld [vmem:[#allocation6 + $0xb0] sm:$0xf]
    %v11819 = vld [vmem:[#allocation6 + $0xb4] sm:$0xf]
    %v11820 = vld [vmem:[#allocation6 + $0xb8] sm:$0xf]
    %v11821 = vld [vmem:[#allocation6 + $0xbc] sm:$0xf]
    %v11822 = vld [vmem:[#allocation6 + $0xc0] sm:$0xf]
    %v11823 = vld [vmem:[#allocation6 + $0xc4] sm:$0xf]
    %v11824 = vld [vmem:[#allocation6 + $0xc8] sm:$0xf]
    %v11825 = vld [vmem:[#allocation6 + $0xcc] sm:$0xf]
    %v11826 = vld [vmem:[#allocation6 + $0xd0] sm:$0xf]
    %v11827 = vld [vmem:[#allocation6 + $0xd4] sm:$0xf]
    %v11828 = vld [vmem:[#allocation6 + $0xd8] sm:$0xf]
    %v11829 = vld [vmem:[#allocation6 + $0xdc] sm:$0xf]
    %v11830 = vld [vmem:[#allocation6 + $0xe0] sm:$0xf]
    %v11831 = vld [vmem:[#allocation6 + $0xe4] sm:$0xf]
    %v11832 = vld [vmem:[#allocation6 + $0xe8] sm:$0xf]
    %v11833 = vld [vmem:[#allocation6 + $0xec] sm:$0xf]
    %v11834 = vld [vmem:[#allocation6 + $0xf0] sm:$0xf]
    %v11835 = vld [vmem:[#allocation6 + $0xf4] sm:$0xf]
    %v11836 = vld [vmem:[#allocation6 + $0xf8] sm:$0xf]
    %v11837 = vld [vmem:[#allocation6 + $0xfc] sm:$0xf]
    %v11838 = vld [vmem:[#allocation6 + $0x100] sm:$0xf]
    %v11839 = vld [vmem:[#allocation6 + $0x104] sm:$0xf]
    %v11840 = vld [vmem:[#allocation6 + $0x108] sm:$0xf]
    %v11841 = vld [vmem:[#allocation6 + $0x10c] sm:$0xf]
    %v11842 = vld [vmem:[#allocation6 + $0x110] sm:$0xf]
    %v11843 = vld [vmem:[#allocation6 + $0x114] sm:$0xf]
    %v11844 = vld [vmem:[#allocation6 + $0x118] sm:$0xf]
    %v11845 = vld [vmem:[#allocation6 + $0x11c] sm:$0xf]
    %v11846 = vld [vmem:[#allocation6 + $0x120] sm:$0xf]
    %v11847 = vld [vmem:[#allocation6 + $0x124] sm:$0xf]
    %v11848 = vld [vmem:[#allocation6 + $0x128] sm:$0xf]
    %v11849 = vld [vmem:[#allocation6 + $0x12c] sm:$0xf]
    %v11850 = vld [vmem:[#allocation6 + $0x130] sm:$0xf]
    %v11851 = vld [vmem:[#allocation6 + $0x134] sm:$0xf]
    %v11852 = vld [vmem:[#allocation6 + $0x138] sm:$0xf]
    %v11853 = vld [vmem:[#allocation6 + $0x13c] sm:$0xf]
    %v11854 = vld [vmem:[#allocation6 + $0x140] sm:$0xf]
    %v11855 = vld [vmem:[#allocation6 + $0x144] sm:$0xf]
    %v11856 = vld [vmem:[#allocation6 + $0x148] sm:$0xf]
    %v11857 = vld [vmem:[#allocation6 + $0x14c] sm:$0xf]
    %v11858 = vld [vmem:[#allocation6 + $0x150] sm:$0xf]
    %v11859 = vld [vmem:[#allocation6 + $0x154] sm:$0xf]
    %v11860 = vld [vmem:[#allocation6 + $0x158] sm:$0xf]
    %v11861 = vld [vmem:[#allocation6 + $0x15c] sm:$0xf]
    %v11862 = vld [vmem:[#allocation6 + $0x160] sm:$0xf]
    %v11863 = vld [vmem:[#allocation6 + $0x164] sm:$0xf]
    %v11864 = vld [vmem:[#allocation6 + $0x168] sm:$0xf]
    %v11865 = vld [vmem:[#allocation6 + $0x16c] sm:$0xf]
    %v11866 = vld [vmem:[#allocation6 + $0x170] sm:$0xf]
    %v11867 = vld [vmem:[#allocation6 + $0x174] sm:$0xf]
    %v11868 = vld [vmem:[#allocation6 + $0x178] sm:$0xf]
    %v11869 = vld [vmem:[#allocation6 + $0x17c] sm:$0xf]
    %v11870 = vld [vmem:[#allocation6 + $0x180] sm:$0xf]
    %v11871 = vld [vmem:[#allocation6 + $0x184] sm:$0xf]
    %v11872 = vld [vmem:[#allocation6 + $0x188] sm:$0xf]
    %v11873 = vld [vmem:[#allocation6 + $0x18c] sm:$0xf]
    %v11874 = vld [vmem:[#allocation6 + $0x190] sm:$0xf]
    %v11875 = vld [vmem:[#allocation6 + $0x194] sm:$0xf]
    %v11876 = vld [vmem:[#allocation6 + $0x198] sm:$0xf]
    %v11877 = vld [vmem:[#allocation6 + $0x19c] sm:$0xf]
    %v11878 = vld [vmem:[#allocation6 + $0x1a0] sm:$0xf]
    %v11879 = vld [vmem:[#allocation6 + $0x1a4] sm:$0xf]
    %v11880 = vld [vmem:[#allocation6 + $0x1a8] sm:$0xf]
    %v11881 = vld [vmem:[#allocation6 + $0x1ac] sm:$0xf]
    %v11882 = vld [vmem:[#allocation6 + $0x1b0] sm:$0xf]
    %v11883 = vld [vmem:[#allocation6 + $0x1b4] sm:$0xf]
    %v11884 = vld [vmem:[#allocation6 + $0x1b8] sm:$0xf]
    %v11885 = vld [vmem:[#allocation6 + $0x1bc] sm:$0xf]
    %v11886 = vld [vmem:[#allocation6 + $0x1c0] sm:$0xf]
    %v11887 = vld [vmem:[#allocation6 + $0x1c4] sm:$0xf]
    %v11888 = vld [vmem:[#allocation6 + $0x1c8] sm:$0xf]
    %v11889 = vld [vmem:[#allocation6 + $0x1cc] sm:$0xf]
    %v11890 = vld [vmem:[#allocation6 + $0x1d0] sm:$0xf]
    %v11891 = vld [vmem:[#allocation6 + $0x1d4] sm:$0xf]
    %v11892 = vld [vmem:[#allocation6 + $0x1d8] sm:$0xf]
    %v11893 = vld [vmem:[#allocation6 + $0x1dc] sm:$0xf]
    %v11894 = vld [vmem:[#allocation6 + $0x1e0] sm:$0xf]
    %v11895 = vld [vmem:[#allocation6 + $0x1e4] sm:$0xf]
    %v11896 = vld [vmem:[#allocation6 + $0x1e8] sm:$0xf]
    %v11897 = vld [vmem:[#allocation6 + $0x1ec] sm:$0xf]
    %v11898 = vld [vmem:[#allocation6 + $0x1f0] sm:$0xf]
    %v11899 = vld [vmem:[#allocation6 + $0x1f4] sm:$0xf]
    %v11900 = vld [vmem:[#allocation6 + $0x1f8] sm:$0xf]
    %v11901 = vld [vmem:[#allocation6 + $0x1fc] sm:$0xf]
    %v11902 = vld [vmem:[#allocation7] sm:$0x1]
    %v11904 = vlaneseq
    %v11905 = vshrl.u32 %v11904, 7
    %v11906 = vsub.s32 0, %v11905
    %v11907 = vrot.slane %v11902, %v11906
    %v12037 = vunpack.c.l.b16 %v11774
    %v12038 = vunpack.c.l.b16 %v11775
    %v12039 = vunpack.c.l.b16 %v11776
    %v12040 = vunpack.c.l.b16 %v11777
    %v12041 = vunpack.c.l.b16 %v11778
    %v12042 = vunpack.c.l.b16 %v11779
    %v12043 = vunpack.c.l.b16 %v11780
    %v12044 = vunpack.c.l.b16 %v11781
    %v12045 = vunpack.c.l.b16 %v11782
    %v12046 = vunpack.c.l.b16 %v11783
    %v12047 = vunpack.c.l.b16 %v11784
    %v12048 = vunpack.c.l.b16 %v11785
    %v12049 = vunpack.c.l.b16 %v11786
    %v12050 = vunpack.c.l.b16 %v11787
    %v12051 = vunpack.c.l.b16 %v11788
    %v12052 = vunpack.c.l.b16 %v11789
    %v12053 = vunpack.c.l.b16 %v11790
    %v12054 = vunpack.c.l.b16 %v11791
    %v12055 = vunpack.c.l.b16 %v11792
    %v12056 = vunpack.c.l.b16 %v11793
    %v12057 = vunpack.c.l.b16 %v11794
    %v12058 = vunpack.c.l.b16 %v11795
    %v12059 = vunpack.c.l.b16 %v11796
    %v12060 = vunpack.c.l.b16 %v11797
    %v12061 = vunpack.c.l.b16 %v11798
    %v12062 = vunpack.c.l.b16 %v11799
    %v12063 = vunpack.c.l.b16 %v11800
    %v12064 = vunpack.c.l.b16 %v11801
    %v12065 = vunpack.c.l.b16 %v11802
    %v12066 = vunpack.c.l.b16 %v11803
    %v12067 = vunpack.c.l.b16 %v11804
    %v12068 = vunpack.c.l.b16 %v11805
    %v12069 = vunpack.c.l.b16 %v11806
    %v12070 = vunpack.c.l.b16 %v11807
    %v12071 = vunpack.c.l.b16 %v11808
    %v12072 = vunpack.c.l.b16 %v11809
    %v12073 = vunpack.c.l.b16 %v11810
    %v12074 = vunpack.c.l.b16 %v11811
    %v12075 = vunpack.c.l.b16 %v11812
    %v12076 = vunpack.c.l.b16 %v11813
    %v12077 = vunpack.c.l.b16 %v11814
    %v12078 = vunpack.c.l.b16 %v11815
    %v12079 = vunpack.c.l.b16 %v11816
    %v12080 = vunpack.c.l.b16 %v11817
    %v12081 = vunpack.c.l.b16 %v11818
    %v12082 = vunpack.c.l.b16 %v11819
    %v12083 = vunpack.c.l.b16 %v11820
    %v12084 = vunpack.c.l.b16 %v11821
    %v12085 = vunpack.c.l.b16 %v11822
    %v12086 = vunpack.c.l.b16 %v11823
    %v12087 = vunpack.c.l.b16 %v11824
    %v12088 = vunpack.c.l.b16 %v11825
    %v12089 = vunpack.c.l.b16 %v11826
    %v12090 = vunpack.c.l.b16 %v11827
    %v12091 = vunpack.c.l.b16 %v11828
    %v12092 = vunpack.c.l.b16 %v11829
    %v12093 = vunpack.c.l.b16 %v11830
    %v12094 = vunpack.c.l.b16 %v11831
    %v12095 = vunpack.c.l.b16 %v11832
    %v12096 = vunpack.c.l.b16 %v11833
    %v12097 = vunpack.c.l.b16 %v11834
    %v12098 = vunpack.c.l.b16 %v11835
    %v12099 = vunpack.c.l.b16 %v11836
    %v12100 = vunpack.c.l.b16 %v11837
    %v12101 = vunpack.c.l.b16 %v11838
    %v12102 = vunpack.c.l.b16 %v11839
    %v12103 = vunpack.c.l.b16 %v11840
    %v12104 = vunpack.c.l.b16 %v11841
    %v12105 = vunpack.c.l.b16 %v11842
    %v12106 = vunpack.c.l.b16 %v11843
    %v12107 = vunpack.c.l.b16 %v11844
    %v12108 = vunpack.c.l.b16 %v11845
    %v12109 = vunpack.c.l.b16 %v11846
    %v12110 = vunpack.c.l.b16 %v11847
    %v12111 = vunpack.c.l.b16 %v11848
    %v12112 = vunpack.c.l.b16 %v11849
    %v12113 = vunpack.c.l.b16 %v11850
    %v12114 = vunpack.c.l.b16 %v11851
    %v12115 = vunpack.c.l.b16 %v11852
    %v12116 = vunpack.c.l.b16 %v11853
    %v12117 = vunpack.c.l.b16 %v11854
    %v12118 = vunpack.c.l.b16 %v11855
    %v12119 = vunpack.c.l.b16 %v11856
    %v12120 = vunpack.c.l.b16 %v11857
    %v12121 = vunpack.c.l.b16 %v11858
    %v12122 = vunpack.c.l.b16 %v11859
    %v12123 = vunpack.c.l.b16 %v11860
    %v12124 = vunpack.c.l.b16 %v11861
    %v12125 = vunpack.c.l.b16 %v11862
    %v12126 = vunpack.c.l.b16 %v11863
    %v12127 = vunpack.c.l.b16 %v11864
    %v12128 = vunpack.c.l.b16 %v11865
    %v12129 = vunpack.c.l.b16 %v11866
    %v12130 = vunpack.c.l.b16 %v11867
    %v12131 = vunpack.c.l.b16 %v11868
    %v12132 = vunpack.c.l.b16 %v11869
    %v12133 = vunpack.c.l.b16 %v11870
    %v12134 = vunpack.c.l.b16 %v11871
    %v12135 = vunpack.c.l.b16 %v11872
    %v12136 = vunpack.c.l.b16 %v11873
    %v12137 = vunpack.c.l.b16 %v11874
    %v12138 = vunpack.c.l.b16 %v11875
    %v12139 = vunpack.c.l.b16 %v11876
    %v12140 = vunpack.c.l.b16 %v11877
    %v12141 = vunpack.c.l.b16 %v11878
    %v12142 = vunpack.c.l.b16 %v11879
    %v12143 = vunpack.c.l.b16 %v11880
    %v12144 = vunpack.c.l.b16 %v11881
    %v12145 = vunpack.c.l.b16 %v11882
    %v12146 = vunpack.c.l.b16 %v11883
    %v12147 = vunpack.c.l.b16 %v11884
    %v12148 = vunpack.c.l.b16 %v11885
    %v12149 = vunpack.c.l.b16 %v11886
    %v12150 = vunpack.c.l.b16 %v11887
    %v12151 = vunpack.c.l.b16 %v11888
    %v12152 = vunpack.c.l.b16 %v11889
    %v12153 = vunpack.c.l.b16 %v11890
    %v12154 = vunpack.c.l.b16 %v11891
    %v12155 = vunpack.c.l.b16 %v11892
    %v12156 = vunpack.c.l.b16 %v11893
    %v12157 = vunpack.c.l.b16 %v11894
    %v12158 = vunpack.c.l.b16 %v11895
    %v12159 = vunpack.c.l.b16 %v11896
    %v12160 = vunpack.c.l.b16 %v11897
    %v12161 = vunpack.c.l.b16 %v11898
    %v12162 = vunpack.c.l.b16 %v11899
    %v12163 = vunpack.c.l.b16 %v11900
    %v12164 = vunpack.c.l.b16 %v11901
    %v12165 = vpack.c.b16 %v12038, %v12037
    %v12166 = vpack.c.b16 %v12040, %v12039
    %v12167 = vpack.c.b16 %v12042, %v12041
    %v12168 = vpack.c.b16 %v12044, %v12043
    %v12169 = vpack.c.b16 %v12046, %v12045
    %v12170 = vpack.c.b16 %v12048, %v12047
    %v12171 = vpack.c.b16 %v12050, %v12049
    %v12172 = vpack.c.b16 %v12052, %v12051
    %v12173 = vpack.c.b16 %v12054, %v12053
    %v12174 = vpack.c.b16 %v12056, %v12055
    %v12175 = vpack.c.b16 %v12058, %v12057
    %v12176 = vpack.c.b16 %v12060, %v12059
    %v12177 = vpack.c.b16 %v12062, %v12061
    %v12178 = vpack.c.b16 %v12064, %v12063
    %v12179 = vpack.c.b16 %v12066, %v12065
    %v12180 = vpack.c.b16 %v12068, %v12067
    %v12181 = vpack.c.b16 %v12070, %v12069
    %v12182 = vpack.c.b16 %v12072, %v12071
    %v12183 = vpack.c.b16 %v12074, %v12073
    %v12184 = vpack.c.b16 %v12076, %v12075
    %v12185 = vpack.c.b16 %v12078, %v12077
    %v12186 = vpack.c.b16 %v12080, %v12079
    %v12187 = vpack.c.b16 %v12082, %v12081
    %v12188 = vpack.c.b16 %v12084, %v12083
    %v12189 = vpack.c.b16 %v12086, %v12085
    %v12190 = vpack.c.b16 %v12088, %v12087
    %v12191 = vpack.c.b16 %v12090, %v12089
    %v12192 = vpack.c.b16 %v12092, %v12091
    %v12193 = vpack.c.b16 %v12094, %v12093
    %v12194 = vpack.c.b16 %v12096, %v12095
    %v12195 = vpack.c.b16 %v12098, %v12097
    %v12196 = vpack.c.b16 %v12100, %v12099
    %v12197 = vpack.c.b16 %v12102, %v12101
    %v12198 = vpack.c.b16 %v12104, %v12103
    %v12199 = vpack.c.b16 %v12106, %v12105
    %v12200 = vpack.c.b16 %v12108, %v12107
    %v12201 = vpack.c.b16 %v12110, %v12109
    %v12202 = vpack.c.b16 %v12112, %v12111
    %v12203 = vpack.c.b16 %v12114, %v12113
    %v12204 = vpack.c.b16 %v12116, %v12115
    %v12205 = vpack.c.b16 %v12118, %v12117
    %v12206 = vpack.c.b16 %v12120, %v12119
    %v12207 = vpack.c.b16 %v12122, %v12121
    %v12208 = vpack.c.b16 %v12124, %v12123
    %v12209 = vpack.c.b16 %v12126, %v12125
    %v12210 = vpack.c.b16 %v12128, %v12127
    %v12211 = vpack.c.b16 %v12130, %v12129
    %v12212 = vpack.c.b16 %v12132, %v12131
    %v12213 = vpack.c.b16 %v12134, %v12133
    %v12214 = vpack.c.b16 %v12136, %v12135
    %v12215 = vpack.c.b16 %v12138, %v12137
    %v12216 = vpack.c.b16 %v12140, %v12139
    %v12217 = vpack.c.b16 %v12142, %v12141
    %v12218 = vpack.c.b16 %v12144, %v12143
    %v12219 = vpack.c.b16 %v12146, %v12145
    %v12220 = vpack.c.b16 %v12148, %v12147
    %v12221 = vpack.c.b16 %v12150, %v12149
    %v12222 = vpack.c.b16 %v12152, %v12151
    %v12223 = vpack.c.b16 %v12154, %v12153
    %v12224 = vpack.c.b16 %v12156, %v12155
    %v12225 = vpack.c.b16 %v12158, %v12157
    %v12226 = vpack.c.b16 %v12160, %v12159
    %v12227 = vpack.c.b16 %v12162, %v12161
    %v12228 = vpack.c.b16 %v12164, %v12163
    %12293 = vmatprep.subr.bf16.mxu0 0
    %12294 = vmatpush1.bf16.msra.mxu0 %v12172
    %12295 = vmatprep.subr.bf16.mxu0 0
    %12296 = vmatpush1.bf16.msra.mxu0 %v12171
    %12297 = vmatprep.subr.bf16.mxu0 0
    %12298 = vmatpush1.bf16.msra.mxu0 %v12170
    %12299 = vmatprep.subr.bf16.mxu0 0
    %12300 = vmatpush1.bf16.msra.mxu0 %v12169
    %12301 = vmatprep.subr.bf16.mxu0 0
    %12302 = vmatpush1.bf16.msra.mxu0 %v12168
    %12303 = vmatprep.subr.bf16.mxu0 0
    %12304 = vmatpush1.bf16.msra.mxu0 %v12167
    %12305 = vmatprep.subr.bf16.mxu0 0
    %12306 = vmatpush1.bf16.msra.mxu0 %v12166
    %12307 = vmatprep.subr.bf16.mxu0 0
    %12308 = vmatpush1.bf16.msra.mxu0 %v12165
    %12309 = vmatprep.subr.bf16.mxu0 0
    %12310 = vmatpush2.bf16.msra.mxu0 %v12180
    %12311 = vmatprep.subr.bf16.mxu0 0
    %12312 = vmatpush2.bf16.msra.mxu0 %v12179
    %12313 = vmatprep.subr.bf16.mxu0 0
    %12314 = vmatpush2.bf16.msra.mxu0 %v12178
    %12315 = vmatprep.subr.bf16.mxu0 0
    %12316 = vmatpush2.bf16.msra.mxu0 %v12177
    %12317 = vmatprep.subr.bf16.mxu0 0
    %12318 = vmatpush2.bf16.msra.mxu0 %v12176
    %12319 = vmatprep.subr.bf16.mxu0 0
    %12320 = vmatpush2.bf16.msra.mxu0 %v12175
    %12321 = vmatprep.subr.bf16.mxu0 0
    %12322 = vmatpush2.bf16.msra.mxu0 %v12174
    %12323 = vmatprep.subr.bf16.mxu0 0
    %12324 = vmatpush2.bf16.msra.mxu0 %v12173
    %12325 = vmatprep.mubr.bf16.mxu0 %v11767
    %12326 = vmatmul.mubr.bf16.gmra.mxu0 %v11766
    %v12327 = vpop.f32.mrf.mxu0
    %v12328 = vadd.f32 %v11907, %v12327
    %v12329 = vpop.f32.mrf.mxu0
    %v12330 = vpop.f32.mrf.mxu0
    %v12331 = vpop.f32.mrf.mxu0
    %12332 = vdwg.mxu0
    %12333 = vmatprep.subr.bf16.mxu0 0
    %12334 = vmatpush1.bf16.msra.mxu0 %v12188
    %12335 = vmatprep.subr.bf16.mxu0 0
    %12336 = vmatpush1.bf16.msra.mxu0 %v12187
    %12337 = vmatprep.subr.bf16.mxu0 0
    %12338 = vmatpush1.bf16.msra.mxu0 %v12186
    %12339 = vmatprep.subr.bf16.mxu0 0
    %12340 = vmatpush1.bf16.msra.mxu0 %v12185
    %12341 = vmatprep.subr.bf16.mxu0 0
    %12342 = vmatpush1.bf16.msra.mxu0 %v12184
    %12343 = vmatprep.subr.bf16.mxu0 0
    %12344 = vmatpush1.bf16.msra.mxu0 %v12183
    %12345 = vmatprep.subr.bf16.mxu0 0
    %12346 = vmatpush1.bf16.msra.mxu0 %v12182
    %12347 = vmatprep.subr.bf16.mxu0 0
    %12348 = vmatpush1.bf16.msra.mxu0 %v12181
    %12349 = vmatprep.subr.bf16.mxu0 0
    %12350 = vmatpush2.bf16.msra.mxu0 %v12196
    %12351 = vmatprep.subr.bf16.mxu0 0
    %12352 = vmatpush2.bf16.msra.mxu0 %v12195
    %12353 = vmatprep.subr.bf16.mxu0 0
    %12354 = vmatpush2.bf16.msra.mxu0 %v12194
    %12355 = vmatprep.subr.bf16.mxu0 0
    %12356 = vmatpush2.bf16.msra.mxu0 %v12193
    %12357 = vmatprep.subr.bf16.mxu0 0
    %12358 = vmatpush2.bf16.msra.mxu0 %v12192
    %12359 = vmatprep.subr.bf16.mxu0 0
    %12360 = vmatpush2.bf16.msra.mxu0 %v12191
    %12361 = vmatprep.subr.bf16.mxu0 0
    %12362 = vmatpush2.bf16.msra.mxu0 %v12190
    %12363 = vmatprep.subr.bf16.mxu0 0
    %12364 = vmatpush2.bf16.msra.mxu0 %v12189
    %12365 = vmatprep.mubr.bf16.mxu0 %v11769
    %12366 = vmatmul.mubr.bf16.gmra.mxu0 %v11768
    %v12367 = vpop.f32.mrf.mxu0
    %v12368 = vadd.f32 %v12328, %v12367
    %v12369 = vpop.f32.mrf.mxu0
    %v12370 = vpop.f32.mrf.mxu0
    %v12371 = vpop.f32.mrf.mxu0
    %12372 = vdwg.mxu0
    %12373 = vmatprep.subr.bf16.mxu0 0
    %12374 = vmatpush1.bf16.msra.mxu0 %v12204
    %12375 = vmatprep.subr.bf16.mxu0 0
    %12376 = vmatpush1.bf16.msra.mxu0 %v12203
    %12377 = vmatprep.subr.bf16.mxu0 0
    %12378 = vmatpush1.bf16.msra.mxu0 %v12202
    %12379 = vmatprep.subr.bf16.mxu0 0
    %12380 = vmatpush1.bf16.msra.mxu0 %v12201
    %12381 = vmatprep.subr.bf16.mxu0 0
    %12382 = vmatpush1.bf16.msra.mxu0 %v12200
    %12383 = vmatprep.subr.bf16.mxu0 0
    %12384 = vmatpush1.bf16.msra.mxu0 %v12199
    %12385 = vmatprep.subr.bf16.mxu0 0
    %12386 = vmatpush1.bf16.msra.mxu0 %v12198
    %12387 = vmatprep.subr.bf16.mxu0 0
    %12388 = vmatpush1.bf16.msra.mxu0 %v12197
    %12389 = vmatprep.subr.bf16.mxu0 0
    %12390 = vmatpush2.bf16.msra.mxu0 %v12212
    %12391 = vmatprep.subr.bf16.mxu0 0
    %12392 = vmatpush2.bf16.msra.mxu0 %v12211
    %12393 = vmatprep.subr.bf16.mxu0 0
    %12394 = vmatpush2.bf16.msra.mxu0 %v12210
    %12395 = vmatprep.subr.bf16.mxu0 0
    %12396 = vmatpush2.bf16.msra.mxu0 %v12209
    %12397 = vmatprep.subr.bf16.mxu0 0
    %12398 = vmatpush2.bf16.msra.mxu0 %v12208
    %12399 = vmatprep.subr.bf16.mxu0 0
    %12400 = vmatpush2.bf16.msra.mxu0 %v12207
    %12401 = vmatprep.subr.bf16.mxu0 0
    %12402 = vmatpush2.bf16.msra.mxu0 %v12206
    %12403 = vmatprep.subr.bf16.mxu0 0
    %12404 = vmatpush2.bf16.msra.mxu0 %v12205
    %12405 = vmatprep.mubr.bf16.mxu0 %v11771
    %12406 = vmatmul.mubr.bf16.gmra.mxu0 %v11770
    %v12407 = vpop.f32.mrf.mxu0
    %v12408 = vadd.f32 %v12368, %v12407
    %v12409 = vpop.f32.mrf.mxu0
    %v12410 = vpop.f32.mrf.mxu0
    %v12411 = vpop.f32.mrf.mxu0
    %12412 = vdwg.mxu0
    %12413 = vmatprep.subr.bf16.mxu0 0
    %12414 = vmatpush1.bf16.msra.mxu0 %v12220
    %12415 = vmatprep.subr.bf16.mxu0 0
    %12416 = vmatpush1.bf16.msra.mxu0 %v12219
    %12417 = vmatprep.subr.bf16.mxu0 0
    %12418 = vmatpush1.bf16.msra.mxu0 %v12218
    %12419 = vmatprep.subr.bf16.mxu0 0
    %12420 = vmatpush1.bf16.msra.mxu0 %v12217
    %12421 = vmatprep.subr.bf16.mxu0 0
    %12422 = vmatpush1.bf16.msra.mxu0 %v12216
    %12423 = vmatprep.subr.bf16.mxu0 0
    %12424 = vmatpush1.bf16.msra.mxu0 %v12215
    %12425 = vmatprep.subr.bf16.mxu0 0
    %12426 = vmatpush1.bf16.msra.mxu0 %v12214
    %12427 = vmatprep.subr.bf16.mxu0 0
    %12428 = vmatpush1.bf16.msra.mxu0 %v12213
    %12429 = vmatprep.subr.bf16.mxu0 0
    %12430 = vmatpush2.bf16.msra.mxu0 %v12228
    %12431 = vmatprep.subr.bf16.mxu0 0
    %12432 = vmatpush2.bf16.msra.mxu0 %v12227
    %12433 = vmatprep.subr.bf16.mxu0 0
    %12434 = vmatpush2.bf16.msra.mxu0 %v12226
    %12435 = vmatprep.subr.bf16.mxu0 0
    %12436 = vmatpush2.bf16.msra.mxu0 %v12225
    %12437 = vmatprep.subr.bf16.mxu0 0
    %12438 = vmatpush2.bf16.msra.mxu0 %v12224
    %12439 = vmatprep.subr.bf16.mxu0 0
    %12440 = vmatpush2.bf16.msra.mxu0 %v12223
    %12441 = vmatprep.subr.bf16.mxu0 0
    %12442 = vmatpush2.bf16.msra.mxu0 %v12222
    %12443 = vmatprep.subr.bf16.mxu0 0
    %12444 = vmatpush2.bf16.msra.mxu0 %v12221
    %12445 = vmatprep.mubr.bf16.mxu0 %v11773
    %12446 = vmatmul.mubr.bf16.gmra.mxu0 %v11772
    %v12447 = vpop.f32.mrf.mxu0
    %v12448 = vadd.f32 %v12408, %v12447
    %v12449 = vpop.f32.mrf.mxu0
    %v12450 = vpop.f32.mrf.mxu0
    %v12451 = vpop.f32.mrf.mxu0
    %12452 = vdwg.mxu0
    %12453 = vst [vmem:[%s5] sm:$0xff] %v12448
    // Predicated region
    $region38: #{net_forward.1} parent=1 // pred_check
      _
    $region39: #{net_forward.1} parent=1 // pred_check_branch
      %12455 = sbr.rel (0) target = $region41
    $region40: #{net_forward.1} parent=1 // pred_region
      _
    $region41: #{net_forward.1} parent=1 // pred_fallthru
      _
    // Predicated region
    $region42: #{net_forward.1} parent=1 // pred_check
      _
    $region43: #{net_forward.1} parent=1 // pred_check_branch
      %12457 = sbr.rel (0) target = $region45
    $region44: #{net_forward.1} parent=1 // pred_region
      _
    $region45: #{net_forward.1} parent=1 // pred_fallthru
      _
    %12458 = vsyncpa [#allocation3], 1
    %12459 = vsyncpa [#allocation5], 1
    %12460 = vsyncpa [#allocation8], 1

</llo_original>
